<compile_context>
chip_gen: v7x
topology: tpu7x:2x2x1
jax: 0.10.0
libtpu: 0.0.40
codegen_flags: <defaults>
</compile_context>

<pallas_src>
import jax
import jax.numpy as jnp
from jax.experimental import pallas as pl
from jax.experimental.pallas import tpu as pltpu

EPS = 1e-5       # PyTorch BatchNorm2d default eps
LANE = 128       # TPU lane width; channels are padded to a multiple of this


def resblock_kernel(x_ref,
                    w0_ref, b0_ref, g0_ref, be0_ref,
                    w1_ref, b1_ref, g1_ref, be1_ref,
                    o_ref, pad_ref):
    """x_ref / o_ref: (N, H, W, Cp) f32.  wX_ref: (9*Cp, Cp) bf16 (im2col layout).
    bX/gX/beX: (1, Cp) f32.  pad_ref: (N, H+2, W+2, Cp) f32 staging scratch."""
    N, H, W, Cp = x_ref.shape
    Hp, Wp = H + 2, W + 2
    M = N * H * W
    inv_m = 1.0 / M

    x = x_ref[...]                                    # f32; also the exact residual

    # Zero the 1-pixel border of the staging buffer ONCE; it is shared by both
    # convs (the interior is fully overwritten before each conv, so there is no
    # full-buffer zero fill and no separate ypad scratch).
    zrow = jnp.zeros((N, 1, Wp, Cp), pad_ref.dtype)
    zcol = jnp.zeros((N, Hp, 1, Cp), pad_ref.dtype)
    pad_ref[:, 0:1, :, :] = zrow
    pad_ref[:, Hp - 1:Hp, :, :] = zrow
    pad_ref[:, :, 0:1, :] = zcol
    pad_ref[:, :, Wp - 1:Wp, :] = zcol

    def conv_relu_bn(w_ref, b_row, g_row, be_row):
        # im2col: 9 shifted views -> one (M, 9*Cp) bf16 patch matrix -> ONE MXU
        # matmul with f32 accumulation.
        pad = pad_ref[...]
        patches = jnp.concatenate(
            [pad[:, dy:dy + H, dx:dx + W, :].reshape(M, Cp).astype(jnp.bfloat16)
             for dy in range(3) for dx in range(3)],
            axis=1)                                              # (M, 9*Cp) bf16
        acc = jnp.dot(patches, w_ref[...],
                      preferred_element_type=jnp.float32)        # (M, Cp) f32
        v = jnp.maximum(acc + b_row, 0.0)                        # conv bias + ReLU

        # BatchNorm2d, training-mode biased batch stats, fused single pass
        # (sum + sum-of-squares in f32; post-ReLU values >= 0 so the
        #  E[v^2] - mean^2 form is well conditioned).
        s = jnp.sum(v, axis=0, keepdims=True)
        ss = jnp.sum(v * v, axis=0, keepdims=True)
        mu = s * inv_m
        var = ss * inv_m - mu * mu
        scale = jax.lax.rsqrt(var + EPS) * g_row                 # (1, Cp)
        shift = be_row - mu * scale                              # (1, Cp)
        return v * scale + shift                                 # (M, Cp) f32

    # ---- conv_0 -> ReLU -> norm_0 ----
    pad_ref[:, 1:H + 1, 1:W + 1, :] = x
    y = conv_relu_bn(w0_ref, b0_ref[...], g0_ref[...], be0_ref[...])

    # TODO(synk): Dropout2d train-mode channel masking is stochastic; applied as identity (eval mode).

    # ---- conv_1 -> ReLU -> norm_1 (reuse the same zero-bordered staging buffer) ----
    pad_ref[:, 1:H + 1, 1:W + 1, :] = y.reshape(N, H, W, Cp)
    z = conv_relu_bn(w1_ref, b1_ref[...], g1_ref[...], be1_ref[...])

    # ---- residual add, lane-dense (Cp = 128) store ----
    o_ref[...] = (z.reshape(N, H, W, Cp) + x).astype(o_ref.dtype)


def resblock_forward(x_nchw, params):
    """x_nchw: (N, C, H, W) float32, PyTorch layout."""
    w0, b0, g0, be0, w1, b1, g1, be1 = params
    N, C, H, W = x_nchw.shape
    Cp = -(-C // LANE) * LANE                        # channels padded to lane width

    # NHWC, channel-padded to Cp so every in-kernel array is lane-dense.
    x = jnp.transpose(x_nchw, (0, 2, 3, 1)).astype(jnp.float32)
    x = jnp.pad(x, ((0, 0), (0, 0), (0, 0), (0, Cp - C)))

    def pack_w(w):                                   # (Cout, Cin, 3, 3) -> (9*Cp, Cp) bf16
        cout, cin = w.shape[0], w.shape[1]
        wk = jnp.transpose(w, (2, 3, 1, 0))          # (3, 3, Cin, Cout)
        wk = jnp.pad(wk, ((0, 0), (0, 0), (0, Cp - cin), (0, Cp - cout)))
        return wk.reshape(9 * Cp, Cp).astype(jnp.bfloat16)

    def row(v, fill=0.0):                            # (C,) -> (1, Cp) f32
        v = v.astype(jnp.float32)
        return jnp.pad(v, (0, Cp - v.shape[0]), constant_values=fill).reshape(1, Cp)

    vmem = pl.BlockSpec(memory_space=pltpu.MemorySpace.VMEM)
    out = pl.pallas_call(
        resblock_kernel,
        out_shape=jax.ShapeDtypeStruct((N, H, W, Cp), jnp.float32),
        in_specs=[vmem] * 9,
        out_specs=vmem,
        scratch_shapes=[pltpu.VMEM((N, H + 2, W + 2, Cp), jnp.float32)],
        compiler_params=pltpu.CompilerParams(vmem_limit_bytes=32 * 1024 * 1024),
    )(x, pack_w(w0), row(b0), row(g0, 1.0), row(be0),
      pack_w(w1), row(b1), row(g1, 1.0), row(be1))

    # TODO(synk): for production shapes, grid over spatial/Cout tiles with a
    # cross-tile two-pass BN (sum/sumsq accumulators + pl.when init/finalize)
    # and dimension_semantics=("parallel", ..., "arbitrary") so it fits v7x's
    # 64 MiB VMEM and uses both TensorCores; the toy shape fits one invocation.

    return jnp.transpose(out[..., :C], (0, 3, 1, 2))   # drop channel pad, back to NCHW


def init_params(key, in_channels, out_channels):
    """Deterministic PyTorch-style (kaiming-uniform) init. gamma=1, beta=0."""
    k0, k1, k2, k3 = jax.random.split(key, 4)
    bnd0 = 1.0 / (in_channels * 9) ** 0.5
    bnd1 = 1.0 / (out_channels * 9) ** 0.5
    w0 = jax.random.uniform(k0, (out_channels, in_channels, 3, 3), jnp.float32, -bnd0, bnd0)
    b0 = jax.random.uniform(k1, (out_channels,), jnp.float32, -bnd0, bnd0)
    w1 = jax.random.uniform(k2, (out_channels, out_channels, 3, 3), jnp.float32, -bnd1, bnd1)
    b1 = jax.random.uniform(k3, (out_channels,), jnp.float32, -bnd1, bnd1)
    g0 = jnp.ones((out_channels,), jnp.float32)
    be0 = jnp.zeros((out_channels,), jnp.float32)
    g1 = jnp.ones((out_channels,), jnp.float32)
    be1 = jnp.zeros((out_channels,), jnp.float32)
    return (w0, b0, g0, be0, w1, b1, g1, be1)


def resblock_reference(x_nchw, params, matmul_dtype=jnp.float32):
    """Pure-JAX reference (train-mode BN, dropout identity). `matmul_dtype`
    controls the conv operand precision: f32 = exact PyTorch math; bf16 = the
    same mixed precision the kernel uses on the MXU (f32 accumulation)."""
    w0, b0, g0, be0, w1, b1, g1, be1 = params

    def conv(x, w, b):
        y = jax.lax.conv_general_dilated(
            x.astype(matmul_dtype), w.astype(matmul_dtype),
            window_strides=(1, 1), padding=((1, 1), (1, 1)),
            dimension_numbers=('NCHW', 'OIHW', 'NCHW'),
            preferred_element_type=jnp.float32)
        return y + b[None, :, None, None]

    def bn(x, g, be):
        mu = jnp.mean(x, axis=(0, 2, 3), keepdims=True)
        var = jnp.mean((x - mu) ** 2, axis=(0, 2, 3), keepdims=True)
        return (x - mu) * jax.lax.rsqrt(var + EPS) * g[None, :, None, None] \
               + be[None, :, None, None]

    y = bn(jnp.maximum(conv(x_nchw, w0, b0), 0.0), g0, be0)
    z = bn(jnp.maximum(conv(y, w1, b1), 0.0), g1, be1)
    return z + x_nchw


if __name__ == "__main__":
    N, C, H, W = 2, 4, 16, 16            # in_channels == out_channels == 4
    key = jax.random.PRNGKey(0)
    kx, kp = jax.random.split(key)
    x = jax.random.normal(kx, (N, C, H, W), jnp.float32)
    params = init_params(kp, C, C)

    out = jax.block_until_ready(resblock_forward(x, params))
    assert out.shape == (N, C, H, W)

    # Strict check vs a reference using the same bf16-operand / f32-accumulate
    # matmul precision as the kernel.
    ref_mixed = resblock_reference(x, params, matmul_dtype=jnp.bfloat16)
    err_mixed = float(jnp.max(jnp.abs(out - ref_mixed)))
    # Looser check vs pure-f32 PyTorch-equivalent math; the gap is the expected
    # bf16 MXU-operand rounding (~1e-2 on O(1), BN-normalized activations).
    ref_f32 = resblock_reference(x, params, matmul_dtype=jnp.float32)
    err_f32 = float(jnp.max(jnp.abs(out - ref_f32)))

    assert err_mixed < 1e-2, f"mismatch vs bf16-matmul reference: {err_mixed}"
    assert err_f32 < 1e-1, f"mismatch vs f32 reference: {err_f32}"
    print("KERNEL_OK")
</pallas_src>

<mosaic_0001>
module attributes {stable_mosaic.version = 11 : i64} {
  func.func @resblock_kernel(%arg0: memref<2x16x16x128xf32, #tpu.memory_space<vmem>>, %arg1: memref<1152x128xbf16, #tpu.memory_space<vmem>>, %arg2: memref<1x128xf32, #tpu.memory_space<vmem>>, %arg3: memref<1x128xf32, #tpu.memory_space<vmem>>, %arg4: memref<1x128xf32, #tpu.memory_space<vmem>>, %arg5: memref<1152x128xbf16, #tpu.memory_space<vmem>>, %arg6: memref<1x128xf32, #tpu.memory_space<vmem>>, %arg7: memref<1x128xf32, #tpu.memory_space<vmem>>, %arg8: memref<1x128xf32, #tpu.memory_space<vmem>>, %arg9: memref<2x16x16x128xf32, #tpu.memory_space<vmem>>, %arg10: memref<2x18x18x128xf32, #tpu.memory_space<vmem>>) attributes {dimension_semantics = [], scalar_prefetch = 0 : i64, scratch_operands = 1 : i64, tpu.core_type = #tpu.core_type<tc>} {
    %c0 = arith.constant 0 : index
    %c0_0 = arith.constant 0 : index
    %c0_1 = arith.constant 0 : index
    %c0_2 = arith.constant 0 : index
    %0 = vector.load %arg0[%c0, %c0_0, %c0_1, %c0_2] : memref<2x16x16x128xf32, #tpu.memory_space<vmem>>, vector<2x16x16x128xf32>
    %cst = arith.constant 0.000000e+00 : f32
    %1 = vector.broadcast %cst : f32 to vector<2x1x18x128xf32>
    %cst_3 = arith.constant 0.000000e+00 : f32
    %2 = vector.broadcast %cst_3 : f32 to vector<2x18x1x128xf32>
    %c0_4 = arith.constant 0 : index
    %c0_5 = arith.constant 0 : index
    %c0_6 = arith.constant 0 : index
    %c0_7 = arith.constant 0 : index
    %3 = vector.load %arg10[%c0_4, %c0_5, %c0_6, %c0_7] : memref<2x18x18x128xf32, #tpu.memory_space<vmem>>, vector<2x1x18x128xf32>
    tpu.vector_store %arg10[%c0_4, %c0_5, %c0_6, %c0_7], %1 {strides = array<i32>} : memref<2x18x18x128xf32, #tpu.memory_space<vmem>>, vector<2x1x18x128xf32>,
    %c0_8 = arith.constant 0 : index
    %c17 = arith.constant 17 : index
    %c0_9 = arith.constant 0 : index
    %c0_10 = arith.constant 0 : index
    %4 = vector.load %arg10[%c0_8, %c17, %c0_9, %c0_10] : memref<2x18x18x128xf32, #tpu.memory_space<vmem>>, vector<2x1x18x128xf32>
    tpu.vector_store %arg10[%c0_8, %c17, %c0_9, %c0_10], %1 {strides = array<i32>} : memref<2x18x18x128xf32, #tpu.memory_space<vmem>>, vector<2x1x18x128xf32>,
    %c0_11 = arith.constant 0 : index
    %c0_12 = arith.constant 0 : index
    %c0_13 = arith.constant 0 : index
    %c0_14 = arith.constant 0 : index
    %5 = vector.load %arg10[%c0_11, %c0_12, %c0_13, %c0_14] : memref<2x18x18x128xf32, #tpu.memory_space<vmem>>, vector<2x18x1x128xf32>
    tpu.vector_store %arg10[%c0_11, %c0_12, %c0_13, %c0_14], %2 {strides = array<i32>} : memref<2x18x18x128xf32, #tpu.memory_space<vmem>>, vector<2x18x1x128xf32>,
    %c0_15 = arith.constant 0 : index
    %c0_16 = arith.constant 0 : index
    %c17_17 = arith.constant 17 : index
    %c0_18 = arith.constant 0 : index
    %6 = vector.load %arg10[%c0_15, %c0_16, %c17_17, %c0_18] : memref<2x18x18x128xf32, #tpu.memory_space<vmem>>, vector<2x18x1x128xf32>
    tpu.vector_store %arg10[%c0_15, %c0_16, %c17_17, %c0_18], %2 {strides = array<i32>} : memref<2x18x18x128xf32, #tpu.memory_space<vmem>>, vector<2x18x1x128xf32>,
    %c0_19 = arith.constant 0 : index
    %c1 = arith.constant 1 : index
    %c1_20 = arith.constant 1 : index
    %c0_21 = arith.constant 0 : index
    %7 = vector.load %arg10[%c0_19, %c1, %c1_20, %c0_21] : memref<2x18x18x128xf32, #tpu.memory_space<vmem>>, vector<2x16x16x128xf32>
    tpu.vector_store %arg10[%c0_19, %c1, %c1_20, %c0_21], %0 {strides = array<i32>} : memref<2x18x18x128xf32, #tpu.memory_space<vmem>>, vector<2x16x16x128xf32>,
    %c0_22 = arith.constant 0 : index
    %c0_23 = arith.constant 0 : index
    %8 = vector.load %arg2[%c0_22, %c0_23] : memref<1x128xf32, #tpu.memory_space<vmem>>, vector<1x128xf32>
    %c0_24 = arith.constant 0 : index
    %c0_25 = arith.constant 0 : index
    %9 = vector.load %arg3[%c0_24, %c0_25] : memref<1x128xf32, #tpu.memory_space<vmem>>, vector<1x128xf32>
    %c0_26 = arith.constant 0 : index
    %c0_27 = arith.constant 0 : index
    %10 = vector.load %arg4[%c0_26, %c0_27] : memref<1x128xf32, #tpu.memory_space<vmem>>, vector<1x128xf32>
    %c0_28 = arith.constant 0 : index
    %c0_29 = arith.constant 0 : index
    %c0_30 = arith.constant 0 : index
    %c0_31 = arith.constant 0 : index
    %11 = vector.load %arg10[%c0_28, %c0_29, %c0_30, %c0_31] : memref<2x18x18x128xf32, #tpu.memory_space<vmem>>, vector<2x18x18x128xf32>
    %12 = vector.extract_strided_slice %11 {offsets = [0, 0, 0, 0], sizes = [2, 16, 16, 128], strides = [1, 1, 1, 1]} : vector<2x18x18x128xf32> to vector<2x16x16x128xf32>
    %13 = vector.shape_cast %12 : vector<2x16x16x128xf32> to vector<512x128xf32>
    %14 = arith.truncf %13 : vector<512x128xf32> to vector<512x128xbf16>
    %15 = vector.extract_strided_slice %11 {offsets = [0, 0, 1, 0], sizes = [2, 16, 16, 128], strides = [1, 1, 1, 1]} : vector<2x18x18x128xf32> to vector<2x16x16x128xf32>
    %16 = vector.shape_cast %15 : vector<2x16x16x128xf32> to vector<512x128xf32>
    %17 = arith.truncf %16 : vector<512x128xf32> to vector<512x128xbf16>
    %18 = vector.extract_strided_slice %11 {offsets = [0, 0, 2, 0], sizes = [2, 16, 16, 128], strides = [1, 1, 1, 1]} : vector<2x18x18x128xf32> to vector<2x16x16x128xf32>
    %19 = vector.shape_cast %18 : vector<2x16x16x128xf32> to vector<512x128xf32>
    %20 = arith.truncf %19 : vector<512x128xf32> to vector<512x128xbf16>
    %21 = vector.extract_strided_slice %11 {offsets = [0, 1, 0, 0], sizes = [2, 16, 16, 128], strides = [1, 1, 1, 1]} : vector<2x18x18x128xf32> to vector<2x16x16x128xf32>
    %22 = vector.shape_cast %21 : vector<2x16x16x128xf32> to vector<512x128xf32>
    %23 = arith.truncf %22 : vector<512x128xf32> to vector<512x128xbf16>
    %24 = vector.extract_strided_slice %11 {offsets = [0, 1, 1, 0], sizes = [2, 16, 16, 128], strides = [1, 1, 1, 1]} : vector<2x18x18x128xf32> to vector<2x16x16x128xf32>
    %25 = vector.shape_cast %24 : vector<2x16x16x128xf32> to vector<512x128xf32>
    %26 = arith.truncf %25 : vector<512x128xf32> to vector<512x128xbf16>
    %27 = vector.extract_strided_slice %11 {offsets = [0, 1, 2, 0], sizes = [2, 16, 16, 128], strides = [1, 1, 1, 1]} : vector<2x18x18x128xf32> to vector<2x16x16x128xf32>
    %28 = vector.shape_cast %27 : vector<2x16x16x128xf32> to vector<512x128xf32>
    %29 = arith.truncf %28 : vector<512x128xf32> to vector<512x128xbf16>
    %30 = vector.extract_strided_slice %11 {offsets = [0, 2, 0, 0], sizes = [2, 16, 16, 128], strides = [1, 1, 1, 1]} : vector<2x18x18x128xf32> to vector<2x16x16x128xf32>
    %31 = vector.shape_cast %30 : vector<2x16x16x128xf32> to vector<512x128xf32>
    %32 = arith.truncf %31 : vector<512x128xf32> to vector<512x128xbf16>
    %33 = vector.extract_strided_slice %11 {offsets = [0, 2, 1, 0], sizes = [2, 16, 16, 128], strides = [1, 1, 1, 1]} : vector<2x18x18x128xf32> to vector<2x16x16x128xf32>
    %34 = vector.shape_cast %33 : vector<2x16x16x128xf32> to vector<512x128xf32>
    %35 = arith.truncf %34 : vector<512x128xf32> to vector<512x128xbf16>
    %36 = vector.extract_strided_slice %11 {offsets = [0, 2, 2, 0], sizes = [2, 16, 16, 128], strides = [1, 1, 1, 1]} : vector<2x18x18x128xf32> to vector<2x16x16x128xf32>
    %37 = vector.shape_cast %36 : vector<2x16x16x128xf32> to vector<512x128xf32>
    %38 = arith.truncf %37 : vector<512x128xf32> to vector<512x128xbf16>
    %39 = tpu.concatenate %14, %17, %20, %23, %26, %29, %32, %35, %38 in 1 : vector<512x128xbf16>, vector<512x128xbf16>, vector<512x128xbf16>, vector<512x128xbf16>, vector<512x128xbf16>, vector<512x128xbf16>, vector<512x128xbf16>, vector<512x128xbf16>, vector<512x128xbf16> -> vector<512x1152xbf16>
    %c0_32 = arith.constant 0 : index
    %c0_33 = arith.constant 0 : index
    %40 = vector.load %arg1[%c0_32, %c0_33] : memref<1152x128xbf16, #tpu.memory_space<vmem>>, vector<1152x128xbf16>
    %cst_34 = arith.constant dense<0.000000e+00> : vector<512x128xf32>
    %41 = tpu.matmul %39, %40, %cst_34 {dimension_numbers = #tpu.dot_dimension_numbers<[1], [0], [0], [1], [0, 0, 1, 1], [], []>} : vector<512x1152xbf16>, vector<1152x128xbf16>, vector<512x128xf32> -> vector<512x128xf32>
    %42 = vector.broadcast %8 : vector<1x128xf32> to vector<512x128xf32>
    %43 = arith.addf %41, %42 : vector<512x128xf32>
    %cst_35 = arith.constant 0.000000e+00 : f32
    %44 = vector.broadcast %cst_35 : f32 to vector<512x128xf32>
    %45 = arith.maximumf %43, %44 : vector<512x128xf32>
    %cst_36 = arith.constant dense<0.000000e+00> : vector<128xf32>
    %46 = vector.multi_reduction <add>, %45, %cst_36 [0] : vector<512x128xf32> to vector<128xf32>
    %47 = vector.shape_cast %46 : vector<128xf32> to vector<1x128xf32>
    %48 = arith.mulf %45, %45 : vector<512x128xf32>
    %cst_37 = arith.constant dense<0.000000e+00> : vector<128xf32>
    %49 = vector.multi_reduction <add>, %48, %cst_37 [0] : vector<512x128xf32> to vector<128xf32>
    %50 = vector.shape_cast %49 : vector<128xf32> to vector<1x128xf32>
    %cst_38 = arith.constant 0.001953125 : f32
    %51 = vector.broadcast %cst_38 : f32 to vector<1x128xf32>
    %52 = arith.mulf %47, %51 : vector<1x128xf32>
    %cst_39 = arith.constant 0.001953125 : f32
    %53 = vector.broadcast %cst_39 : f32 to vector<1x128xf32>
    %54 = arith.mulf %50, %53 : vector<1x128xf32>
    %55 = arith.mulf %52, %52 : vector<1x128xf32>
    %56 = arith.subf %54, %55 : vector<1x128xf32>
    %cst_40 = arith.constant 9.99999974E-6 : f32
    %57 = vector.broadcast %cst_40 : f32 to vector<1x128xf32>
    %58 = arith.addf %56, %57 : vector<1x128xf32>
    %59 = math.rsqrt %58 : vector<1x128xf32>
    %60 = arith.mulf %59, %9 : vector<1x128xf32>
    %61 = arith.mulf %52, %60 : vector<1x128xf32>
    %62 = arith.subf %10, %61 : vector<1x128xf32>
    %63 = vector.broadcast %60 : vector<1x128xf32> to vector<512x128xf32>
    %64 = arith.mulf %45, %63 : vector<512x128xf32>
    %65 = vector.broadcast %62 : vector<1x128xf32> to vector<512x128xf32>
    %66 = arith.addf %64, %65 : vector<512x128xf32>
    %67 = vector.shape_cast %66 : vector<512x128xf32> to vector<2x16x16x128xf32>
    %c0_41 = arith.constant 0 : index
    %c1_42 = arith.constant 1 : index
    %c1_43 = arith.constant 1 : index
    %c0_44 = arith.constant 0 : index
    %68 = vector.load %arg10[%c0_41, %c1_42, %c1_43, %c0_44] : memref<2x18x18x128xf32, #tpu.memory_space<vmem>>, vector<2x16x16x128xf32>
    tpu.vector_store %arg10[%c0_41, %c1_42, %c1_43, %c0_44], %67 {strides = array<i32>} : memref<2x18x18x128xf32, #tpu.memory_space<vmem>>, vector<2x16x16x128xf32>,
    %c0_45 = arith.constant 0 : index
    %c0_46 = arith.constant 0 : index
    %69 = vector.load %arg6[%c0_45, %c0_46] : memref<1x128xf32, #tpu.memory_space<vmem>>, vector<1x128xf32>
    %c0_47 = arith.constant 0 : index
    %c0_48 = arith.constant 0 : index
    %70 = vector.load %arg7[%c0_47, %c0_48] : memref<1x128xf32, #tpu.memory_space<vmem>>, vector<1x128xf32>
    %c0_49 = arith.constant 0 : index
    %c0_50 = arith.constant 0 : index
    %71 = vector.load %arg8[%c0_49, %c0_50] : memref<1x128xf32, #tpu.memory_space<vmem>>, vector<1x128xf32>
    %c0_51 = arith.constant 0 : index
    %c0_52 = arith.constant 0 : index
    %c0_53 = arith.constant 0 : index
    %c0_54 = arith.constant 0 : index
    %72 = vector.load %arg10[%c0_51, %c0_52, %c0_53, %c0_54] : memref<2x18x18x128xf32, #tpu.memory_space<vmem>>, vector<2x18x18x128xf32>
    %73 = vector.extract_strided_slice %72 {offsets = [0, 0, 0, 0], sizes = [2, 16, 16, 128], strides = [1, 1, 1, 1]} : vector<2x18x18x128xf32> to vector<2x16x16x128xf32>
    %74 = vector.shape_cast %73 : vector<2x16x16x128xf32> to vector<512x128xf32>
    %75 = arith.truncf %74 : vector<512x128xf32> to vector<512x128xbf16>
    %76 = vector.extract_strided_slice %72 {offsets = [0, 0, 1, 0], sizes = [2, 16, 16, 128], strides = [1, 1, 1, 1]} : vector<2x18x18x128xf32> to vector<2x16x16x128xf32>
    %77 = vector.shape_cast %76 : vector<2x16x16x128xf32> to vector<512x128xf32>
    %78 = arith.truncf %77 : vector<512x128xf32> to vector<512x128xbf16>
    %79 = vector.extract_strided_slice %72 {offsets = [0, 0, 2, 0], sizes = [2, 16, 16, 128], strides = [1, 1, 1, 1]} : vector<2x18x18x128xf32> to vector<2x16x16x128xf32>
    %80 = vector.shape_cast %79 : vector<2x16x16x128xf32> to vector<512x128xf32>
    %81 = arith.truncf %80 : vector<512x128xf32> to vector<512x128xbf16>
    %82 = vector.extract_strided_slice %72 {offsets = [0, 1, 0, 0], sizes = [2, 16, 16, 128], strides = [1, 1, 1, 1]} : vector<2x18x18x128xf32> to vector<2x16x16x128xf32>
    %83 = vector.shape_cast %82 : vector<2x16x16x128xf32> to vector<512x128xf32>
    %84 = arith.truncf %83 : vector<512x128xf32> to vector<512x128xbf16>
    %85 = vector.extract_strided_slice %72 {offsets = [0, 1, 1, 0], sizes = [2, 16, 16, 128], strides = [1, 1, 1, 1]} : vector<2x18x18x128xf32> to vector<2x16x16x128xf32>
    %86 = vector.shape_cast %85 : vector<2x16x16x128xf32> to vector<512x128xf32>
    %87 = arith.truncf %86 : vector<512x128xf32> to vector<512x128xbf16>
    %88 = vector.extract_strided_slice %72 {offsets = [0, 1, 2, 0], sizes = [2, 16, 16, 128], strides = [1, 1, 1, 1]} : vector<2x18x18x128xf32> to vector<2x16x16x128xf32>
    %89 = vector.shape_cast %88 : vector<2x16x16x128xf32> to vector<512x128xf32>
    %90 = arith.truncf %89 : vector<512x128xf32> to vector<512x128xbf16>
    %91 = vector.extract_strided_slice %72 {offsets = [0, 2, 0, 0], sizes = [2, 16, 16, 128], strides = [1, 1, 1, 1]} : vector<2x18x18x128xf32> to vector<2x16x16x128xf32>
    %92 = vector.shape_cast %91 : vector<2x16x16x128xf32> to vector<512x128xf32>
    %93 = arith.truncf %92 : vector<512x128xf32> to vector<512x128xbf16>
    %94 = vector.extract_strided_slice %72 {offsets = [0, 2, 1, 0], sizes = [2, 16, 16, 128], strides = [1, 1, 1, 1]} : vector<2x18x18x128xf32> to vector<2x16x16x128xf32>
    %95 = vector.shape_cast %94 : vector<2x16x16x128xf32> to vector<512x128xf32>
    %96 = arith.truncf %95 : vector<512x128xf32> to vector<512x128xbf16>
    %97 = vector.extract_strided_slice %72 {offsets = [0, 2, 2, 0], sizes = [2, 16, 16, 128], strides = [1, 1, 1, 1]} : vector<2x18x18x128xf32> to vector<2x16x16x128xf32>
    %98 = vector.shape_cast %97 : vector<2x16x16x128xf32> to vector<512x128xf32>
    %99 = arith.truncf %98 : vector<512x128xf32> to vector<512x128xbf16>
    %100 = tpu.concatenate %75, %78, %81, %84, %87, %90, %93, %96, %99 in 1 : vector<512x128xbf16>, vector<512x128xbf16>, vector<512x128xbf16>, vector<512x128xbf16>, vector<512x128xbf16>, vector<512x128xbf16>, vector<512x128xbf16>, vector<512x128xbf16>, vector<512x128xbf16> -> vector<512x1152xbf16>
    %c0_55 = arith.constant 0 : index
    %c0_56 = arith.constant 0 : index
    %101 = vector.load %arg5[%c0_55, %c0_56] : memref<1152x128xbf16, #tpu.memory_space<vmem>>, vector<1152x128xbf16>
    %cst_57 = arith.constant dense<0.000000e+00> : vector<512x128xf32>
    %102 = tpu.matmul %100, %101, %cst_57 {dimension_numbers = #tpu.dot_dimension_numbers<[1], [0], [0], [1], [0, 0, 1, 1], [], []>} : vector<512x1152xbf16>, vector<1152x128xbf16>, vector<512x128xf32> -> vector<512x128xf32>
    %103 = vector.broadcast %69 : vector<1x128xf32> to vector<512x128xf32>
    %104 = arith.addf %102, %103 : vector<512x128xf32>
    %cst_58 = arith.constant 0.000000e+00 : f32
    %105 = vector.broadcast %cst_58 : f32 to vector<512x128xf32>
    %106 = arith.maximumf %104, %105 : vector<512x128xf32>
    %cst_59 = arith.constant dense<0.000000e+00> : vector<128xf32>
    %107 = vector.multi_reduction <add>, %106, %cst_59 [0] : vector<512x128xf32> to vector<128xf32>
    %108 = vector.shape_cast %107 : vector<128xf32> to vector<1x128xf32>
    %109 = arith.mulf %106, %106 : vector<512x128xf32>
    %cst_60 = arith.constant dense<0.000000e+00> : vector<128xf32>
    %110 = vector.multi_reduction <add>, %109, %cst_60 [0] : vector<512x128xf32> to vector<128xf32>
    %111 = vector.shape_cast %110 : vector<128xf32> to vector<1x128xf32>
    %cst_61 = arith.constant 0.001953125 : f32
    %112 = vector.broadcast %cst_61 : f32 to vector<1x128xf32>
    %113 = arith.mulf %108, %112 : vector<1x128xf32>
    %cst_62 = arith.constant 0.001953125 : f32
    %114 = vector.broadcast %cst_62 : f32 to vector<1x128xf32>
    %115 = arith.mulf %111, %114 : vector<1x128xf32>
    %116 = arith.mulf %113, %113 : vector<1x128xf32>
    %117 = arith.subf %115, %116 : vector<1x128xf32>
    %cst_63 = arith.constant 9.99999974E-6 : f32
    %118 = vector.broadcast %cst_63 : f32 to vector<1x128xf32>
    %119 = arith.addf %117, %118 : vector<1x128xf32>
    %120 = math.rsqrt %119 : vector<1x128xf32>
    %121 = arith.mulf %120, %70 : vector<1x128xf32>
    %122 = arith.mulf %113, %121 : vector<1x128xf32>
    %123 = arith.subf %71, %122 : vector<1x128xf32>
    %124 = vector.broadcast %121 : vector<1x128xf32> to vector<512x128xf32>
    %125 = arith.mulf %106, %124 : vector<512x128xf32>
    %126 = vector.broadcast %123 : vector<1x128xf32> to vector<512x128xf32>
    %127 = arith.addf %125, %126 : vector<512x128xf32>
    %128 = vector.shape_cast %127 : vector<512x128xf32> to vector<2x16x16x128xf32>
    %129 = arith.addf %128, %0 : vector<2x16x16x128xf32>
    %c0_64 = arith.constant 0 : index
    %c0_65 = arith.constant 0 : index
    %c0_66 = arith.constant 0 : index
    %c0_67 = arith.constant 0 : index
    %130 = vector.load %arg9[%c0_64, %c0_65, %c0_66, %c0_67] : memref<2x16x16x128xf32, #tpu.memory_space<vmem>>, vector<2x16x16x128xf32>
    tpu.vector_store %arg9[%c0_64, %c0_65, %c0_66, %c0_67], %129 {strides = array<i32>} : memref<2x16x16x128xf32, #tpu.memory_space<vmem>>, vector<2x16x16x128xf32>,
    return
  }
}

</mosaic_0001>

<llo_original>
// kernel: tpu_custom_call.1
$region0: #{tpu_custom_call.1}
  #allocation0 [shape = 'u32[]', space=smem, size = 0x4, offset = 0x4, fixed_abs, tag = 'smem constant byte address 0x4 - core index']
  #allocation1 [shape = 'u32[144,128]{1,0:T(1,128)}', space=vmem, size = 0x12000, scoped, tag = 'internal scratch']
  #allocation2 [shape = 'f32[2,18,18,128]{3,2,1,0:T(8,128)}', space=vmem, size = 0x6c000, scoped, tag = 'scratch operand']
  %s0 = inlined_call_operand.hbm [shape: f32[2,16,16,128], index: 0, kind: input, shape index: {}]
  %s1 = inlined_call_operand.hbm [shape: bf16[1152,128], index: 1, kind: input, shape index: {}]
  %s2 = inlined_call_operand.vmem [shape: f32[1,128], index: 2, kind: input, shape index: {}]
  %s3 = inlined_call_operand.vmem [shape: f32[1,128], index: 3, kind: input, shape index: {}]
  %s4 = inlined_call_operand.vmem [shape: f32[1,128], index: 4, kind: input, shape index: {}]
  %s5 = inlined_call_operand.hbm [shape: bf16[1152,128], index: 5, kind: input, shape index: {}]
  %s6 = inlined_call_operand.vmem [shape: f32[1,128], index: 6, kind: input, shape index: {}]
  %s7 = inlined_call_operand.vmem [shape: f32[1,128], index: 7, kind: input, shape index: {}]
  %s8 = inlined_call_operand.vmem [shape: f32[1,128], index: 8, kind: input, shape index: {}]
  %s9 = inlined_call_operand.hbm [shape: f32[2,16,16,128], index: 9, kind: output, shape index: {}]
  %s10 = sld [smem:[#allocation0]]
  $region58: #{tpu_custom_call.1} parent=0
    _
  %s12 = ssub.s32 1, %s10
  %s13 = scalar_select 0, %s12, %s10
  $region1: #{tpu_custom_call.1} parent=0
    #allocation3 [shape = 'u8[262144]{0}', space=vmem, size = 0x40000, scoped, tag = 'input window, operand 0, single buffered']
    #allocation4 [shape = 's32[1]{0}', space=sflag, size = 0x4, scoped, tag = 'scoped memory for tpu_custom_call.1']
    #allocation5 [shape = 's32[1]{0}', space=sflag, size = 0x4, scoped, tag = 'scoped memory for tpu_custom_call.1']
    #allocation6 [shape = 'u8[294912]{0}', space=vmem, size = 0x48000, scoped, tag = 'input window, operand 1, single buffered']
    #allocation7 [shape = 's32[1]{0}', space=sflag, size = 0x4, scoped, tag = 'scoped memory for tpu_custom_call.1']
    #allocation8 [shape = 'u8[294912]{0}', space=vmem, size = 0x48000, scoped, tag = 'input window, operand 5, single buffered']
    #allocation9 [shape = 'u8[262144]{0}', space=vmem, size = 0x40000, scoped, tag = 'output window, operand 0, single buffered']
    %14 = vsyncpa [#allocation4], 0
    %15 = vsyncpa [#allocation7], 0
    %16 = vsyncpa [#allocation5], 0
    // Predicated region
    $region2: #{tpu_custom_call.1} parent=1 // pred_check
      _
    $region3: #{tpu_custom_call.1} parent=1 // pred_check_branch
      %18 = sbr.rel (0) target = $region5
    $region4: #{tpu_custom_call.1} parent=1 // pred_region
      %s20 = ssub.s32 8192, 8192
      %21 = vsyncadd [#allocation4], %s20
      %s22 = sshll.u32 [#allocation3], 4
      %s23 = int_to_ptr.vmem [resolvable:$true] %s22
      %28 = dma.hbm_to_vmem [thread:$0]  %s0, 8192, %s23, [#allocation4], 128, 128, 8
    $region5: #{tpu_custom_call.1} parent=1 // pred_fallthru
      _
    // Predicated region
    $region6: #{tpu_custom_call.1} parent=1 // pred_check
      _
    $region7: #{tpu_custom_call.1} parent=1 // pred_check_branch
      %30 = sbr.rel (0) target = $region9
    $region8: #{tpu_custom_call.1} parent=1 // pred_region
      %s32 = ssub.s32 9216, 9216
      %33 = vsyncadd [#allocation7], %s32
      %s34 = sshll.u32 [#allocation6], 4
      %s35 = int_to_ptr.vmem [resolvable:$true] %s34
      %40 = dma.hbm_to_vmem [thread:$0]  %s1, 9216, %s35, [#allocation7], 64, 64, 4
    $region9: #{tpu_custom_call.1} parent=1 // pred_fallthru
      _
    // Predicated region
    $region10: #{tpu_custom_call.1} parent=1 // pred_check
      _
    $region11: #{tpu_custom_call.1} parent=1 // pred_check_branch
      %42 = sbr.rel (0) target = $region13
    $region12: #{tpu_custom_call.1} parent=1 // pred_region
      _
    $region13: #{tpu_custom_call.1} parent=1 // pred_fallthru
      _
    // Predicated region
    $region14: #{tpu_custom_call.1} parent=1 // pred_check
      _
    $region15: #{tpu_custom_call.1} parent=1 // pred_check_branch
      %44 = sbr.rel (0) target = $region17
    $region16: #{tpu_custom_call.1} parent=1 // pred_region
      _
    $region17: #{tpu_custom_call.1} parent=1 // pred_fallthru
      _
    // Predicated region
    $region18: #{tpu_custom_call.1} parent=1 // pred_check
      _
    $region19: #{tpu_custom_call.1} parent=1 // pred_check_branch
      %46 = sbr.rel (0) target = $region21
    $region20: #{tpu_custom_call.1} parent=1 // pred_region
      _
    $region21: #{tpu_custom_call.1} parent=1 // pred_fallthru
      _
    // Predicated region
    $region22: #{tpu_custom_call.1} parent=1 // pred_check
      _
    $region23: #{tpu_custom_call.1} parent=1 // pred_check_branch
      %48 = sbr.rel (0) target = $region25
    $region24: #{tpu_custom_call.1} parent=1 // pred_region
      %s50 = ssub.s32 9216, 9216
      %51 = vsyncadd [#allocation7], %s50
      %s52 = sshll.u32 [#allocation8], 4
      %s53 = int_to_ptr.vmem [resolvable:$true] %s52
      %58 = dma.hbm_to_vmem [thread:$0]  %s5, 9216, %s53, [#allocation7], 64, 64, 4
    $region25: #{tpu_custom_call.1} parent=1 // pred_fallthru
      _
    // Predicated region
    $region26: #{tpu_custom_call.1} parent=1 // pred_check
      _
    $region27: #{tpu_custom_call.1} parent=1 // pred_check_branch
      %60 = sbr.rel (0) target = $region29
    $region28: #{tpu_custom_call.1} parent=1 // pred_region
      _
    $region29: #{tpu_custom_call.1} parent=1 // pred_fallthru
      _
    // Predicated region
    $region30: #{tpu_custom_call.1} parent=1 // pred_check
      _
    $region31: #{tpu_custom_call.1} parent=1 // pred_check_branch
      %62 = sbr.rel (0) target = $region33
    $region32: #{tpu_custom_call.1} parent=1 // pred_region
      _
    $region33: #{tpu_custom_call.1} parent=1 // pred_fallthru
      _
    // Predicated region
    $region34: #{tpu_custom_call.1} parent=1 // pred_check
      _
    $region35: #{tpu_custom_call.1} parent=1 // pred_check_branch
      %64 = sbr.rel (0) target = $region37
    $region36: #{tpu_custom_call.1} parent=1 // pred_region
      _
    $region37: #{tpu_custom_call.1} parent=1 // pred_fallthru
      _
    // Predicated region
    $region38: #{tpu_custom_call.1} parent=1 // pred_check
      _
    $region39: #{tpu_custom_call.1} parent=1 // pred_check_branch
      %66 = sbr.rel (0) target = $region41
    $region40: #{tpu_custom_call.1} parent=1 // pred_region
      %67 = dma.done [#allocation4], 8192
    $region41: #{tpu_custom_call.1} parent=1 // pred_fallthru
      _
    // Predicated region
    $region42: #{tpu_custom_call.1} parent=1 // pred_check
      _
    $region43: #{tpu_custom_call.1} parent=1 // pred_check_branch
      %69 = sbr.rel (0) target = $region45
    $region44: #{tpu_custom_call.1} parent=1 // pred_region
      %70 = dma.done [#allocation7], 9216
    $region45: #{tpu_custom_call.1} parent=1 // pred_fallthru
      _
    // Predicated region
    $region46: #{tpu_custom_call.1} parent=1 // pred_check
      _
    $region47: #{tpu_custom_call.1} parent=1 // pred_check_branch
      %72 = sbr.rel (0) target = $region49
    $region48: #{tpu_custom_call.1} parent=1 // pred_region
      %73 = dma.done [#allocation7], 9216
    $region49: #{tpu_custom_call.1} parent=1 // pred_fallthru
      _
    %v75 = vld [vmem:[#allocation3] sm:$0xff]
    %v76 = vld [vmem:[#allocation3 + $0x8] sm:$0xff]
    %v77 = vld [vmem:[#allocation3 + $0x10] sm:$0xff]
    %v78 = vld [vmem:[#allocation3 + $0x18] sm:$0xff]
    %v79 = vld [vmem:[#allocation3 + $0x20] sm:$0xff]
    %v80 = vld [vmem:[#allocation3 + $0x28] sm:$0xff]
    %v81 = vld [vmem:[#allocation3 + $0x30] sm:$0xff]
    %v82 = vld [vmem:[#allocation3 + $0x38] sm:$0xff]
    %v83 = vld [vmem:[#allocation3 + $0x40] sm:$0xff]
    %v84 = vld [vmem:[#allocation3 + $0x48] sm:$0xff]
    %v85 = vld [vmem:[#allocation3 + $0x50] sm:$0xff]
    %v86 = vld [vmem:[#allocation3 + $0x58] sm:$0xff]
    %v87 = vld [vmem:[#allocation3 + $0x60] sm:$0xff]
    %v88 = vld [vmem:[#allocation3 + $0x68] sm:$0xff]
    %v89 = vld [vmem:[#allocation3 + $0x70] sm:$0xff]
    %v90 = vld [vmem:[#allocation3 + $0x78] sm:$0xff]
    %v91 = vld [vmem:[#allocation3 + $0x80] sm:$0xff]
    %v92 = vld [vmem:[#allocation3 + $0x88] sm:$0xff]
    %v93 = vld [vmem:[#allocation3 + $0x90] sm:$0xff]
    %v94 = vld [vmem:[#allocation3 + $0x98] sm:$0xff]
    %v95 = vld [vmem:[#allocation3 + $0xa0] sm:$0xff]
    %v96 = vld [vmem:[#allocation3 + $0xa8] sm:$0xff]
    %v97 = vld [vmem:[#allocation3 + $0xb0] sm:$0xff]
    %v98 = vld [vmem:[#allocation3 + $0xb8] sm:$0xff]
    %v99 = vld [vmem:[#allocation3 + $0xc0] sm:$0xff]
    %v100 = vld [vmem:[#allocation3 + $0xc8] sm:$0xff]
    %v101 = vld [vmem:[#allocation3 + $0xd0] sm:$0xff]
    %v102 = vld [vmem:[#allocation3 + $0xd8] sm:$0xff]
    %v103 = vld [vmem:[#allocation3 + $0xe0] sm:$0xff]
    %v104 = vld [vmem:[#allocation3 + $0xe8] sm:$0xff]
    %v105 = vld [vmem:[#allocation3 + $0xf0] sm:$0xff]
    %v106 = vld [vmem:[#allocation3 + $0xf8] sm:$0xff]
    %v107 = vld [vmem:[#allocation3 + $0x100] sm:$0xff]
    %v108 = vld [vmem:[#allocation3 + $0x108] sm:$0xff]
    %v109 = vld [vmem:[#allocation3 + $0x110] sm:$0xff]
    %v110 = vld [vmem:[#allocation3 + $0x118] sm:$0xff]
    %v111 = vld [vmem:[#allocation3 + $0x120] sm:$0xff]
    %v112 = vld [vmem:[#allocation3 + $0x128] sm:$0xff]
    %v113 = vld [vmem:[#allocation3 + $0x130] sm:$0xff]
    %v114 = vld [vmem:[#allocation3 + $0x138] sm:$0xff]
    %v115 = vld [vmem:[#allocation3 + $0x140] sm:$0xff]
    %v116 = vld [vmem:[#allocation3 + $0x148] sm:$0xff]
    %v117 = vld [vmem:[#allocation3 + $0x150] sm:$0xff]
    %v118 = vld [vmem:[#allocation3 + $0x158] sm:$0xff]
    %v119 = vld [vmem:[#allocation3 + $0x160] sm:$0xff]
    %v120 = vld [vmem:[#allocation3 + $0x168] sm:$0xff]
    %v121 = vld [vmem:[#allocation3 + $0x170] sm:$0xff]
    %v122 = vld [vmem:[#allocation3 + $0x178] sm:$0xff]
    %v123 = vld [vmem:[#allocation3 + $0x180] sm:$0xff]
    %v124 = vld [vmem:[#allocation3 + $0x188] sm:$0xff]
    %v125 = vld [vmem:[#allocation3 + $0x190] sm:$0xff]
    %v126 = vld [vmem:[#allocation3 + $0x198] sm:$0xff]
    %v127 = vld [vmem:[#allocation3 + $0x1a0] sm:$0xff]
    %v128 = vld [vmem:[#allocation3 + $0x1a8] sm:$0xff]
    %v129 = vld [vmem:[#allocation3 + $0x1b0] sm:$0xff]
    %v130 = vld [vmem:[#allocation3 + $0x1b8] sm:$0xff]
    %v131 = vld [vmem:[#allocation3 + $0x1c0] sm:$0xff]
    %v132 = vld [vmem:[#allocation3 + $0x1c8] sm:$0xff]
    %v133 = vld [vmem:[#allocation3 + $0x1d0] sm:$0xff]
    %v134 = vld [vmem:[#allocation3 + $0x1d8] sm:$0xff]
    %v135 = vld [vmem:[#allocation3 + $0x1e0] sm:$0xff]
    %v136 = vld [vmem:[#allocation3 + $0x1e8] sm:$0xff]
    %v137 = vld [vmem:[#allocation3 + $0x1f0] sm:$0xff]
    %v138 = vld [vmem:[#allocation3 + $0x1f8] sm:$0xff]
    %139 = vst [vmem:[#allocation2] sm:$0xff] 0.0
    %140 = vst [vmem:[#allocation2 + $0x8] sm:$0xff] 0.0
    %141 = vst [vmem:[#allocation2 + $0x10] sm:$0x3] 0.0
    %142 = vst [vmem:[#allocation2 + $0x1b0] sm:$0xff] 0.0
    %143 = vst [vmem:[#allocation2 + $0x1b8] sm:$0xff] 0.0
    %144 = vst [vmem:[#allocation2 + $0x1c0] sm:$0x3] 0.0
    %s145 = scalar_lea.vmem [#allocation2], 408
    %146 = vst [vmem:[%s145] sm:$0xff] 0.0
    %147 = vst [vmem:[%s145 + $0x8] sm:$0xff] 0.0
    %148 = vst [vmem:[%s145 + $0x10] sm:$0x3] 0.0
    %149 = vst [vmem:[%s145 + $0x1b0] sm:$0xff] 0.0
    %150 = vst [vmem:[%s145 + $0x1b8] sm:$0xff] 0.0
    %151 = vst [vmem:[%s145 + $0x1c0] sm:$0x3] 0.0
    %152 = vst [vmem:[#allocation2] sm:$0x1] 0.0
    %153 = vst [vmem:[#allocation2 + $0x18] sm:$0x1] 0.0
    %154 = vst [vmem:[#allocation2 + $0x30] sm:$0x1] 0.0
    %155 = vst [vmem:[#allocation2 + $0x48] sm:$0x1] 0.0
    %156 = vst [vmem:[#allocation2 + $0x60] sm:$0x1] 0.0
    %157 = vst [vmem:[#allocation2 + $0x78] sm:$0x1] 0.0
    %158 = vst [vmem:[#allocation2 + $0x90] sm:$0x1] 0.0
    %159 = vst [vmem:[#allocation2 + $0xa8] sm:$0x1] 0.0
    %160 = vst [vmem:[#allocation2 + $0xc0] sm:$0x1] 0.0
    %161 = vst [vmem:[#allocation2 + $0xd8] sm:$0x1] 0.0
    %162 = vst [vmem:[#allocation2 + $0xf0] sm:$0x1] 0.0
    %163 = vst [vmem:[#allocation2 + $0x108] sm:$0x1] 0.0
    %164 = vst [vmem:[#allocation2 + $0x120] sm:$0x1] 0.0
    %165 = vst [vmem:[#allocation2 + $0x138] sm:$0x1] 0.0
    %166 = vst [vmem:[#allocation2 + $0x150] sm:$0x1] 0.0
    %167 = vst [vmem:[#allocation2 + $0x168] sm:$0x1] 0.0
    %168 = vst [vmem:[#allocation2 + $0x180] sm:$0x1] 0.0
    %169 = vst [vmem:[#allocation2 + $0x198] sm:$0x1] 0.0
    %170 = vst [vmem:[#allocation2 + $0x1b0] sm:$0x1] 0.0
    %171 = vst [vmem:[#allocation2 + $0x1c8] sm:$0x1] 0.0
    %172 = vst [vmem:[#allocation2 + $0x1e0] sm:$0x1] 0.0
    %173 = vst [vmem:[#allocation2 + $0x1f8] sm:$0x1] 0.0
    %174 = vst [vmem:[#allocation2 + $0x210] sm:$0x1] 0.0
    %175 = vst [vmem:[#allocation2 + $0x228] sm:$0x1] 0.0
    %176 = vst [vmem:[#allocation2 + $0x240] sm:$0x1] 0.0
    %177 = vst [vmem:[#allocation2 + $0x258] sm:$0x1] 0.0
    %178 = vst [vmem:[#allocation2 + $0x270] sm:$0x1] 0.0
    %179 = vst [vmem:[#allocation2 + $0x288] sm:$0x1] 0.0
    %180 = vst [vmem:[#allocation2 + $0x2a0] sm:$0x1] 0.0
    %181 = vst [vmem:[#allocation2 + $0x2b8] sm:$0x1] 0.0
    %182 = vst [vmem:[#allocation2 + $0x2d0] sm:$0x1] 0.0
    %183 = vst [vmem:[#allocation2 + $0x2e8] sm:$0x1] 0.0
    %184 = vst [vmem:[#allocation2 + $0x300] sm:$0x1] 0.0
    %185 = vst [vmem:[#allocation2 + $0x318] sm:$0x1] 0.0
    %186 = vst [vmem:[#allocation2 + $0x330] sm:$0x1] 0.0
    %187 = vst [vmem:[#allocation2 + $0x348] sm:$0x1] 0.0
    %188 = vst [vmem:[#allocation2 + $0x11] sm:$0x1] 0.0
    %189 = vst [vmem:[#allocation2 + $0x29] sm:$0x1] 0.0
    %190 = vst [vmem:[#allocation2 + $0x41] sm:$0x1] 0.0
    %191 = vst [vmem:[#allocation2 + $0x59] sm:$0x1] 0.0
    %192 = vst [vmem:[#allocation2 + $0x71] sm:$0x1] 0.0
    %193 = vst [vmem:[#allocation2 + $0x89] sm:$0x1] 0.0
    %194 = vst [vmem:[#allocation2 + $0xa1] sm:$0x1] 0.0
    %195 = vst [vmem:[#allocation2 + $0xb9] sm:$0x1] 0.0
    %196 = vst [vmem:[#allocation2 + $0xd1] sm:$0x1] 0.0
    %197 = vst [vmem:[#allocation2 + $0xe9] sm:$0x1] 0.0
    %198 = vst [vmem:[#allocation2 + $0x101] sm:$0x1] 0.0
    %199 = vst [vmem:[#allocation2 + $0x119] sm:$0x1] 0.0
    %200 = vst [vmem:[#allocation2 + $0x131] sm:$0x1] 0.0
    %201 = vst [vmem:[#allocation2 + $0x149] sm:$0x1] 0.0
    %202 = vst [vmem:[#allocation2 + $0x161] sm:$0x1] 0.0
    %203 = vst [vmem:[#allocation2 + $0x179] sm:$0x1] 0.0
    %204 = vst [vmem:[#allocation2 + $0x191] sm:$0x1] 0.0
    %205 = vst [vmem:[#allocation2 + $0x1a9] sm:$0x1] 0.0
    %206 = vst [vmem:[#allocation2 + $0x1c1] sm:$0x1] 0.0
    %207 = vst [vmem:[#allocation2 + $0x1d9] sm:$0x1] 0.0
    %208 = vst [vmem:[#allocation2 + $0x1f1] sm:$0x1] 0.0
    %209 = vst [vmem:[#allocation2 + $0x209] sm:$0x1] 0.0
    %210 = vst [vmem:[#allocation2 + $0x221] sm:$0x1] 0.0
    %211 = vst [vmem:[#allocation2 + $0x239] sm:$0x1] 0.0
    %212 = vst [vmem:[#allocation2 + $0x251] sm:$0x1] 0.0
    %213 = vst [vmem:[#allocation2 + $0x269] sm:$0x1] 0.0
    %214 = vst [vmem:[#allocation2 + $0x281] sm:$0x1] 0.0
    %215 = vst [vmem:[#allocation2 + $0x299] sm:$0x1] 0.0
    %216 = vst [vmem:[#allocation2 + $0x2b1] sm:$0x1] 0.0
    %217 = vst [vmem:[#allocation2 + $0x2c9] sm:$0x1] 0.0
    %218 = vst [vmem:[#allocation2 + $0x2e1] sm:$0x1] 0.0
    %219 = vst [vmem:[#allocation2 + $0x2f9] sm:$0x1] 0.0
    %220 = vst [vmem:[#allocation2 + $0x311] sm:$0x1] 0.0
    %221 = vst [vmem:[#allocation2 + $0x329] sm:$0x1] 0.0
    %222 = vst [vmem:[#allocation2 + $0x341] sm:$0x1] 0.0
    %223 = vst [vmem:[#allocation2 + $0x359] sm:$0x1] 0.0
    %s224 = scalar_lea.vmem [#allocation2], 24
    %225 = vst [vmem:[%s224 + $0x1] sm:$0xff] %v75
    %226 = vst [vmem:[%s224 + $0x9] sm:$0xff] %v76
    %227 = vst [vmem:[%s224 + $0x19] sm:$0xff] %v77
    %228 = vst [vmem:[%s224 + $0x21] sm:$0xff] %v78
    %229 = vst [vmem:[%s224 + $0x31] sm:$0xff] %v79
    %230 = vst [vmem:[%s224 + $0x39] sm:$0xff] %v80
    %231 = vst [vmem:[%s224 + $0x49] sm:$0xff] %v81
    %232 = vst [vmem:[%s224 + $0x51] sm:$0xff] %v82
    %233 = vst [vmem:[%s224 + $0x61] sm:$0xff] %v83
    %234 = vst [vmem:[%s224 + $0x69] sm:$0xff] %v84
    %235 = vst [vmem:[%s224 + $0x79] sm:$0xff] %v85
    %236 = vst [vmem:[%s224 + $0x81] sm:$0xff] %v86
    %237 = vst [vmem:[%s224 + $0x91] sm:$0xff] %v87
    %238 = vst [vmem:[%s224 + $0x99] sm:$0xff] %v88
    %239 = vst [vmem:[%s224 + $0xa9] sm:$0xff] %v89
    %240 = vst [vmem:[%s224 + $0xb1] sm:$0xff] %v90
    %241 = vst [vmem:[%s224 + $0xc1] sm:$0xff] %v91
    %242 = vst [vmem:[%s224 + $0xc9] sm:$0xff] %v92
    %243 = vst [vmem:[%s224 + $0xd9] sm:$0xff] %v93
    %244 = vst [vmem:[%s224 + $0xe1] sm:$0xff] %v94
    %245 = vst [vmem:[%s224 + $0xf1] sm:$0xff] %v95
    %246 = vst [vmem:[%s224 + $0xf9] sm:$0xff] %v96
    %247 = vst [vmem:[%s224 + $0x109] sm:$0xff] %v97
    %248 = vst [vmem:[%s224 + $0x111] sm:$0xff] %v98
    %249 = vst [vmem:[%s224 + $0x121] sm:$0xff] %v99
    %250 = vst [vmem:[%s224 + $0x129] sm:$0xff] %v100
    %251 = vst [vmem:[%s224 + $0x139] sm:$0xff] %v101
    %252 = vst [vmem:[%s224 + $0x141] sm:$0xff] %v102
    %253 = vst [vmem:[%s224 + $0x151] sm:$0xff] %v103
    %254 = vst [vmem:[%s224 + $0x159] sm:$0xff] %v104
    %255 = vst [vmem:[%s224 + $0x169] sm:$0xff] %v105
    %256 = vst [vmem:[%s224 + $0x171] sm:$0xff] %v106
    %257 = vst [vmem:[%s224 + $0x1b1] sm:$0xff] %v107
    %258 = vst [vmem:[%s224 + $0x1b9] sm:$0xff] %v108
    %259 = vst [vmem:[%s224 + $0x1c9] sm:$0xff] %v109
    %260 = vst [vmem:[%s224 + $0x1d1] sm:$0xff] %v110
    %261 = vst [vmem:[%s224 + $0x1e1] sm:$0xff] %v111
    %262 = vst [vmem:[%s224 + $0x1e9] sm:$0xff] %v112
    %263 = vst [vmem:[%s224 + $0x1f9] sm:$0xff] %v113
    %264 = vst [vmem:[%s224 + $0x201] sm:$0xff] %v114
    %265 = vst [vmem:[%s224 + $0x211] sm:$0xff] %v115
    %266 = vst [vmem:[%s224 + $0x219] sm:$0xff] %v116
    %267 = vst [vmem:[%s224 + $0x229] sm:$0xff] %v117
    %268 = vst [vmem:[%s224 + $0x231] sm:$0xff] %v118
    %269 = vst [vmem:[%s224 + $0x241] sm:$0xff] %v119
    %270 = vst [vmem:[%s224 + $0x249] sm:$0xff] %v120
    %271 = vst [vmem:[%s224 + $0x259] sm:$0xff] %v121
    %272 = vst [vmem:[%s224 + $0x261] sm:$0xff] %v122
    %273 = vst [vmem:[%s224 + $0x271] sm:$0xff] %v123
    %274 = vst [vmem:[%s224 + $0x279] sm:$0xff] %v124
    %275 = vst [vmem:[%s224 + $0x289] sm:$0xff] %v125
    %276 = vst [vmem:[%s224 + $0x291] sm:$0xff] %v126
    %277 = vst [vmem:[%s224 + $0x2a1] sm:$0xff] %v127
    %278 = vst [vmem:[%s224 + $0x2a9] sm:$0xff] %v128
    %279 = vst [vmem:[%s224 + $0x2b9] sm:$0xff] %v129
    %280 = vst [vmem:[%s224 + $0x2c1] sm:$0xff] %v130
    %281 = vst [vmem:[%s224 + $0x2d1] sm:$0xff] %v131
    %282 = vst [vmem:[%s224 + $0x2d9] sm:$0xff] %v132
    %283 = vst [vmem:[%s224 + $0x2e9] sm:$0xff] %v133
    %284 = vst [vmem:[%s224 + $0x2f1] sm:$0xff] %v134
    %285 = vst [vmem:[%s224 + $0x301] sm:$0xff] %v135
    %286 = vst [vmem:[%s224 + $0x309] sm:$0xff] %v136
    %287 = vst [vmem:[%s224 + $0x319] sm:$0xff] %v137
    %288 = vst [vmem:[%s224 + $0x321] sm:$0xff] %v138
    %v289 = vld [vmem:[%s2] sm:$0x1]
    %v290 = vld [vmem:[%s3] sm:$0x1]
    %v291 = vld [vmem:[%s4] sm:$0x1]
    %v292 = vld [vmem:[#allocation2] sm:$0xff]
    %v293 = vld [vmem:[#allocation2 + $0x8] sm:$0xff]
    %v294 = vld [vmem:[#allocation2 + $0x10] sm:$0x3]
    %v295 = vld [vmem:[#allocation2 + $0x18] sm:$0xff]
    %v296 = vld [vmem:[#allocation2 + $0x20] sm:$0xff]
    %v297 = vld [vmem:[#allocation2 + $0x28] sm:$0x3]
    %v298 = vld [vmem:[#allocation2 + $0x30] sm:$0xff]
    %v299 = vld [vmem:[#allocation2 + $0x38] sm:$0xff]
    %v300 = vld [vmem:[#allocation2 + $0x40] sm:$0x3]
    %v301 = vld [vmem:[#allocation2 + $0x48] sm:$0xff]
    %v302 = vld [vmem:[#allocation2 + $0x50] sm:$0xff]
    %v303 = vld [vmem:[#allocation2 + $0x58] sm:$0x3]
    %v304 = vld [vmem:[#allocation2 + $0x60] sm:$0xff]
    %v305 = vld [vmem:[#allocation2 + $0x68] sm:$0xff]
    %v306 = vld [vmem:[#allocation2 + $0x70] sm:$0x3]
    %v307 = vld [vmem:[#allocation2 + $0x78] sm:$0xff]
    %v308 = vld [vmem:[#allocation2 + $0x80] sm:$0xff]
    %v309 = vld [vmem:[#allocation2 + $0x88] sm:$0x3]
    %v310 = vld [vmem:[#allocation2 + $0x90] sm:$0xff]
    %v311 = vld [vmem:[#allocation2 + $0x98] sm:$0xff]
    %v312 = vld [vmem:[#allocation2 + $0xa0] sm:$0x3]
    %v313 = vld [vmem:[#allocation2 + $0xa8] sm:$0xff]
    %v314 = vld [vmem:[#allocation2 + $0xb0] sm:$0xff]
    %v315 = vld [vmem:[#allocation2 + $0xb8] sm:$0x3]
    %v316 = vld [vmem:[#allocation2 + $0xc0] sm:$0xff]
    %v317 = vld [vmem:[#allocation2 + $0xc8] sm:$0xff]
    %v318 = vld [vmem:[#allocation2 + $0xd0] sm:$0x3]
    %v319 = vld [vmem:[#allocation2 + $0xd8] sm:$0xff]
    %v320 = vld [vmem:[#allocation2 + $0xe0] sm:$0xff]
    %v321 = vld [vmem:[#allocation2 + $0xe8] sm:$0x3]
    %v322 = vld [vmem:[#allocation2 + $0xf0] sm:$0xff]
    %v323 = vld [vmem:[#allocation2 + $0xf8] sm:$0xff]
    %v324 = vld [vmem:[#allocation2 + $0x100] sm:$0x3]
    %v325 = vld [vmem:[#allocation2 + $0x108] sm:$0xff]
    %v326 = vld [vmem:[#allocation2 + $0x110] sm:$0xff]
    %v327 = vld [vmem:[#allocation2 + $0x118] sm:$0x3]
    %v328 = vld [vmem:[#allocation2 + $0x120] sm:$0xff]
    %v329 = vld [vmem:[#allocation2 + $0x128] sm:$0xff]
    %v330 = vld [vmem:[#allocation2 + $0x130] sm:$0x3]
    %v331 = vld [vmem:[#allocation2 + $0x138] sm:$0xff]
    %v332 = vld [vmem:[#allocation2 + $0x140] sm:$0xff]
    %v333 = vld [vmem:[#allocation2 + $0x148] sm:$0x3]
    %v334 = vld [vmem:[#allocation2 + $0x150] sm:$0xff]
    %v335 = vld [vmem:[#allocation2 + $0x158] sm:$0xff]
    %v336 = vld [vmem:[#allocation2 + $0x160] sm:$0x3]
    %v337 = vld [vmem:[#allocation2 + $0x168] sm:$0xff]
    %v338 = vld [vmem:[#allocation2 + $0x170] sm:$0xff]
    %v339 = vld [vmem:[#allocation2 + $0x178] sm:$0x3]
    %v340 = vld [vmem:[#allocation2 + $0x180] sm:$0xff]
    %v341 = vld [vmem:[#allocation2 + $0x188] sm:$0xff]
    %v342 = vld [vmem:[#allocation2 + $0x190] sm:$0x3]
    %v343 = vld [vmem:[#allocation2 + $0x198] sm:$0xff]
    %v344 = vld [vmem:[#allocation2 + $0x1a0] sm:$0xff]
    %v345 = vld [vmem:[#allocation2 + $0x1a8] sm:$0x3]
    %v346 = vld [vmem:[#allocation2 + $0x1b0] sm:$0xff]
    %v347 = vld [vmem:[#allocation2 + $0x1b8] sm:$0xff]
    %v348 = vld [vmem:[#allocation2 + $0x1c0] sm:$0x3]
    %v349 = vld [vmem:[#allocation2 + $0x1c8] sm:$0xff]
    %v350 = vld [vmem:[#allocation2 + $0x1d0] sm:$0xff]
    %v351 = vld [vmem:[#allocation2 + $0x1d8] sm:$0x3]
    %v352 = vld [vmem:[#allocation2 + $0x1e0] sm:$0xff]
    %v353 = vld [vmem:[#allocation2 + $0x1e8] sm:$0xff]
    %v354 = vld [vmem:[#allocation2 + $0x1f0] sm:$0x3]
    %v355 = vld [vmem:[#allocation2 + $0x1f8] sm:$0xff]
    %v356 = vld [vmem:[#allocation2 + $0x200] sm:$0xff]
    %v357 = vld [vmem:[#allocation2 + $0x208] sm:$0x3]
    %v358 = vld [vmem:[#allocation2 + $0x210] sm:$0xff]
    %v359 = vld [vmem:[#allocation2 + $0x218] sm:$0xff]
    %v360 = vld [vmem:[#allocation2 + $0x220] sm:$0x3]
    %v361 = vld [vmem:[#allocation2 + $0x228] sm:$0xff]
    %v362 = vld [vmem:[#allocation2 + $0x230] sm:$0xff]
    %v363 = vld [vmem:[#allocation2 + $0x238] sm:$0x3]
    %v364 = vld [vmem:[#allocation2 + $0x240] sm:$0xff]
    %v365 = vld [vmem:[#allocation2 + $0x248] sm:$0xff]
    %v366 = vld [vmem:[#allocation2 + $0x250] sm:$0x3]
    %v367 = vld [vmem:[#allocation2 + $0x258] sm:$0xff]
    %v368 = vld [vmem:[#allocation2 + $0x260] sm:$0xff]
    %v369 = vld [vmem:[#allocation2 + $0x268] sm:$0x3]
    %v370 = vld [vmem:[#allocation2 + $0x270] sm:$0xff]
    %v371 = vld [vmem:[#allocation2 + $0x278] sm:$0xff]
    %v372 = vld [vmem:[#allocation2 + $0x280] sm:$0x3]
    %v373 = vld [vmem:[#allocation2 + $0x288] sm:$0xff]
    %v374 = vld [vmem:[#allocation2 + $0x290] sm:$0xff]
    %v375 = vld [vmem:[#allocation2 + $0x298] sm:$0x3]
    %v376 = vld [vmem:[#allocation2 + $0x2a0] sm:$0xff]
    %v377 = vld [vmem:[#allocation2 + $0x2a8] sm:$0xff]
    %v378 = vld [vmem:[#allocation2 + $0x2b0] sm:$0x3]
    %v379 = vld [vmem:[#allocation2 + $0x2b8] sm:$0xff]
    %v380 = vld [vmem:[#allocation2 + $0x2c0] sm:$0xff]
    %v381 = vld [vmem:[#allocation2 + $0x2c8] sm:$0x3]
    %v382 = vld [vmem:[#allocation2 + $0x2d0] sm:$0xff]
    %v383 = vld [vmem:[#allocation2 + $0x2d8] sm:$0xff]
    %v384 = vld [vmem:[#allocation2 + $0x2e0] sm:$0x3]
    %v385 = vld [vmem:[#allocation2 + $0x2e8] sm:$0xff]
    %v386 = vld [vmem:[#allocation2 + $0x2f0] sm:$0xff]
    %v387 = vld [vmem:[#allocation2 + $0x2f8] sm:$0x3]
    %v388 = vld [vmem:[#allocation2 + $0x300] sm:$0xff]
    %v389 = vld [vmem:[#allocation2 + $0x308] sm:$0xff]
    %v390 = vld [vmem:[#allocation2 + $0x310] sm:$0x3]
    %v391 = vld [vmem:[#allocation2 + $0x318] sm:$0xff]
    %v392 = vld [vmem:[#allocation2 + $0x320] sm:$0xff]
    %v393 = vld [vmem:[#allocation2 + $0x328] sm:$0x3]
    %v394 = vld [vmem:[#allocation2 + $0x330] sm:$0xff]
    %v395 = vld [vmem:[#allocation2 + $0x338] sm:$0xff]
    %v396 = vld [vmem:[#allocation2 + $0x340] sm:$0x3]
    %v397 = vld [vmem:[#allocation2 + $0x348] sm:$0xff]
    %v398 = vld [vmem:[#allocation2 + $0x350] sm:$0xff]
    %v399 = vld [vmem:[#allocation2 + $0x358] sm:$0x3]
    %v400 = vpack.c.bf16 %v293, %v292
    %v401 = vpack.c.bf16 %v296, %v295
    %v402 = vpack.c.bf16 %v299, %v298
    %v403 = vpack.c.bf16 %v302, %v301
    %v404 = vpack.c.bf16 %v305, %v304
    %v405 = vpack.c.bf16 %v308, %v307
    %v406 = vpack.c.bf16 %v311, %v310
    %v407 = vpack.c.bf16 %v314, %v313
    %v408 = vpack.c.bf16 %v317, %v316
    %v409 = vpack.c.bf16 %v320, %v319
    %v410 = vpack.c.bf16 %v323, %v322
    %v411 = vpack.c.bf16 %v326, %v325
    %v412 = vpack.c.bf16 %v329, %v328
    %v413 = vpack.c.bf16 %v332, %v331
    %v414 = vpack.c.bf16 %v335, %v334
    %v415 = vpack.c.bf16 %v338, %v337
    %v416 = vpack.c.bf16 %v347, %v346
    %v417 = vpack.c.bf16 %v350, %v349
    %v418 = vpack.c.bf16 %v353, %v352
    %v419 = vpack.c.bf16 %v356, %v355
    %v420 = vpack.c.bf16 %v359, %v358
    %v421 = vpack.c.bf16 %v362, %v361
    %v422 = vpack.c.bf16 %v365, %v364
    %v423 = vpack.c.bf16 %v368, %v367
    %v424 = vpack.c.bf16 %v371, %v370
    %v425 = vpack.c.bf16 %v374, %v373
    %v426 = vpack.c.bf16 %v377, %v376
    %v427 = vpack.c.bf16 %v380, %v379
    %v428 = vpack.c.bf16 %v383, %v382
    %v429 = vpack.c.bf16 %v386, %v385
    %v430 = vpack.c.bf16 %v389, %v388
    %v431 = vpack.c.bf16 %v392, %v391
    %vm528 = vcmask 1046528
    %v529 = vrot.slane %v292, 1
    %v530 = vrot.slane %v293, 1
    %v531 = vsel %vm528, %v529, %v530
    %v532 = vrot.slane %v294, 1
    %v533 = vsel %vm528, %v530, %v532
    %v534 = vrot.slane %v295, 1
    %v535 = vrot.slane %v296, 1
    %v536 = vsel %vm528, %v534, %v535
    %v537 = vrot.slane %v297, 1
    %v538 = vsel %vm528, %v535, %v537
    %v539 = vrot.slane %v298, 1
    %v540 = vrot.slane %v299, 1
    %v541 = vsel %vm528, %v539, %v540
    %v542 = vrot.slane %v300, 1
    %v543 = vsel %vm528, %v540, %v542
    %v544 = vrot.slane %v301, 1
    %v545 = vrot.slane %v302, 1
    %v546 = vsel %vm528, %v544, %v545
    %v547 = vrot.slane %v303, 1
    %v548 = vsel %vm528, %v545, %v547
    %v549 = vrot.slane %v304, 1
    %v550 = vrot.slane %v305, 1
    %v551 = vsel %vm528, %v549, %v550
    %v552 = vrot.slane %v306, 1
    %v553 = vsel %vm528, %v550, %v552
    %v554 = vrot.slane %v307, 1
    %v555 = vrot.slane %v308, 1
    %v556 = vsel %vm528, %v554, %v555
    %v557 = vrot.slane %v309, 1
    %v558 = vsel %vm528, %v555, %v557
    %v559 = vrot.slane %v310, 1
    %v560 = vrot.slane %v311, 1
    %v561 = vsel %vm528, %v559, %v560
    %v562 = vrot.slane %v312, 1
    %v563 = vsel %vm528, %v560, %v562
    %v564 = vrot.slane %v313, 1
    %v565 = vrot.slane %v314, 1
    %v566 = vsel %vm528, %v564, %v565
    %v567 = vrot.slane %v315, 1
    %v568 = vsel %vm528, %v565, %v567
    %v569 = vrot.slane %v316, 1
    %v570 = vrot.slane %v317, 1
    %v571 = vsel %vm528, %v569, %v570
    %v572 = vrot.slane %v318, 1
    %v573 = vsel %vm528, %v570, %v572
    %v574 = vrot.slane %v319, 1
    %v575 = vrot.slane %v320, 1
    %v576 = vsel %vm528, %v574, %v575
    %v577 = vrot.slane %v321, 1
    %v578 = vsel %vm528, %v575, %v577
    %v579 = vrot.slane %v322, 1
    %v580 = vrot.slane %v323, 1
    %v581 = vsel %vm528, %v579, %v580
    %v582 = vrot.slane %v324, 1
    %v583 = vsel %vm528, %v580, %v582
    %v584 = vrot.slane %v325, 1
    %v585 = vrot.slane %v326, 1
    %v586 = vsel %vm528, %v584, %v585
    %v587 = vrot.slane %v327, 1
    %v588 = vsel %vm528, %v585, %v587
    %v589 = vrot.slane %v328, 1
    %v590 = vrot.slane %v329, 1
    %v591 = vsel %vm528, %v589, %v590
    %v592 = vrot.slane %v330, 1
    %v593 = vsel %vm528, %v590, %v592
    %v594 = vrot.slane %v331, 1
    %v595 = vrot.slane %v332, 1
    %v596 = vsel %vm528, %v594, %v595
    %v597 = vrot.slane %v333, 1
    %v598 = vsel %vm528, %v595, %v597
    %v599 = vrot.slane %v334, 1
    %v600 = vrot.slane %v335, 1
    %v601 = vsel %vm528, %v599, %v600
    %v602 = vrot.slane %v336, 1
    %v603 = vsel %vm528, %v600, %v602
    %v604 = vrot.slane %v337, 1
    %v605 = vrot.slane %v338, 1
    %v606 = vsel %vm528, %v604, %v605
    %v607 = vrot.slane %v339, 1
    %v608 = vsel %vm528, %v605, %v607
    %v609 = vrot.slane %v346, 1
    %v610 = vrot.slane %v347, 1
    %v611 = vsel %vm528, %v609, %v610
    %v612 = vrot.slane %v348, 1
    %v613 = vsel %vm528, %v610, %v612
    %v614 = vrot.slane %v349, 1
    %v615 = vrot.slane %v350, 1
    %v616 = vsel %vm528, %v614, %v615
    %v617 = vrot.slane %v351, 1
    %v618 = vsel %vm528, %v615, %v617
    %v619 = vrot.slane %v352, 1
    %v620 = vrot.slane %v353, 1
    %v621 = vsel %vm528, %v619, %v620
    %v622 = vrot.slane %v354, 1
    %v623 = vsel %vm528, %v620, %v622
    %v624 = vrot.slane %v355, 1
    %v625 = vrot.slane %v356, 1
    %v626 = vsel %vm528, %v624, %v625
    %v627 = vrot.slane %v357, 1
    %v628 = vsel %vm528, %v625, %v627
    %v629 = vrot.slane %v358, 1
    %v630 = vrot.slane %v359, 1
    %v631 = vsel %vm528, %v629, %v630
    %v632 = vrot.slane %v360, 1
    %v633 = vsel %vm528, %v630, %v632
    %v634 = vrot.slane %v361, 1
    %v635 = vrot.slane %v362, 1
    %v636 = vsel %vm528, %v634, %v635
    %v637 = vrot.slane %v363, 1
    %v638 = vsel %vm528, %v635, %v637
    %v639 = vrot.slane %v364, 1
    %v640 = vrot.slane %v365, 1
    %v641 = vsel %vm528, %v639, %v640
    %v642 = vrot.slane %v366, 1
    %v643 = vsel %vm528, %v640, %v642
    %v644 = vrot.slane %v367, 1
    %v645 = vrot.slane %v368, 1
    %v646 = vsel %vm528, %v644, %v645
    %v647 = vrot.slane %v369, 1
    %v648 = vsel %vm528, %v645, %v647
    %v649 = vrot.slane %v370, 1
    %v650 = vrot.slane %v371, 1
    %v651 = vsel %vm528, %v649, %v650
    %v652 = vrot.slane %v372, 1
    %v653 = vsel %vm528, %v650, %v652
    %v654 = vrot.slane %v373, 1
    %v655 = vrot.slane %v374, 1
    %v656 = vsel %vm528, %v654, %v655
    %v657 = vrot.slane %v375, 1
    %v658 = vsel %vm528, %v655, %v657
    %v659 = vrot.slane %v376, 1
    %v660 = vrot.slane %v377, 1
    %v661 = vsel %vm528, %v659, %v660
    %v662 = vrot.slane %v378, 1
    %v663 = vsel %vm528, %v660, %v662
    %v664 = vrot.slane %v379, 1
    %v665 = vrot.slane %v380, 1
    %v666 = vsel %vm528, %v664, %v665
    %v667 = vrot.slane %v381, 1
    %v668 = vsel %vm528, %v665, %v667
    %v669 = vrot.slane %v382, 1
    %v670 = vrot.slane %v383, 1
    %v671 = vsel %vm528, %v669, %v670
    %v672 = vrot.slane %v384, 1
    %v673 = vsel %vm528, %v670, %v672
    %v674 = vrot.slane %v385, 1
    %v675 = vrot.slane %v386, 1
    %v676 = vsel %vm528, %v674, %v675
    %v677 = vrot.slane %v387, 1
    %v678 = vsel %vm528, %v675, %v677
    %v679 = vrot.slane %v388, 1
    %v680 = vrot.slane %v389, 1
    %v681 = vsel %vm528, %v679, %v680
    %v682 = vrot.slane %v390, 1
    %v683 = vsel %vm528, %v680, %v682
    %v684 = vrot.slane %v391, 1
    %v685 = vrot.slane %v392, 1
    %v686 = vsel %vm528, %v684, %v685
    %v687 = vrot.slane %v393, 1
    %v688 = vsel %vm528, %v685, %v687
    %v753 = vpack.c.bf16 %v533, %v531
    %v754 = vpack.c.bf16 %v538, %v536
    %v755 = vpack.c.bf16 %v543, %v541
    %v756 = vpack.c.bf16 %v548, %v546
    %v757 = vpack.c.bf16 %v553, %v551
    %v758 = vpack.c.bf16 %v558, %v556
    %v759 = vpack.c.bf16 %v563, %v561
    %v760 = vpack.c.bf16 %v568, %v566
    %v761 = vpack.c.bf16 %v573, %v571
    %v762 = vpack.c.bf16 %v578, %v576
    %v763 = vpack.c.bf16 %v583, %v581
    %v764 = vpack.c.bf16 %v588, %v586
    %v765 = vpack.c.bf16 %v593, %v591
    %v766 = vpack.c.bf16 %v598, %v596
    %v767 = vpack.c.bf16 %v603, %v601
    %v768 = vpack.c.bf16 %v608, %v606
    %v769 = vpack.c.bf16 %v613, %v611
    %v770 = vpack.c.bf16 %v618, %v616
    %v771 = vpack.c.bf16 %v623, %v621
    %v772 = vpack.c.bf16 %v628, %v626
    %v773 = vpack.c.bf16 %v633, %v631
    %v774 = vpack.c.bf16 %v638, %v636
    %v775 = vpack.c.bf16 %v643, %v641
    %v776 = vpack.c.bf16 %v648, %v646
    %v777 = vpack.c.bf16 %v653, %v651
    %v778 = vpack.c.bf16 %v658, %v656
    %v779 = vpack.c.bf16 %v663, %v661
    %v780 = vpack.c.bf16 %v668, %v666
    %v781 = vpack.c.bf16 %v673, %v671
    %v782 = vpack.c.bf16 %v678, %v676
    %v783 = vpack.c.bf16 %v683, %v681
    %v784 = vpack.c.bf16 %v688, %v686
    %vm785 = vcmask 1045504
    %v786 = vrot.slane %v292, 2
    %v787 = vrot.slane %v293, 2
    %v788 = vsel %vm785, %v786, %v787
    %v789 = vrot.slane %v294, 2
    %v790 = vsel %vm785, %v787, %v789
    %v791 = vrot.slane %v295, 2
    %v792 = vrot.slane %v296, 2
    %v793 = vsel %vm785, %v791, %v792
    %v794 = vrot.slane %v297, 2
    %v795 = vsel %vm785, %v792, %v794
    %v796 = vrot.slane %v298, 2
    %v797 = vrot.slane %v299, 2
    %v798 = vsel %vm785, %v796, %v797
    %v799 = vrot.slane %v300, 2
    %v800 = vsel %vm785, %v797, %v799
    %v801 = vrot.slane %v301, 2
    %v802 = vrot.slane %v302, 2
    %v803 = vsel %vm785, %v801, %v802
    %v804 = vrot.slane %v303, 2
    %v805 = vsel %vm785, %v802, %v804
    %v806 = vrot.slane %v304, 2
    %v807 = vrot.slane %v305, 2
    %v808 = vsel %vm785, %v806, %v807
    %v809 = vrot.slane %v306, 2
    %v810 = vsel %vm785, %v807, %v809
    %v811 = vrot.slane %v307, 2
    %v812 = vrot.slane %v308, 2
    %v813 = vsel %vm785, %v811, %v812
    %v814 = vrot.slane %v309, 2
    %v815 = vsel %vm785, %v812, %v814
    %v816 = vrot.slane %v310, 2
    %v817 = vrot.slane %v311, 2
    %v818 = vsel %vm785, %v816, %v817
    %v819 = vrot.slane %v312, 2
    %v820 = vsel %vm785, %v817, %v819
    %v821 = vrot.slane %v313, 2
    %v822 = vrot.slane %v314, 2
    %v823 = vsel %vm785, %v821, %v822
    %v824 = vrot.slane %v315, 2
    %v825 = vsel %vm785, %v822, %v824
    %v826 = vrot.slane %v316, 2
    %v827 = vrot.slane %v317, 2
    %v828 = vsel %vm785, %v826, %v827
    %v829 = vrot.slane %v318, 2
    %v830 = vsel %vm785, %v827, %v829
    %v831 = vrot.slane %v319, 2
    %v832 = vrot.slane %v320, 2
    %v833 = vsel %vm785, %v831, %v832
    %v834 = vrot.slane %v321, 2
    %v835 = vsel %vm785, %v832, %v834
    %v836 = vrot.slane %v322, 2
    %v837 = vrot.slane %v323, 2
    %v838 = vsel %vm785, %v836, %v837
    %v839 = vrot.slane %v324, 2
    %v840 = vsel %vm785, %v837, %v839
    %v841 = vrot.slane %v325, 2
    %v842 = vrot.slane %v326, 2
    %v843 = vsel %vm785, %v841, %v842
    %v844 = vrot.slane %v327, 2
    %v845 = vsel %vm785, %v842, %v844
    %v846 = vrot.slane %v328, 2
    %v847 = vrot.slane %v329, 2
    %v848 = vsel %vm785, %v846, %v847
    %v849 = vrot.slane %v330, 2
    %v850 = vsel %vm785, %v847, %v849
    %v851 = vrot.slane %v331, 2
    %v852 = vrot.slane %v332, 2
    %v853 = vsel %vm785, %v851, %v852
    %v854 = vrot.slane %v333, 2
    %v855 = vsel %vm785, %v852, %v854
    %v856 = vrot.slane %v334, 2
    %v857 = vrot.slane %v335, 2
    %v858 = vsel %vm785, %v856, %v857
    %v859 = vrot.slane %v336, 2
    %v860 = vsel %vm785, %v857, %v859
    %v861 = vrot.slane %v337, 2
    %v862 = vrot.slane %v338, 2
    %v863 = vsel %vm785, %v861, %v862
    %v864 = vrot.slane %v339, 2
    %v865 = vsel %vm785, %v862, %v864
    %v866 = vrot.slane %v346, 2
    %v867 = vrot.slane %v347, 2
    %v868 = vsel %vm785, %v866, %v867
    %v869 = vrot.slane %v348, 2
    %v870 = vsel %vm785, %v867, %v869
    %v871 = vrot.slane %v349, 2
    %v872 = vrot.slane %v350, 2
    %v873 = vsel %vm785, %v871, %v872
    %v874 = vrot.slane %v351, 2
    %v875 = vsel %vm785, %v872, %v874
    %v876 = vrot.slane %v352, 2
    %v877 = vrot.slane %v353, 2
    %v878 = vsel %vm785, %v876, %v877
    %v879 = vrot.slane %v354, 2
    %v880 = vsel %vm785, %v877, %v879
    %v881 = vrot.slane %v355, 2
    %v882 = vrot.slane %v356, 2
    %v883 = vsel %vm785, %v881, %v882
    %v884 = vrot.slane %v357, 2
    %v885 = vsel %vm785, %v882, %v884
    %v886 = vrot.slane %v358, 2
    %v887 = vrot.slane %v359, 2
    %v888 = vsel %vm785, %v886, %v887
    %v889 = vrot.slane %v360, 2
    %v890 = vsel %vm785, %v887, %v889
    %v891 = vrot.slane %v361, 2
    %v892 = vrot.slane %v362, 2
    %v893 = vsel %vm785, %v891, %v892
    %v894 = vrot.slane %v363, 2
    %v895 = vsel %vm785, %v892, %v894
    %v896 = vrot.slane %v364, 2
    %v897 = vrot.slane %v365, 2
    %v898 = vsel %vm785, %v896, %v897
    %v899 = vrot.slane %v366, 2
    %v900 = vsel %vm785, %v897, %v899
    %v901 = vrot.slane %v367, 2
    %v902 = vrot.slane %v368, 2
    %v903 = vsel %vm785, %v901, %v902
    %v904 = vrot.slane %v369, 2
    %v905 = vsel %vm785, %v902, %v904
    %v906 = vrot.slane %v370, 2
    %v907 = vrot.slane %v371, 2
    %v908 = vsel %vm785, %v906, %v907
    %v909 = vrot.slane %v372, 2
    %v910 = vsel %vm785, %v907, %v909
    %v911 = vrot.slane %v373, 2
    %v912 = vrot.slane %v374, 2
    %v913 = vsel %vm785, %v911, %v912
    %v914 = vrot.slane %v375, 2
    %v915 = vsel %vm785, %v912, %v914
    %v916 = vrot.slane %v376, 2
    %v917 = vrot.slane %v377, 2
    %v918 = vsel %vm785, %v916, %v917
    %v919 = vrot.slane %v378, 2
    %v920 = vsel %vm785, %v917, %v919
    %v921 = vrot.slane %v379, 2
    %v922 = vrot.slane %v380, 2
    %v923 = vsel %vm785, %v921, %v922
    %v924 = vrot.slane %v381, 2
    %v925 = vsel %vm785, %v922, %v924
    %v926 = vrot.slane %v382, 2
    %v927 = vrot.slane %v383, 2
    %v928 = vsel %vm785, %v926, %v927
    %v929 = vrot.slane %v384, 2
    %v930 = vsel %vm785, %v927, %v929
    %v931 = vrot.slane %v385, 2
    %v932 = vrot.slane %v386, 2
    %v933 = vsel %vm785, %v931, %v932
    %v934 = vrot.slane %v387, 2
    %v935 = vsel %vm785, %v932, %v934
    %v936 = vrot.slane %v388, 2
    %v937 = vrot.slane %v389, 2
    %v938 = vsel %vm785, %v936, %v937
    %v939 = vrot.slane %v390, 2
    %v940 = vsel %vm785, %v937, %v939
    %v941 = vrot.slane %v391, 2
    %v942 = vrot.slane %v392, 2
    %v943 = vsel %vm785, %v941, %v942
    %v944 = vrot.slane %v393, 2
    %v945 = vsel %vm785, %v942, %v944
    %v1010 = vpack.c.bf16 %v790, %v788
    %v1011 = vpack.c.bf16 %v795, %v793
    %v1012 = vpack.c.bf16 %v800, %v798
    %v1013 = vpack.c.bf16 %v805, %v803
    %v1014 = vpack.c.bf16 %v810, %v808
    %v1015 = vpack.c.bf16 %v815, %v813
    %v1016 = vpack.c.bf16 %v820, %v818
    %v1017 = vpack.c.bf16 %v825, %v823
    %v1018 = vpack.c.bf16 %v830, %v828
    %v1019 = vpack.c.bf16 %v835, %v833
    %v1020 = vpack.c.bf16 %v840, %v838
    %v1021 = vpack.c.bf16 %v845, %v843
    %v1022 = vpack.c.bf16 %v850, %v848
    %v1023 = vpack.c.bf16 %v855, %v853
    %v1024 = vpack.c.bf16 %v860, %v858
    %v1025 = vpack.c.bf16 %v865, %v863
    %v1026 = vpack.c.bf16 %v870, %v868
    %v1027 = vpack.c.bf16 %v875, %v873
    %v1028 = vpack.c.bf16 %v880, %v878
    %v1029 = vpack.c.bf16 %v885, %v883
    %v1030 = vpack.c.bf16 %v890, %v888
    %v1031 = vpack.c.bf16 %v895, %v893
    %v1032 = vpack.c.bf16 %v900, %v898
    %v1033 = vpack.c.bf16 %v905, %v903
    %v1034 = vpack.c.bf16 %v910, %v908
    %v1035 = vpack.c.bf16 %v915, %v913
    %v1036 = vpack.c.bf16 %v920, %v918
    %v1037 = vpack.c.bf16 %v925, %v923
    %v1038 = vpack.c.bf16 %v930, %v928
    %v1039 = vpack.c.bf16 %v935, %v933
    %v1040 = vpack.c.bf16 %v940, %v938
    %v1041 = vpack.c.bf16 %v945, %v943
    %v1042 = vpack.c.bf16 %v341, %v340
    %v1043 = vpack.c.bf16 %v395, %v394
    %v1050 = vrot.slane %v340, 1
    %v1051 = vrot.slane %v341, 1
    %v1052 = vsel %vm528, %v1050, %v1051
    %v1053 = vrot.slane %v342, 1
    %v1054 = vsel %vm528, %v1051, %v1053
    %v1055 = vrot.slane %v394, 1
    %v1056 = vrot.slane %v395, 1
    %v1057 = vsel %vm528, %v1055, %v1056
    %v1058 = vrot.slane %v396, 1
    %v1059 = vsel %vm528, %v1056, %v1058
    %v1064 = vpack.c.bf16 %v1054, %v1052
    %v1065 = vpack.c.bf16 %v1059, %v1057
    %v1066 = vrot.slane %v340, 2
    %v1067 = vrot.slane %v341, 2
    %v1068 = vsel %vm785, %v1066, %v1067
    %v1069 = vrot.slane %v342, 2
    %v1070 = vsel %vm785, %v1067, %v1069
    %v1071 = vrot.slane %v394, 2
    %v1072 = vrot.slane %v395, 2
    %v1073 = vsel %vm785, %v1071, %v1072
    %v1074 = vrot.slane %v396, 2
    %v1075 = vsel %vm785, %v1072, %v1074
    %v1080 = vpack.c.bf16 %v1070, %v1068
    %v1081 = vpack.c.bf16 %v1075, %v1073
    %v1082 = vpack.c.bf16 %v344, %v343
    %v1083 = vpack.c.bf16 %v398, %v397
    %v1090 = vrot.slane %v343, 1
    %v1091 = vrot.slane %v344, 1
    %v1092 = vsel %vm528, %v1090, %v1091
    %v1093 = vrot.slane %v345, 1
    %v1094 = vsel %vm528, %v1091, %v1093
    %v1095 = vrot.slane %v397, 1
    %v1096 = vrot.slane %v398, 1
    %v1097 = vsel %vm528, %v1095, %v1096
    %v1098 = vrot.slane %v399, 1
    %v1099 = vsel %vm528, %v1096, %v1098
    %v1104 = vpack.c.bf16 %v1094, %v1092
    %v1105 = vpack.c.bf16 %v1099, %v1097
    %v1106 = vrot.slane %v343, 2
    %v1107 = vrot.slane %v344, 2
    %v1108 = vsel %vm785, %v1106, %v1107
    %v1109 = vrot.slane %v345, 2
    %v1110 = vsel %vm785, %v1107, %v1109
    %v1111 = vrot.slane %v397, 2
    %v1112 = vrot.slane %v398, 2
    %v1113 = vsel %vm785, %v1111, %v1112
    %v1114 = vrot.slane %v399, 2
    %v1115 = vsel %vm785, %v1112, %v1114
    %v1120 = vpack.c.bf16 %v1110, %v1108
    %v1121 = vpack.c.bf16 %v1115, %v1113
    %v1122 = vld [vmem:[#allocation6] sm:$0xf]
    %v1123 = vld [vmem:[#allocation6 + $0x4] sm:$0xf]
    %v1124 = vld [vmem:[#allocation6 + $0x8] sm:$0xf]
    %v1125 = vld [vmem:[#allocation6 + $0xc] sm:$0xf]
    %v1126 = vld [vmem:[#allocation6 + $0x10] sm:$0xf]
    %v1127 = vld [vmem:[#allocation6 + $0x14] sm:$0xf]
    %v1128 = vld [vmem:[#allocation6 + $0x18] sm:$0xf]
    %v1129 = vld [vmem:[#allocation6 + $0x1c] sm:$0xf]
    %v1130 = vld [vmem:[#allocation6 + $0x20] sm:$0xf]
    %v1131 = vld [vmem:[#allocation6 + $0x24] sm:$0xf]
    %v1132 = vld [vmem:[#allocation6 + $0x28] sm:$0xf]
    %v1133 = vld [vmem:[#allocation6 + $0x2c] sm:$0xf]
    %v1134 = vld [vmem:[#allocation6 + $0x30] sm:$0xf]
    %v1135 = vld [vmem:[#allocation6 + $0x34] sm:$0xf]
    %v1136 = vld [vmem:[#allocation6 + $0x38] sm:$0xf]
    %v1137 = vld [vmem:[#allocation6 + $0x3c] sm:$0xf]
    %v1138 = vld [vmem:[#allocation6 + $0x40] sm:$0xf]
    %v1139 = vld [vmem:[#allocation6 + $0x44] sm:$0xf]
    %v1140 = vld [vmem:[#allocation6 + $0x48] sm:$0xf]
    %v1141 = vld [vmem:[#allocation6 + $0x4c] sm:$0xf]
    %v1142 = vld [vmem:[#allocation6 + $0x50] sm:$0xf]
    %v1143 = vld [vmem:[#allocation6 + $0x54] sm:$0xf]
    %v1144 = vld [vmem:[#allocation6 + $0x58] sm:$0xf]
    %v1145 = vld [vmem:[#allocation6 + $0x5c] sm:$0xf]
    %v1146 = vld [vmem:[#allocation6 + $0x60] sm:$0xf]
    %v1147 = vld [vmem:[#allocation6 + $0x64] sm:$0xf]
    %v1148 = vld [vmem:[#allocation6 + $0x68] sm:$0xf]
    %v1149 = vld [vmem:[#allocation6 + $0x6c] sm:$0xf]
    %v1150 = vld [vmem:[#allocation6 + $0x70] sm:$0xf]
    %v1151 = vld [vmem:[#allocation6 + $0x74] sm:$0xf]
    %v1152 = vld [vmem:[#allocation6 + $0x78] sm:$0xf]
    %v1153 = vld [vmem:[#allocation6 + $0x7c] sm:$0xf]
    %v1154 = vld [vmem:[#allocation6 + $0x80] sm:$0xf]
    %v1155 = vld [vmem:[#allocation6 + $0x84] sm:$0xf]
    %v1156 = vld [vmem:[#allocation6 + $0x88] sm:$0xf]
    %v1157 = vld [vmem:[#allocation6 + $0x8c] sm:$0xf]
    %v1158 = vld [vmem:[#allocation6 + $0x90] sm:$0xf]
    %v1159 = vld [vmem:[#allocation6 + $0x94] sm:$0xf]
    %v1160 = vld [vmem:[#allocation6 + $0x98] sm:$0xf]
    %v1161 = vld [vmem:[#allocation6 + $0x9c] sm:$0xf]
    %v1162 = vld [vmem:[#allocation6 + $0xa0] sm:$0xf]
    %v1163 = vld [vmem:[#allocation6 + $0xa4] sm:$0xf]
    %v1164 = vld [vmem:[#allocation6 + $0xa8] sm:$0xf]
    %v1165 = vld [vmem:[#allocation6 + $0xac] sm:$0xf]
    %v1166 = vld [vmem:[#allocation6 + $0xb0] sm:$0xf]
    %v1167 = vld [vmem:[#allocation6 + $0xb4] sm:$0xf]
    %v1168 = vld [vmem:[#allocation6 + $0xb8] sm:$0xf]
    %v1169 = vld [vmem:[#allocation6 + $0xbc] sm:$0xf]
    %v1170 = vld [vmem:[#allocation6 + $0xc0] sm:$0xf]
    %v1171 = vld [vmem:[#allocation6 + $0xc4] sm:$0xf]
    %v1172 = vld [vmem:[#allocation6 + $0xc8] sm:$0xf]
    %v1173 = vld [vmem:[#allocation6 + $0xcc] sm:$0xf]
    %v1174 = vld [vmem:[#allocation6 + $0xd0] sm:$0xf]
    %v1175 = vld [vmem:[#allocation6 + $0xd4] sm:$0xf]
    %v1176 = vld [vmem:[#allocation6 + $0xd8] sm:$0xf]
    %v1177 = vld [vmem:[#allocation6 + $0xdc] sm:$0xf]
    %v1178 = vld [vmem:[#allocation6 + $0xe0] sm:$0xf]
    %v1179 = vld [vmem:[#allocation6 + $0xe4] sm:$0xf]
    %v1180 = vld [vmem:[#allocation6 + $0xe8] sm:$0xf]
    %v1181 = vld [vmem:[#allocation6 + $0xec] sm:$0xf]
    %v1182 = vld [vmem:[#allocation6 + $0xf0] sm:$0xf]
    %v1183 = vld [vmem:[#allocation6 + $0xf4] sm:$0xf]
    %v1184 = vld [vmem:[#allocation6 + $0xf8] sm:$0xf]
    %v1185 = vld [vmem:[#allocation6 + $0xfc] sm:$0xf]
    %v1186 = vld [vmem:[#allocation6 + $0x100] sm:$0xf]
    %v1187 = vld [vmem:[#allocation6 + $0x104] sm:$0xf]
    %v1188 = vld [vmem:[#allocation6 + $0x108] sm:$0xf]
    %v1189 = vld [vmem:[#allocation6 + $0x10c] sm:$0xf]
    %v1190 = vld [vmem:[#allocation6 + $0x110] sm:$0xf]
    %v1191 = vld [vmem:[#allocation6 + $0x114] sm:$0xf]
    %v1192 = vld [vmem:[#allocation6 + $0x118] sm:$0xf]
    %v1193 = vld [vmem:[#allocation6 + $0x11c] sm:$0xf]
    %v1194 = vld [vmem:[#allocation6 + $0x120] sm:$0xf]
    %v1195 = vld [vmem:[#allocation6 + $0x124] sm:$0xf]
    %v1196 = vld [vmem:[#allocation6 + $0x128] sm:$0xf]
    %v1197 = vld [vmem:[#allocation6 + $0x12c] sm:$0xf]
    %v1198 = vld [vmem:[#allocation6 + $0x130] sm:$0xf]
    %v1199 = vld [vmem:[#allocation6 + $0x134] sm:$0xf]
    %v1200 = vld [vmem:[#allocation6 + $0x138] sm:$0xf]
    %v1201 = vld [vmem:[#allocation6 + $0x13c] sm:$0xf]
    %v1202 = vld [vmem:[#allocation6 + $0x140] sm:$0xf]
    %v1203 = vld [vmem:[#allocation6 + $0x144] sm:$0xf]
    %v1204 = vld [vmem:[#allocation6 + $0x148] sm:$0xf]
    %v1205 = vld [vmem:[#allocation6 + $0x14c] sm:$0xf]
    %v1206 = vld [vmem:[#allocation6 + $0x150] sm:$0xf]
    %v1207 = vld [vmem:[#allocation6 + $0x154] sm:$0xf]
    %v1208 = vld [vmem:[#allocation6 + $0x158] sm:$0xf]
    %v1209 = vld [vmem:[#allocation6 + $0x15c] sm:$0xf]
    %v1210 = vld [vmem:[#allocation6 + $0x160] sm:$0xf]
    %v1211 = vld [vmem:[#allocation6 + $0x164] sm:$0xf]
    %v1212 = vld [vmem:[#allocation6 + $0x168] sm:$0xf]
    %v1213 = vld [vmem:[#allocation6 + $0x16c] sm:$0xf]
    %v1214 = vld [vmem:[#allocation6 + $0x170] sm:$0xf]
    %v1215 = vld [vmem:[#allocation6 + $0x174] sm:$0xf]
    %v1216 = vld [vmem:[#allocation6 + $0x178] sm:$0xf]
    %v1217 = vld [vmem:[#allocation6 + $0x17c] sm:$0xf]
    %v1218 = vld [vmem:[#allocation6 + $0x180] sm:$0xf]
    %v1219 = vld [vmem:[#allocation6 + $0x184] sm:$0xf]
    %v1220 = vld [vmem:[#allocation6 + $0x188] sm:$0xf]
    %v1221 = vld [vmem:[#allocation6 + $0x18c] sm:$0xf]
    %v1222 = vld [vmem:[#allocation6 + $0x190] sm:$0xf]
    %v1223 = vld [vmem:[#allocation6 + $0x194] sm:$0xf]
    %v1224 = vld [vmem:[#allocation6 + $0x198] sm:$0xf]
    %v1225 = vld [vmem:[#allocation6 + $0x19c] sm:$0xf]
    %v1226 = vld [vmem:[#allocation6 + $0x1a0] sm:$0xf]
    %v1227 = vld [vmem:[#allocation6 + $0x1a4] sm:$0xf]
    %v1228 = vld [vmem:[#allocation6 + $0x1a8] sm:$0xf]
    %v1229 = vld [vmem:[#allocation6 + $0x1ac] sm:$0xf]
    %v1230 = vld [vmem:[#allocation6 + $0x1b0] sm:$0xf]
    %v1231 = vld [vmem:[#allocation6 + $0x1b4] sm:$0xf]
    %v1232 = vld [vmem:[#allocation6 + $0x1b8] sm:$0xf]
    %v1233 = vld [vmem:[#allocation6 + $0x1bc] sm:$0xf]
    %v1234 = vld [vmem:[#allocation6 + $0x1c0] sm:$0xf]
    %v1235 = vld [vmem:[#allocation6 + $0x1c4] sm:$0xf]
    %v1236 = vld [vmem:[#allocation6 + $0x1c8] sm:$0xf]
    %v1237 = vld [vmem:[#allocation6 + $0x1cc] sm:$0xf]
    %v1238 = vld [vmem:[#allocation6 + $0x1d0] sm:$0xf]
    %v1239 = vld [vmem:[#allocation6 + $0x1d4] sm:$0xf]
    %v1240 = vld [vmem:[#allocation6 + $0x1d8] sm:$0xf]
    %v1241 = vld [vmem:[#allocation6 + $0x1dc] sm:$0xf]
    %v1242 = vld [vmem:[#allocation6 + $0x1e0] sm:$0xf]
    %v1243 = vld [vmem:[#allocation6 + $0x1e4] sm:$0xf]
    %v1244 = vld [vmem:[#allocation6 + $0x1e8] sm:$0xf]
    %v1245 = vld [vmem:[#allocation6 + $0x1ec] sm:$0xf]
    %v1246 = vld [vmem:[#allocation6 + $0x1f0] sm:$0xf]
    %v1247 = vld [vmem:[#allocation6 + $0x1f4] sm:$0xf]
    %v1248 = vld [vmem:[#allocation6 + $0x1f8] sm:$0xf]
    %v1249 = vld [vmem:[#allocation6 + $0x1fc] sm:$0xf]
    %v1250 = vld [vmem:[#allocation6 + $0x200] sm:$0xf]
    %v1251 = vld [vmem:[#allocation6 + $0x204] sm:$0xf]
    %v1252 = vld [vmem:[#allocation6 + $0x208] sm:$0xf]
    %v1253 = vld [vmem:[#allocation6 + $0x20c] sm:$0xf]
    %v1254 = vld [vmem:[#allocation6 + $0x210] sm:$0xf]
    %v1255 = vld [vmem:[#allocation6 + $0x214] sm:$0xf]
    %v1256 = vld [vmem:[#allocation6 + $0x218] sm:$0xf]
    %v1257 = vld [vmem:[#allocation6 + $0x21c] sm:$0xf]
    %v1258 = vld [vmem:[#allocation6 + $0x220] sm:$0xf]
    %v1259 = vld [vmem:[#allocation6 + $0x224] sm:$0xf]
    %v1260 = vld [vmem:[#allocation6 + $0x228] sm:$0xf]
    %v1261 = vld [vmem:[#allocation6 + $0x22c] sm:$0xf]
    %v1262 = vld [vmem:[#allocation6 + $0x230] sm:$0xf]
    %v1263 = vld [vmem:[#allocation6 + $0x234] sm:$0xf]
    %v1264 = vld [vmem:[#allocation6 + $0x238] sm:$0xf]
    %v1265 = vld [vmem:[#allocation6 + $0x23c] sm:$0xf]
    %v1267 = vlaneseq
    %v1268 = vshrl.u32 %v1267, 7
    %v1269 = vsub.s32 0, %v1268
    %v1270 = vrot.slane %v289, %v1269
    %v1416 = vunpack.c.l.b16 %v1122
    %v1417 = vunpack.c.l.b16 %v1123
    %v1418 = vunpack.c.l.b16 %v1124
    %v1419 = vunpack.c.l.b16 %v1125
    %v1420 = vunpack.c.l.b16 %v1126
    %v1421 = vunpack.c.l.b16 %v1127
    %v1422 = vunpack.c.l.b16 %v1128
    %v1423 = vunpack.c.l.b16 %v1129
    %v1424 = vunpack.c.l.b16 %v1130
    %v1425 = vunpack.c.l.b16 %v1131
    %v1426 = vunpack.c.l.b16 %v1132
    %v1427 = vunpack.c.l.b16 %v1133
    %v1428 = vunpack.c.l.b16 %v1134
    %v1429 = vunpack.c.l.b16 %v1135
    %v1430 = vunpack.c.l.b16 %v1136
    %v1431 = vunpack.c.l.b16 %v1137
    %v1432 = vunpack.c.l.b16 %v1138
    %v1433 = vunpack.c.l.b16 %v1139
    %v1434 = vunpack.c.l.b16 %v1140
    %v1435 = vunpack.c.l.b16 %v1141
    %v1436 = vunpack.c.l.b16 %v1142
    %v1437 = vunpack.c.l.b16 %v1143
    %v1438 = vunpack.c.l.b16 %v1144
    %v1439 = vunpack.c.l.b16 %v1145
    %v1440 = vunpack.c.l.b16 %v1146
    %v1441 = vunpack.c.l.b16 %v1147
    %v1442 = vunpack.c.l.b16 %v1148
    %v1443 = vunpack.c.l.b16 %v1149
    %v1444 = vunpack.c.l.b16 %v1150
    %v1445 = vunpack.c.l.b16 %v1151
    %v1446 = vunpack.c.l.b16 %v1152
    %v1447 = vunpack.c.l.b16 %v1153
    %v1448 = vunpack.c.l.b16 %v1154
    %v1449 = vunpack.c.l.b16 %v1155
    %v1450 = vunpack.c.l.b16 %v1156
    %v1451 = vunpack.c.l.b16 %v1157
    %v1452 = vunpack.c.l.b16 %v1158
    %v1453 = vunpack.c.l.b16 %v1159
    %v1454 = vunpack.c.l.b16 %v1160
    %v1455 = vunpack.c.l.b16 %v1161
    %v1456 = vunpack.c.l.b16 %v1162
    %v1457 = vunpack.c.l.b16 %v1163
    %v1458 = vunpack.c.l.b16 %v1164
    %v1459 = vunpack.c.l.b16 %v1165
    %v1460 = vunpack.c.l.b16 %v1166
    %v1461 = vunpack.c.l.b16 %v1167
    %v1462 = vunpack.c.l.b16 %v1168
    %v1463 = vunpack.c.l.b16 %v1169
    %v1464 = vunpack.c.l.b16 %v1170
    %v1465 = vunpack.c.l.b16 %v1171
    %v1466 = vunpack.c.l.b16 %v1172
    %v1467 = vunpack.c.l.b16 %v1173
    %v1468 = vunpack.c.l.b16 %v1174
    %v1469 = vunpack.c.l.b16 %v1175
    %v1470 = vunpack.c.l.b16 %v1176
    %v1471 = vunpack.c.l.b16 %v1177
    %v1472 = vunpack.c.l.b16 %v1178
    %v1473 = vunpack.c.l.b16 %v1179
    %v1474 = vunpack.c.l.b16 %v1180
    %v1475 = vunpack.c.l.b16 %v1181
    %v1476 = vunpack.c.l.b16 %v1182
    %v1477 = vunpack.c.l.b16 %v1183
    %v1478 = vunpack.c.l.b16 %v1184
    %v1479 = vunpack.c.l.b16 %v1185
    %v1480 = vunpack.c.l.b16 %v1186
    %v1481 = vunpack.c.l.b16 %v1187
    %v1482 = vunpack.c.l.b16 %v1188
    %v1483 = vunpack.c.l.b16 %v1189
    %v1484 = vunpack.c.l.b16 %v1190
    %v1485 = vunpack.c.l.b16 %v1191
    %v1486 = vunpack.c.l.b16 %v1192
    %v1487 = vunpack.c.l.b16 %v1193
    %v1488 = vunpack.c.l.b16 %v1194
    %v1489 = vunpack.c.l.b16 %v1195
    %v1490 = vunpack.c.l.b16 %v1196
    %v1491 = vunpack.c.l.b16 %v1197
    %v1492 = vunpack.c.l.b16 %v1198
    %v1493 = vunpack.c.l.b16 %v1199
    %v1494 = vunpack.c.l.b16 %v1200
    %v1495 = vunpack.c.l.b16 %v1201
    %v1496 = vunpack.c.l.b16 %v1202
    %v1497 = vunpack.c.l.b16 %v1203
    %v1498 = vunpack.c.l.b16 %v1204
    %v1499 = vunpack.c.l.b16 %v1205
    %v1500 = vunpack.c.l.b16 %v1206
    %v1501 = vunpack.c.l.b16 %v1207
    %v1502 = vunpack.c.l.b16 %v1208
    %v1503 = vunpack.c.l.b16 %v1209
    %v1504 = vunpack.c.l.b16 %v1210
    %v1505 = vunpack.c.l.b16 %v1211
    %v1506 = vunpack.c.l.b16 %v1212
    %v1507 = vunpack.c.l.b16 %v1213
    %v1508 = vunpack.c.l.b16 %v1214
    %v1509 = vunpack.c.l.b16 %v1215
    %v1510 = vunpack.c.l.b16 %v1216
    %v1511 = vunpack.c.l.b16 %v1217
    %v1512 = vunpack.c.l.b16 %v1218
    %v1513 = vunpack.c.l.b16 %v1219
    %v1514 = vunpack.c.l.b16 %v1220
    %v1515 = vunpack.c.l.b16 %v1221
    %v1516 = vunpack.c.l.b16 %v1222
    %v1517 = vunpack.c.l.b16 %v1223
    %v1518 = vunpack.c.l.b16 %v1224
    %v1519 = vunpack.c.l.b16 %v1225
    %v1520 = vunpack.c.l.b16 %v1226
    %v1521 = vunpack.c.l.b16 %v1227
    %v1522 = vunpack.c.l.b16 %v1228
    %v1523 = vunpack.c.l.b16 %v1229
    %v1524 = vunpack.c.l.b16 %v1230
    %v1525 = vunpack.c.l.b16 %v1231
    %v1526 = vunpack.c.l.b16 %v1232
    %v1527 = vunpack.c.l.b16 %v1233
    %v1528 = vunpack.c.l.b16 %v1234
    %v1529 = vunpack.c.l.b16 %v1235
    %v1530 = vunpack.c.l.b16 %v1236
    %v1531 = vunpack.c.l.b16 %v1237
    %v1532 = vunpack.c.l.b16 %v1238
    %v1533 = vunpack.c.l.b16 %v1239
    %v1534 = vunpack.c.l.b16 %v1240
    %v1535 = vunpack.c.l.b16 %v1241
    %v1536 = vunpack.c.l.b16 %v1242
    %v1537 = vunpack.c.l.b16 %v1243
    %v1538 = vunpack.c.l.b16 %v1244
    %v1539 = vunpack.c.l.b16 %v1245
    %v1540 = vunpack.c.l.b16 %v1246
    %v1541 = vunpack.c.l.b16 %v1247
    %v1542 = vunpack.c.l.b16 %v1248
    %v1543 = vunpack.c.l.b16 %v1249
    %v1544 = vunpack.c.l.b16 %v1250
    %v1545 = vunpack.c.l.b16 %v1251
    %v1546 = vunpack.c.l.b16 %v1252
    %v1547 = vunpack.c.l.b16 %v1253
    %v1548 = vunpack.c.l.b16 %v1254
    %v1549 = vunpack.c.l.b16 %v1255
    %v1550 = vunpack.c.l.b16 %v1256
    %v1551 = vunpack.c.l.b16 %v1257
    %v1552 = vunpack.c.l.b16 %v1258
    %v1553 = vunpack.c.l.b16 %v1259
    %v1554 = vunpack.c.l.b16 %v1260
    %v1555 = vunpack.c.l.b16 %v1261
    %v1556 = vunpack.c.l.b16 %v1262
    %v1557 = vunpack.c.l.b16 %v1263
    %v1558 = vunpack.c.l.b16 %v1264
    %v1559 = vunpack.c.l.b16 %v1265
    %v1560 = vpack.c.b16 %v1417, %v1416
    %v1561 = vpack.c.b16 %v1419, %v1418
    %v1562 = vpack.c.b16 %v1421, %v1420
    %v1563 = vpack.c.b16 %v1423, %v1422
    %v1564 = vpack.c.b16 %v1425, %v1424
    %v1565 = vpack.c.b16 %v1427, %v1426
    %v1566 = vpack.c.b16 %v1429, %v1428
    %v1567 = vpack.c.b16 %v1431, %v1430
    %v1568 = vpack.c.b16 %v1433, %v1432
    %v1569 = vpack.c.b16 %v1435, %v1434
    %v1570 = vpack.c.b16 %v1437, %v1436
    %v1571 = vpack.c.b16 %v1439, %v1438
    %v1572 = vpack.c.b16 %v1441, %v1440
    %v1573 = vpack.c.b16 %v1443, %v1442
    %v1574 = vpack.c.b16 %v1445, %v1444
    %v1575 = vpack.c.b16 %v1447, %v1446
    %v1576 = vpack.c.b16 %v1449, %v1448
    %v1577 = vpack.c.b16 %v1451, %v1450
    %v1578 = vpack.c.b16 %v1453, %v1452
    %v1579 = vpack.c.b16 %v1455, %v1454
    %v1580 = vpack.c.b16 %v1457, %v1456
    %v1581 = vpack.c.b16 %v1459, %v1458
    %v1582 = vpack.c.b16 %v1461, %v1460
    %v1583 = vpack.c.b16 %v1463, %v1462
    %v1584 = vpack.c.b16 %v1465, %v1464
    %v1585 = vpack.c.b16 %v1467, %v1466
    %v1586 = vpack.c.b16 %v1469, %v1468
    %v1587 = vpack.c.b16 %v1471, %v1470
    %v1588 = vpack.c.b16 %v1473, %v1472
    %v1589 = vpack.c.b16 %v1475, %v1474
    %v1590 = vpack.c.b16 %v1477, %v1476
    %v1591 = vpack.c.b16 %v1479, %v1478
    %v1592 = vpack.c.b16 %v1481, %v1480
    %v1593 = vpack.c.b16 %v1483, %v1482
    %v1594 = vpack.c.b16 %v1485, %v1484
    %v1595 = vpack.c.b16 %v1487, %v1486
    %v1596 = vpack.c.b16 %v1489, %v1488
    %v1597 = vpack.c.b16 %v1491, %v1490
    %v1598 = vpack.c.b16 %v1493, %v1492
    %v1599 = vpack.c.b16 %v1495, %v1494
    %v1600 = vpack.c.b16 %v1497, %v1496
    %v1601 = vpack.c.b16 %v1499, %v1498
    %v1602 = vpack.c.b16 %v1501, %v1500
    %v1603 = vpack.c.b16 %v1503, %v1502
    %v1604 = vpack.c.b16 %v1505, %v1504
    %v1605 = vpack.c.b16 %v1507, %v1506
    %v1606 = vpack.c.b16 %v1509, %v1508
    %v1607 = vpack.c.b16 %v1511, %v1510
    %v1608 = vpack.c.b16 %v1513, %v1512
    %v1609 = vpack.c.b16 %v1515, %v1514
    %v1610 = vpack.c.b16 %v1517, %v1516
    %v1611 = vpack.c.b16 %v1519, %v1518
    %v1612 = vpack.c.b16 %v1521, %v1520
    %v1613 = vpack.c.b16 %v1523, %v1522
    %v1614 = vpack.c.b16 %v1525, %v1524
    %v1615 = vpack.c.b16 %v1527, %v1526
    %v1616 = vpack.c.b16 %v1529, %v1528
    %v1617 = vpack.c.b16 %v1531, %v1530
    %v1618 = vpack.c.b16 %v1533, %v1532
    %v1619 = vpack.c.b16 %v1535, %v1534
    %v1620 = vpack.c.b16 %v1537, %v1536
    %v1621 = vpack.c.b16 %v1539, %v1538
    %v1622 = vpack.c.b16 %v1541, %v1540
    %v1623 = vpack.c.b16 %v1543, %v1542
    %v1624 = vpack.c.b16 %v1545, %v1544
    %v1625 = vpack.c.b16 %v1547, %v1546
    %v1626 = vpack.c.b16 %v1549, %v1548
    %v1627 = vpack.c.b16 %v1551, %v1550
    %v1628 = vpack.c.b16 %v1553, %v1552
    %v1629 = vpack.c.b16 %v1555, %v1554
    %v1630 = vpack.c.b16 %v1557, %v1556
    %v1631 = vpack.c.b16 %v1559, %v1558
    %1704 = vmatprep.subr.bf16.mxu0 0
    %1705 = vmatpush1.bf16.msra.mxu0 %v1560
    %1706 = vmatprep.subr.bf16.mxu0 0
    %1707 = vmatpush1.bf16.msra.mxu0 %v1561
    %1708 = vmatprep.subr.bf16.mxu0 0
    %1709 = vmatpush1.bf16.msra.mxu0 %v1562
    %1710 = vmatprep.subr.bf16.mxu0 0
    %1711 = vmatpush1.bf16.msra.mxu0 %v1563
    %1712 = vmatprep.subr.bf16.mxu0 0
    %1713 = vmatpush1.bf16.msra.mxu0 %v1564
    %1714 = vmatprep.subr.bf16.mxu0 0
    %1715 = vmatpush1.bf16.msra.mxu0 %v1565
    %1716 = vmatprep.subr.bf16.mxu0 0
    %1717 = vmatpush1.bf16.msra.mxu0 %v1566
    %1718 = vmatprep.subr.bf16.mxu0 0
    %1719 = vmatpush1.bf16.msra.mxu0 %v1567
    %1720 = vmatprep.subr.bf16.mxu0 0
    %1721 = vmatpush1.bf16.msra.mxu0 %v1568
    %1722 = vmatprep.subr.bf16.mxu0 0
    %1723 = vmatpush1.bf16.msra.mxu0 %v1569
    %1724 = vmatprep.subr.bf16.mxu0 0
    %1725 = vmatpush1.bf16.msra.mxu0 %v1570
    %1726 = vmatprep.subr.bf16.mxu0 0
    %1727 = vmatpush1.bf16.msra.mxu0 %v1571
    %1728 = vmatprep.subr.bf16.mxu0 0
    %1729 = vmatpush1.bf16.msra.mxu0 %v1572
    %1730 = vmatprep.subr.bf16.mxu0 0
    %1731 = vmatpush1.bf16.msra.mxu0 %v1573
    %1732 = vmatprep.subr.bf16.mxu0 0
    %1733 = vmatpush1.bf16.msra.mxu0 %v1574
    %1734 = vmatprep.subr.bf16.mxu0 0
    %1735 = vmatpush1.bf16.msra.mxu0 %v1575
    %1736 = vmatprep.mubr.bf16.mxu0 %v753
    %1737 = vmatmul.mubr.bf16.gmra.mrb[0].mxu0 %v400
    %v1738 = vpop.f32.mrb[0].mxu0
    %v1739 = vadd.f32 %v1270, %v1738
    %v1740 = vpop.f32.mrb[0].mxu0
    %v1741 = vpop.f32.mrb[0].mxu0
    %v1742 = vadd.f32 %v1270, %v1741
    %v1743 = vpop.f32.mrb[0].mxu0
    %1744 = vmatprep.mubr.bf16.mxu0 %v754
    %1745 = vmatmul.mubr.bf16.gmra.mrb[0].mxu0 %v401
    %v1746 = vpop.f32.mrb[0].mxu0
    %v1747 = vadd.f32 %v1270, %v1746
    %v1748 = vpop.f32.mrb[0].mxu0
    %v1749 = vpop.f32.mrb[0].mxu0
    %v1750 = vadd.f32 %v1270, %v1749
    %v1751 = vpop.f32.mrb[0].mxu0
    %1752 = vmatprep.mubr.bf16.mxu0 %v755
    %1753 = vmatmul.mubr.bf16.gmra.mrb[0].mxu0 %v402
    %v1754 = vpop.f32.mrb[0].mxu0
    %v1755 = vadd.f32 %v1270, %v1754
    %v1756 = vpop.f32.mrb[0].mxu0
    %v1757 = vpop.f32.mrb[0].mxu0
    %v1758 = vadd.f32 %v1270, %v1757
    %v1759 = vpop.f32.mrb[0].mxu0
    %1760 = vmatprep.mubr.bf16.mxu0 %v756
    %1761 = vmatmul.mubr.bf16.gmra.mrb[0].mxu0 %v403
    %v1762 = vpop.f32.mrb[0].mxu0
    %v1763 = vadd.f32 %v1270, %v1762
    %v1764 = vpop.f32.mrb[0].mxu0
    %v1765 = vpop.f32.mrb[0].mxu0
    %v1766 = vadd.f32 %v1270, %v1765
    %v1767 = vpop.f32.mrb[0].mxu0
    %1768 = vmatprep.mubr.bf16.mxu0 %v757
    %1769 = vmatmul.mubr.bf16.gmra.mrb[0].mxu0 %v404
    %v1770 = vpop.f32.mrb[0].mxu0
    %v1771 = vadd.f32 %v1270, %v1770
    %v1772 = vpop.f32.mrb[0].mxu0
    %v1773 = vpop.f32.mrb[0].mxu0
    %v1774 = vadd.f32 %v1270, %v1773
    %v1775 = vpop.f32.mrb[0].mxu0
    %1776 = vmatprep.mubr.bf16.mxu0 %v758
    %1777 = vmatmul.mubr.bf16.gmra.mrb[0].mxu0 %v405
    %v1778 = vpop.f32.mrb[0].mxu0
    %v1779 = vadd.f32 %v1270, %v1778
    %v1780 = vpop.f32.mrb[0].mxu0
    %v1781 = vpop.f32.mrb[0].mxu0
    %v1782 = vadd.f32 %v1270, %v1781
    %v1783 = vpop.f32.mrb[0].mxu0
    %1784 = vmatprep.mubr.bf16.mxu0 %v759
    %1785 = vmatmul.mubr.bf16.gmra.mrb[0].mxu0 %v406
    %v1786 = vpop.f32.mrb[0].mxu0
    %v1787 = vadd.f32 %v1270, %v1786
    %v1788 = vpop.f32.mrb[0].mxu0
    %v1789 = vpop.f32.mrb[0].mxu0
    %v1790 = vadd.f32 %v1270, %v1789
    %v1791 = vpop.f32.mrb[0].mxu0
    %1792 = vmatprep.mubr.bf16.mxu0 %v760
    %1793 = vmatmul.mubr.bf16.gmra.mrb[0].mxu0 %v407
    %v1794 = vpop.f32.mrb[0].mxu0
    %v1795 = vadd.f32 %v1270, %v1794
    %v1796 = vpop.f32.mrb[0].mxu0
    %v1797 = vpop.f32.mrb[0].mxu0
    %v1798 = vadd.f32 %v1270, %v1797
    %v1799 = vpop.f32.mrb[0].mxu0
    %1800 = vmatprep.mubr.bf16.mxu0 %v761
    %1801 = vmatmul.mubr.bf16.gmra.mrb[0].mxu0 %v408
    %v1802 = vpop.f32.mrb[0].mxu0
    %v1803 = vadd.f32 %v1270, %v1802
    %v1804 = vpop.f32.mrb[0].mxu0
    %v1805 = vpop.f32.mrb[0].mxu0
    %v1806 = vadd.f32 %v1270, %v1805
    %v1807 = vpop.f32.mrb[0].mxu0
    %1808 = vmatprep.mubr.bf16.mxu0 %v762
    %1809 = vmatmul.mubr.bf16.gmra.mrb[0].mxu0 %v409
    %v1810 = vpop.f32.mrb[0].mxu0
    %v1811 = vadd.f32 %v1270, %v1810
    %v1812 = vpop.f32.mrb[0].mxu0
    %v1813 = vpop.f32.mrb[0].mxu0
    %v1814 = vadd.f32 %v1270, %v1813
    %v1815 = vpop.f32.mrb[0].mxu0
    %1816 = vmatprep.mubr.bf16.mxu0 %v763
    %1817 = vmatmul.mubr.bf16.gmra.mrb[0].mxu0 %v410
    %v1818 = vpop.f32.mrb[0].mxu0
    %v1819 = vadd.f32 %v1270, %v1818
    %v1820 = vpop.f32.mrb[0].mxu0
    %v1821 = vpop.f32.mrb[0].mxu0
    %v1822 = vadd.f32 %v1270, %v1821
    %v1823 = vpop.f32.mrb[0].mxu0
    %1824 = vmatprep.mubr.bf16.mxu0 %v764
    %1825 = vmatmul.mubr.bf16.gmra.mrb[0].mxu0 %v411
    %v1826 = vpop.f32.mrb[0].mxu0
    %v1827 = vadd.f32 %v1270, %v1826
    %v1828 = vpop.f32.mrb[0].mxu0
    %v1829 = vpop.f32.mrb[0].mxu0
    %v1830 = vadd.f32 %v1270, %v1829
    %v1831 = vpop.f32.mrb[0].mxu0
    %1832 = vmatprep.mubr.bf16.mxu0 %v765
    %1833 = vmatmul.mubr.bf16.gmra.mrb[0].mxu0 %v412
    %v1834 = vpop.f32.mrb[0].mxu0
    %v1835 = vadd.f32 %v1270, %v1834
    %v1836 = vpop.f32.mrb[0].mxu0
    %v1837 = vpop.f32.mrb[0].mxu0
    %v1838 = vadd.f32 %v1270, %v1837
    %v1839 = vpop.f32.mrb[0].mxu0
    %1840 = vmatprep.mubr.bf16.mxu0 %v766
    %1841 = vmatmul.mubr.bf16.gmra.mrb[0].mxu0 %v413
    %v1842 = vpop.f32.mrb[0].mxu0
    %v1843 = vadd.f32 %v1270, %v1842
    %v1844 = vpop.f32.mrb[0].mxu0
    %v1845 = vpop.f32.mrb[0].mxu0
    %v1846 = vadd.f32 %v1270, %v1845
    %v1847 = vpop.f32.mrb[0].mxu0
    %1848 = vmatprep.mubr.bf16.mxu0 %v767
    %1849 = vmatmul.mubr.bf16.gmra.mrb[0].mxu0 %v414
    %v1850 = vpop.f32.mrb[0].mxu0
    %v1851 = vadd.f32 %v1270, %v1850
    %v1852 = vpop.f32.mrb[0].mxu0
    %v1853 = vpop.f32.mrb[0].mxu0
    %v1854 = vadd.f32 %v1270, %v1853
    %v1855 = vpop.f32.mrb[0].mxu0
    %1856 = vmatprep.mubr.bf16.mxu0 %v768
    %1857 = vmatmul.mubr.bf16.gmra.mrb[0].mxu0 %v415
    %v1858 = vpop.f32.mrb[0].mxu0
    %v1859 = vadd.f32 %v1270, %v1858
    %v1860 = vpop.f32.mrb[0].mxu0
    %v1861 = vpop.f32.mrb[0].mxu0
    %v1862 = vadd.f32 %v1270, %v1861
    %v1863 = vpop.f32.mrb[0].mxu0
    %1864 = vmatprep.mubr.bf16.mxu0 %v769
    %1865 = vmatmul.mubr.bf16.gmra.mrb[0].mxu0 %v416
    %v1866 = vpop.f32.mrb[0].mxu0
    %v1867 = vadd.f32 %v1270, %v1866
    %v1868 = vpop.f32.mrb[0].mxu0
    %v1869 = vpop.f32.mrb[0].mxu0
    %v1870 = vadd.f32 %v1270, %v1869
    %v1871 = vpop.f32.mrb[0].mxu0
    %1872 = vmatprep.mubr.bf16.mxu0 %v770
    %1873 = vmatmul.mubr.bf16.gmra.mrb[0].mxu0 %v417
    %v1874 = vpop.f32.mrb[0].mxu0
    %v1875 = vadd.f32 %v1270, %v1874
    %v1876 = vpop.f32.mrb[0].mxu0
    %v1877 = vpop.f32.mrb[0].mxu0
    %v1878 = vadd.f32 %v1270, %v1877
    %v1879 = vpop.f32.mrb[0].mxu0
    %1880 = vmatprep.mubr.bf16.mxu0 %v771
    %1881 = vmatmul.mubr.bf16.gmra.mrb[0].mxu0 %v418
    %v1882 = vpop.f32.mrb[0].mxu0
    %v1883 = vadd.f32 %v1270, %v1882
    %v1884 = vpop.f32.mrb[0].mxu0
    %v1885 = vpop.f32.mrb[0].mxu0
    %v1886 = vadd.f32 %v1270, %v1885
    %v1887 = vpop.f32.mrb[0].mxu0
    %1888 = vmatprep.mubr.bf16.mxu0 %v772
    %1889 = vmatmul.mubr.bf16.gmra.mrb[0].mxu0 %v419
    %v1890 = vpop.f32.mrb[0].mxu0
    %v1891 = vadd.f32 %v1270, %v1890
    %v1892 = vpop.f32.mrb[0].mxu0
    %v1893 = vpop.f32.mrb[0].mxu0
    %v1894 = vadd.f32 %v1270, %v1893
    %v1895 = vpop.f32.mrb[0].mxu0
    %1896 = vmatprep.mubr.bf16.mxu0 %v773
    %1897 = vmatmul.mubr.bf16.gmra.mrb[0].mxu0 %v420
    %v1898 = vpop.f32.mrb[0].mxu0
    %v1899 = vadd.f32 %v1270, %v1898
    %v1900 = vpop.f32.mrb[0].mxu0
    %v1901 = vpop.f32.mrb[0].mxu0
    %v1902 = vadd.f32 %v1270, %v1901
    %v1903 = vpop.f32.mrb[0].mxu0
    %1904 = vmatprep.mubr.bf16.mxu0 %v774
    %1905 = vmatmul.mubr.bf16.gmra.mrb[0].mxu0 %v421
    %v1906 = vpop.f32.mrb[0].mxu0
    %v1907 = vadd.f32 %v1270, %v1906
    %v1908 = vpop.f32.mrb[0].mxu0
    %v1909 = vpop.f32.mrb[0].mxu0
    %v1910 = vadd.f32 %v1270, %v1909
    %v1911 = vpop.f32.mrb[0].mxu0
    %1912 = vmatprep.mubr.bf16.mxu0 %v775
    %1913 = vmatmul.mubr.bf16.gmra.mrb[0].mxu0 %v422
    %v1914 = vpop.f32.mrb[0].mxu0
    %v1915 = vadd.f32 %v1270, %v1914
    %v1916 = vpop.f32.mrb[0].mxu0
    %v1917 = vpop.f32.mrb[0].mxu0
    %v1918 = vadd.f32 %v1270, %v1917
    %v1919 = vpop.f32.mrb[0].mxu0
    %1920 = vmatprep.mubr.bf16.mxu0 %v776
    %1921 = vmatmul.mubr.bf16.gmra.mrb[0].mxu0 %v423
    %v1922 = vpop.f32.mrb[0].mxu0
    %v1923 = vadd.f32 %v1270, %v1922
    %v1924 = vpop.f32.mrb[0].mxu0
    %v1925 = vpop.f32.mrb[0].mxu0
    %v1926 = vadd.f32 %v1270, %v1925
    %v1927 = vpop.f32.mrb[0].mxu0
    %1928 = vmatprep.mubr.bf16.mxu0 %v777
    %1929 = vmatmul.mubr.bf16.gmra.mrb[0].mxu0 %v424
    %v1930 = vpop.f32.mrb[0].mxu0
    %v1931 = vadd.f32 %v1270, %v1930
    %v1932 = vpop.f32.mrb[0].mxu0
    %v1933 = vpop.f32.mrb[0].mxu0
    %v1934 = vadd.f32 %v1270, %v1933
    %v1935 = vpop.f32.mrb[0].mxu0
    %1936 = vmatprep.mubr.bf16.mxu0 %v778
    %1937 = vmatmul.mubr.bf16.gmra.mrb[0].mxu0 %v425
    %v1938 = vpop.f32.mrb[0].mxu0
    %v1939 = vadd.f32 %v1270, %v1938
    %v1940 = vpop.f32.mrb[0].mxu0
    %v1941 = vpop.f32.mrb[0].mxu0
    %v1942 = vadd.f32 %v1270, %v1941
    %v1943 = vpop.f32.mrb[0].mxu0
    %1944 = vmatprep.mubr.bf16.mxu0 %v779
    %1945 = vmatmul.mubr.bf16.gmra.mrb[0].mxu0 %v426
    %v1946 = vpop.f32.mrb[0].mxu0
    %v1947 = vadd.f32 %v1270, %v1946
    %v1948 = vpop.f32.mrb[0].mxu0
    %v1949 = vpop.f32.mrb[0].mxu0
    %v1950 = vadd.f32 %v1270, %v1949
    %v1951 = vpop.f32.mrb[0].mxu0
    %1952 = vmatprep.mubr.bf16.mxu0 %v780
    %1953 = vmatmul.mubr.bf16.gmra.mrb[0].mxu0 %v427
    %v1954 = vpop.f32.mrb[0].mxu0
    %v1955 = vadd.f32 %v1270, %v1954
    %v1956 = vpop.f32.mrb[0].mxu0
    %v1957 = vpop.f32.mrb[0].mxu0
    %v1958 = vadd.f32 %v1270, %v1957
    %v1959 = vpop.f32.mrb[0].mxu0
    %1960 = vmatprep.mubr.bf16.mxu0 %v781
    %1961 = vmatmul.mubr.bf16.gmra.mrb[0].mxu0 %v428
    %v1962 = vpop.f32.mrb[0].mxu0
    %v1963 = vadd.f32 %v1270, %v1962
    %v1964 = vpop.f32.mrb[0].mxu0
    %v1965 = vpop.f32.mrb[0].mxu0
    %v1966 = vadd.f32 %v1270, %v1965
    %v1967 = vpop.f32.mrb[0].mxu0
    %1968 = vmatprep.mubr.bf16.mxu0 %v782
    %1969 = vmatmul.mubr.bf16.gmra.mrb[0].mxu0 %v429
    %v1970 = vpop.f32.mrb[0].mxu0
    %v1971 = vadd.f32 %v1270, %v1970
    %v1972 = vpop.f32.mrb[0].mxu0
    %v1973 = vpop.f32.mrb[0].mxu0
    %v1974 = vadd.f32 %v1270, %v1973
    %v1975 = vpop.f32.mrb[0].mxu0
    %1976 = vmatprep.mubr.bf16.mxu0 %v783
    %1977 = vmatmul.mubr.bf16.gmra.mrb[0].mxu0 %v430
    %v1978 = vpop.f32.mrb[0].mxu0
    %v1979 = vadd.f32 %v1270, %v1978
    %v1980 = vpop.f32.mrb[0].mxu0
    %v1981 = vpop.f32.mrb[0].mxu0
    %v1982 = vadd.f32 %v1270, %v1981
    %v1983 = vpop.f32.mrb[0].mxu0
    %1984 = vmatprep.mubr.bf16.mxu0 %v784
    %1985 = vmatmul.mubr.bf16.gmra.mrb[0].mxu0 %v431
    %v1986 = vpop.f32.mrb[0].mxu0
    %v1987 = vadd.f32 %v1270, %v1986
    %v1988 = vpop.f32.mrb[0].mxu0
    %v1989 = vpop.f32.mrb[0].mxu0
    %v1990 = vadd.f32 %v1270, %v1989
    %v1991 = vpop.f32.mrb[0].mxu0
    %1992 = vdwg.mxu0
    %1993 = vmatprep.subr.bf16.mxu0 0
    %1994 = vmatpush1.bf16.msra.mxu0 %v1576
    %1995 = vmatprep.subr.bf16.mxu0 0
    %1996 = vmatpush1.bf16.msra.mxu0 %v1577
    %1997 = vmatprep.subr.bf16.mxu0 0
    %1998 = vmatpush1.bf16.msra.mxu0 %v1578
    %1999 = vmatprep.subr.bf16.mxu0 0
    %2000 = vmatpush1.bf16.msra.mxu0 %v1579
    %2001 = vmatprep.subr.bf16.mxu0 0
    %2002 = vmatpush1.bf16.msra.mxu0 %v1580
    %2003 = vmatprep.subr.bf16.mxu0 0
    %2004 = vmatpush1.bf16.msra.mxu0 %v1581
    %2005 = vmatprep.subr.bf16.mxu0 0
    %2006 = vmatpush1.bf16.msra.mxu0 %v1582
    %2007 = vmatprep.subr.bf16.mxu0 0
    %2008 = vmatpush1.bf16.msra.mxu0 %v1583
    %2009 = vmatprep.subr.bf16.mxu0 0
    %2010 = vmatpush1.bf16.msra.mxu0 %v1584
    %2011 = vmatprep.subr.bf16.mxu0 0
    %2012 = vmatpush1.bf16.msra.mxu0 %v1585
    %2013 = vmatprep.subr.bf16.mxu0 0
    %2014 = vmatpush1.bf16.msra.mxu0 %v1586
    %2015 = vmatprep.subr.bf16.mxu0 0
    %2016 = vmatpush1.bf16.msra.mxu0 %v1587
    %2017 = vmatprep.subr.bf16.mxu0 0
    %2018 = vmatpush1.bf16.msra.mxu0 %v1588
    %2019 = vmatprep.subr.bf16.mxu0 0
    %2020 = vmatpush1.bf16.msra.mxu0 %v1589
    %2021 = vmatprep.subr.bf16.mxu0 0
    %2022 = vmatpush1.bf16.msra.mxu0 %v1590
    %2023 = vmatprep.subr.bf16.mxu0 0
    %2024 = vmatpush1.bf16.msra.mxu0 %v1591
    %2025 = vmatprep.mubr.bf16.mxu0 %v401
    %2026 = vmatmul.mubr.bf16.gmra.mrb[0].mxu0 %v1010
    %v2027 = vpop.f32.mrb[0].mxu0
    %v2028 = vadd.f32 %v1739, %v2027
    %v2029 = vpop.f32.mrb[0].mxu0
    %v2030 = vpop.f32.mrb[0].mxu0
    %v2031 = vadd.f32 %v1742, %v2030
    %v2032 = vpop.f32.mrb[0].mxu0
    %2033 = vmatprep.mubr.bf16.mxu0 %v402
    %2034 = vmatmul.mubr.bf16.gmra.mrb[0].mxu0 %v1011
    %v2035 = vpop.f32.mrb[0].mxu0
    %v2036 = vadd.f32 %v1747, %v2035
    %v2037 = vpop.f32.mrb[0].mxu0
    %v2038 = vpop.f32.mrb[0].mxu0
    %v2039 = vadd.f32 %v1750, %v2038
    %v2040 = vpop.f32.mrb[0].mxu0
    %2041 = vmatprep.mubr.bf16.mxu0 %v403
    %2042 = vmatmul.mubr.bf16.gmra.mrb[0].mxu0 %v1012
    %v2043 = vpop.f32.mrb[0].mxu0
    %v2044 = vadd.f32 %v1755, %v2043
    %v2045 = vpop.f32.mrb[0].mxu0
    %v2046 = vpop.f32.mrb[0].mxu0
    %v2047 = vadd.f32 %v1758, %v2046
    %v2048 = vpop.f32.mrb[0].mxu0
    %2049 = vmatprep.mubr.bf16.mxu0 %v404
    %2050 = vmatmul.mubr.bf16.gmra.mrb[0].mxu0 %v1013
    %v2051 = vpop.f32.mrb[0].mxu0
    %v2052 = vadd.f32 %v1763, %v2051
    %v2053 = vpop.f32.mrb[0].mxu0
    %v2054 = vpop.f32.mrb[0].mxu0
    %v2055 = vadd.f32 %v1766, %v2054
    %v2056 = vpop.f32.mrb[0].mxu0
    %2057 = vmatprep.mubr.bf16.mxu0 %v405
    %2058 = vmatmul.mubr.bf16.gmra.mrb[0].mxu0 %v1014
    %v2059 = vpop.f32.mrb[0].mxu0
    %v2060 = vadd.f32 %v1771, %v2059
    %v2061 = vpop.f32.mrb[0].mxu0
    %v2062 = vpop.f32.mrb[0].mxu0
    %v2063 = vadd.f32 %v1774, %v2062
    %v2064 = vpop.f32.mrb[0].mxu0
    %2065 = vmatprep.mubr.bf16.mxu0 %v406
    %2066 = vmatmul.mubr.bf16.gmra.mrb[0].mxu0 %v1015
    %v2067 = vpop.f32.mrb[0].mxu0
    %v2068 = vadd.f32 %v1779, %v2067
    %v2069 = vpop.f32.mrb[0].mxu0
    %v2070 = vpop.f32.mrb[0].mxu0
    %v2071 = vadd.f32 %v1782, %v2070
    %v2072 = vpop.f32.mrb[0].mxu0
    %2073 = vmatprep.mubr.bf16.mxu0 %v407
    %2074 = vmatmul.mubr.bf16.gmra.mrb[0].mxu0 %v1016
    %v2075 = vpop.f32.mrb[0].mxu0
    %v2076 = vadd.f32 %v1787, %v2075
    %v2077 = vpop.f32.mrb[0].mxu0
    %v2078 = vpop.f32.mrb[0].mxu0
    %v2079 = vadd.f32 %v1790, %v2078
    %v2080 = vpop.f32.mrb[0].mxu0
    %2081 = vmatprep.mubr.bf16.mxu0 %v408
    %2082 = vmatmul.mubr.bf16.gmra.mrb[0].mxu0 %v1017
    %v2083 = vpop.f32.mrb[0].mxu0
    %v2084 = vadd.f32 %v1795, %v2083
    %v2085 = vpop.f32.mrb[0].mxu0
    %v2086 = vpop.f32.mrb[0].mxu0
    %v2087 = vadd.f32 %v1798, %v2086
    %v2088 = vpop.f32.mrb[0].mxu0
    %2089 = vmatprep.mubr.bf16.mxu0 %v409
    %2090 = vmatmul.mubr.bf16.gmra.mrb[0].mxu0 %v1018
    %v2091 = vpop.f32.mrb[0].mxu0
    %v2092 = vadd.f32 %v1803, %v2091
    %v2093 = vpop.f32.mrb[0].mxu0
    %v2094 = vpop.f32.mrb[0].mxu0
    %v2095 = vadd.f32 %v1806, %v2094
    %v2096 = vpop.f32.mrb[0].mxu0
    %2097 = vmatprep.mubr.bf16.mxu0 %v410
    %2098 = vmatmul.mubr.bf16.gmra.mrb[0].mxu0 %v1019
    %v2099 = vpop.f32.mrb[0].mxu0
    %v2100 = vadd.f32 %v1811, %v2099
    %v2101 = vpop.f32.mrb[0].mxu0
    %v2102 = vpop.f32.mrb[0].mxu0
    %v2103 = vadd.f32 %v1814, %v2102
    %v2104 = vpop.f32.mrb[0].mxu0
    %2105 = vmatprep.mubr.bf16.mxu0 %v411
    %2106 = vmatmul.mubr.bf16.gmra.mrb[0].mxu0 %v1020
    %v2107 = vpop.f32.mrb[0].mxu0
    %v2108 = vadd.f32 %v1819, %v2107
    %v2109 = vpop.f32.mrb[0].mxu0
    %v2110 = vpop.f32.mrb[0].mxu0
    %v2111 = vadd.f32 %v1822, %v2110
    %v2112 = vpop.f32.mrb[0].mxu0
    %2113 = vmatprep.mubr.bf16.mxu0 %v412
    %2114 = vmatmul.mubr.bf16.gmra.mrb[0].mxu0 %v1021
    %v2115 = vpop.f32.mrb[0].mxu0
    %v2116 = vadd.f32 %v1827, %v2115
    %v2117 = vpop.f32.mrb[0].mxu0
    %v2118 = vpop.f32.mrb[0].mxu0
    %v2119 = vadd.f32 %v1830, %v2118
    %v2120 = vpop.f32.mrb[0].mxu0
    %2121 = vmatprep.mubr.bf16.mxu0 %v413
    %2122 = vmatmul.mubr.bf16.gmra.mrb[0].mxu0 %v1022
    %v2123 = vpop.f32.mrb[0].mxu0
    %v2124 = vadd.f32 %v1835, %v2123
    %v2125 = vpop.f32.mrb[0].mxu0
    %v2126 = vpop.f32.mrb[0].mxu0
    %v2127 = vadd.f32 %v1838, %v2126
    %v2128 = vpop.f32.mrb[0].mxu0
    %2129 = vmatprep.mubr.bf16.mxu0 %v414
    %2130 = vmatmul.mubr.bf16.gmra.mrb[0].mxu0 %v1023
    %v2131 = vpop.f32.mrb[0].mxu0
    %v2132 = vadd.f32 %v1843, %v2131
    %v2133 = vpop.f32.mrb[0].mxu0
    %v2134 = vpop.f32.mrb[0].mxu0
    %v2135 = vadd.f32 %v1846, %v2134
    %v2136 = vpop.f32.mrb[0].mxu0
    %2137 = vmatprep.mubr.bf16.mxu0 %v415
    %2138 = vmatmul.mubr.bf16.gmra.mrb[0].mxu0 %v1024
    %v2139 = vpop.f32.mrb[0].mxu0
    %v2140 = vadd.f32 %v1851, %v2139
    %v2141 = vpop.f32.mrb[0].mxu0
    %v2142 = vpop.f32.mrb[0].mxu0
    %v2143 = vadd.f32 %v1854, %v2142
    %v2144 = vpop.f32.mrb[0].mxu0
    %2145 = vmatprep.mubr.bf16.mxu0 %v1042
    %2146 = vmatmul.mubr.bf16.gmra.mrb[0].mxu0 %v1025
    %v2147 = vpop.f32.mrb[0].mxu0
    %v2148 = vadd.f32 %v1859, %v2147
    %v2149 = vpop.f32.mrb[0].mxu0
    %v2150 = vpop.f32.mrb[0].mxu0
    %v2151 = vadd.f32 %v1862, %v2150
    %v2152 = vpop.f32.mrb[0].mxu0
    %2153 = vmatprep.mubr.bf16.mxu0 %v417
    %2154 = vmatmul.mubr.bf16.gmra.mrb[0].mxu0 %v1026
    %v2155 = vpop.f32.mrb[0].mxu0
    %v2156 = vadd.f32 %v1867, %v2155
    %v2157 = vpop.f32.mrb[0].mxu0
    %v2158 = vpop.f32.mrb[0].mxu0
    %v2159 = vadd.f32 %v1870, %v2158
    %v2160 = vpop.f32.mrb[0].mxu0
    %2161 = vmatprep.mubr.bf16.mxu0 %v418
    %2162 = vmatmul.mubr.bf16.gmra.mrb[0].mxu0 %v1027
    %v2163 = vpop.f32.mrb[0].mxu0
    %v2164 = vadd.f32 %v1875, %v2163
    %v2165 = vpop.f32.mrb[0].mxu0
    %v2166 = vpop.f32.mrb[0].mxu0
    %v2167 = vadd.f32 %v1878, %v2166
    %v2168 = vpop.f32.mrb[0].mxu0
    %2169 = vmatprep.mubr.bf16.mxu0 %v419
    %2170 = vmatmul.mubr.bf16.gmra.mrb[0].mxu0 %v1028
    %v2171 = vpop.f32.mrb[0].mxu0
    %v2172 = vadd.f32 %v1883, %v2171
    %v2173 = vpop.f32.mrb[0].mxu0
    %v2174 = vpop.f32.mrb[0].mxu0
    %v2175 = vadd.f32 %v1886, %v2174
    %v2176 = vpop.f32.mrb[0].mxu0
    %2177 = vmatprep.mubr.bf16.mxu0 %v420
    %2178 = vmatmul.mubr.bf16.gmra.mrb[0].mxu0 %v1029
    %v2179 = vpop.f32.mrb[0].mxu0
    %v2180 = vadd.f32 %v1891, %v2179
    %v2181 = vpop.f32.mrb[0].mxu0
    %v2182 = vpop.f32.mrb[0].mxu0
    %v2183 = vadd.f32 %v1894, %v2182
    %v2184 = vpop.f32.mrb[0].mxu0
    %2185 = vmatprep.mubr.bf16.mxu0 %v421
    %2186 = vmatmul.mubr.bf16.gmra.mrb[0].mxu0 %v1030
    %v2187 = vpop.f32.mrb[0].mxu0
    %v2188 = vadd.f32 %v1899, %v2187
    %v2189 = vpop.f32.mrb[0].mxu0
    %v2190 = vpop.f32.mrb[0].mxu0
    %v2191 = vadd.f32 %v1902, %v2190
    %v2192 = vpop.f32.mrb[0].mxu0
    %2193 = vmatprep.mubr.bf16.mxu0 %v422
    %2194 = vmatmul.mubr.bf16.gmra.mrb[0].mxu0 %v1031
    %v2195 = vpop.f32.mrb[0].mxu0
    %v2196 = vadd.f32 %v1907, %v2195
    %v2197 = vpop.f32.mrb[0].mxu0
    %v2198 = vpop.f32.mrb[0].mxu0
    %v2199 = vadd.f32 %v1910, %v2198
    %v2200 = vpop.f32.mrb[0].mxu0
    %2201 = vmatprep.mubr.bf16.mxu0 %v423
    %2202 = vmatmul.mubr.bf16.gmra.mrb[0].mxu0 %v1032
    %v2203 = vpop.f32.mrb[0].mxu0
    %v2204 = vadd.f32 %v1915, %v2203
    %v2205 = vpop.f32.mrb[0].mxu0
    %v2206 = vpop.f32.mrb[0].mxu0
    %v2207 = vadd.f32 %v1918, %v2206
    %v2208 = vpop.f32.mrb[0].mxu0
    %2209 = vmatprep.mubr.bf16.mxu0 %v424
    %2210 = vmatmul.mubr.bf16.gmra.mrb[0].mxu0 %v1033
    %v2211 = vpop.f32.mrb[0].mxu0
    %v2212 = vadd.f32 %v1923, %v2211
    %v2213 = vpop.f32.mrb[0].mxu0
    %v2214 = vpop.f32.mrb[0].mxu0
    %v2215 = vadd.f32 %v1926, %v2214
    %v2216 = vpop.f32.mrb[0].mxu0
    %2217 = vmatprep.mubr.bf16.mxu0 %v425
    %2218 = vmatmul.mubr.bf16.gmra.mrb[0].mxu0 %v1034
    %v2219 = vpop.f32.mrb[0].mxu0
    %v2220 = vadd.f32 %v1931, %v2219
    %v2221 = vpop.f32.mrb[0].mxu0
    %v2222 = vpop.f32.mrb[0].mxu0
    %v2223 = vadd.f32 %v1934, %v2222
    %v2224 = vpop.f32.mrb[0].mxu0
    %2225 = vmatprep.mubr.bf16.mxu0 %v426
    %2226 = vmatmul.mubr.bf16.gmra.mrb[0].mxu0 %v1035
    %v2227 = vpop.f32.mrb[0].mxu0
    %v2228 = vadd.f32 %v1939, %v2227
    %v2229 = vpop.f32.mrb[0].mxu0
    %v2230 = vpop.f32.mrb[0].mxu0
    %v2231 = vadd.f32 %v1942, %v2230
    %v2232 = vpop.f32.mrb[0].mxu0
    %2233 = vmatprep.mubr.bf16.mxu0 %v427
    %2234 = vmatmul.mubr.bf16.gmra.mrb[0].mxu0 %v1036
    %v2235 = vpop.f32.mrb[0].mxu0
    %v2236 = vadd.f32 %v1947, %v2235
    %v2237 = vpop.f32.mrb[0].mxu0
    %v2238 = vpop.f32.mrb[0].mxu0
    %v2239 = vadd.f32 %v1950, %v2238
    %v2240 = vpop.f32.mrb[0].mxu0
    %2241 = vmatprep.mubr.bf16.mxu0 %v428
    %2242 = vmatmul.mubr.bf16.gmra.mrb[0].mxu0 %v1037
    %v2243 = vpop.f32.mrb[0].mxu0
    %v2244 = vadd.f32 %v1955, %v2243
    %v2245 = vpop.f32.mrb[0].mxu0
    %v2246 = vpop.f32.mrb[0].mxu0
    %v2247 = vadd.f32 %v1958, %v2246
    %v2248 = vpop.f32.mrb[0].mxu0
    %2249 = vmatprep.mubr.bf16.mxu0 %v429
    %2250 = vmatmul.mubr.bf16.gmra.mrb[0].mxu0 %v1038
    %v2251 = vpop.f32.mrb[0].mxu0
    %v2252 = vadd.f32 %v1963, %v2251
    %v2253 = vpop.f32.mrb[0].mxu0
    %v2254 = vpop.f32.mrb[0].mxu0
    %v2255 = vadd.f32 %v1966, %v2254
    %v2256 = vpop.f32.mrb[0].mxu0
    %2257 = vmatprep.mubr.bf16.mxu0 %v430
    %2258 = vmatmul.mubr.bf16.gmra.mrb[0].mxu0 %v1039
    %v2259 = vpop.f32.mrb[0].mxu0
    %v2260 = vadd.f32 %v1971, %v2259
    %v2261 = vpop.f32.mrb[0].mxu0
    %v2262 = vpop.f32.mrb[0].mxu0
    %v2263 = vadd.f32 %v1974, %v2262
    %v2264 = vpop.f32.mrb[0].mxu0
    %2265 = vmatprep.mubr.bf16.mxu0 %v431
    %2266 = vmatmul.mubr.bf16.gmra.mrb[0].mxu0 %v1040
    %v2267 = vpop.f32.mrb[0].mxu0
    %v2268 = vadd.f32 %v1979, %v2267
    %v2269 = vpop.f32.mrb[0].mxu0
    %v2270 = vpop.f32.mrb[0].mxu0
    %v2271 = vadd.f32 %v1982, %v2270
    %v2272 = vpop.f32.mrb[0].mxu0
    %2273 = vmatprep.mubr.bf16.mxu0 %v1043
    %2274 = vmatmul.mubr.bf16.gmra.mrb[0].mxu0 %v1041
    %v2275 = vpop.f32.mrb[0].mxu0
    %v2276 = vadd.f32 %v1987, %v2275
    %v2277 = vpop.f32.mrb[0].mxu0
    %v2278 = vpop.f32.mrb[0].mxu0
    %v2279 = vadd.f32 %v1990, %v2278
    %v2280 = vpop.f32.mrb[0].mxu0
    %2281 = vdwg.mxu0
    %2282 = vmatprep.subr.bf16.mxu0 0
    %2283 = vmatpush1.bf16.msra.mxu0 %v1592
    %2284 = vmatprep.subr.bf16.mxu0 0
    %2285 = vmatpush1.bf16.msra.mxu0 %v1593
    %2286 = vmatprep.subr.bf16.mxu0 0
    %2287 = vmatpush1.bf16.msra.mxu0 %v1594
    %2288 = vmatprep.subr.bf16.mxu0 0
    %2289 = vmatpush1.bf16.msra.mxu0 %v1595
    %2290 = vmatprep.subr.bf16.mxu0 0
    %2291 = vmatpush1.bf16.msra.mxu0 %v1596
    %2292 = vmatprep.subr.bf16.mxu0 0
    %2293 = vmatpush1.bf16.msra.mxu0 %v1597
    %2294 = vmatprep.subr.bf16.mxu0 0
    %2295 = vmatpush1.bf16.msra.mxu0 %v1598
    %2296 = vmatprep.subr.bf16.mxu0 0
    %2297 = vmatpush1.bf16.msra.mxu0 %v1599
    %2298 = vmatprep.subr.bf16.mxu0 0
    %2299 = vmatpush1.bf16.msra.mxu0 %v1600
    %2300 = vmatprep.subr.bf16.mxu0 0
    %2301 = vmatpush1.bf16.msra.mxu0 %v1601
    %2302 = vmatprep.subr.bf16.mxu0 0
    %2303 = vmatpush1.bf16.msra.mxu0 %v1602
    %2304 = vmatprep.subr.bf16.mxu0 0
    %2305 = vmatpush1.bf16.msra.mxu0 %v1603
    %2306 = vmatprep.subr.bf16.mxu0 0
    %2307 = vmatpush1.bf16.msra.mxu0 %v1604
    %2308 = vmatprep.subr.bf16.mxu0 0
    %2309 = vmatpush1.bf16.msra.mxu0 %v1605
    %2310 = vmatprep.subr.bf16.mxu0 0
    %2311 = vmatpush1.bf16.msra.mxu0 %v1606
    %2312 = vmatprep.subr.bf16.mxu0 0
    %2313 = vmatpush1.bf16.msra.mxu0 %v1607
    %2314 = vmatprep.mubr.bf16.mxu0 %v1011
    %2315 = vmatmul.mubr.bf16.gmra.mrb[0].mxu0 %v754
    %v2316 = vpop.f32.mrb[0].mxu0
    %v2317 = vadd.f32 %v2028, %v2316
    %v2318 = vpop.f32.mrb[0].mxu0
    %v2319 = vpop.f32.mrb[0].mxu0
    %v2320 = vadd.f32 %v2031, %v2319
    %v2321 = vpop.f32.mrb[0].mxu0
    %2322 = vmatprep.mubr.bf16.mxu0 %v1012
    %2323 = vmatmul.mubr.bf16.gmra.mrb[0].mxu0 %v755
    %v2324 = vpop.f32.mrb[0].mxu0
    %v2325 = vadd.f32 %v2036, %v2324
    %v2326 = vpop.f32.mrb[0].mxu0
    %v2327 = vpop.f32.mrb[0].mxu0
    %v2328 = vadd.f32 %v2039, %v2327
    %v2329 = vpop.f32.mrb[0].mxu0
    %2330 = vmatprep.mubr.bf16.mxu0 %v1013
    %2331 = vmatmul.mubr.bf16.gmra.mrb[0].mxu0 %v756
    %v2332 = vpop.f32.mrb[0].mxu0
    %v2333 = vadd.f32 %v2044, %v2332
    %v2334 = vpop.f32.mrb[0].mxu0
    %v2335 = vpop.f32.mrb[0].mxu0
    %v2336 = vadd.f32 %v2047, %v2335
    %v2337 = vpop.f32.mrb[0].mxu0
    %2338 = vmatprep.mubr.bf16.mxu0 %v1014
    %2339 = vmatmul.mubr.bf16.gmra.mrb[0].mxu0 %v757
    %v2340 = vpop.f32.mrb[0].mxu0
    %v2341 = vadd.f32 %v2052, %v2340
    %v2342 = vpop.f32.mrb[0].mxu0
    %v2343 = vpop.f32.mrb[0].mxu0
    %v2344 = vadd.f32 %v2055, %v2343
    %v2345 = vpop.f32.mrb[0].mxu0
    %2346 = vmatprep.mubr.bf16.mxu0 %v1015
    %2347 = vmatmul.mubr.bf16.gmra.mrb[0].mxu0 %v758
    %v2348 = vpop.f32.mrb[0].mxu0
    %v2349 = vadd.f32 %v2060, %v2348
    %v2350 = vpop.f32.mrb[0].mxu0
    %v2351 = vpop.f32.mrb[0].mxu0
    %v2352 = vadd.f32 %v2063, %v2351
    %v2353 = vpop.f32.mrb[0].mxu0
    %2354 = vmatprep.mubr.bf16.mxu0 %v1016
    %2355 = vmatmul.mubr.bf16.gmra.mrb[0].mxu0 %v759
    %v2356 = vpop.f32.mrb[0].mxu0
    %v2357 = vadd.f32 %v2068, %v2356
    %v2358 = vpop.f32.mrb[0].mxu0
    %v2359 = vpop.f32.mrb[0].mxu0
    %v2360 = vadd.f32 %v2071, %v2359
    %v2361 = vpop.f32.mrb[0].mxu0
    %2362 = vmatprep.mubr.bf16.mxu0 %v1017
    %2363 = vmatmul.mubr.bf16.gmra.mrb[0].mxu0 %v760
    %v2364 = vpop.f32.mrb[0].mxu0
    %v2365 = vadd.f32 %v2076, %v2364
    %v2366 = vpop.f32.mrb[0].mxu0
    %v2367 = vpop.f32.mrb[0].mxu0
    %v2368 = vadd.f32 %v2079, %v2367
    %v2369 = vpop.f32.mrb[0].mxu0
    %2370 = vmatprep.mubr.bf16.mxu0 %v1018
    %2371 = vmatmul.mubr.bf16.gmra.mrb[0].mxu0 %v761
    %v2372 = vpop.f32.mrb[0].mxu0
    %v2373 = vadd.f32 %v2084, %v2372
    %v2374 = vpop.f32.mrb[0].mxu0
    %v2375 = vpop.f32.mrb[0].mxu0
    %v2376 = vadd.f32 %v2087, %v2375
    %v2377 = vpop.f32.mrb[0].mxu0
    %2378 = vmatprep.mubr.bf16.mxu0 %v1019
    %2379 = vmatmul.mubr.bf16.gmra.mrb[0].mxu0 %v762
    %v2380 = vpop.f32.mrb[0].mxu0
    %v2381 = vadd.f32 %v2092, %v2380
    %v2382 = vpop.f32.mrb[0].mxu0
    %v2383 = vpop.f32.mrb[0].mxu0
    %v2384 = vadd.f32 %v2095, %v2383
    %v2385 = vpop.f32.mrb[0].mxu0
    %2386 = vmatprep.mubr.bf16.mxu0 %v1020
    %2387 = vmatmul.mubr.bf16.gmra.mrb[0].mxu0 %v763
    %v2388 = vpop.f32.mrb[0].mxu0
    %v2389 = vadd.f32 %v2100, %v2388
    %v2390 = vpop.f32.mrb[0].mxu0
    %v2391 = vpop.f32.mrb[0].mxu0
    %v2392 = vadd.f32 %v2103, %v2391
    %v2393 = vpop.f32.mrb[0].mxu0
    %2394 = vmatprep.mubr.bf16.mxu0 %v1021
    %2395 = vmatmul.mubr.bf16.gmra.mrb[0].mxu0 %v764
    %v2396 = vpop.f32.mrb[0].mxu0
    %v2397 = vadd.f32 %v2108, %v2396
    %v2398 = vpop.f32.mrb[0].mxu0
    %v2399 = vpop.f32.mrb[0].mxu0
    %v2400 = vadd.f32 %v2111, %v2399
    %v2401 = vpop.f32.mrb[0].mxu0
    %2402 = vmatprep.mubr.bf16.mxu0 %v1022
    %2403 = vmatmul.mubr.bf16.gmra.mrb[0].mxu0 %v765
    %v2404 = vpop.f32.mrb[0].mxu0
    %v2405 = vadd.f32 %v2116, %v2404
    %v2406 = vpop.f32.mrb[0].mxu0
    %v2407 = vpop.f32.mrb[0].mxu0
    %v2408 = vadd.f32 %v2119, %v2407
    %v2409 = vpop.f32.mrb[0].mxu0
    %2410 = vmatprep.mubr.bf16.mxu0 %v1023
    %2411 = vmatmul.mubr.bf16.gmra.mrb[0].mxu0 %v766
    %v2412 = vpop.f32.mrb[0].mxu0
    %v2413 = vadd.f32 %v2124, %v2412
    %v2414 = vpop.f32.mrb[0].mxu0
    %v2415 = vpop.f32.mrb[0].mxu0
    %v2416 = vadd.f32 %v2127, %v2415
    %v2417 = vpop.f32.mrb[0].mxu0
    %2418 = vmatprep.mubr.bf16.mxu0 %v1024
    %2419 = vmatmul.mubr.bf16.gmra.mrb[0].mxu0 %v767
    %v2420 = vpop.f32.mrb[0].mxu0
    %v2421 = vadd.f32 %v2132, %v2420
    %v2422 = vpop.f32.mrb[0].mxu0
    %v2423 = vpop.f32.mrb[0].mxu0
    %v2424 = vadd.f32 %v2135, %v2423
    %v2425 = vpop.f32.mrb[0].mxu0
    %2426 = vmatprep.mubr.bf16.mxu0 %v1025
    %2427 = vmatmul.mubr.bf16.gmra.mrb[0].mxu0 %v768
    %v2428 = vpop.f32.mrb[0].mxu0
    %v2429 = vadd.f32 %v2140, %v2428
    %v2430 = vpop.f32.mrb[0].mxu0
    %v2431 = vpop.f32.mrb[0].mxu0
    %v2432 = vadd.f32 %v2143, %v2431
    %v2433 = vpop.f32.mrb[0].mxu0
    %2434 = vmatprep.mubr.bf16.mxu0 %v1080
    %2435 = vmatmul.mubr.bf16.gmra.mrb[0].mxu0 %v1064
    %v2436 = vpop.f32.mrb[0].mxu0
    %v2437 = vadd.f32 %v2148, %v2436
    %v2438 = vpop.f32.mrb[0].mxu0
    %v2439 = vpop.f32.mrb[0].mxu0
    %v2440 = vadd.f32 %v2151, %v2439
    %v2441 = vpop.f32.mrb[0].mxu0
    %2442 = vmatprep.mubr.bf16.mxu0 %v1027
    %2443 = vmatmul.mubr.bf16.gmra.mrb[0].mxu0 %v770
    %v2444 = vpop.f32.mrb[0].mxu0
    %v2445 = vadd.f32 %v2156, %v2444
    %v2446 = vpop.f32.mrb[0].mxu0
    %v2447 = vpop.f32.mrb[0].mxu0
    %v2448 = vadd.f32 %v2159, %v2447
    %v2449 = vpop.f32.mrb[0].mxu0
    %2450 = vmatprep.mubr.bf16.mxu0 %v1028
    %2451 = vmatmul.mubr.bf16.gmra.mrb[0].mxu0 %v771
    %v2452 = vpop.f32.mrb[0].mxu0
    %v2453 = vadd.f32 %v2164, %v2452
    %v2454 = vpop.f32.mrb[0].mxu0
    %v2455 = vpop.f32.mrb[0].mxu0
    %v2456 = vadd.f32 %v2167, %v2455
    %v2457 = vpop.f32.mrb[0].mxu0
    %2458 = vmatprep.mubr.bf16.mxu0 %v1029
    %2459 = vmatmul.mubr.bf16.gmra.mrb[0].mxu0 %v772
    %v2460 = vpop.f32.mrb[0].mxu0
    %v2461 = vadd.f32 %v2172, %v2460
    %v2462 = vpop.f32.mrb[0].mxu0
    %v2463 = vpop.f32.mrb[0].mxu0
    %v2464 = vadd.f32 %v2175, %v2463
    %v2465 = vpop.f32.mrb[0].mxu0
    %2466 = vmatprep.mubr.bf16.mxu0 %v1030
    %2467 = vmatmul.mubr.bf16.gmra.mrb[0].mxu0 %v773
    %v2468 = vpop.f32.mrb[0].mxu0
    %v2469 = vadd.f32 %v2180, %v2468
    %v2470 = vpop.f32.mrb[0].mxu0
    %v2471 = vpop.f32.mrb[0].mxu0
    %v2472 = vadd.f32 %v2183, %v2471
    %v2473 = vpop.f32.mrb[0].mxu0
    %2474 = vmatprep.mubr.bf16.mxu0 %v1031
    %2475 = vmatmul.mubr.bf16.gmra.mrb[0].mxu0 %v774
    %v2476 = vpop.f32.mrb[0].mxu0
    %v2477 = vadd.f32 %v2188, %v2476
    %v2478 = vpop.f32.mrb[0].mxu0
    %v2479 = vpop.f32.mrb[0].mxu0
    %v2480 = vadd.f32 %v2191, %v2479
    %v2481 = vpop.f32.mrb[0].mxu0
    %2482 = vmatprep.mubr.bf16.mxu0 %v1032
    %2483 = vmatmul.mubr.bf16.gmra.mrb[0].mxu0 %v775
    %v2484 = vpop.f32.mrb[0].mxu0
    %v2485 = vadd.f32 %v2196, %v2484
    %v2486 = vpop.f32.mrb[0].mxu0
    %v2487 = vpop.f32.mrb[0].mxu0
    %v2488 = vadd.f32 %v2199, %v2487
    %v2489 = vpop.f32.mrb[0].mxu0
    %2490 = vmatprep.mubr.bf16.mxu0 %v1033
    %2491 = vmatmul.mubr.bf16.gmra.mrb[0].mxu0 %v776
    %v2492 = vpop.f32.mrb[0].mxu0
    %v2493 = vadd.f32 %v2204, %v2492
    %v2494 = vpop.f32.mrb[0].mxu0
    %v2495 = vpop.f32.mrb[0].mxu0
    %v2496 = vadd.f32 %v2207, %v2495
    %v2497 = vpop.f32.mrb[0].mxu0
    %2498 = vmatprep.mubr.bf16.mxu0 %v1034
    %2499 = vmatmul.mubr.bf16.gmra.mrb[0].mxu0 %v777
    %v2500 = vpop.f32.mrb[0].mxu0
    %v2501 = vadd.f32 %v2212, %v2500
    %v2502 = vpop.f32.mrb[0].mxu0
    %v2503 = vpop.f32.mrb[0].mxu0
    %v2504 = vadd.f32 %v2215, %v2503
    %v2505 = vpop.f32.mrb[0].mxu0
    %2506 = vmatprep.mubr.bf16.mxu0 %v1035
    %2507 = vmatmul.mubr.bf16.gmra.mrb[0].mxu0 %v778
    %v2508 = vpop.f32.mrb[0].mxu0
    %v2509 = vadd.f32 %v2220, %v2508
    %v2510 = vpop.f32.mrb[0].mxu0
    %v2511 = vpop.f32.mrb[0].mxu0
    %v2512 = vadd.f32 %v2223, %v2511
    %v2513 = vpop.f32.mrb[0].mxu0
    %2514 = vmatprep.mubr.bf16.mxu0 %v1036
    %2515 = vmatmul.mubr.bf16.gmra.mrb[0].mxu0 %v779
    %v2516 = vpop.f32.mrb[0].mxu0
    %v2517 = vadd.f32 %v2228, %v2516
    %v2518 = vpop.f32.mrb[0].mxu0
    %v2519 = vpop.f32.mrb[0].mxu0
    %v2520 = vadd.f32 %v2231, %v2519
    %v2521 = vpop.f32.mrb[0].mxu0
    %2522 = vmatprep.mubr.bf16.mxu0 %v1037
    %2523 = vmatmul.mubr.bf16.gmra.mrb[0].mxu0 %v780
    %v2524 = vpop.f32.mrb[0].mxu0
    %v2525 = vadd.f32 %v2236, %v2524
    %v2526 = vpop.f32.mrb[0].mxu0
    %v2527 = vpop.f32.mrb[0].mxu0
    %v2528 = vadd.f32 %v2239, %v2527
    %v2529 = vpop.f32.mrb[0].mxu0
    %2530 = vmatprep.mubr.bf16.mxu0 %v1038
    %2531 = vmatmul.mubr.bf16.gmra.mrb[0].mxu0 %v781
    %v2532 = vpop.f32.mrb[0].mxu0
    %v2533 = vadd.f32 %v2244, %v2532
    %v2534 = vpop.f32.mrb[0].mxu0
    %v2535 = vpop.f32.mrb[0].mxu0
    %v2536 = vadd.f32 %v2247, %v2535
    %v2537 = vpop.f32.mrb[0].mxu0
    %2538 = vmatprep.mubr.bf16.mxu0 %v1039
    %2539 = vmatmul.mubr.bf16.gmra.mrb[0].mxu0 %v782
    %v2540 = vpop.f32.mrb[0].mxu0
    %v2541 = vadd.f32 %v2252, %v2540
    %v2542 = vpop.f32.mrb[0].mxu0
    %v2543 = vpop.f32.mrb[0].mxu0
    %v2544 = vadd.f32 %v2255, %v2543
    %v2545 = vpop.f32.mrb[0].mxu0
    %2546 = vmatprep.mubr.bf16.mxu0 %v1040
    %2547 = vmatmul.mubr.bf16.gmra.mrb[0].mxu0 %v783
    %v2548 = vpop.f32.mrb[0].mxu0
    %v2549 = vadd.f32 %v2260, %v2548
    %v2550 = vpop.f32.mrb[0].mxu0
    %v2551 = vpop.f32.mrb[0].mxu0
    %v2552 = vadd.f32 %v2263, %v2551
    %v2553 = vpop.f32.mrb[0].mxu0
    %2554 = vmatprep.mubr.bf16.mxu0 %v1041
    %2555 = vmatmul.mubr.bf16.gmra.mrb[0].mxu0 %v784
    %v2556 = vpop.f32.mrb[0].mxu0
    %v2557 = vadd.f32 %v2268, %v2556
    %v2558 = vpop.f32.mrb[0].mxu0
    %v2559 = vpop.f32.mrb[0].mxu0
    %v2560 = vadd.f32 %v2271, %v2559
    %v2561 = vpop.f32.mrb[0].mxu0
    %2562 = vmatprep.mubr.bf16.mxu0 %v1081
    %2563 = vmatmul.mubr.bf16.gmra.mrb[0].mxu0 %v1065
    %v2564 = vpop.f32.mrb[0].mxu0
    %v2565 = vadd.f32 %v2276, %v2564
    %v2566 = vpop.f32.mrb[0].mxu0
    %v2567 = vpop.f32.mrb[0].mxu0
    %v2568 = vadd.f32 %v2279, %v2567
    %v2569 = vpop.f32.mrb[0].mxu0
    %2570 = vdwg.mxu0
    %2571 = vmatprep.subr.bf16.mxu0 0
    %2572 = vmatpush1.bf16.msra.mxu0 %v1608
    %2573 = vmatprep.subr.bf16.mxu0 0
    %2574 = vmatpush1.bf16.msra.mxu0 %v1609
    %2575 = vmatprep.subr.bf16.mxu0 0
    %2576 = vmatpush1.bf16.msra.mxu0 %v1610
    %2577 = vmatprep.subr.bf16.mxu0 0
    %2578 = vmatpush1.bf16.msra.mxu0 %v1611
    %2579 = vmatprep.subr.bf16.mxu0 0
    %2580 = vmatpush1.bf16.msra.mxu0 %v1612
    %2581 = vmatprep.subr.bf16.mxu0 0
    %2582 = vmatpush1.bf16.msra.mxu0 %v1613
    %2583 = vmatprep.subr.bf16.mxu0 0
    %2584 = vmatpush1.bf16.msra.mxu0 %v1614
    %2585 = vmatprep.subr.bf16.mxu0 0
    %2586 = vmatpush1.bf16.msra.mxu0 %v1615
    %2587 = vmatprep.subr.bf16.mxu0 0
    %2588 = vmatpush1.bf16.msra.mxu0 %v1616
    %2589 = vmatprep.subr.bf16.mxu0 0
    %2590 = vmatpush1.bf16.msra.mxu0 %v1617
    %2591 = vmatprep.subr.bf16.mxu0 0
    %2592 = vmatpush1.bf16.msra.mxu0 %v1618
    %2593 = vmatprep.subr.bf16.mxu0 0
    %2594 = vmatpush1.bf16.msra.mxu0 %v1619
    %2595 = vmatprep.subr.bf16.mxu0 0
    %2596 = vmatpush1.bf16.msra.mxu0 %v1620
    %2597 = vmatprep.subr.bf16.mxu0 0
    %2598 = vmatpush1.bf16.msra.mxu0 %v1621
    %2599 = vmatprep.subr.bf16.mxu0 0
    %2600 = vmatpush1.bf16.msra.mxu0 %v1622
    %2601 = vmatprep.subr.bf16.mxu0 0
    %2602 = vmatpush1.bf16.msra.mxu0 %v1623
    %2603 = vmatprep.mubr.bf16.mxu0 %v755
    %2604 = vmatmul.mubr.bf16.gmra.mrb[0].mxu0 %v402
    %v2605 = vpop.f32.mrb[0].mxu0
    %v2606 = vadd.f32 %v2317, %v2605
    %v2607 = vpop.f32.mrb[0].mxu0
    %v2608 = vpop.f32.mrb[0].mxu0
    %v2609 = vadd.f32 %v2320, %v2608
    %v2610 = vpop.f32.mrb[0].mxu0
    %2611 = vmatprep.mubr.bf16.mxu0 %v756
    %2612 = vmatmul.mubr.bf16.gmra.mrb[0].mxu0 %v403
    %v2613 = vpop.f32.mrb[0].mxu0
    %v2614 = vadd.f32 %v2325, %v2613
    %v2615 = vpop.f32.mrb[0].mxu0
    %v2616 = vpop.f32.mrb[0].mxu0
    %v2617 = vadd.f32 %v2328, %v2616
    %v2618 = vpop.f32.mrb[0].mxu0
    %2619 = vmatprep.mubr.bf16.mxu0 %v757
    %2620 = vmatmul.mubr.bf16.gmra.mrb[0].mxu0 %v404
    %v2621 = vpop.f32.mrb[0].mxu0
    %v2622 = vadd.f32 %v2333, %v2621
    %v2623 = vpop.f32.mrb[0].mxu0
    %v2624 = vpop.f32.mrb[0].mxu0
    %v2625 = vadd.f32 %v2336, %v2624
    %v2626 = vpop.f32.mrb[0].mxu0
    %2627 = vmatprep.mubr.bf16.mxu0 %v758
    %2628 = vmatmul.mubr.bf16.gmra.mrb[0].mxu0 %v405
    %v2629 = vpop.f32.mrb[0].mxu0
    %v2630 = vadd.f32 %v2341, %v2629
    %v2631 = vpop.f32.mrb[0].mxu0
    %v2632 = vpop.f32.mrb[0].mxu0
    %v2633 = vadd.f32 %v2344, %v2632
    %v2634 = vpop.f32.mrb[0].mxu0
    %2635 = vmatprep.mubr.bf16.mxu0 %v759
    %2636 = vmatmul.mubr.bf16.gmra.mrb[0].mxu0 %v406
    %v2637 = vpop.f32.mrb[0].mxu0
    %v2638 = vadd.f32 %v2349, %v2637
    %v2639 = vpop.f32.mrb[0].mxu0
    %v2640 = vpop.f32.mrb[0].mxu0
    %v2641 = vadd.f32 %v2352, %v2640
    %v2642 = vpop.f32.mrb[0].mxu0
    %2643 = vmatprep.mubr.bf16.mxu0 %v760
    %2644 = vmatmul.mubr.bf16.gmra.mrb[0].mxu0 %v407
    %v2645 = vpop.f32.mrb[0].mxu0
    %v2646 = vadd.f32 %v2357, %v2645
    %v2647 = vpop.f32.mrb[0].mxu0
    %v2648 = vpop.f32.mrb[0].mxu0
    %v2649 = vadd.f32 %v2360, %v2648
    %v2650 = vpop.f32.mrb[0].mxu0
    %2651 = vmatprep.mubr.bf16.mxu0 %v761
    %2652 = vmatmul.mubr.bf16.gmra.mrb[0].mxu0 %v408
    %v2653 = vpop.f32.mrb[0].mxu0
    %v2654 = vadd.f32 %v2365, %v2653
    %v2655 = vpop.f32.mrb[0].mxu0
    %v2656 = vpop.f32.mrb[0].mxu0
    %v2657 = vadd.f32 %v2368, %v2656
    %v2658 = vpop.f32.mrb[0].mxu0
    %2659 = vmatprep.mubr.bf16.mxu0 %v762
    %2660 = vmatmul.mubr.bf16.gmra.mrb[0].mxu0 %v409
    %v2661 = vpop.f32.mrb[0].mxu0
    %v2662 = vadd.f32 %v2373, %v2661
    %v2663 = vpop.f32.mrb[0].mxu0
    %v2664 = vpop.f32.mrb[0].mxu0
    %v2665 = vadd.f32 %v2376, %v2664
    %v2666 = vpop.f32.mrb[0].mxu0
    %2667 = vmatprep.mubr.bf16.mxu0 %v763
    %2668 = vmatmul.mubr.bf16.gmra.mrb[0].mxu0 %v410
    %v2669 = vpop.f32.mrb[0].mxu0
    %v2670 = vadd.f32 %v2381, %v2669
    %v2671 = vpop.f32.mrb[0].mxu0
    %v2672 = vpop.f32.mrb[0].mxu0
    %v2673 = vadd.f32 %v2384, %v2672
    %v2674 = vpop.f32.mrb[0].mxu0
    %2675 = vmatprep.mubr.bf16.mxu0 %v764
    %2676 = vmatmul.mubr.bf16.gmra.mrb[0].mxu0 %v411
    %v2677 = vpop.f32.mrb[0].mxu0
    %v2678 = vadd.f32 %v2389, %v2677
    %v2679 = vpop.f32.mrb[0].mxu0
    %v2680 = vpop.f32.mrb[0].mxu0
    %v2681 = vadd.f32 %v2392, %v2680
    %v2682 = vpop.f32.mrb[0].mxu0
    %2683 = vmatprep.mubr.bf16.mxu0 %v765
    %2684 = vmatmul.mubr.bf16.gmra.mrb[0].mxu0 %v412
    %v2685 = vpop.f32.mrb[0].mxu0
    %v2686 = vadd.f32 %v2397, %v2685
    %v2687 = vpop.f32.mrb[0].mxu0
    %v2688 = vpop.f32.mrb[0].mxu0
    %v2689 = vadd.f32 %v2400, %v2688
    %v2690 = vpop.f32.mrb[0].mxu0
    %2691 = vmatprep.mubr.bf16.mxu0 %v766
    %2692 = vmatmul.mubr.bf16.gmra.mrb[0].mxu0 %v413
    %v2693 = vpop.f32.mrb[0].mxu0
    %v2694 = vadd.f32 %v2405, %v2693
    %v2695 = vpop.f32.mrb[0].mxu0
    %v2696 = vpop.f32.mrb[0].mxu0
    %v2697 = vadd.f32 %v2408, %v2696
    %v2698 = vpop.f32.mrb[0].mxu0
    %2699 = vmatprep.mubr.bf16.mxu0 %v767
    %2700 = vmatmul.mubr.bf16.gmra.mrb[0].mxu0 %v414
    %v2701 = vpop.f32.mrb[0].mxu0
    %v2702 = vadd.f32 %v2413, %v2701
    %v2703 = vpop.f32.mrb[0].mxu0
    %v2704 = vpop.f32.mrb[0].mxu0
    %v2705 = vadd.f32 %v2416, %v2704
    %v2706 = vpop.f32.mrb[0].mxu0
    %2707 = vmatprep.mubr.bf16.mxu0 %v768
    %2708 = vmatmul.mubr.bf16.gmra.mrb[0].mxu0 %v415
    %v2709 = vpop.f32.mrb[0].mxu0
    %v2710 = vadd.f32 %v2421, %v2709
    %v2711 = vpop.f32.mrb[0].mxu0
    %v2712 = vpop.f32.mrb[0].mxu0
    %v2713 = vadd.f32 %v2424, %v2712
    %v2714 = vpop.f32.mrb[0].mxu0
    %2715 = vmatprep.mubr.bf16.mxu0 %v1064
    %2716 = vmatmul.mubr.bf16.gmra.mrb[0].mxu0 %v1042
    %v2717 = vpop.f32.mrb[0].mxu0
    %v2718 = vadd.f32 %v2429, %v2717
    %v2719 = vpop.f32.mrb[0].mxu0
    %v2720 = vpop.f32.mrb[0].mxu0
    %v2721 = vadd.f32 %v2432, %v2720
    %v2722 = vpop.f32.mrb[0].mxu0
    %2723 = vmatprep.mubr.bf16.mxu0 %v1104
    %2724 = vmatmul.mubr.bf16.gmra.mrb[0].mxu0 %v1082
    %v2725 = vpop.f32.mrb[0].mxu0
    %v2726 = vadd.f32 %v2437, %v2725
    %v2727 = vpop.f32.mrb[0].mxu0
    %v2728 = vpop.f32.mrb[0].mxu0
    %v2729 = vadd.f32 %v2440, %v2728
    %v2730 = vpop.f32.mrb[0].mxu0
    %2731 = vmatprep.mubr.bf16.mxu0 %v771
    %2732 = vmatmul.mubr.bf16.gmra.mrb[0].mxu0 %v418
    %v2733 = vpop.f32.mrb[0].mxu0
    %v2734 = vadd.f32 %v2445, %v2733
    %v2735 = vpop.f32.mrb[0].mxu0
    %v2736 = vpop.f32.mrb[0].mxu0
    %v2737 = vadd.f32 %v2448, %v2736
    %v2738 = vpop.f32.mrb[0].mxu0
    %2739 = vmatprep.mubr.bf16.mxu0 %v772
    %2740 = vmatmul.mubr.bf16.gmra.mrb[0].mxu0 %v419
    %v2741 = vpop.f32.mrb[0].mxu0
    %v2742 = vadd.f32 %v2453, %v2741
    %v2743 = vpop.f32.mrb[0].mxu0
    %v2744 = vpop.f32.mrb[0].mxu0
    %v2745 = vadd.f32 %v2456, %v2744
    %v2746 = vpop.f32.mrb[0].mxu0
    %2747 = vmatprep.mubr.bf16.mxu0 %v773
    %2748 = vmatmul.mubr.bf16.gmra.mrb[0].mxu0 %v420
    %v2749 = vpop.f32.mrb[0].mxu0
    %v2750 = vadd.f32 %v2461, %v2749
    %v2751 = vpop.f32.mrb[0].mxu0
    %v2752 = vpop.f32.mrb[0].mxu0
    %v2753 = vadd.f32 %v2464, %v2752
    %v2754 = vpop.f32.mrb[0].mxu0
    %2755 = vmatprep.mubr.bf16.mxu0 %v774
    %2756 = vmatmul.mubr.bf16.gmra.mrb[0].mxu0 %v421
    %v2757 = vpop.f32.mrb[0].mxu0
    %v2758 = vadd.f32 %v2469, %v2757
    %v2759 = vpop.f32.mrb[0].mxu0
    %v2760 = vpop.f32.mrb[0].mxu0
    %v2761 = vadd.f32 %v2472, %v2760
    %v2762 = vpop.f32.mrb[0].mxu0
    %2763 = vmatprep.mubr.bf16.mxu0 %v775
    %2764 = vmatmul.mubr.bf16.gmra.mrb[0].mxu0 %v422
    %v2765 = vpop.f32.mrb[0].mxu0
    %v2766 = vadd.f32 %v2477, %v2765
    %v2767 = vpop.f32.mrb[0].mxu0
    %v2768 = vpop.f32.mrb[0].mxu0
    %v2769 = vadd.f32 %v2480, %v2768
    %v2770 = vpop.f32.mrb[0].mxu0
    %2771 = vmatprep.mubr.bf16.mxu0 %v776
    %2772 = vmatmul.mubr.bf16.gmra.mrb[0].mxu0 %v423
    %v2773 = vpop.f32.mrb[0].mxu0
    %v2774 = vadd.f32 %v2485, %v2773
    %v2775 = vpop.f32.mrb[0].mxu0
    %v2776 = vpop.f32.mrb[0].mxu0
    %v2777 = vadd.f32 %v2488, %v2776
    %v2778 = vpop.f32.mrb[0].mxu0
    %2779 = vmatprep.mubr.bf16.mxu0 %v777
    %2780 = vmatmul.mubr.bf16.gmra.mrb[0].mxu0 %v424
    %v2781 = vpop.f32.mrb[0].mxu0
    %v2782 = vadd.f32 %v2493, %v2781
    %v2783 = vpop.f32.mrb[0].mxu0
    %v2784 = vpop.f32.mrb[0].mxu0
    %v2785 = vadd.f32 %v2496, %v2784
    %v2786 = vpop.f32.mrb[0].mxu0
    %2787 = vmatprep.mubr.bf16.mxu0 %v778
    %2788 = vmatmul.mubr.bf16.gmra.mrb[0].mxu0 %v425
    %v2789 = vpop.f32.mrb[0].mxu0
    %v2790 = vadd.f32 %v2501, %v2789
    %v2791 = vpop.f32.mrb[0].mxu0
    %v2792 = vpop.f32.mrb[0].mxu0
    %v2793 = vadd.f32 %v2504, %v2792
    %v2794 = vpop.f32.mrb[0].mxu0
    %2795 = vmatprep.mubr.bf16.mxu0 %v779
    %2796 = vmatmul.mubr.bf16.gmra.mrb[0].mxu0 %v426
    %v2797 = vpop.f32.mrb[0].mxu0
    %v2798 = vadd.f32 %v2509, %v2797
    %v2799 = vpop.f32.mrb[0].mxu0
    %v2800 = vpop.f32.mrb[0].mxu0
    %v2801 = vadd.f32 %v2512, %v2800
    %v2802 = vpop.f32.mrb[0].mxu0
    %2803 = vmatprep.mubr.bf16.mxu0 %v780
    %2804 = vmatmul.mubr.bf16.gmra.mrb[0].mxu0 %v427
    %v2805 = vpop.f32.mrb[0].mxu0
    %v2806 = vadd.f32 %v2517, %v2805
    %v2807 = vpop.f32.mrb[0].mxu0
    %v2808 = vpop.f32.mrb[0].mxu0
    %v2809 = vadd.f32 %v2520, %v2808
    %v2810 = vpop.f32.mrb[0].mxu0
    %2811 = vmatprep.mubr.bf16.mxu0 %v781
    %2812 = vmatmul.mubr.bf16.gmra.mrb[0].mxu0 %v428
    %v2813 = vpop.f32.mrb[0].mxu0
    %v2814 = vadd.f32 %v2525, %v2813
    %v2815 = vpop.f32.mrb[0].mxu0
    %v2816 = vpop.f32.mrb[0].mxu0
    %v2817 = vadd.f32 %v2528, %v2816
    %v2818 = vpop.f32.mrb[0].mxu0
    %2819 = vmatprep.mubr.bf16.mxu0 %v782
    %2820 = vmatmul.mubr.bf16.gmra.mrb[0].mxu0 %v429
    %v2821 = vpop.f32.mrb[0].mxu0
    %v2822 = vadd.f32 %v2533, %v2821
    %v2823 = vpop.f32.mrb[0].mxu0
    %v2824 = vpop.f32.mrb[0].mxu0
    %v2825 = vadd.f32 %v2536, %v2824
    %v2826 = vpop.f32.mrb[0].mxu0
    %2827 = vmatprep.mubr.bf16.mxu0 %v783
    %2828 = vmatmul.mubr.bf16.gmra.mrb[0].mxu0 %v430
    %v2829 = vpop.f32.mrb[0].mxu0
    %v2830 = vadd.f32 %v2541, %v2829
    %v2831 = vpop.f32.mrb[0].mxu0
    %v2832 = vpop.f32.mrb[0].mxu0
    %v2833 = vadd.f32 %v2544, %v2832
    %v2834 = vpop.f32.mrb[0].mxu0
    %2835 = vmatprep.mubr.bf16.mxu0 %v784
    %2836 = vmatmul.mubr.bf16.gmra.mrb[0].mxu0 %v431
    %v2837 = vpop.f32.mrb[0].mxu0
    %v2838 = vadd.f32 %v2549, %v2837
    %v2839 = vpop.f32.mrb[0].mxu0
    %v2840 = vpop.f32.mrb[0].mxu0
    %v2841 = vadd.f32 %v2552, %v2840
    %v2842 = vpop.f32.mrb[0].mxu0
    %2843 = vmatprep.mubr.bf16.mxu0 %v1065
    %2844 = vmatmul.mubr.bf16.gmra.mrb[0].mxu0 %v1043
    %v2845 = vpop.f32.mrb[0].mxu0
    %v2846 = vadd.f32 %v2557, %v2845
    %v2847 = vpop.f32.mrb[0].mxu0
    %v2848 = vpop.f32.mrb[0].mxu0
    %v2849 = vadd.f32 %v2560, %v2848
    %v2850 = vpop.f32.mrb[0].mxu0
    %2851 = vmatprep.mubr.bf16.mxu0 %v1105
    %2852 = vmatmul.mubr.bf16.gmra.mrb[0].mxu0 %v1083
    %v2853 = vpop.f32.mrb[0].mxu0
    %v2854 = vadd.f32 %v2565, %v2853
    %v2855 = vpop.f32.mrb[0].mxu0
    %v2856 = vpop.f32.mrb[0].mxu0
    %v2857 = vadd.f32 %v2568, %v2856
    %v2858 = vpop.f32.mrb[0].mxu0
    %2859 = vdwg.mxu0
    %2860 = vmatprep.subr.bf16.mxu0 0
    %2861 = vmatpush1.bf16.msra.mxu0 %v1624
    %2862 = vmatprep.subr.bf16.mxu0 0
    %2863 = vmatpush1.bf16.msra.mxu0 %v1625
    %2864 = vmatprep.subr.bf16.mxu0 0
    %2865 = vmatpush1.bf16.msra.mxu0 %v1626
    %2866 = vmatprep.subr.bf16.mxu0 0
    %2867 = vmatpush1.bf16.msra.mxu0 %v1627
    %2868 = vmatprep.subr.bf16.mxu0 0
    %2869 = vmatpush1.bf16.msra.mxu0 %v1628
    %2870 = vmatprep.subr.bf16.mxu0 0
    %2871 = vmatpush1.bf16.msra.mxu0 %v1629
    %2872 = vmatprep.subr.bf16.mxu0 0
    %2873 = vmatpush1.bf16.msra.mxu0 %v1630
    %2874 = vmatprep.subr.bf16.mxu0 0
    %2875 = vmatpush1.bf16.msra.mxu0 %v1631
    %2876 = vmatprep.subr.bf16.mxu0 0
    %2877 = vmatpush1.bf16.msra.mxu0 0
    %2878 = vmatprep.subr.bf16.mxu0 0
    %2879 = vmatpush1.bf16.msra.mxu0 0
    %2880 = vmatprep.subr.bf16.mxu0 0
    %2881 = vmatpush1.bf16.msra.mxu0 0
    %2882 = vmatprep.subr.bf16.mxu0 0
    %2883 = vmatpush1.bf16.msra.mxu0 0
    %2884 = vmatprep.subr.bf16.mxu0 0
    %2885 = vmatpush1.bf16.msra.mxu0 0
    %2886 = vmatprep.subr.bf16.mxu0 0
    %2887 = vmatpush1.bf16.msra.mxu0 0
    %2888 = vmatprep.subr.bf16.mxu0 0
    %2889 = vmatpush1.bf16.msra.mxu0 0
    %2890 = vmatprep.subr.bf16.mxu0 0
    %2891 = vmatpush1.bf16.msra.mxu0 0
    %2892 = vmatprep.mubr.bf16.mxu0 0
    %2893 = vmatmul.mubr.bf16.gmra.mrb[0].mxu0 %v1012
    %v2894 = vpop.f32.mrb[0].mxu0
    %v2895 = vadd.f32 %v2606, %v2894
    %v2896 = vpop.f32.mrb[0].mxu0
    %v2897 = vpop.f32.mrb[0].mxu0
    %v2898 = vadd.f32 %v2609, %v2897
    %v2899 = vpop.f32.mrb[0].mxu0
    %2900 = vmatprep.mubr.bf16.mxu0 0
    %2901 = vmatmul.mubr.bf16.gmra.mrb[0].mxu0 %v1013
    %v2902 = vpop.f32.mrb[0].mxu0
    %v2903 = vadd.f32 %v2614, %v2902
    %v2904 = vpop.f32.mrb[0].mxu0
    %v2905 = vpop.f32.mrb[0].mxu0
    %v2906 = vadd.f32 %v2617, %v2905
    %v2907 = vpop.f32.mrb[0].mxu0
    %2908 = vmatprep.mubr.bf16.mxu0 0
    %2909 = vmatmul.mubr.bf16.gmra.mrb[0].mxu0 %v1014
    %v2910 = vpop.f32.mrb[0].mxu0
    %v2911 = vadd.f32 %v2622, %v2910
    %v2912 = vpop.f32.mrb[0].mxu0
    %v2913 = vpop.f32.mrb[0].mxu0
    %v2914 = vadd.f32 %v2625, %v2913
    %v2915 = vpop.f32.mrb[0].mxu0
    %2916 = vmatprep.mubr.bf16.mxu0 0
    %2917 = vmatmul.mubr.bf16.gmra.mrb[0].mxu0 %v1015
    %v2918 = vpop.f32.mrb[0].mxu0
    %v2919 = vadd.f32 %v2630, %v2918
    %v2920 = vpop.f32.mrb[0].mxu0
    %v2921 = vpop.f32.mrb[0].mxu0
    %v2922 = vadd.f32 %v2633, %v2921
    %v2923 = vpop.f32.mrb[0].mxu0
    %2924 = vmatprep.mubr.bf16.mxu0 0
    %2925 = vmatmul.mubr.bf16.gmra.mrb[0].mxu0 %v1016
    %v2926 = vpop.f32.mrb[0].mxu0
    %v2927 = vadd.f32 %v2638, %v2926
    %v2928 = vpop.f32.mrb[0].mxu0
    %v2929 = vpop.f32.mrb[0].mxu0
    %v2930 = vadd.f32 %v2641, %v2929
    %v2931 = vpop.f32.mrb[0].mxu0
    %2932 = vmatprep.mubr.bf16.mxu0 0
    %2933 = vmatmul.mubr.bf16.gmra.mrb[0].mxu0 %v1017
    %v2934 = vpop.f32.mrb[0].mxu0
    %v2935 = vadd.f32 %v2646, %v2934
    %v2936 = vpop.f32.mrb[0].mxu0
    %v2937 = vpop.f32.mrb[0].mxu0
    %v2938 = vadd.f32 %v2649, %v2937
    %v2939 = vpop.f32.mrb[0].mxu0
    %2940 = vmatprep.mubr.bf16.mxu0 0
    %2941 = vmatmul.mubr.bf16.gmra.mrb[0].mxu0 %v1018
    %v2942 = vpop.f32.mrb[0].mxu0
    %v2943 = vadd.f32 %v2654, %v2942
    %v2944 = vpop.f32.mrb[0].mxu0
    %v2945 = vpop.f32.mrb[0].mxu0
    %v2946 = vadd.f32 %v2657, %v2945
    %v2947 = vpop.f32.mrb[0].mxu0
    %2948 = vmatprep.mubr.bf16.mxu0 0
    %2949 = vmatmul.mubr.bf16.gmra.mrb[0].mxu0 %v1019
    %v2950 = vpop.f32.mrb[0].mxu0
    %v2951 = vadd.f32 %v2662, %v2950
    %v2952 = vpop.f32.mrb[0].mxu0
    %v2953 = vpop.f32.mrb[0].mxu0
    %v2954 = vadd.f32 %v2665, %v2953
    %v2955 = vpop.f32.mrb[0].mxu0
    %2956 = vmatprep.mubr.bf16.mxu0 0
    %2957 = vmatmul.mubr.bf16.gmra.mrb[0].mxu0 %v1020
    %v2958 = vpop.f32.mrb[0].mxu0
    %v2959 = vadd.f32 %v2670, %v2958
    %v2960 = vpop.f32.mrb[0].mxu0
    %v2961 = vpop.f32.mrb[0].mxu0
    %v2962 = vadd.f32 %v2673, %v2961
    %v2963 = vpop.f32.mrb[0].mxu0
    %2964 = vmatprep.mubr.bf16.mxu0 0
    %2965 = vmatmul.mubr.bf16.gmra.mrb[0].mxu0 %v1021
    %v2966 = vpop.f32.mrb[0].mxu0
    %v2967 = vadd.f32 %v2678, %v2966
    %v2968 = vpop.f32.mrb[0].mxu0
    %v2969 = vpop.f32.mrb[0].mxu0
    %v2970 = vadd.f32 %v2681, %v2969
    %v2971 = vpop.f32.mrb[0].mxu0
    %2972 = vmatprep.mubr.bf16.mxu0 0
    %2973 = vmatmul.mubr.bf16.gmra.mrb[0].mxu0 %v1022
    %v2974 = vpop.f32.mrb[0].mxu0
    %v2975 = vadd.f32 %v2686, %v2974
    %v2976 = vpop.f32.mrb[0].mxu0
    %v2977 = vpop.f32.mrb[0].mxu0
    %v2978 = vadd.f32 %v2689, %v2977
    %v2979 = vpop.f32.mrb[0].mxu0
    %2980 = vmatprep.mubr.bf16.mxu0 0
    %2981 = vmatmul.mubr.bf16.gmra.mrb[0].mxu0 %v1023
    %v2982 = vpop.f32.mrb[0].mxu0
    %v2983 = vadd.f32 %v2694, %v2982
    %v2984 = vpop.f32.mrb[0].mxu0
    %v2985 = vpop.f32.mrb[0].mxu0
    %v2986 = vadd.f32 %v2697, %v2985
    %v2987 = vpop.f32.mrb[0].mxu0
    %2988 = vmatprep.mubr.bf16.mxu0 0
    %2989 = vmatmul.mubr.bf16.gmra.mrb[0].mxu0 %v1024
    %v2990 = vpop.f32.mrb[0].mxu0
    %v2991 = vadd.f32 %v2702, %v2990
    %v2992 = vpop.f32.mrb[0].mxu0
    %v2993 = vpop.f32.mrb[0].mxu0
    %v2994 = vadd.f32 %v2705, %v2993
    %v2995 = vpop.f32.mrb[0].mxu0
    %2996 = vmatprep.mubr.bf16.mxu0 0
    %2997 = vmatmul.mubr.bf16.gmra.mrb[0].mxu0 %v1025
    %v2998 = vpop.f32.mrb[0].mxu0
    %v2999 = vadd.f32 %v2710, %v2998
    %v3000 = vpop.f32.mrb[0].mxu0
    %v3001 = vpop.f32.mrb[0].mxu0
    %v3002 = vadd.f32 %v2713, %v3001
    %v3003 = vpop.f32.mrb[0].mxu0
    %3004 = vmatprep.mubr.bf16.mxu0 0
    %3005 = vmatmul.mubr.bf16.gmra.mrb[0].mxu0 %v1080
    %v3006 = vpop.f32.mrb[0].mxu0
    %v3007 = vadd.f32 %v2718, %v3006
    %v3008 = vpop.f32.mrb[0].mxu0
    %v3009 = vpop.f32.mrb[0].mxu0
    %v3010 = vadd.f32 %v2721, %v3009
    %v3011 = vpop.f32.mrb[0].mxu0
    %3012 = vmatprep.mubr.bf16.mxu0 0
    %3013 = vmatmul.mubr.bf16.gmra.mrb[0].mxu0 %v1120
    %v3014 = vpop.f32.mrb[0].mxu0
    %v3015 = vadd.f32 %v2726, %v3014
    %v3016 = vpop.f32.mrb[0].mxu0
    %v3017 = vpop.f32.mrb[0].mxu0
    %v3018 = vadd.f32 %v2729, %v3017
    %v3019 = vpop.f32.mrb[0].mxu0
    %3020 = vmatprep.mubr.bf16.mxu0 0
    %3021 = vmatmul.mubr.bf16.gmra.mrb[0].mxu0 %v1028
    %v3022 = vpop.f32.mrb[0].mxu0
    %v3023 = vadd.f32 %v2734, %v3022
    %v3024 = vpop.f32.mrb[0].mxu0
    %v3025 = vpop.f32.mrb[0].mxu0
    %v3026 = vadd.f32 %v2737, %v3025
    %v3027 = vpop.f32.mrb[0].mxu0
    %3028 = vmatprep.mubr.bf16.mxu0 0
    %3029 = vmatmul.mubr.bf16.gmra.mrb[0].mxu0 %v1029
    %v3030 = vpop.f32.mrb[0].mxu0
    %v3031 = vadd.f32 %v2742, %v3030
    %v3032 = vpop.f32.mrb[0].mxu0
    %v3033 = vpop.f32.mrb[0].mxu0
    %v3034 = vadd.f32 %v2745, %v3033
    %v3035 = vpop.f32.mrb[0].mxu0
    %3036 = vmatprep.mubr.bf16.mxu0 0
    %3037 = vmatmul.mubr.bf16.gmra.mrb[0].mxu0 %v1030
    %v3038 = vpop.f32.mrb[0].mxu0
    %v3039 = vadd.f32 %v2750, %v3038
    %v3040 = vpop.f32.mrb[0].mxu0
    %v3041 = vpop.f32.mrb[0].mxu0
    %v3042 = vadd.f32 %v2753, %v3041
    %v3043 = vpop.f32.mrb[0].mxu0
    %3044 = vmatprep.mubr.bf16.mxu0 0
    %3045 = vmatmul.mubr.bf16.gmra.mrb[0].mxu0 %v1031
    %v3046 = vpop.f32.mrb[0].mxu0
    %v3047 = vadd.f32 %v2758, %v3046
    %v3048 = vpop.f32.mrb[0].mxu0
    %v3049 = vpop.f32.mrb[0].mxu0
    %v3050 = vadd.f32 %v2761, %v3049
    %v3051 = vpop.f32.mrb[0].mxu0
    %3052 = vmatprep.mubr.bf16.mxu0 0
    %3053 = vmatmul.mubr.bf16.gmra.mrb[0].mxu0 %v1032
    %v3054 = vpop.f32.mrb[0].mxu0
    %v3055 = vadd.f32 %v2766, %v3054
    %v3056 = vpop.f32.mrb[0].mxu0
    %v3057 = vpop.f32.mrb[0].mxu0
    %v3058 = vadd.f32 %v2769, %v3057
    %v3059 = vpop.f32.mrb[0].mxu0
    %3060 = vmatprep.mubr.bf16.mxu0 0
    %3061 = vmatmul.mubr.bf16.gmra.mrb[0].mxu0 %v1033
    %v3062 = vpop.f32.mrb[0].mxu0
    %v3063 = vadd.f32 %v2774, %v3062
    %v3064 = vpop.f32.mrb[0].mxu0
    %v3065 = vpop.f32.mrb[0].mxu0
    %v3066 = vadd.f32 %v2777, %v3065
    %v3067 = vpop.f32.mrb[0].mxu0
    %3068 = vmatprep.mubr.bf16.mxu0 0
    %3069 = vmatmul.mubr.bf16.gmra.mrb[0].mxu0 %v1034
    %v3070 = vpop.f32.mrb[0].mxu0
    %v3071 = vadd.f32 %v2782, %v3070
    %v3072 = vpop.f32.mrb[0].mxu0
    %v3073 = vpop.f32.mrb[0].mxu0
    %v3074 = vadd.f32 %v2785, %v3073
    %v3075 = vpop.f32.mrb[0].mxu0
    %3076 = vmatprep.mubr.bf16.mxu0 0
    %3077 = vmatmul.mubr.bf16.gmra.mrb[0].mxu0 %v1035
    %v3078 = vpop.f32.mrb[0].mxu0
    %v3079 = vadd.f32 %v2790, %v3078
    %v3080 = vpop.f32.mrb[0].mxu0
    %v3081 = vpop.f32.mrb[0].mxu0
    %v3082 = vadd.f32 %v2793, %v3081
    %v3083 = vpop.f32.mrb[0].mxu0
    %3084 = vmatprep.mubr.bf16.mxu0 0
    %3085 = vmatmul.mubr.bf16.gmra.mrb[0].mxu0 %v1036
    %v3086 = vpop.f32.mrb[0].mxu0
    %v3087 = vadd.f32 %v2798, %v3086
    %v3088 = vpop.f32.mrb[0].mxu0
    %v3089 = vpop.f32.mrb[0].mxu0
    %v3090 = vadd.f32 %v2801, %v3089
    %v3091 = vpop.f32.mrb[0].mxu0
    %3092 = vmatprep.mubr.bf16.mxu0 0
    %3093 = vmatmul.mubr.bf16.gmra.mrb[0].mxu0 %v1037
    %v3094 = vpop.f32.mrb[0].mxu0
    %v3095 = vadd.f32 %v2806, %v3094
    %v3096 = vpop.f32.mrb[0].mxu0
    %v3097 = vpop.f32.mrb[0].mxu0
    %v3098 = vadd.f32 %v2809, %v3097
    %v3099 = vpop.f32.mrb[0].mxu0
    %3100 = vmatprep.mubr.bf16.mxu0 0
    %3101 = vmatmul.mubr.bf16.gmra.mrb[0].mxu0 %v1038
    %v3102 = vpop.f32.mrb[0].mxu0
    %v3103 = vadd.f32 %v2814, %v3102
    %v3104 = vpop.f32.mrb[0].mxu0
    %v3105 = vpop.f32.mrb[0].mxu0
    %v3106 = vadd.f32 %v2817, %v3105
    %v3107 = vpop.f32.mrb[0].mxu0
    %3108 = vmatprep.mubr.bf16.mxu0 0
    %3109 = vmatmul.mubr.bf16.gmra.mrb[0].mxu0 %v1039
    %v3110 = vpop.f32.mrb[0].mxu0
    %v3111 = vadd.f32 %v2822, %v3110
    %v3112 = vpop.f32.mrb[0].mxu0
    %v3113 = vpop.f32.mrb[0].mxu0
    %v3114 = vadd.f32 %v2825, %v3113
    %v3115 = vpop.f32.mrb[0].mxu0
    %3116 = vmatprep.mubr.bf16.mxu0 0
    %3117 = vmatmul.mubr.bf16.gmra.mrb[0].mxu0 %v1040
    %v3118 = vpop.f32.mrb[0].mxu0
    %v3119 = vadd.f32 %v2830, %v3118
    %v3120 = vpop.f32.mrb[0].mxu0
    %v3121 = vpop.f32.mrb[0].mxu0
    %v3122 = vadd.f32 %v2833, %v3121
    %v3123 = vpop.f32.mrb[0].mxu0
    %3124 = vmatprep.mubr.bf16.mxu0 0
    %3125 = vmatmul.mubr.bf16.gmra.mrb[0].mxu0 %v1041
    %v3126 = vpop.f32.mrb[0].mxu0
    %v3127 = vadd.f32 %v2838, %v3126
    %v3128 = vpop.f32.mrb[0].mxu0
    %v3129 = vpop.f32.mrb[0].mxu0
    %v3130 = vadd.f32 %v2841, %v3129
    %v3131 = vpop.f32.mrb[0].mxu0
    %3132 = vmatprep.mubr.bf16.mxu0 0
    %3133 = vmatmul.mubr.bf16.gmra.mrb[0].mxu0 %v1081
    %v3134 = vpop.f32.mrb[0].mxu0
    %v3135 = vadd.f32 %v2846, %v3134
    %v3136 = vpop.f32.mrb[0].mxu0
    %v3137 = vpop.f32.mrb[0].mxu0
    %v3138 = vadd.f32 %v2849, %v3137
    %v3139 = vpop.f32.mrb[0].mxu0
    %3140 = vmatprep.mubr.bf16.mxu0 0
    %3141 = vmatmul.mubr.bf16.gmra.mrb[0].mxu0 %v1121
    %v3142 = vpop.f32.mrb[0].mxu0
    %v3143 = vadd.f32 %v2854, %v3142
    %v3144 = vpop.f32.mrb[0].mxu0
    %v3145 = vpop.f32.mrb[0].mxu0
    %v3146 = vadd.f32 %v2857, %v3145
    %v3147 = vpop.f32.mrb[0].mxu0
    %3148 = vdwg.mxu0
    %v3149 = vmax.f32 %v2895, 0.0
    %v3150 = vmax.f32 %v2898, 0.0
    %v3151 = vmax.f32 %v2903, 0.0
    %v3152 = vmax.f32 %v2906, 0.0
    %v3153 = vmax.f32 %v2911, 0.0
    %v3154 = vmax.f32 %v2914, 0.0
    %v3155 = vmax.f32 %v2919, 0.0
    %v3156 = vmax.f32 %v2922, 0.0
    %v3157 = vmax.f32 %v2927, 0.0
    %v3158 = vmax.f32 %v2930, 0.0
    %v3159 = vmax.f32 %v2935, 0.0
    %v3160 = vmax.f32 %v2938, 0.0
    %v3161 = vmax.f32 %v2943, 0.0
    %v3162 = vmax.f32 %v2946, 0.0
    %v3163 = vmax.f32 %v2951, 0.0
    %v3164 = vmax.f32 %v2954, 0.0
    %v3165 = vmax.f32 %v2959, 0.0
    %v3166 = vmax.f32 %v2962, 0.0
    %v3167 = vmax.f32 %v2967, 0.0
    %v3168 = vmax.f32 %v2970, 0.0
    %v3169 = vmax.f32 %v2975, 0.0
    %v3170 = vmax.f32 %v2978, 0.0
    %v3171 = vmax.f32 %v2983, 0.0
    %v3172 = vmax.f32 %v2986, 0.0
    %v3173 = vmax.f32 %v2991, 0.0
    %v3174 = vmax.f32 %v2994, 0.0
    %v3175 = vmax.f32 %v2999, 0.0
    %v3176 = vmax.f32 %v3002, 0.0
    %v3177 = vmax.f32 %v3007, 0.0
    %v3178 = vmax.f32 %v3010, 0.0
    %v3179 = vmax.f32 %v3015, 0.0
    %v3180 = vmax.f32 %v3018, 0.0
    %v3181 = vmax.f32 %v3023, 0.0
    %v3182 = vmax.f32 %v3026, 0.0
    %v3183 = vmax.f32 %v3031, 0.0
    %v3184 = vmax.f32 %v3034, 0.0
    %v3185 = vmax.f32 %v3039, 0.0
    %v3186 = vmax.f32 %v3042, 0.0
    %v3187 = vmax.f32 %v3047, 0.0
    %v3188 = vmax.f32 %v3050, 0.0
    %v3189 = vmax.f32 %v3055, 0.0
    %v3190 = vmax.f32 %v3058, 0.0
    %v3191 = vmax.f32 %v3063, 0.0
    %v3192 = vmax.f32 %v3066, 0.0
    %v3193 = vmax.f32 %v3071, 0.0
    %v3194 = vmax.f32 %v3074, 0.0
    %v3195 = vmax.f32 %v3079, 0.0
    %v3196 = vmax.f32 %v3082, 0.0
    %v3197 = vmax.f32 %v3087, 0.0
    %v3198 = vmax.f32 %v3090, 0.0
    %v3199 = vmax.f32 %v3095, 0.0
    %v3200 = vmax.f32 %v3098, 0.0
    %v3201 = vmax.f32 %v3103, 0.0
    %v3202 = vmax.f32 %v3106, 0.0
    %v3203 = vmax.f32 %v3111, 0.0
    %v3204 = vmax.f32 %v3114, 0.0
    %v3205 = vmax.f32 %v3119, 0.0
    %v3206 = vmax.f32 %v3122, 0.0
    %v3207 = vmax.f32 %v3127, 0.0
    %v3208 = vmax.f32 %v3130, 0.0
    %v3209 = vmax.f32 %v3135, 0.0
    %v3210 = vmax.f32 %v3138, 0.0
    %v3211 = vmax.f32 %v3143, 0.0
    %v3212 = vmax.f32 %v3146, 0.0
    %v3213 = vadd.f32 %v3149, %v3150
    %v3214 = vadd.f32 %v3213, %v3151
    %v3215 = vadd.f32 %v3214, %v3152
    %v3216 = vadd.f32 %v3215, %v3153
    %v3217 = vadd.f32 %v3216, %v3154
    %v3218 = vadd.f32 %v3217, %v3155
    %v3219 = vadd.f32 %v3218, %v3156
    %v3220 = vadd.f32 %v3219, %v3157
    %v3221 = vadd.f32 %v3220, %v3158
    %v3222 = vadd.f32 %v3221, %v3159
    %v3223 = vadd.f32 %v3222, %v3160
    %v3224 = vadd.f32 %v3223, %v3161
    %v3225 = vadd.f32 %v3224, %v3162
    %v3226 = vadd.f32 %v3225, %v3163
    %v3227 = vadd.f32 %v3226, %v3164
    %v3228 = vadd.f32 %v3227, %v3165
    %v3229 = vadd.f32 %v3228, %v3166
    %v3230 = vadd.f32 %v3229, %v3167
    %v3231 = vadd.f32 %v3230, %v3168
    %v3232 = vadd.f32 %v3231, %v3169
    %v3233 = vadd.f32 %v3232, %v3170
    %v3234 = vadd.f32 %v3233, %v3171
    %v3235 = vadd.f32 %v3234, %v3172
    %v3236 = vadd.f32 %v3235, %v3173
    %v3237 = vadd.f32 %v3236, %v3174
    %v3238 = vadd.f32 %v3237, %v3175
    %v3239 = vadd.f32 %v3238, %v3176
    %v3240 = vadd.f32 %v3239, %v3177
    %v3241 = vadd.f32 %v3240, %v3178
    %v3242 = vadd.f32 %v3241, %v3179
    %v3243 = vadd.f32 %v3242, %v3180
    %v3244 = vadd.f32 %v3243, %v3181
    %v3245 = vadd.f32 %v3244, %v3182
    %v3246 = vadd.f32 %v3245, %v3183
    %v3247 = vadd.f32 %v3246, %v3184
    %v3248 = vadd.f32 %v3247, %v3185
    %v3249 = vadd.f32 %v3248, %v3186
    %v3250 = vadd.f32 %v3249, %v3187
    %v3251 = vadd.f32 %v3250, %v3188
    %v3252 = vadd.f32 %v3251, %v3189
    %v3253 = vadd.f32 %v3252, %v3190
    %v3254 = vadd.f32 %v3253, %v3191
    %v3255 = vadd.f32 %v3254, %v3192
    %v3256 = vadd.f32 %v3255, %v3193
    %v3257 = vadd.f32 %v3256, %v3194
    %v3258 = vadd.f32 %v3257, %v3195
    %v3259 = vadd.f32 %v3258, %v3196
    %v3260 = vadd.f32 %v3259, %v3197
    %v3261 = vadd.f32 %v3260, %v3198
    %v3262 = vadd.f32 %v3261, %v3199
    %v3263 = vadd.f32 %v3262, %v3200
    %v3264 = vadd.f32 %v3263, %v3201
    %v3265 = vadd.f32 %v3264, %v3202
    %v3266 = vadd.f32 %v3265, %v3203
    %v3267 = vadd.f32 %v3266, %v3204
    %v3268 = vadd.f32 %v3267, %v3205
    %v3269 = vadd.f32 %v3268, %v3206
    %v3270 = vadd.f32 %v3269, %v3207
    %v3271 = vadd.f32 %v3270, %v3208
    %v3272 = vadd.f32 %v3271, %v3209
    %v3273 = vadd.f32 %v3272, %v3210
    %v3274 = vadd.f32 %v3273, %v3211
    %v3275 = vadd.f32 %v3274, %v3212
    %v3276 = vrot.slane %v3275, 4
    %v3277 = vadd.f32 %v3275, %v3276
    %v3278 = vrot.slane %v3277, 2
    %v3279 = vadd.f32 %v3277, %v3278
    %v3280 = vrot.slane %v3279, 1
    %v3281 = vadd.f32 %v3279, %v3280
    %v3282 = vmul.f32 %v3149, %v3149
    %v3283 = vmul.f32 %v3150, %v3150
    %v3284 = vmul.f32 %v3151, %v3151
    %v3285 = vmul.f32 %v3152, %v3152
    %v3286 = vmul.f32 %v3153, %v3153
    %v3287 = vmul.f32 %v3154, %v3154
    %v3288 = vmul.f32 %v3155, %v3155
    %v3289 = vmul.f32 %v3156, %v3156
    %v3290 = vmul.f32 %v3157, %v3157
    %v3291 = vmul.f32 %v3158, %v3158
    %v3292 = vmul.f32 %v3159, %v3159
    %v3293 = vmul.f32 %v3160, %v3160
    %v3294 = vmul.f32 %v3161, %v3161
    %v3295 = vmul.f32 %v3162, %v3162
    %v3296 = vmul.f32 %v3163, %v3163
    %v3297 = vmul.f32 %v3164, %v3164
    %v3298 = vmul.f32 %v3165, %v3165
    %v3299 = vmul.f32 %v3166, %v3166
    %v3300 = vmul.f32 %v3167, %v3167
    %v3301 = vmul.f32 %v3168, %v3168
    %v3302 = vmul.f32 %v3169, %v3169
    %v3303 = vmul.f32 %v3170, %v3170
    %v3304 = vmul.f32 %v3171, %v3171
    %v3305 = vmul.f32 %v3172, %v3172
    %v3306 = vmul.f32 %v3173, %v3173
    %v3307 = vmul.f32 %v3174, %v3174
    %v3308 = vmul.f32 %v3175, %v3175
    %v3309 = vmul.f32 %v3176, %v3176
    %v3310 = vmul.f32 %v3177, %v3177
    %v3311 = vmul.f32 %v3178, %v3178
    %v3312 = vmul.f32 %v3179, %v3179
    %v3313 = vmul.f32 %v3180, %v3180
    %v3314 = vmul.f32 %v3181, %v3181
    %v3315 = vmul.f32 %v3182, %v3182
    %v3316 = vmul.f32 %v3183, %v3183
    %v3317 = vmul.f32 %v3184, %v3184
    %v3318 = vmul.f32 %v3185, %v3185
    %v3319 = vmul.f32 %v3186, %v3186
    %v3320 = vmul.f32 %v3187, %v3187
    %v3321 = vmul.f32 %v3188, %v3188
    %v3322 = vmul.f32 %v3189, %v3189
    %v3323 = vmul.f32 %v3190, %v3190
    %v3324 = vmul.f32 %v3191, %v3191
    %v3325 = vmul.f32 %v3192, %v3192
    %v3326 = vmul.f32 %v3193, %v3193
    %v3327 = vmul.f32 %v3194, %v3194
    %v3328 = vmul.f32 %v3195, %v3195
    %v3329 = vmul.f32 %v3196, %v3196
    %v3330 = vmul.f32 %v3197, %v3197
    %v3331 = vmul.f32 %v3198, %v3198
    %v3332 = vmul.f32 %v3199, %v3199
    %v3333 = vmul.f32 %v3200, %v3200
    %v3334 = vmul.f32 %v3201, %v3201
    %v3335 = vmul.f32 %v3202, %v3202
    %v3336 = vmul.f32 %v3203, %v3203
    %v3337 = vmul.f32 %v3204, %v3204
    %v3338 = vmul.f32 %v3205, %v3205
    %v3339 = vmul.f32 %v3206, %v3206
    %v3340 = vmul.f32 %v3207, %v3207
    %v3341 = vmul.f32 %v3208, %v3208
    %v3342 = vmul.f32 %v3209, %v3209
    %v3343 = vmul.f32 %v3210, %v3210
    %v3344 = vmul.f32 %v3211, %v3211
    %v3345 = vmul.f32 %v3212, %v3212
    %v3346 = vadd.f32 %v3282, %v3283
    %v3347 = vadd.f32 %v3346, %v3284
    %v3348 = vadd.f32 %v3347, %v3285
    %v3349 = vadd.f32 %v3348, %v3286
    %v3350 = vadd.f32 %v3349, %v3287
    %v3351 = vadd.f32 %v3350, %v3288
    %v3352 = vadd.f32 %v3351, %v3289
    %v3353 = vadd.f32 %v3352, %v3290
    %v3354 = vadd.f32 %v3353, %v3291
    %v3355 = vadd.f32 %v3354, %v3292
    %v3356 = vadd.f32 %v3355, %v3293
    %v3357 = vadd.f32 %v3356, %v3294
    %v3358 = vadd.f32 %v3357, %v3295
    %v3359 = vadd.f32 %v3358, %v3296
    %v3360 = vadd.f32 %v3359, %v3297
    %v3361 = vadd.f32 %v3360, %v3298
    %v3362 = vadd.f32 %v3361, %v3299
    %v3363 = vadd.f32 %v3362, %v3300
    %v3364 = vadd.f32 %v3363, %v3301
    %v3365 = vadd.f32 %v3364, %v3302
    %v3366 = vadd.f32 %v3365, %v3303
    %v3367 = vadd.f32 %v3366, %v3304
    %v3368 = vadd.f32 %v3367, %v3305
    %v3369 = vadd.f32 %v3368, %v3306
    %v3370 = vadd.f32 %v3369, %v3307
    %v3371 = vadd.f32 %v3370, %v3308
    %v3372 = vadd.f32 %v3371, %v3309
    %v3373 = vadd.f32 %v3372, %v3310
    %v3374 = vadd.f32 %v3373, %v3311
    %v3375 = vadd.f32 %v3374, %v3312
    %v3376 = vadd.f32 %v3375, %v3313
    %v3377 = vadd.f32 %v3376, %v3314
    %v3378 = vadd.f32 %v3377, %v3315
    %v3379 = vadd.f32 %v3378, %v3316
    %v3380 = vadd.f32 %v3379, %v3317
    %v3381 = vadd.f32 %v3380, %v3318
    %v3382 = vadd.f32 %v3381, %v3319
    %v3383 = vadd.f32 %v3382, %v3320
    %v3384 = vadd.f32 %v3383, %v3321
    %v3385 = vadd.f32 %v3384, %v3322
    %v3386 = vadd.f32 %v3385, %v3323
    %v3387 = vadd.f32 %v3386, %v3324
    %v3388 = vadd.f32 %v3387, %v3325
    %v3389 = vadd.f32 %v3388, %v3326
    %v3390 = vadd.f32 %v3389, %v3327
    %v3391 = vadd.f32 %v3390, %v3328
    %v3392 = vadd.f32 %v3391, %v3329
    %v3393 = vadd.f32 %v3392, %v3330
    %v3394 = vadd.f32 %v3393, %v3331
    %v3395 = vadd.f32 %v3394, %v3332
    %v3396 = vadd.f32 %v3395, %v3333
    %v3397 = vadd.f32 %v3396, %v3334
    %v3398 = vadd.f32 %v3397, %v3335
    %v3399 = vadd.f32 %v3398, %v3336
    %v3400 = vadd.f32 %v3399, %v3337
    %v3401 = vadd.f32 %v3400, %v3338
    %v3402 = vadd.f32 %v3401, %v3339
    %v3403 = vadd.f32 %v3402, %v3340
    %v3404 = vadd.f32 %v3403, %v3341
    %v3405 = vadd.f32 %v3404, %v3342
    %v3406 = vadd.f32 %v3405, %v3343
    %v3407 = vadd.f32 %v3406, %v3344
    %v3408 = vadd.f32 %v3407, %v3345
    %v3409 = vrot.slane %v3408, 4
    %v3410 = vadd.f32 %v3408, %v3409
    %v3411 = vrot.slane %v3410, 2
    %v3412 = vadd.f32 %v3410, %v3411
    %v3413 = vrot.slane %v3412, 1
    %v3414 = vadd.f32 %v3412, %v3413
    %v3415 = vmul.f32 %v3281, 0.001953125
    %v3416 = vmul.f32 %v3414, 0.001953125
    %v3417 = vmul.f32 %v3415, %v3415
    %v3418 = vsub.f32 %v3416, %v3417
    %v3419 = vadd.f32 %v3418, 1e-05
    %v3420 = vrsqrt.pop %v3419
    %v3421 = vmul.f32 %v3420, %v290
    %v3422 = vmul.f32 %v3415, %v3421
    %v3423 = vsub.f32 %v291, %v3422
    %v3424 = vlaneseq
    %v3425 = vshrl.u32 %v3424, 7
    %v3426 = vsub.s32 0, %v3425
    %v3427 = vrot.slane %v3421, %v3426
    %v3428 = vmul.f32 %v3149, %v3427
    %v3429 = vmul.f32 %v3150, %v3427
    %v3430 = vmul.f32 %v3151, %v3427
    %v3431 = vmul.f32 %v3152, %v3427
    %v3432 = vmul.f32 %v3153, %v3427
    %v3433 = vmul.f32 %v3154, %v3427
    %v3434 = vmul.f32 %v3155, %v3427
    %v3435 = vmul.f32 %v3156, %v3427
    %v3436 = vmul.f32 %v3157, %v3427
    %v3437 = vmul.f32 %v3158, %v3427
    %v3438 = vmul.f32 %v3159, %v3427
    %v3439 = vmul.f32 %v3160, %v3427
    %v3440 = vmul.f32 %v3161, %v3427
    %v3441 = vmul.f32 %v3162, %v3427
    %v3442 = vmul.f32 %v3163, %v3427
    %v3443 = vmul.f32 %v3164, %v3427
    %v3444 = vmul.f32 %v3165, %v3427
    %v3445 = vmul.f32 %v3166, %v3427
    %v3446 = vmul.f32 %v3167, %v3427
    %v3447 = vmul.f32 %v3168, %v3427
    %v3448 = vmul.f32 %v3169, %v3427
    %v3449 = vmul.f32 %v3170, %v3427
    %v3450 = vmul.f32 %v3171, %v3427
    %v3451 = vmul.f32 %v3172, %v3427
    %v3452 = vmul.f32 %v3173, %v3427
    %v3453 = vmul.f32 %v3174, %v3427
    %v3454 = vmul.f32 %v3175, %v3427
    %v3455 = vmul.f32 %v3176, %v3427
    %v3456 = vmul.f32 %v3177, %v3427
    %v3457 = vmul.f32 %v3178, %v3427
    %v3458 = vmul.f32 %v3179, %v3427
    %v3459 = vmul.f32 %v3180, %v3427
    %v3460 = vmul.f32 %v3181, %v3427
    %v3461 = vmul.f32 %v3182, %v3427
    %v3462 = vmul.f32 %v3183, %v3427
    %v3463 = vmul.f32 %v3184, %v3427
    %v3464 = vmul.f32 %v3185, %v3427
    %v3465 = vmul.f32 %v3186, %v3427
    %v3466 = vmul.f32 %v3187, %v3427
    %v3467 = vmul.f32 %v3188, %v3427
    %v3468 = vmul.f32 %v3189, %v3427
    %v3469 = vmul.f32 %v3190, %v3427
    %v3470 = vmul.f32 %v3191, %v3427
    %v3471 = vmul.f32 %v3192, %v3427
    %v3472 = vmul.f32 %v3193, %v3427
    %v3473 = vmul.f32 %v3194, %v3427
    %v3474 = vmul.f32 %v3195, %v3427
    %v3475 = vmul.f32 %v3196, %v3427
    %v3476 = vmul.f32 %v3197, %v3427
    %v3477 = vmul.f32 %v3198, %v3427
    %v3478 = vmul.f32 %v3199, %v3427
    %v3479 = vmul.f32 %v3200, %v3427
    %v3480 = vmul.f32 %v3201, %v3427
    %v3481 = vmul.f32 %v3202, %v3427
    %v3482 = vmul.f32 %v3203, %v3427
    %v3483 = vmul.f32 %v3204, %v3427
    %v3484 = vmul.f32 %v3205, %v3427
    %v3485 = vmul.f32 %v3206, %v3427
    %v3486 = vmul.f32 %v3207, %v3427
    %v3487 = vmul.f32 %v3208, %v3427
    %v3488 = vmul.f32 %v3209, %v3427
    %v3489 = vmul.f32 %v3210, %v3427
    %v3490 = vmul.f32 %v3211, %v3427
    %v3491 = vmul.f32 %v3212, %v3427
    %v3493 = vlaneseq
    %v3494 = vshrl.u32 %v3493, 7
    %v3495 = vsub.s32 0, %v3494
    %v3496 = vrot.slane %v3423, %v3495
    %v3498 = vadd.f32 %v3428, %v3496
    %v3499 = vadd.f32 %v3429, %v3496
    %v3500 = vadd.f32 %v3430, %v3496
    %v3501 = vadd.f32 %v3431, %v3496
    %v3502 = vadd.f32 %v3432, %v3496
    %v3503 = vadd.f32 %v3433, %v3496
    %v3504 = vadd.f32 %v3434, %v3496
    %v3505 = vadd.f32 %v3435, %v3496
    %v3506 = vadd.f32 %v3436, %v3496
    %v3507 = vadd.f32 %v3437, %v3496
    %v3508 = vadd.f32 %v3438, %v3496
    %v3509 = vadd.f32 %v3439, %v3496
    %v3510 = vadd.f32 %v3440, %v3496
    %v3511 = vadd.f32 %v3441, %v3496
    %v3512 = vadd.f32 %v3442, %v3496
    %v3513 = vadd.f32 %v3443, %v3496
    %v3514 = vadd.f32 %v3444, %v3496
    %v3515 = vadd.f32 %v3445, %v3496
    %v3516 = vadd.f32 %v3446, %v3496
    %v3517 = vadd.f32 %v3447, %v3496
    %v3518 = vadd.f32 %v3448, %v3496
    %v3519 = vadd.f32 %v3449, %v3496
    %v3520 = vadd.f32 %v3450, %v3496
    %v3521 = vadd.f32 %v3451, %v3496
    %v3522 = vadd.f32 %v3452, %v3496
    %v3523 = vadd.f32 %v3453, %v3496
    %v3524 = vadd.f32 %v3454, %v3496
    %v3525 = vadd.f32 %v3455, %v3496
    %v3526 = vadd.f32 %v3456, %v3496
    %v3527 = vadd.f32 %v3457, %v3496
    %v3528 = vadd.f32 %v3458, %v3496
    %v3529 = vadd.f32 %v3459, %v3496
    %v3530 = vadd.f32 %v3460, %v3496
    %v3531 = vadd.f32 %v3461, %v3496
    %v3532 = vadd.f32 %v3462, %v3496
    %v3533 = vadd.f32 %v3463, %v3496
    %v3534 = vadd.f32 %v3464, %v3496
    %v3535 = vadd.f32 %v3465, %v3496
    %v3536 = vadd.f32 %v3466, %v3496
    %v3537 = vadd.f32 %v3467, %v3496
    %v3538 = vadd.f32 %v3468, %v3496
    %v3539 = vadd.f32 %v3469, %v3496
    %v3540 = vadd.f32 %v3470, %v3496
    %v3541 = vadd.f32 %v3471, %v3496
    %v3542 = vadd.f32 %v3472, %v3496
    %v3543 = vadd.f32 %v3473, %v3496
    %v3544 = vadd.f32 %v3474, %v3496
    %v3545 = vadd.f32 %v3475, %v3496
    %v3546 = vadd.f32 %v3476, %v3496
    %v3547 = vadd.f32 %v3477, %v3496
    %v3548 = vadd.f32 %v3478, %v3496
    %v3549 = vadd.f32 %v3479, %v3496
    %v3550 = vadd.f32 %v3480, %v3496
    %v3551 = vadd.f32 %v3481, %v3496
    %v3552 = vadd.f32 %v3482, %v3496
    %v3553 = vadd.f32 %v3483, %v3496
    %v3554 = vadd.f32 %v3484, %v3496
    %v3555 = vadd.f32 %v3485, %v3496
    %v3556 = vadd.f32 %v3486, %v3496
    %v3557 = vadd.f32 %v3487, %v3496
    %v3558 = vadd.f32 %v3488, %v3496
    %v3559 = vadd.f32 %v3489, %v3496
    %v3560 = vadd.f32 %v3490, %v3496
    %v3561 = vadd.f32 %v3491, %v3496
    %3562 = vst [vmem:[%s224 + $0x1] sm:$0xff] %v3498
    %3563 = vst [vmem:[%s224 + $0x9] sm:$0xff] %v3499
    %3564 = vst [vmem:[%s224 + $0x19] sm:$0xff] %v3500
    %3565 = vst [vmem:[%s224 + $0x21] sm:$0xff] %v3501
    %3566 = vst [vmem:[%s224 + $0x31] sm:$0xff] %v3502
    %3567 = vst [vmem:[%s224 + $0x39] sm:$0xff] %v3503
    %3568 = vst [vmem:[%s224 + $0x49] sm:$0xff] %v3504
    %3569 = vst [vmem:[%s224 + $0x51] sm:$0xff] %v3505
    %3570 = vst [vmem:[%s224 + $0x61] sm:$0xff] %v3506
    %3571 = vst [vmem:[%s224 + $0x69] sm:$0xff] %v3507
    %3572 = vst [vmem:[%s224 + $0x79] sm:$0xff] %v3508
    %3573 = vst [vmem:[%s224 + $0x81] sm:$0xff] %v3509
    %3574 = vst [vmem:[%s224 + $0x91] sm:$0xff] %v3510
    %3575 = vst [vmem:[%s224 + $0x99] sm:$0xff] %v3511
    %3576 = vst [vmem:[%s224 + $0xa9] sm:$0xff] %v3512
    %3577 = vst [vmem:[%s224 + $0xb1] sm:$0xff] %v3513
    %3578 = vst [vmem:[%s224 + $0xc1] sm:$0xff] %v3514
    %3579 = vst [vmem:[%s224 + $0xc9] sm:$0xff] %v3515
    %3580 = vst [vmem:[%s224 + $0xd9] sm:$0xff] %v3516
    %3581 = vst [vmem:[%s224 + $0xe1] sm:$0xff] %v3517
    %3582 = vst [vmem:[%s224 + $0xf1] sm:$0xff] %v3518
    %3583 = vst [vmem:[%s224 + $0xf9] sm:$0xff] %v3519
    %3584 = vst [vmem:[%s224 + $0x109] sm:$0xff] %v3520
    %3585 = vst [vmem:[%s224 + $0x111] sm:$0xff] %v3521
    %3586 = vst [vmem:[%s224 + $0x121] sm:$0xff] %v3522
    %3587 = vst [vmem:[%s224 + $0x129] sm:$0xff] %v3523
    %3588 = vst [vmem:[%s224 + $0x139] sm:$0xff] %v3524
    %3589 = vst [vmem:[%s224 + $0x141] sm:$0xff] %v3525
    %3590 = vst [vmem:[%s224 + $0x151] sm:$0xff] %v3526
    %3591 = vst [vmem:[%s224 + $0x159] sm:$0xff] %v3527
    %3592 = vst [vmem:[%s224 + $0x169] sm:$0xff] %v3528
    %3593 = vst [vmem:[%s224 + $0x171] sm:$0xff] %v3529
    %3594 = vst [vmem:[%s224 + $0x1b1] sm:$0xff] %v3530
    %3595 = vst [vmem:[%s224 + $0x1b9] sm:$0xff] %v3531
    %3596 = vst [vmem:[%s224 + $0x1c9] sm:$0xff] %v3532
    %3597 = vst [vmem:[%s224 + $0x1d1] sm:$0xff] %v3533
    %3598 = vst [vmem:[%s224 + $0x1e1] sm:$0xff] %v3534
    %3599 = vst [vmem:[%s224 + $0x1e9] sm:$0xff] %v3535
    %3600 = vst [vmem:[%s224 + $0x1f9] sm:$0xff] %v3536
    %3601 = vst [vmem:[%s224 + $0x201] sm:$0xff] %v3537
    %3602 = vst [vmem:[%s224 + $0x211] sm:$0xff] %v3538
    %3603 = vst [vmem:[%s224 + $0x219] sm:$0xff] %v3539
    %3604 = vst [vmem:[%s224 + $0x229] sm:$0xff] %v3540
    %3605 = vst [vmem:[%s224 + $0x231] sm:$0xff] %v3541
    %3606 = vst [vmem:[%s224 + $0x241] sm:$0xff] %v3542
    %3607 = vst [vmem:[%s224 + $0x249] sm:$0xff] %v3543
    %3608 = vst [vmem:[%s224 + $0x259] sm:$0xff] %v3544
    %3609 = vst [vmem:[%s224 + $0x261] sm:$0xff] %v3545
    %3610 = vst [vmem:[%s224 + $0x271] sm:$0xff] %v3546
    %3611 = vst [vmem:[%s224 + $0x279] sm:$0xff] %v3547
    %3612 = vst [vmem:[%s224 + $0x289] sm:$0xff] %v3548
    %3613 = vst [vmem:[%s224 + $0x291] sm:$0xff] %v3549
    %3614 = vst [vmem:[%s224 + $0x2a1] sm:$0xff] %v3550
    %3615 = vst [vmem:[%s224 + $0x2a9] sm:$0xff] %v3551
    %3616 = vst [vmem:[%s224 + $0x2b9] sm:$0xff] %v3552
    %3617 = vst [vmem:[%s224 + $0x2c1] sm:$0xff] %v3553
    %3618 = vst [vmem:[%s224 + $0x2d1] sm:$0xff] %v3554
    %3619 = vst [vmem:[%s224 + $0x2d9] sm:$0xff] %v3555
    %3620 = vst [vmem:[%s224 + $0x2e9] sm:$0xff] %v3556
    %3621 = vst [vmem:[%s224 + $0x2f1] sm:$0xff] %v3557
    %3622 = vst [vmem:[%s224 + $0x301] sm:$0xff] %v3558
    %3623 = vst [vmem:[%s224 + $0x309] sm:$0xff] %v3559
    %3624 = vst [vmem:[%s224 + $0x319] sm:$0xff] %v3560
    %3625 = vst [vmem:[%s224 + $0x321] sm:$0xff] %v3561
    %v3626 = vld [vmem:[%s6] sm:$0x1]
    %v3627 = vld [vmem:[%s7] sm:$0x1]
    %v3628 = vld [vmem:[%s8] sm:$0x1]
    %v3629 = vld [vmem:[#allocation2] sm:$0xff]
    %v3630 = vld [vmem:[#allocation2 + $0x8] sm:$0xff]
    %v3631 = vld [vmem:[#allocation2 + $0x10] sm:$0x3]
    %v3632 = vld [vmem:[#allocation2 + $0x18] sm:$0xff]
    %v3633 = vld [vmem:[#allocation2 + $0x20] sm:$0xff]
    %v3634 = vld [vmem:[#allocation2 + $0x28] sm:$0x3]
    %v3635 = vld [vmem:[#allocation2 + $0x30] sm:$0xff]
    %v3636 = vld [vmem:[#allocation2 + $0x38] sm:$0xff]
    %v3637 = vld [vmem:[#allocation2 + $0x40] sm:$0x3]
    %v3638 = vld [vmem:[#allocation2 + $0x48] sm:$0xff]
    %v3639 = vld [vmem:[#allocation2 + $0x50] sm:$0xff]
    %v3640 = vld [vmem:[#allocation2 + $0x58] sm:$0x3]
    %v3641 = vld [vmem:[#allocation2 + $0x60] sm:$0xff]
    %v3642 = vld [vmem:[#allocation2 + $0x68] sm:$0xff]
    %v3643 = vld [vmem:[#allocation2 + $0x70] sm:$0x3]
    %v3644 = vld [vmem:[#allocation2 + $0x78] sm:$0xff]
    %v3645 = vld [vmem:[#allocation2 + $0x80] sm:$0xff]
    %v3646 = vld [vmem:[#allocation2 + $0x88] sm:$0x3]
    %v3647 = vld [vmem:[#allocation2 + $0x90] sm:$0xff]
    %v3648 = vld [vmem:[#allocation2 + $0x98] sm:$0xff]
    %v3649 = vld [vmem:[#allocation2 + $0xa0] sm:$0x3]
    %v3650 = vld [vmem:[#allocation2 + $0xa8] sm:$0xff]
    %v3651 = vld [vmem:[#allocation2 + $0xb0] sm:$0xff]
    %v3652 = vld [vmem:[#allocation2 + $0xb8] sm:$0x3]
    %v3653 = vld [vmem:[#allocation2 + $0xc0] sm:$0xff]
    %v3654 = vld [vmem:[#allocation2 + $0xc8] sm:$0xff]
    %v3655 = vld [vmem:[#allocation2 + $0xd0] sm:$0x3]
    %v3656 = vld [vmem:[#allocation2 + $0xd8] sm:$0xff]
    %v3657 = vld [vmem:[#allocation2 + $0xe0] sm:$0xff]
    %v3658 = vld [vmem:[#allocation2 + $0xe8] sm:$0x3]
    %v3659 = vld [vmem:[#allocation2 + $0xf0] sm:$0xff]
    %v3660 = vld [vmem:[#allocation2 + $0xf8] sm:$0xff]
    %v3661 = vld [vmem:[#allocation2 + $0x100] sm:$0x3]
    %v3662 = vld [vmem:[#allocation2 + $0x108] sm:$0xff]
    %v3663 = vld [vmem:[#allocation2 + $0x110] sm:$0xff]
    %v3664 = vld [vmem:[#allocation2 + $0x118] sm:$0x3]
    %v3665 = vld [vmem:[#allocation2 + $0x120] sm:$0xff]
    %v3666 = vld [vmem:[#allocation2 + $0x128] sm:$0xff]
    %v3667 = vld [vmem:[#allocation2 + $0x130] sm:$0x3]
    %v3668 = vld [vmem:[#allocation2 + $0x138] sm:$0xff]
    %v3669 = vld [vmem:[#allocation2 + $0x140] sm:$0xff]
    %v3670 = vld [vmem:[#allocation2 + $0x148] sm:$0x3]
    %v3671 = vld [vmem:[#allocation2 + $0x150] sm:$0xff]
    %v3672 = vld [vmem:[#allocation2 + $0x158] sm:$0xff]
    %v3673 = vld [vmem:[#allocation2 + $0x160] sm:$0x3]
    %v3674 = vld [vmem:[#allocation2 + $0x168] sm:$0xff]
    %v3675 = vld [vmem:[#allocation2 + $0x170] sm:$0xff]
    %v3676 = vld [vmem:[#allocation2 + $0x178] sm:$0x3]
    %v3677 = vld [vmem:[#allocation2 + $0x180] sm:$0xff]
    %v3678 = vld [vmem:[#allocation2 + $0x188] sm:$0xff]
    %v3679 = vld [vmem:[#allocation2 + $0x190] sm:$0x3]
    %v3680 = vld [vmem:[#allocation2 + $0x198] sm:$0xff]
    %v3681 = vld [vmem:[#allocation2 + $0x1a0] sm:$0xff]
    %v3682 = vld [vmem:[#allocation2 + $0x1a8] sm:$0x3]
    %v3683 = vld [vmem:[#allocation2 + $0x1b0] sm:$0xff]
    %v3684 = vld [vmem:[#allocation2 + $0x1b8] sm:$0xff]
    %v3685 = vld [vmem:[#allocation2 + $0x1c0] sm:$0x3]
    %v3686 = vld [vmem:[#allocation2 + $0x1c8] sm:$0xff]
    %v3687 = vld [vmem:[#allocation2 + $0x1d0] sm:$0xff]
    %v3688 = vld [vmem:[#allocation2 + $0x1d8] sm:$0x3]
    %v3689 = vld [vmem:[#allocation2 + $0x1e0] sm:$0xff]
    %v3690 = vld [vmem:[#allocation2 + $0x1e8] sm:$0xff]
    %v3691 = vld [vmem:[#allocation2 + $0x1f0] sm:$0x3]
    %v3692 = vld [vmem:[#allocation2 + $0x1f8] sm:$0xff]
    %v3693 = vld [vmem:[#allocation2 + $0x200] sm:$0xff]
    %v3694 = vld [vmem:[#allocation2 + $0x208] sm:$0x3]
    %v3695 = vld [vmem:[#allocation2 + $0x210] sm:$0xff]
    %v3696 = vld [vmem:[#allocation2 + $0x218] sm:$0xff]
    %v3697 = vld [vmem:[#allocation2 + $0x220] sm:$0x3]
    %v3698 = vld [vmem:[#allocation2 + $0x228] sm:$0xff]
    %v3699 = vld [vmem:[#allocation2 + $0x230] sm:$0xff]
    %v3700 = vld [vmem:[#allocation2 + $0x238] sm:$0x3]
    %v3701 = vld [vmem:[#allocation2 + $0x240] sm:$0xff]
    %v3702 = vld [vmem:[#allocation2 + $0x248] sm:$0xff]
    %v3703 = vld [vmem:[#allocation2 + $0x250] sm:$0x3]
    %v3704 = vld [vmem:[#allocation2 + $0x258] sm:$0xff]
    %v3705 = vld [vmem:[#allocation2 + $0x260] sm:$0xff]
    %v3706 = vld [vmem:[#allocation2 + $0x268] sm:$0x3]
    %v3707 = vld [vmem:[#allocation2 + $0x270] sm:$0xff]
    %v3708 = vld [vmem:[#allocation2 + $0x278] sm:$0xff]
    %v3709 = vld [vmem:[#allocation2 + $0x280] sm:$0x3]
    %v3710 = vld [vmem:[#allocation2 + $0x288] sm:$0xff]
    %v3711 = vld [vmem:[#allocation2 + $0x290] sm:$0xff]
    %v3712 = vld [vmem:[#allocation2 + $0x298] sm:$0x3]
    %v3713 = vld [vmem:[#allocation2 + $0x2a0] sm:$0xff]
    %v3714 = vld [vmem:[#allocation2 + $0x2a8] sm:$0xff]
    %v3715 = vld [vmem:[#allocation2 + $0x2b0] sm:$0x3]
    %v3716 = vld [vmem:[#allocation2 + $0x2b8] sm:$0xff]
    %v3717 = vld [vmem:[#allocation2 + $0x2c0] sm:$0xff]
    %v3718 = vld [vmem:[#allocation2 + $0x2c8] sm:$0x3]
    %v3719 = vld [vmem:[#allocation2 + $0x2d0] sm:$0xff]
    %v3720 = vld [vmem:[#allocation2 + $0x2d8] sm:$0xff]
    %v3721 = vld [vmem:[#allocation2 + $0x2e0] sm:$0x3]
    %v3722 = vld [vmem:[#allocation2 + $0x2e8] sm:$0xff]
    %v3723 = vld [vmem:[#allocation2 + $0x2f0] sm:$0xff]
    %v3724 = vld [vmem:[#allocation2 + $0x2f8] sm:$0x3]
    %v3725 = vld [vmem:[#allocation2 + $0x300] sm:$0xff]
    %v3726 = vld [vmem:[#allocation2 + $0x308] sm:$0xff]
    %v3727 = vld [vmem:[#allocation2 + $0x310] sm:$0x3]
    %v3728 = vld [vmem:[#allocation2 + $0x318] sm:$0xff]
    %v3729 = vld [vmem:[#allocation2 + $0x320] sm:$0xff]
    %v3730 = vld [vmem:[#allocation2 + $0x328] sm:$0x3]
    %v3731 = vld [vmem:[#allocation2 + $0x330] sm:$0xff]
    %v3732 = vld [vmem:[#allocation2 + $0x338] sm:$0xff]
    %v3733 = vld [vmem:[#allocation2 + $0x340] sm:$0x3]
    %v3734 = vld [vmem:[#allocation2 + $0x348] sm:$0xff]
    %v3735 = vld [vmem:[#allocation2 + $0x350] sm:$0xff]
    %v3736 = vld [vmem:[#allocation2 + $0x358] sm:$0x3]
    %v3737 = vpack.c.bf16 %v3630, %v3629
    %v3738 = vpack.c.bf16 %v3633, %v3632
    %v3739 = vpack.c.bf16 %v3636, %v3635
    %v3740 = vpack.c.bf16 %v3639, %v3638
    %v3741 = vpack.c.bf16 %v3642, %v3641
    %v3742 = vpack.c.bf16 %v3645, %v3644
    %v3743 = vpack.c.bf16 %v3648, %v3647
    %v3744 = vpack.c.bf16 %v3651, %v3650
    %v3745 = vpack.c.bf16 %v3654, %v3653
    %v3746 = vpack.c.bf16 %v3657, %v3656
    %v3747 = vpack.c.bf16 %v3660, %v3659
    %v3748 = vpack.c.bf16 %v3663, %v3662
    %v3749 = vpack.c.bf16 %v3666, %v3665
    %v3750 = vpack.c.bf16 %v3669, %v3668
    %v3751 = vpack.c.bf16 %v3672, %v3671
    %v3752 = vpack.c.bf16 %v3675, %v3674
    %v3753 = vpack.c.bf16 %v3684, %v3683
    %v3754 = vpack.c.bf16 %v3687, %v3686
    %v3755 = vpack.c.bf16 %v3690, %v3689
    %v3756 = vpack.c.bf16 %v3693, %v3692
    %v3757 = vpack.c.bf16 %v3696, %v3695
    %v3758 = vpack.c.bf16 %v3699, %v3698
    %v3759 = vpack.c.bf16 %v3702, %v3701
    %v3760 = vpack.c.bf16 %v3705, %v3704
    %v3761 = vpack.c.bf16 %v3708, %v3707
    %v3762 = vpack.c.bf16 %v3711, %v3710
    %v3763 = vpack.c.bf16 %v3714, %v3713
    %v3764 = vpack.c.bf16 %v3717, %v3716
    %v3765 = vpack.c.bf16 %v3720, %v3719
    %v3766 = vpack.c.bf16 %v3723, %v3722
    %v3767 = vpack.c.bf16 %v3726, %v3725
    %v3768 = vpack.c.bf16 %v3729, %v3728
    %v3865 = vrot.slane %v3629, 1
    %v3866 = vrot.slane %v3630, 1
    %v3867 = vsel %vm528, %v3865, %v3866
    %v3868 = vrot.slane %v3631, 1
    %v3869 = vsel %vm528, %v3866, %v3868
    %v3870 = vrot.slane %v3632, 1
    %v3871 = vrot.slane %v3633, 1
    %v3872 = vsel %vm528, %v3870, %v3871
    %v3873 = vrot.slane %v3634, 1
    %v3874 = vsel %vm528, %v3871, %v3873
    %v3875 = vrot.slane %v3635, 1
    %v3876 = vrot.slane %v3636, 1
    %v3877 = vsel %vm528, %v3875, %v3876
    %v3878 = vrot.slane %v3637, 1
    %v3879 = vsel %vm528, %v3876, %v3878
    %v3880 = vrot.slane %v3638, 1
    %v3881 = vrot.slane %v3639, 1
    %v3882 = vsel %vm528, %v3880, %v3881
    %v3883 = vrot.slane %v3640, 1
    %v3884 = vsel %vm528, %v3881, %v3883
    %v3885 = vrot.slane %v3641, 1
    %v3886 = vrot.slane %v3642, 1
    %v3887 = vsel %vm528, %v3885, %v3886
    %v3888 = vrot.slane %v3643, 1
    %v3889 = vsel %vm528, %v3886, %v3888
    %v3890 = vrot.slane %v3644, 1
    %v3891 = vrot.slane %v3645, 1
    %v3892 = vsel %vm528, %v3890, %v3891
    %v3893 = vrot.slane %v3646, 1
    %v3894 = vsel %vm528, %v3891, %v3893
    %v3895 = vrot.slane %v3647, 1
    %v3896 = vrot.slane %v3648, 1
    %v3897 = vsel %vm528, %v3895, %v3896
    %v3898 = vrot.slane %v3649, 1
    %v3899 = vsel %vm528, %v3896, %v3898
    %v3900 = vrot.slane %v3650, 1
    %v3901 = vrot.slane %v3651, 1
    %v3902 = vsel %vm528, %v3900, %v3901
    %v3903 = vrot.slane %v3652, 1
    %v3904 = vsel %vm528, %v3901, %v3903
    %v3905 = vrot.slane %v3653, 1
    %v3906 = vrot.slane %v3654, 1
    %v3907 = vsel %vm528, %v3905, %v3906
    %v3908 = vrot.slane %v3655, 1
    %v3909 = vsel %vm528, %v3906, %v3908
    %v3910 = vrot.slane %v3656, 1
    %v3911 = vrot.slane %v3657, 1
    %v3912 = vsel %vm528, %v3910, %v3911
    %v3913 = vrot.slane %v3658, 1
    %v3914 = vsel %vm528, %v3911, %v3913
    %v3915 = vrot.slane %v3659, 1
    %v3916 = vrot.slane %v3660, 1
    %v3917 = vsel %vm528, %v3915, %v3916
    %v3918 = vrot.slane %v3661, 1
    %v3919 = vsel %vm528, %v3916, %v3918
    %v3920 = vrot.slane %v3662, 1
    %v3921 = vrot.slane %v3663, 1
    %v3922 = vsel %vm528, %v3920, %v3921
    %v3923 = vrot.slane %v3664, 1
    %v3924 = vsel %vm528, %v3921, %v3923
    %v3925 = vrot.slane %v3665, 1
    %v3926 = vrot.slane %v3666, 1
    %v3927 = vsel %vm528, %v3925, %v3926
    %v3928 = vrot.slane %v3667, 1
    %v3929 = vsel %vm528, %v3926, %v3928
    %v3930 = vrot.slane %v3668, 1
    %v3931 = vrot.slane %v3669, 1
    %v3932 = vsel %vm528, %v3930, %v3931
    %v3933 = vrot.slane %v3670, 1
    %v3934 = vsel %vm528, %v3931, %v3933
    %v3935 = vrot.slane %v3671, 1
    %v3936 = vrot.slane %v3672, 1
    %v3937 = vsel %vm528, %v3935, %v3936
    %v3938 = vrot.slane %v3673, 1
    %v3939 = vsel %vm528, %v3936, %v3938
    %v3940 = vrot.slane %v3674, 1
    %v3941 = vrot.slane %v3675, 1
    %v3942 = vsel %vm528, %v3940, %v3941
    %v3943 = vrot.slane %v3676, 1
    %v3944 = vsel %vm528, %v3941, %v3943
    %v3945 = vrot.slane %v3683, 1
    %v3946 = vrot.slane %v3684, 1
    %v3947 = vsel %vm528, %v3945, %v3946
    %v3948 = vrot.slane %v3685, 1
    %v3949 = vsel %vm528, %v3946, %v3948
    %v3950 = vrot.slane %v3686, 1
    %v3951 = vrot.slane %v3687, 1
    %v3952 = vsel %vm528, %v3950, %v3951
    %v3953 = vrot.slane %v3688, 1
    %v3954 = vsel %vm528, %v3951, %v3953
    %v3955 = vrot.slane %v3689, 1
    %v3956 = vrot.slane %v3690, 1
    %v3957 = vsel %vm528, %v3955, %v3956
    %v3958 = vrot.slane %v3691, 1
    %v3959 = vsel %vm528, %v3956, %v3958
    %v3960 = vrot.slane %v3692, 1
    %v3961 = vrot.slane %v3693, 1
    %v3962 = vsel %vm528, %v3960, %v3961
    %v3963 = vrot.slane %v3694, 1
    %v3964 = vsel %vm528, %v3961, %v3963
    %v3965 = vrot.slane %v3695, 1
    %v3966 = vrot.slane %v3696, 1
    %v3967 = vsel %vm528, %v3965, %v3966
    %v3968 = vrot.slane %v3697, 1
    %v3969 = vsel %vm528, %v3966, %v3968
    %v3970 = vrot.slane %v3698, 1
    %v3971 = vrot.slane %v3699, 1
    %v3972 = vsel %vm528, %v3970, %v3971
    %v3973 = vrot.slane %v3700, 1
    %v3974 = vsel %vm528, %v3971, %v3973
    %v3975 = vrot.slane %v3701, 1
    %v3976 = vrot.slane %v3702, 1
    %v3977 = vsel %vm528, %v3975, %v3976
    %v3978 = vrot.slane %v3703, 1
    %v3979 = vsel %vm528, %v3976, %v3978
    %v3980 = vrot.slane %v3704, 1
    %v3981 = vrot.slane %v3705, 1
    %v3982 = vsel %vm528, %v3980, %v3981
    %v3983 = vrot.slane %v3706, 1
    %v3984 = vsel %vm528, %v3981, %v3983
    %v3985 = vrot.slane %v3707, 1
    %v3986 = vrot.slane %v3708, 1
    %v3987 = vsel %vm528, %v3985, %v3986
    %v3988 = vrot.slane %v3709, 1
    %v3989 = vsel %vm528, %v3986, %v3988
    %v3990 = vrot.slane %v3710, 1
    %v3991 = vrot.slane %v3711, 1
    %v3992 = vsel %vm528, %v3990, %v3991
    %v3993 = vrot.slane %v3712, 1
    %v3994 = vsel %vm528, %v3991, %v3993
    %v3995 = vrot.slane %v3713, 1
    %v3996 = vrot.slane %v3714, 1
    %v3997 = vsel %vm528, %v3995, %v3996
    %v3998 = vrot.slane %v3715, 1
    %v3999 = vsel %vm528, %v3996, %v3998
    %v4000 = vrot.slane %v3716, 1
    %v4001 = vrot.slane %v3717, 1
    %v4002 = vsel %vm528, %v4000, %v4001
    %v4003 = vrot.slane %v3718, 1
    %v4004 = vsel %vm528, %v4001, %v4003
    %v4005 = vrot.slane %v3719, 1
    %v4006 = vrot.slane %v3720, 1
    %v4007 = vsel %vm528, %v4005, %v4006
    %v4008 = vrot.slane %v3721, 1
    %v4009 = vsel %vm528, %v4006, %v4008
    %v4010 = vrot.slane %v3722, 1
    %v4011 = vrot.slane %v3723, 1
    %v4012 = vsel %vm528, %v4010, %v4011
    %v4013 = vrot.slane %v3724, 1
    %v4014 = vsel %vm528, %v4011, %v4013
    %v4015 = vrot.slane %v3725, 1
    %v4016 = vrot.slane %v3726, 1
    %v4017 = vsel %vm528, %v4015, %v4016
    %v4018 = vrot.slane %v3727, 1
    %v4019 = vsel %vm528, %v4016, %v4018
    %v4020 = vrot.slane %v3728, 1
    %v4021 = vrot.slane %v3729, 1
    %v4022 = vsel %vm528, %v4020, %v4021
    %v4023 = vrot.slane %v3730, 1
    %v4024 = vsel %vm528, %v4021, %v4023
    %v4089 = vpack.c.bf16 %v3869, %v3867
    %v4090 = vpack.c.bf16 %v3874, %v3872
    %v4091 = vpack.c.bf16 %v3879, %v3877
    %v4092 = vpack.c.bf16 %v3884, %v3882
    %v4093 = vpack.c.bf16 %v3889, %v3887
    %v4094 = vpack.c.bf16 %v3894, %v3892
    %v4095 = vpack.c.bf16 %v3899, %v3897
    %v4096 = vpack.c.bf16 %v3904, %v3902
    %v4097 = vpack.c.bf16 %v3909, %v3907
    %v4098 = vpack.c.bf16 %v3914, %v3912
    %v4099 = vpack.c.bf16 %v3919, %v3917
    %v4100 = vpack.c.bf16 %v3924, %v3922
    %v4101 = vpack.c.bf16 %v3929, %v3927
    %v4102 = vpack.c.bf16 %v3934, %v3932
    %v4103 = vpack.c.bf16 %v3939, %v3937
    %v4104 = vpack.c.bf16 %v3944, %v3942
    %v4105 = vpack.c.bf16 %v3949, %v3947
    %v4106 = vpack.c.bf16 %v3954, %v3952
    %v4107 = vpack.c.bf16 %v3959, %v3957
    %v4108 = vpack.c.bf16 %v3964, %v3962
    %v4109 = vpack.c.bf16 %v3969, %v3967
    %v4110 = vpack.c.bf16 %v3974, %v3972
    %v4111 = vpack.c.bf16 %v3979, %v3977
    %v4112 = vpack.c.bf16 %v3984, %v3982
    %v4113 = vpack.c.bf16 %v3989, %v3987
    %v4114 = vpack.c.bf16 %v3994, %v3992
    %v4115 = vpack.c.bf16 %v3999, %v3997
    %v4116 = vpack.c.bf16 %v4004, %v4002
    %v4117 = vpack.c.bf16 %v4009, %v4007
    %v4118 = vpack.c.bf16 %v4014, %v4012
    %v4119 = vpack.c.bf16 %v4019, %v4017
    %v4120 = vpack.c.bf16 %v4024, %v4022
    %v4121 = vrot.slane %v3629, 2
    %v4122 = vrot.slane %v3630, 2
    %v4123 = vsel %vm785, %v4121, %v4122
    %v4124 = vrot.slane %v3631, 2
    %v4125 = vsel %vm785, %v4122, %v4124
    %v4126 = vrot.slane %v3632, 2
    %v4127 = vrot.slane %v3633, 2
    %v4128 = vsel %vm785, %v4126, %v4127
    %v4129 = vrot.slane %v3634, 2
    %v4130 = vsel %vm785, %v4127, %v4129
    %v4131 = vrot.slane %v3635, 2
    %v4132 = vrot.slane %v3636, 2
    %v4133 = vsel %vm785, %v4131, %v4132
    %v4134 = vrot.slane %v3637, 2
    %v4135 = vsel %vm785, %v4132, %v4134
    %v4136 = vrot.slane %v3638, 2
    %v4137 = vrot.slane %v3639, 2
    %v4138 = vsel %vm785, %v4136, %v4137
    %v4139 = vrot.slane %v3640, 2
    %v4140 = vsel %vm785, %v4137, %v4139
    %v4141 = vrot.slane %v3641, 2
    %v4142 = vrot.slane %v3642, 2
    %v4143 = vsel %vm785, %v4141, %v4142
    %v4144 = vrot.slane %v3643, 2
    %v4145 = vsel %vm785, %v4142, %v4144
    %v4146 = vrot.slane %v3644, 2
    %v4147 = vrot.slane %v3645, 2
    %v4148 = vsel %vm785, %v4146, %v4147
    %v4149 = vrot.slane %v3646, 2
    %v4150 = vsel %vm785, %v4147, %v4149
    %v4151 = vrot.slane %v3647, 2
    %v4152 = vrot.slane %v3648, 2
    %v4153 = vsel %vm785, %v4151, %v4152
    %v4154 = vrot.slane %v3649, 2
    %v4155 = vsel %vm785, %v4152, %v4154
    %v4156 = vrot.slane %v3650, 2
    %v4157 = vrot.slane %v3651, 2
    %v4158 = vsel %vm785, %v4156, %v4157
    %v4159 = vrot.slane %v3652, 2
    %v4160 = vsel %vm785, %v4157, %v4159
    %v4161 = vrot.slane %v3653, 2
    %v4162 = vrot.slane %v3654, 2
    %v4163 = vsel %vm785, %v4161, %v4162
    %v4164 = vrot.slane %v3655, 2
    %v4165 = vsel %vm785, %v4162, %v4164
    %v4166 = vrot.slane %v3656, 2
    %v4167 = vrot.slane %v3657, 2
    %v4168 = vsel %vm785, %v4166, %v4167
    %v4169 = vrot.slane %v3658, 2
    %v4170 = vsel %vm785, %v4167, %v4169
    %v4171 = vrot.slane %v3659, 2
    %v4172 = vrot.slane %v3660, 2
    %v4173 = vsel %vm785, %v4171, %v4172
    %v4174 = vrot.slane %v3661, 2
    %v4175 = vsel %vm785, %v4172, %v4174
    %v4176 = vrot.slane %v3662, 2
    %v4177 = vrot.slane %v3663, 2
    %v4178 = vsel %vm785, %v4176, %v4177
    %v4179 = vrot.slane %v3664, 2
    %v4180 = vsel %vm785, %v4177, %v4179
    %v4181 = vrot.slane %v3665, 2
    %v4182 = vrot.slane %v3666, 2
    %v4183 = vsel %vm785, %v4181, %v4182
    %v4184 = vrot.slane %v3667, 2
    %v4185 = vsel %vm785, %v4182, %v4184
    %v4186 = vrot.slane %v3668, 2
    %v4187 = vrot.slane %v3669, 2
    %v4188 = vsel %vm785, %v4186, %v4187
    %v4189 = vrot.slane %v3670, 2
    %v4190 = vsel %vm785, %v4187, %v4189
    %v4191 = vrot.slane %v3671, 2
    %v4192 = vrot.slane %v3672, 2
    %v4193 = vsel %vm785, %v4191, %v4192
    %v4194 = vrot.slane %v3673, 2
    %v4195 = vsel %vm785, %v4192, %v4194
    %v4196 = vrot.slane %v3674, 2
    %v4197 = vrot.slane %v3675, 2
    %v4198 = vsel %vm785, %v4196, %v4197
    %v4199 = vrot.slane %v3676, 2
    %v4200 = vsel %vm785, %v4197, %v4199
    %v4201 = vrot.slane %v3683, 2
    %v4202 = vrot.slane %v3684, 2
    %v4203 = vsel %vm785, %v4201, %v4202
    %v4204 = vrot.slane %v3685, 2
    %v4205 = vsel %vm785, %v4202, %v4204
    %v4206 = vrot.slane %v3686, 2
    %v4207 = vrot.slane %v3687, 2
    %v4208 = vsel %vm785, %v4206, %v4207
    %v4209 = vrot.slane %v3688, 2
    %v4210 = vsel %vm785, %v4207, %v4209
    %v4211 = vrot.slane %v3689, 2
    %v4212 = vrot.slane %v3690, 2
    %v4213 = vsel %vm785, %v4211, %v4212
    %v4214 = vrot.slane %v3691, 2
    %v4215 = vsel %vm785, %v4212, %v4214
    %v4216 = vrot.slane %v3692, 2
    %v4217 = vrot.slane %v3693, 2
    %v4218 = vsel %vm785, %v4216, %v4217
    %v4219 = vrot.slane %v3694, 2
    %v4220 = vsel %vm785, %v4217, %v4219
    %v4221 = vrot.slane %v3695, 2
    %v4222 = vrot.slane %v3696, 2
    %v4223 = vsel %vm785, %v4221, %v4222
    %v4224 = vrot.slane %v3697, 2
    %v4225 = vsel %vm785, %v4222, %v4224
    %v4226 = vrot.slane %v3698, 2
    %v4227 = vrot.slane %v3699, 2
    %v4228 = vsel %vm785, %v4226, %v4227
    %v4229 = vrot.slane %v3700, 2
    %v4230 = vsel %vm785, %v4227, %v4229
    %v4231 = vrot.slane %v3701, 2
    %v4232 = vrot.slane %v3702, 2
    %v4233 = vsel %vm785, %v4231, %v4232
    %v4234 = vrot.slane %v3703, 2
    %v4235 = vsel %vm785, %v4232, %v4234
    %v4236 = vrot.slane %v3704, 2
    %v4237 = vrot.slane %v3705, 2
    %v4238 = vsel %vm785, %v4236, %v4237
    %v4239 = vrot.slane %v3706, 2
    %v4240 = vsel %vm785, %v4237, %v4239
    %v4241 = vrot.slane %v3707, 2
    %v4242 = vrot.slane %v3708, 2
    %v4243 = vsel %vm785, %v4241, %v4242
    %v4244 = vrot.slane %v3709, 2
    %v4245 = vsel %vm785, %v4242, %v4244
    %v4246 = vrot.slane %v3710, 2
    %v4247 = vrot.slane %v3711, 2
    %v4248 = vsel %vm785, %v4246, %v4247
    %v4249 = vrot.slane %v3712, 2
    %v4250 = vsel %vm785, %v4247, %v4249
    %v4251 = vrot.slane %v3713, 2
    %v4252 = vrot.slane %v3714, 2
    %v4253 = vsel %vm785, %v4251, %v4252
    %v4254 = vrot.slane %v3715, 2
    %v4255 = vsel %vm785, %v4252, %v4254
    %v4256 = vrot.slane %v3716, 2
    %v4257 = vrot.slane %v3717, 2
    %v4258 = vsel %vm785, %v4256, %v4257
    %v4259 = vrot.slane %v3718, 2
    %v4260 = vsel %vm785, %v4257, %v4259
    %v4261 = vrot.slane %v3719, 2
    %v4262 = vrot.slane %v3720, 2
    %v4263 = vsel %vm785, %v4261, %v4262
    %v4264 = vrot.slane %v3721, 2
    %v4265 = vsel %vm785, %v4262, %v4264
    %v4266 = vrot.slane %v3722, 2
    %v4267 = vrot.slane %v3723, 2
    %v4268 = vsel %vm785, %v4266, %v4267
    %v4269 = vrot.slane %v3724, 2
    %v4270 = vsel %vm785, %v4267, %v4269
    %v4271 = vrot.slane %v3725, 2
    %v4272 = vrot.slane %v3726, 2
    %v4273 = vsel %vm785, %v4271, %v4272
    %v4274 = vrot.slane %v3727, 2
    %v4275 = vsel %vm785, %v4272, %v4274
    %v4276 = vrot.slane %v3728, 2
    %v4277 = vrot.slane %v3729, 2
    %v4278 = vsel %vm785, %v4276, %v4277
    %v4279 = vrot.slane %v3730, 2
    %v4280 = vsel %vm785, %v4277, %v4279
    %v4345 = vpack.c.bf16 %v4125, %v4123
    %v4346 = vpack.c.bf16 %v4130, %v4128
    %v4347 = vpack.c.bf16 %v4135, %v4133
    %v4348 = vpack.c.bf16 %v4140, %v4138
    %v4349 = vpack.c.bf16 %v4145, %v4143
    %v4350 = vpack.c.bf16 %v4150, %v4148
    %v4351 = vpack.c.bf16 %v4155, %v4153
    %v4352 = vpack.c.bf16 %v4160, %v4158
    %v4353 = vpack.c.bf16 %v4165, %v4163
    %v4354 = vpack.c.bf16 %v4170, %v4168
    %v4355 = vpack.c.bf16 %v4175, %v4173
    %v4356 = vpack.c.bf16 %v4180, %v4178
    %v4357 = vpack.c.bf16 %v4185, %v4183
    %v4358 = vpack.c.bf16 %v4190, %v4188
    %v4359 = vpack.c.bf16 %v4195, %v4193
    %v4360 = vpack.c.bf16 %v4200, %v4198
    %v4361 = vpack.c.bf16 %v4205, %v4203
    %v4362 = vpack.c.bf16 %v4210, %v4208
    %v4363 = vpack.c.bf16 %v4215, %v4213
    %v4364 = vpack.c.bf16 %v4220, %v4218
    %v4365 = vpack.c.bf16 %v4225, %v4223
    %v4366 = vpack.c.bf16 %v4230, %v4228
    %v4367 = vpack.c.bf16 %v4235, %v4233
    %v4368 = vpack.c.bf16 %v4240, %v4238
    %v4369 = vpack.c.bf16 %v4245, %v4243
    %v4370 = vpack.c.bf16 %v4250, %v4248
    %v4371 = vpack.c.bf16 %v4255, %v4253
    %v4372 = vpack.c.bf16 %v4260, %v4258
    %v4373 = vpack.c.bf16 %v4265, %v4263
    %v4374 = vpack.c.bf16 %v4270, %v4268
    %v4375 = vpack.c.bf16 %v4275, %v4273
    %v4376 = vpack.c.bf16 %v4280, %v4278
    %v4377 = vpack.c.bf16 %v3678, %v3677
    %v4378 = vpack.c.bf16 %v3732, %v3731
    %v4385 = vrot.slane %v3677, 1
    %v4386 = vrot.slane %v3678, 1
    %v4387 = vsel %vm528, %v4385, %v4386
    %v4388 = vrot.slane %v3679, 1
    %v4389 = vsel %vm528, %v4386, %v4388
    %v4390 = vrot.slane %v3731, 1
    %v4391 = vrot.slane %v3732, 1
    %v4392 = vsel %vm528, %v4390, %v4391
    %v4393 = vrot.slane %v3733, 1
    %v4394 = vsel %vm528, %v4391, %v4393
    %v4399 = vpack.c.bf16 %v4389, %v4387
    %v4400 = vpack.c.bf16 %v4394, %v4392
    %v4401 = vrot.slane %v3677, 2
    %v4402 = vrot.slane %v3678, 2
    %v4403 = vsel %vm785, %v4401, %v4402
    %v4404 = vrot.slane %v3679, 2
    %v4405 = vsel %vm785, %v4402, %v4404
    %v4406 = vrot.slane %v3731, 2
    %v4407 = vrot.slane %v3732, 2
    %v4408 = vsel %vm785, %v4406, %v4407
    %v4409 = vrot.slane %v3733, 2
    %v4410 = vsel %vm785, %v4407, %v4409
    %v4415 = vpack.c.bf16 %v4405, %v4403
    %v4416 = vpack.c.bf16 %v4410, %v4408
    %v4417 = vpack.c.bf16 %v3681, %v3680
    %v4418 = vpack.c.bf16 %v3735, %v3734
    %v4425 = vrot.slane %v3680, 1
    %v4426 = vrot.slane %v3681, 1
    %v4427 = vsel %vm528, %v4425, %v4426
    %v4428 = vrot.slane %v3682, 1
    %v4429 = vsel %vm528, %v4426, %v4428
    %v4430 = vrot.slane %v3734, 1
    %v4431 = vrot.slane %v3735, 1
    %v4432 = vsel %vm528, %v4430, %v4431
    %v4433 = vrot.slane %v3736, 1
    %v4434 = vsel %vm528, %v4431, %v4433
    %v4439 = vpack.c.bf16 %v4429, %v4427
    %v4440 = vpack.c.bf16 %v4434, %v4432
    %v4441 = vrot.slane %v3680, 2
    %v4442 = vrot.slane %v3681, 2
    %v4443 = vsel %vm785, %v4441, %v4442
    %v4444 = vrot.slane %v3682, 2
    %v4445 = vsel %vm785, %v4442, %v4444
    %v4446 = vrot.slane %v3734, 2
    %v4447 = vrot.slane %v3735, 2
    %v4448 = vsel %vm785, %v4446, %v4447
    %v4449 = vrot.slane %v3736, 2
    %v4450 = vsel %vm785, %v4447, %v4449
    %v4455 = vpack.c.bf16 %v4445, %v4443
    %v4456 = vpack.c.bf16 %v4450, %v4448
    %v4457 = vld [vmem:[#allocation8] sm:$0xf]
    %v4458 = vld [vmem:[#allocation8 + $0x4] sm:$0xf]
    %v4459 = vld [vmem:[#allocation8 + $0x8] sm:$0xf]
    %v4460 = vld [vmem:[#allocation8 + $0xc] sm:$0xf]
    %v4461 = vld [vmem:[#allocation8 + $0x10] sm:$0xf]
    %v4462 = vld [vmem:[#allocation8 + $0x14] sm:$0xf]
    %v4463 = vld [vmem:[#allocation8 + $0x18] sm:$0xf]
    %v4464 = vld [vmem:[#allocation8 + $0x1c] sm:$0xf]
    %v4465 = vld [vmem:[#allocation8 + $0x20] sm:$0xf]
    %v4466 = vld [vmem:[#allocation8 + $0x24] sm:$0xf]
    %v4467 = vld [vmem:[#allocation8 + $0x28] sm:$0xf]
    %v4468 = vld [vmem:[#allocation8 + $0x2c] sm:$0xf]
    %v4469 = vld [vmem:[#allocation8 + $0x30] sm:$0xf]
    %v4470 = vld [vmem:[#allocation8 + $0x34] sm:$0xf]
    %v4471 = vld [vmem:[#allocation8 + $0x38] sm:$0xf]
    %v4472 = vld [vmem:[#allocation8 + $0x3c] sm:$0xf]
    %v4473 = vld [vmem:[#allocation8 + $0x40] sm:$0xf]
    %v4474 = vld [vmem:[#allocation8 + $0x44] sm:$0xf]
    %v4475 = vld [vmem:[#allocation8 + $0x48] sm:$0xf]
    %v4476 = vld [vmem:[#allocation8 + $0x4c] sm:$0xf]
    %v4477 = vld [vmem:[#allocation8 + $0x50] sm:$0xf]
    %v4478 = vld [vmem:[#allocation8 + $0x54] sm:$0xf]
    %v4479 = vld [vmem:[#allocation8 + $0x58] sm:$0xf]
    %v4480 = vld [vmem:[#allocation8 + $0x5c] sm:$0xf]
    %v4481 = vld [vmem:[#allocation8 + $0x60] sm:$0xf]
    %v4482 = vld [vmem:[#allocation8 + $0x64] sm:$0xf]
    %v4483 = vld [vmem:[#allocation8 + $0x68] sm:$0xf]
    %v4484 = vld [vmem:[#allocation8 + $0x6c] sm:$0xf]
    %v4485 = vld [vmem:[#allocation8 + $0x70] sm:$0xf]
    %v4486 = vld [vmem:[#allocation8 + $0x74] sm:$0xf]
    %v4487 = vld [vmem:[#allocation8 + $0x78] sm:$0xf]
    %v4488 = vld [vmem:[#allocation8 + $0x7c] sm:$0xf]
    %v4489 = vld [vmem:[#allocation8 + $0x80] sm:$0xf]
    %v4490 = vld [vmem:[#allocation8 + $0x84] sm:$0xf]
    %v4491 = vld [vmem:[#allocation8 + $0x88] sm:$0xf]
    %v4492 = vld [vmem:[#allocation8 + $0x8c] sm:$0xf]
    %v4493 = vld [vmem:[#allocation8 + $0x90] sm:$0xf]
    %v4494 = vld [vmem:[#allocation8 + $0x94] sm:$0xf]
    %v4495 = vld [vmem:[#allocation8 + $0x98] sm:$0xf]
    %v4496 = vld [vmem:[#allocation8 + $0x9c] sm:$0xf]
    %v4497 = vld [vmem:[#allocation8 + $0xa0] sm:$0xf]
    %v4498 = vld [vmem:[#allocation8 + $0xa4] sm:$0xf]
    %v4499 = vld [vmem:[#allocation8 + $0xa8] sm:$0xf]
    %v4500 = vld [vmem:[#allocation8 + $0xac] sm:$0xf]
    %v4501 = vld [vmem:[#allocation8 + $0xb0] sm:$0xf]
    %v4502 = vld [vmem:[#allocation8 + $0xb4] sm:$0xf]
    %v4503 = vld [vmem:[#allocation8 + $0xb8] sm:$0xf]
    %v4504 = vld [vmem:[#allocation8 + $0xbc] sm:$0xf]
    %v4505 = vld [vmem:[#allocation8 + $0xc0] sm:$0xf]
    %v4506 = vld [vmem:[#allocation8 + $0xc4] sm:$0xf]
    %v4507 = vld [vmem:[#allocation8 + $0xc8] sm:$0xf]
    %v4508 = vld [vmem:[#allocation8 + $0xcc] sm:$0xf]
    %v4509 = vld [vmem:[#allocation8 + $0xd0] sm:$0xf]
    %v4510 = vld [vmem:[#allocation8 + $0xd4] sm:$0xf]
    %v4511 = vld [vmem:[#allocation8 + $0xd8] sm:$0xf]
    %v4512 = vld [vmem:[#allocation8 + $0xdc] sm:$0xf]
    %v4513 = vld [vmem:[#allocation8 + $0xe0] sm:$0xf]
    %v4514 = vld [vmem:[#allocation8 + $0xe4] sm:$0xf]
    %v4515 = vld [vmem:[#allocation8 + $0xe8] sm:$0xf]
    %v4516 = vld [vmem:[#allocation8 + $0xec] sm:$0xf]
    %v4517 = vld [vmem:[#allocation8 + $0xf0] sm:$0xf]
    %v4518 = vld [vmem:[#allocation8 + $0xf4] sm:$0xf]
    %v4519 = vld [vmem:[#allocation8 + $0xf8] sm:$0xf]
    %v4520 = vld [vmem:[#allocation8 + $0xfc] sm:$0xf]
    %v4521 = vld [vmem:[#allocation8 + $0x100] sm:$0xf]
    %v4522 = vld [vmem:[#allocation8 + $0x104] sm:$0xf]
    %v4523 = vld [vmem:[#allocation8 + $0x108] sm:$0xf]
    %v4524 = vld [vmem:[#allocation8 + $0x10c] sm:$0xf]
    %v4525 = vld [vmem:[#allocation8 + $0x110] sm:$0xf]
    %v4526 = vld [vmem:[#allocation8 + $0x114] sm:$0xf]
    %v4527 = vld [vmem:[#allocation8 + $0x118] sm:$0xf]
    %v4528 = vld [vmem:[#allocation8 + $0x11c] sm:$0xf]
    %v4529 = vld [vmem:[#allocation8 + $0x120] sm:$0xf]
    %v4530 = vld [vmem:[#allocation8 + $0x124] sm:$0xf]
    %v4531 = vld [vmem:[#allocation8 + $0x128] sm:$0xf]
    %v4532 = vld [vmem:[#allocation8 + $0x12c] sm:$0xf]
    %v4533 = vld [vmem:[#allocation8 + $0x130] sm:$0xf]
    %v4534 = vld [vmem:[#allocation8 + $0x134] sm:$0xf]
    %v4535 = vld [vmem:[#allocation8 + $0x138] sm:$0xf]
    %v4536 = vld [vmem:[#allocation8 + $0x13c] sm:$0xf]
    %v4537 = vld [vmem:[#allocation8 + $0x140] sm:$0xf]
    %v4538 = vld [vmem:[#allocation8 + $0x144] sm:$0xf]
    %v4539 = vld [vmem:[#allocation8 + $0x148] sm:$0xf]
    %v4540 = vld [vmem:[#allocation8 + $0x14c] sm:$0xf]
    %v4541 = vld [vmem:[#allocation8 + $0x150] sm:$0xf]
    %v4542 = vld [vmem:[#allocation8 + $0x154] sm:$0xf]
    %v4543 = vld [vmem:[#allocation8 + $0x158] sm:$0xf]
    %v4544 = vld [vmem:[#allocation8 + $0x15c] sm:$0xf]
    %v4545 = vld [vmem:[#allocation8 + $0x160] sm:$0xf]
    %v4546 = vld [vmem:[#allocation8 + $0x164] sm:$0xf]
    %v4547 = vld [vmem:[#allocation8 + $0x168] sm:$0xf]
    %v4548 = vld [vmem:[#allocation8 + $0x16c] sm:$0xf]
    %v4549 = vld [vmem:[#allocation8 + $0x170] sm:$0xf]
    %v4550 = vld [vmem:[#allocation8 + $0x174] sm:$0xf]
    %v4551 = vld [vmem:[#allocation8 + $0x178] sm:$0xf]
    %v4552 = vld [vmem:[#allocation8 + $0x17c] sm:$0xf]
    %v4553 = vld [vmem:[#allocation8 + $0x180] sm:$0xf]
    %v4554 = vld [vmem:[#allocation8 + $0x184] sm:$0xf]
    %v4555 = vld [vmem:[#allocation8 + $0x188] sm:$0xf]
    %v4556 = vld [vmem:[#allocation8 + $0x18c] sm:$0xf]
    %v4557 = vld [vmem:[#allocation8 + $0x190] sm:$0xf]
    %v4558 = vld [vmem:[#allocation8 + $0x194] sm:$0xf]
    %v4559 = vld [vmem:[#allocation8 + $0x198] sm:$0xf]
    %v4560 = vld [vmem:[#allocation8 + $0x19c] sm:$0xf]
    %v4561 = vld [vmem:[#allocation8 + $0x1a0] sm:$0xf]
    %v4562 = vld [vmem:[#allocation8 + $0x1a4] sm:$0xf]
    %v4563 = vld [vmem:[#allocation8 + $0x1a8] sm:$0xf]
    %v4564 = vld [vmem:[#allocation8 + $0x1ac] sm:$0xf]
    %v4565 = vld [vmem:[#allocation8 + $0x1b0] sm:$0xf]
    %v4566 = vld [vmem:[#allocation8 + $0x1b4] sm:$0xf]
    %v4567 = vld [vmem:[#allocation8 + $0x1b8] sm:$0xf]
    %v4568 = vld [vmem:[#allocation8 + $0x1bc] sm:$0xf]
    %v4569 = vld [vmem:[#allocation8 + $0x1c0] sm:$0xf]
    %v4570 = vld [vmem:[#allocation8 + $0x1c4] sm:$0xf]
    %v4571 = vld [vmem:[#allocation8 + $0x1c8] sm:$0xf]
    %v4572 = vld [vmem:[#allocation8 + $0x1cc] sm:$0xf]
    %v4573 = vld [vmem:[#allocation8 + $0x1d0] sm:$0xf]
    %v4574 = vld [vmem:[#allocation8 + $0x1d4] sm:$0xf]
    %v4575 = vld [vmem:[#allocation8 + $0x1d8] sm:$0xf]
    %v4576 = vld [vmem:[#allocation8 + $0x1dc] sm:$0xf]
    %v4577 = vld [vmem:[#allocation8 + $0x1e0] sm:$0xf]
    %v4578 = vld [vmem:[#allocation8 + $0x1e4] sm:$0xf]
    %v4579 = vld [vmem:[#allocation8 + $0x1e8] sm:$0xf]
    %v4580 = vld [vmem:[#allocation8 + $0x1ec] sm:$0xf]
    %v4581 = vld [vmem:[#allocation8 + $0x1f0] sm:$0xf]
    %v4582 = vld [vmem:[#allocation8 + $0x1f4] sm:$0xf]
    %v4583 = vld [vmem:[#allocation8 + $0x1f8] sm:$0xf]
    %v4584 = vld [vmem:[#allocation8 + $0x1fc] sm:$0xf]
    %v4585 = vld [vmem:[#allocation8 + $0x200] sm:$0xf]
    %v4586 = vld [vmem:[#allocation8 + $0x204] sm:$0xf]
    %v4587 = vld [vmem:[#allocation8 + $0x208] sm:$0xf]
    %v4588 = vld [vmem:[#allocation8 + $0x20c] sm:$0xf]
    %v4589 = vld [vmem:[#allocation8 + $0x210] sm:$0xf]
    %v4590 = vld [vmem:[#allocation8 + $0x214] sm:$0xf]
    %v4591 = vld [vmem:[#allocation8 + $0x218] sm:$0xf]
    %v4592 = vld [vmem:[#allocation8 + $0x21c] sm:$0xf]
    %v4593 = vld [vmem:[#allocation8 + $0x220] sm:$0xf]
    %v4594 = vld [vmem:[#allocation8 + $0x224] sm:$0xf]
    %v4595 = vld [vmem:[#allocation8 + $0x228] sm:$0xf]
    %v4596 = vld [vmem:[#allocation8 + $0x22c] sm:$0xf]
    %v4597 = vld [vmem:[#allocation8 + $0x230] sm:$0xf]
    %v4598 = vld [vmem:[#allocation8 + $0x234] sm:$0xf]
    %v4599 = vld [vmem:[#allocation8 + $0x238] sm:$0xf]
    %v4600 = vld [vmem:[#allocation8 + $0x23c] sm:$0xf]
    %v4602 = vlaneseq
    %v4603 = vshrl.u32 %v4602, 7
    %v4604 = vsub.s32 0, %v4603
    %v4605 = vrot.slane %v3626, %v4604
    %v4751 = vunpack.c.l.b16 %v4457
    %v4752 = vunpack.c.l.b16 %v4458
    %v4753 = vunpack.c.l.b16 %v4459
    %v4754 = vunpack.c.l.b16 %v4460
    %v4755 = vunpack.c.l.b16 %v4461
    %v4756 = vunpack.c.l.b16 %v4462
    %v4757 = vunpack.c.l.b16 %v4463
    %v4758 = vunpack.c.l.b16 %v4464
    %v4759 = vunpack.c.l.b16 %v4465
    %v4760 = vunpack.c.l.b16 %v4466
    %v4761 = vunpack.c.l.b16 %v4467
    %v4762 = vunpack.c.l.b16 %v4468
    %v4763 = vunpack.c.l.b16 %v4469
    %v4764 = vunpack.c.l.b16 %v4470
    %v4765 = vunpack.c.l.b16 %v4471
    %v4766 = vunpack.c.l.b16 %v4472
    %v4767 = vunpack.c.l.b16 %v4473
    %v4768 = vunpack.c.l.b16 %v4474
    %v4769 = vunpack.c.l.b16 %v4475
    %v4770 = vunpack.c.l.b16 %v4476
    %v4771 = vunpack.c.l.b16 %v4477
    %v4772 = vunpack.c.l.b16 %v4478
    %v4773 = vunpack.c.l.b16 %v4479
    %v4774 = vunpack.c.l.b16 %v4480
    %v4775 = vunpack.c.l.b16 %v4481
    %v4776 = vunpack.c.l.b16 %v4482
    %v4777 = vunpack.c.l.b16 %v4483
    %v4778 = vunpack.c.l.b16 %v4484
    %v4779 = vunpack.c.l.b16 %v4485
    %v4780 = vunpack.c.l.b16 %v4486
    %v4781 = vunpack.c.l.b16 %v4487
    %v4782 = vunpack.c.l.b16 %v4488
    %v4783 = vunpack.c.l.b16 %v4489
    %v4784 = vunpack.c.l.b16 %v4490
    %v4785 = vunpack.c.l.b16 %v4491
    %v4786 = vunpack.c.l.b16 %v4492
    %v4787 = vunpack.c.l.b16 %v4493
    %v4788 = vunpack.c.l.b16 %v4494
    %v4789 = vunpack.c.l.b16 %v4495
    %v4790 = vunpack.c.l.b16 %v4496
    %v4791 = vunpack.c.l.b16 %v4497
    %v4792 = vunpack.c.l.b16 %v4498
    %v4793 = vunpack.c.l.b16 %v4499
    %v4794 = vunpack.c.l.b16 %v4500
    %v4795 = vunpack.c.l.b16 %v4501
    %v4796 = vunpack.c.l.b16 %v4502
    %v4797 = vunpack.c.l.b16 %v4503
    %v4798 = vunpack.c.l.b16 %v4504
    %v4799 = vunpack.c.l.b16 %v4505
    %v4800 = vunpack.c.l.b16 %v4506
    %v4801 = vunpack.c.l.b16 %v4507
    %v4802 = vunpack.c.l.b16 %v4508
    %v4803 = vunpack.c.l.b16 %v4509
    %v4804 = vunpack.c.l.b16 %v4510
    %v4805 = vunpack.c.l.b16 %v4511
    %v4806 = vunpack.c.l.b16 %v4512
    %v4807 = vunpack.c.l.b16 %v4513
    %v4808 = vunpack.c.l.b16 %v4514
    %v4809 = vunpack.c.l.b16 %v4515
    %v4810 = vunpack.c.l.b16 %v4516
    %v4811 = vunpack.c.l.b16 %v4517
    %v4812 = vunpack.c.l.b16 %v4518
    %v4813 = vunpack.c.l.b16 %v4519
    %v4814 = vunpack.c.l.b16 %v4520
    %v4815 = vunpack.c.l.b16 %v4521
    %v4816 = vunpack.c.l.b16 %v4522
    %v4817 = vunpack.c.l.b16 %v4523
    %v4818 = vunpack.c.l.b16 %v4524
    %v4819 = vunpack.c.l.b16 %v4525
    %v4820 = vunpack.c.l.b16 %v4526
    %v4821 = vunpack.c.l.b16 %v4527
    %v4822 = vunpack.c.l.b16 %v4528
    %v4823 = vunpack.c.l.b16 %v4529
    %v4824 = vunpack.c.l.b16 %v4530
    %v4825 = vunpack.c.l.b16 %v4531
    %v4826 = vunpack.c.l.b16 %v4532
    %v4827 = vunpack.c.l.b16 %v4533
    %v4828 = vunpack.c.l.b16 %v4534
    %v4829 = vunpack.c.l.b16 %v4535
    %v4830 = vunpack.c.l.b16 %v4536
    %v4831 = vunpack.c.l.b16 %v4537
    %v4832 = vunpack.c.l.b16 %v4538
    %v4833 = vunpack.c.l.b16 %v4539
    %v4834 = vunpack.c.l.b16 %v4540
    %v4835 = vunpack.c.l.b16 %v4541
    %v4836 = vunpack.c.l.b16 %v4542
    %v4837 = vunpack.c.l.b16 %v4543
    %v4838 = vunpack.c.l.b16 %v4544
    %v4839 = vunpack.c.l.b16 %v4545
    %v4840 = vunpack.c.l.b16 %v4546
    %v4841 = vunpack.c.l.b16 %v4547
    %v4842 = vunpack.c.l.b16 %v4548
    %v4843 = vunpack.c.l.b16 %v4549
    %v4844 = vunpack.c.l.b16 %v4550
    %v4845 = vunpack.c.l.b16 %v4551
    %v4846 = vunpack.c.l.b16 %v4552
    %v4847 = vunpack.c.l.b16 %v4553
    %v4848 = vunpack.c.l.b16 %v4554
    %v4849 = vunpack.c.l.b16 %v4555
    %v4850 = vunpack.c.l.b16 %v4556
    %v4851 = vunpack.c.l.b16 %v4557
    %v4852 = vunpack.c.l.b16 %v4558
    %v4853 = vunpack.c.l.b16 %v4559
    %v4854 = vunpack.c.l.b16 %v4560
    %v4855 = vunpack.c.l.b16 %v4561
    %v4856 = vunpack.c.l.b16 %v4562
    %v4857 = vunpack.c.l.b16 %v4563
    %v4858 = vunpack.c.l.b16 %v4564
    %v4859 = vunpack.c.l.b16 %v4565
    %v4860 = vunpack.c.l.b16 %v4566
    %v4861 = vunpack.c.l.b16 %v4567
    %v4862 = vunpack.c.l.b16 %v4568
    %v4863 = vunpack.c.l.b16 %v4569
    %v4864 = vunpack.c.l.b16 %v4570
    %v4865 = vunpack.c.l.b16 %v4571
    %v4866 = vunpack.c.l.b16 %v4572
    %v4867 = vunpack.c.l.b16 %v4573
    %v4868 = vunpack.c.l.b16 %v4574
    %v4869 = vunpack.c.l.b16 %v4575
    %v4870 = vunpack.c.l.b16 %v4576
    %v4871 = vunpack.c.l.b16 %v4577
    %v4872 = vunpack.c.l.b16 %v4578
    %v4873 = vunpack.c.l.b16 %v4579
    %v4874 = vunpack.c.l.b16 %v4580
    %v4875 = vunpack.c.l.b16 %v4581
    %v4876 = vunpack.c.l.b16 %v4582
    %v4877 = vunpack.c.l.b16 %v4583
    %v4878 = vunpack.c.l.b16 %v4584
    %v4879 = vunpack.c.l.b16 %v4585
    %v4880 = vunpack.c.l.b16 %v4586
    %v4881 = vunpack.c.l.b16 %v4587
    %v4882 = vunpack.c.l.b16 %v4588
    %v4883 = vunpack.c.l.b16 %v4589
    %v4884 = vunpack.c.l.b16 %v4590
    %v4885 = vunpack.c.l.b16 %v4591
    %v4886 = vunpack.c.l.b16 %v4592
    %v4887 = vunpack.c.l.b16 %v4593
    %v4888 = vunpack.c.l.b16 %v4594
    %v4889 = vunpack.c.l.b16 %v4595
    %v4890 = vunpack.c.l.b16 %v4596
    %v4891 = vunpack.c.l.b16 %v4597
    %v4892 = vunpack.c.l.b16 %v4598
    %v4893 = vunpack.c.l.b16 %v4599
    %v4894 = vunpack.c.l.b16 %v4600
    %v4895 = vpack.c.b16 %v4752, %v4751
    %v4896 = vpack.c.b16 %v4754, %v4753
    %v4897 = vpack.c.b16 %v4756, %v4755
    %v4898 = vpack.c.b16 %v4758, %v4757
    %v4899 = vpack.c.b16 %v4760, %v4759
    %v4900 = vpack.c.b16 %v4762, %v4761
    %v4901 = vpack.c.b16 %v4764, %v4763
    %v4902 = vpack.c.b16 %v4766, %v4765
    %v4903 = vpack.c.b16 %v4768, %v4767
    %v4904 = vpack.c.b16 %v4770, %v4769
    %v4905 = vpack.c.b16 %v4772, %v4771
    %v4906 = vpack.c.b16 %v4774, %v4773
    %v4907 = vpack.c.b16 %v4776, %v4775
    %v4908 = vpack.c.b16 %v4778, %v4777
    %v4909 = vpack.c.b16 %v4780, %v4779
    %v4910 = vpack.c.b16 %v4782, %v4781
    %v4911 = vpack.c.b16 %v4784, %v4783
    %v4912 = vpack.c.b16 %v4786, %v4785
    %v4913 = vpack.c.b16 %v4788, %v4787
    %v4914 = vpack.c.b16 %v4790, %v4789
    %v4915 = vpack.c.b16 %v4792, %v4791
    %v4916 = vpack.c.b16 %v4794, %v4793
    %v4917 = vpack.c.b16 %v4796, %v4795
    %v4918 = vpack.c.b16 %v4798, %v4797
    %v4919 = vpack.c.b16 %v4800, %v4799
    %v4920 = vpack.c.b16 %v4802, %v4801
    %v4921 = vpack.c.b16 %v4804, %v4803
    %v4922 = vpack.c.b16 %v4806, %v4805
    %v4923 = vpack.c.b16 %v4808, %v4807
    %v4924 = vpack.c.b16 %v4810, %v4809
    %v4925 = vpack.c.b16 %v4812, %v4811
    %v4926 = vpack.c.b16 %v4814, %v4813
    %v4927 = vpack.c.b16 %v4816, %v4815
    %v4928 = vpack.c.b16 %v4818, %v4817
    %v4929 = vpack.c.b16 %v4820, %v4819
    %v4930 = vpack.c.b16 %v4822, %v4821
    %v4931 = vpack.c.b16 %v4824, %v4823
    %v4932 = vpack.c.b16 %v4826, %v4825
    %v4933 = vpack.c.b16 %v4828, %v4827
    %v4934 = vpack.c.b16 %v4830, %v4829
    %v4935 = vpack.c.b16 %v4832, %v4831
    %v4936 = vpack.c.b16 %v4834, %v4833
    %v4937 = vpack.c.b16 %v4836, %v4835
    %v4938 = vpack.c.b16 %v4838, %v4837
    %v4939 = vpack.c.b16 %v4840, %v4839
    %v4940 = vpack.c.b16 %v4842, %v4841
    %v4941 = vpack.c.b16 %v4844, %v4843
    %v4942 = vpack.c.b16 %v4846, %v4845
    %v4943 = vpack.c.b16 %v4848, %v4847
    %v4944 = vpack.c.b16 %v4850, %v4849
    %v4945 = vpack.c.b16 %v4852, %v4851
    %v4946 = vpack.c.b16 %v4854, %v4853
    %v4947 = vpack.c.b16 %v4856, %v4855
    %v4948 = vpack.c.b16 %v4858, %v4857
    %v4949 = vpack.c.b16 %v4860, %v4859
    %v4950 = vpack.c.b16 %v4862, %v4861
    %v4951 = vpack.c.b16 %v4864, %v4863
    %v4952 = vpack.c.b16 %v4866, %v4865
    %v4953 = vpack.c.b16 %v4868, %v4867
    %v4954 = vpack.c.b16 %v4870, %v4869
    %v4955 = vpack.c.b16 %v4872, %v4871
    %v4956 = vpack.c.b16 %v4874, %v4873
    %v4957 = vpack.c.b16 %v4876, %v4875
    %v4958 = vpack.c.b16 %v4878, %v4877
    %v4959 = vpack.c.b16 %v4880, %v4879
    %v4960 = vpack.c.b16 %v4882, %v4881
    %v4961 = vpack.c.b16 %v4884, %v4883
    %v4962 = vpack.c.b16 %v4886, %v4885
    %v4963 = vpack.c.b16 %v4888, %v4887
    %v4964 = vpack.c.b16 %v4890, %v4889
    %v4965 = vpack.c.b16 %v4892, %v4891
    %v4966 = vpack.c.b16 %v4894, %v4893
    %5039 = vmatprep.subr.bf16.mxu0 0
    %5040 = vmatpush1.bf16.msra.mxu0 %v4895
    %5041 = vmatprep.subr.bf16.mxu0 0
    %5042 = vmatpush1.bf16.msra.mxu0 %v4896
    %5043 = vmatprep.subr.bf16.mxu0 0
    %5044 = vmatpush1.bf16.msra.mxu0 %v4897
    %5045 = vmatprep.subr.bf16.mxu0 0
    %5046 = vmatpush1.bf16.msra.mxu0 %v4898
    %5047 = vmatprep.subr.bf16.mxu0 0
    %5048 = vmatpush1.bf16.msra.mxu0 %v4899
    %5049 = vmatprep.subr.bf16.mxu0 0
    %5050 = vmatpush1.bf16.msra.mxu0 %v4900
    %5051 = vmatprep.subr.bf16.mxu0 0
    %5052 = vmatpush1.bf16.msra.mxu0 %v4901
    %5053 = vmatprep.subr.bf16.mxu0 0
    %5054 = vmatpush1.bf16.msra.mxu0 %v4902
    %5055 = vmatprep.subr.bf16.mxu0 0
    %5056 = vmatpush1.bf16.msra.mxu0 %v4903
    %5057 = vmatprep.subr.bf16.mxu0 0
    %5058 = vmatpush1.bf16.msra.mxu0 %v4904
    %5059 = vmatprep.subr.bf16.mxu0 0
    %5060 = vmatpush1.bf16.msra.mxu0 %v4905
    %5061 = vmatprep.subr.bf16.mxu0 0
    %5062 = vmatpush1.bf16.msra.mxu0 %v4906
    %5063 = vmatprep.subr.bf16.mxu0 0
    %5064 = vmatpush1.bf16.msra.mxu0 %v4907
    %5065 = vmatprep.subr.bf16.mxu0 0
    %5066 = vmatpush1.bf16.msra.mxu0 %v4908
    %5067 = vmatprep.subr.bf16.mxu0 0
    %5068 = vmatpush1.bf16.msra.mxu0 %v4909
    %5069 = vmatprep.subr.bf16.mxu0 0
    %5070 = vmatpush1.bf16.msra.mxu0 %v4910
    %5071 = vmatprep.mubr.bf16.mxu0 %v4089
    %5072 = vmatmul.mubr.bf16.gmra.mrb[0].mxu0 %v3737
    %v5073 = vpop.f32.mrb[0].mxu0
    %v5074 = vadd.f32 %v4605, %v5073
    %v5075 = vpop.f32.mrb[0].mxu0
    %v5076 = vpop.f32.mrb[0].mxu0
    %v5077 = vadd.f32 %v4605, %v5076
    %v5078 = vpop.f32.mrb[0].mxu0
    %5079 = vmatprep.mubr.bf16.mxu0 %v4090
    %5080 = vmatmul.mubr.bf16.gmra.mrb[0].mxu0 %v3738
    %v5081 = vpop.f32.mrb[0].mxu0
    %v5082 = vadd.f32 %v4605, %v5081
    %v5083 = vpop.f32.mrb[0].mxu0
    %v5084 = vpop.f32.mrb[0].mxu0
    %v5085 = vadd.f32 %v4605, %v5084
    %v5086 = vpop.f32.mrb[0].mxu0
    %5087 = vmatprep.mubr.bf16.mxu0 %v4091
    %5088 = vmatmul.mubr.bf16.gmra.mrb[0].mxu0 %v3739
    %v5089 = vpop.f32.mrb[0].mxu0
    %v5090 = vadd.f32 %v4605, %v5089
    %v5091 = vpop.f32.mrb[0].mxu0
    %v5092 = vpop.f32.mrb[0].mxu0
    %v5093 = vadd.f32 %v4605, %v5092
    %v5094 = vpop.f32.mrb[0].mxu0
    %5095 = vmatprep.mubr.bf16.mxu0 %v4092
    %5096 = vmatmul.mubr.bf16.gmra.mrb[0].mxu0 %v3740
    %v5097 = vpop.f32.mrb[0].mxu0
    %v5098 = vadd.f32 %v4605, %v5097
    %v5099 = vpop.f32.mrb[0].mxu0
    %v5100 = vpop.f32.mrb[0].mxu0
    %v5101 = vadd.f32 %v4605, %v5100
    %v5102 = vpop.f32.mrb[0].mxu0
    %5103 = vmatprep.mubr.bf16.mxu0 %v4093
    %5104 = vmatmul.mubr.bf16.gmra.mrb[0].mxu0 %v3741
    %v5105 = vpop.f32.mrb[0].mxu0
    %v5106 = vadd.f32 %v4605, %v5105
    %v5107 = vpop.f32.mrb[0].mxu0
    %v5108 = vpop.f32.mrb[0].mxu0
    %v5109 = vadd.f32 %v4605, %v5108
    %v5110 = vpop.f32.mrb[0].mxu0
    %5111 = vmatprep.mubr.bf16.mxu0 %v4094
    %5112 = vmatmul.mubr.bf16.gmra.mrb[0].mxu0 %v3742
    %v5113 = vpop.f32.mrb[0].mxu0
    %v5114 = vadd.f32 %v4605, %v5113
    %v5115 = vpop.f32.mrb[0].mxu0
    %v5116 = vpop.f32.mrb[0].mxu0
    %v5117 = vadd.f32 %v4605, %v5116
    %v5118 = vpop.f32.mrb[0].mxu0
    %5119 = vmatprep.mubr.bf16.mxu0 %v4095
    %5120 = vmatmul.mubr.bf16.gmra.mrb[0].mxu0 %v3743
    %v5121 = vpop.f32.mrb[0].mxu0
    %v5122 = vadd.f32 %v4605, %v5121
    %v5123 = vpop.f32.mrb[0].mxu0
    %v5124 = vpop.f32.mrb[0].mxu0
    %v5125 = vadd.f32 %v4605, %v5124
    %v5126 = vpop.f32.mrb[0].mxu0
    %5127 = vmatprep.mubr.bf16.mxu0 %v4096
    %5128 = vmatmul.mubr.bf16.gmra.mrb[0].mxu0 %v3744
    %v5129 = vpop.f32.mrb[0].mxu0
    %v5130 = vadd.f32 %v4605, %v5129
    %v5131 = vpop.f32.mrb[0].mxu0
    %v5132 = vpop.f32.mrb[0].mxu0
    %v5133 = vadd.f32 %v4605, %v5132
    %v5134 = vpop.f32.mrb[0].mxu0
    %5135 = vmatprep.mubr.bf16.mxu0 %v4097
    %5136 = vmatmul.mubr.bf16.gmra.mrb[0].mxu0 %v3745
    %v5137 = vpop.f32.mrb[0].mxu0
    %v5138 = vadd.f32 %v4605, %v5137
    %v5139 = vpop.f32.mrb[0].mxu0
    %v5140 = vpop.f32.mrb[0].mxu0
    %v5141 = vadd.f32 %v4605, %v5140
    %v5142 = vpop.f32.mrb[0].mxu0
    %5143 = vmatprep.mubr.bf16.mxu0 %v4098
    %5144 = vmatmul.mubr.bf16.gmra.mrb[0].mxu0 %v3746
    %v5145 = vpop.f32.mrb[0].mxu0
    %v5146 = vadd.f32 %v4605, %v5145
    %v5147 = vpop.f32.mrb[0].mxu0
    %v5148 = vpop.f32.mrb[0].mxu0
    %v5149 = vadd.f32 %v4605, %v5148
    %v5150 = vpop.f32.mrb[0].mxu0
    %5151 = vmatprep.mubr.bf16.mxu0 %v4099
    %5152 = vmatmul.mubr.bf16.gmra.mrb[0].mxu0 %v3747
    %v5153 = vpop.f32.mrb[0].mxu0
    %v5154 = vadd.f32 %v4605, %v5153
    %v5155 = vpop.f32.mrb[0].mxu0
    %v5156 = vpop.f32.mrb[0].mxu0
    %v5157 = vadd.f32 %v4605, %v5156
    %v5158 = vpop.f32.mrb[0].mxu0
    %5159 = vmatprep.mubr.bf16.mxu0 %v4100
    %5160 = vmatmul.mubr.bf16.gmra.mrb[0].mxu0 %v3748
    %v5161 = vpop.f32.mrb[0].mxu0
    %v5162 = vadd.f32 %v4605, %v5161
    %v5163 = vpop.f32.mrb[0].mxu0
    %v5164 = vpop.f32.mrb[0].mxu0
    %v5165 = vadd.f32 %v4605, %v5164
    %v5166 = vpop.f32.mrb[0].mxu0
    %5167 = vmatprep.mubr.bf16.mxu0 %v4101
    %5168 = vmatmul.mubr.bf16.gmra.mrb[0].mxu0 %v3749
    %v5169 = vpop.f32.mrb[0].mxu0
    %v5170 = vadd.f32 %v4605, %v5169
    %v5171 = vpop.f32.mrb[0].mxu0
    %v5172 = vpop.f32.mrb[0].mxu0
    %v5173 = vadd.f32 %v4605, %v5172
    %v5174 = vpop.f32.mrb[0].mxu0
    %5175 = vmatprep.mubr.bf16.mxu0 %v4102
    %5176 = vmatmul.mubr.bf16.gmra.mrb[0].mxu0 %v3750
    %v5177 = vpop.f32.mrb[0].mxu0
    %v5178 = vadd.f32 %v4605, %v5177
    %v5179 = vpop.f32.mrb[0].mxu0
    %v5180 = vpop.f32.mrb[0].mxu0
    %v5181 = vadd.f32 %v4605, %v5180
    %v5182 = vpop.f32.mrb[0].mxu0
    %5183 = vmatprep.mubr.bf16.mxu0 %v4103
    %5184 = vmatmul.mubr.bf16.gmra.mrb[0].mxu0 %v3751
    %v5185 = vpop.f32.mrb[0].mxu0
    %v5186 = vadd.f32 %v4605, %v5185
    %v5187 = vpop.f32.mrb[0].mxu0
    %v5188 = vpop.f32.mrb[0].mxu0
    %v5189 = vadd.f32 %v4605, %v5188
    %v5190 = vpop.f32.mrb[0].mxu0
    %5191 = vmatprep.mubr.bf16.mxu0 %v4104
    %5192 = vmatmul.mubr.bf16.gmra.mrb[0].mxu0 %v3752
    %v5193 = vpop.f32.mrb[0].mxu0
    %v5194 = vadd.f32 %v4605, %v5193
    %v5195 = vpop.f32.mrb[0].mxu0
    %v5196 = vpop.f32.mrb[0].mxu0
    %v5197 = vadd.f32 %v4605, %v5196
    %v5198 = vpop.f32.mrb[0].mxu0
    %5199 = vmatprep.mubr.bf16.mxu0 %v4105
    %5200 = vmatmul.mubr.bf16.gmra.mrb[0].mxu0 %v3753
    %v5201 = vpop.f32.mrb[0].mxu0
    %v5202 = vadd.f32 %v4605, %v5201
    %v5203 = vpop.f32.mrb[0].mxu0
    %v5204 = vpop.f32.mrb[0].mxu0
    %v5205 = vadd.f32 %v4605, %v5204
    %v5206 = vpop.f32.mrb[0].mxu0
    %5207 = vmatprep.mubr.bf16.mxu0 %v4106
    %5208 = vmatmul.mubr.bf16.gmra.mrb[0].mxu0 %v3754
    %v5209 = vpop.f32.mrb[0].mxu0
    %v5210 = vadd.f32 %v4605, %v5209
    %v5211 = vpop.f32.mrb[0].mxu0
    %v5212 = vpop.f32.mrb[0].mxu0
    %v5213 = vadd.f32 %v4605, %v5212
    %v5214 = vpop.f32.mrb[0].mxu0
    %5215 = vmatprep.mubr.bf16.mxu0 %v4107
    %5216 = vmatmul.mubr.bf16.gmra.mrb[0].mxu0 %v3755
    %v5217 = vpop.f32.mrb[0].mxu0
    %v5218 = vadd.f32 %v4605, %v5217
    %v5219 = vpop.f32.mrb[0].mxu0
    %v5220 = vpop.f32.mrb[0].mxu0
    %v5221 = vadd.f32 %v4605, %v5220
    %v5222 = vpop.f32.mrb[0].mxu0
    %5223 = vmatprep.mubr.bf16.mxu0 %v4108
    %5224 = vmatmul.mubr.bf16.gmra.mrb[0].mxu0 %v3756
    %v5225 = vpop.f32.mrb[0].mxu0
    %v5226 = vadd.f32 %v4605, %v5225
    %v5227 = vpop.f32.mrb[0].mxu0
    %v5228 = vpop.f32.mrb[0].mxu0
    %v5229 = vadd.f32 %v4605, %v5228
    %v5230 = vpop.f32.mrb[0].mxu0
    %5231 = vmatprep.mubr.bf16.mxu0 %v4109
    %5232 = vmatmul.mubr.bf16.gmra.mrb[0].mxu0 %v3757
    %v5233 = vpop.f32.mrb[0].mxu0
    %v5234 = vadd.f32 %v4605, %v5233
    %v5235 = vpop.f32.mrb[0].mxu0
    %v5236 = vpop.f32.mrb[0].mxu0
    %v5237 = vadd.f32 %v4605, %v5236
    %v5238 = vpop.f32.mrb[0].mxu0
    %5239 = vmatprep.mubr.bf16.mxu0 %v4110
    %5240 = vmatmul.mubr.bf16.gmra.mrb[0].mxu0 %v3758
    %v5241 = vpop.f32.mrb[0].mxu0
    %v5242 = vadd.f32 %v4605, %v5241
    %v5243 = vpop.f32.mrb[0].mxu0
    %v5244 = vpop.f32.mrb[0].mxu0
    %v5245 = vadd.f32 %v4605, %v5244
    %v5246 = vpop.f32.mrb[0].mxu0
    %5247 = vmatprep.mubr.bf16.mxu0 %v4111
    %5248 = vmatmul.mubr.bf16.gmra.mrb[0].mxu0 %v3759
    %v5249 = vpop.f32.mrb[0].mxu0
    %v5250 = vadd.f32 %v4605, %v5249
    %v5251 = vpop.f32.mrb[0].mxu0
    %v5252 = vpop.f32.mrb[0].mxu0
    %v5253 = vadd.f32 %v4605, %v5252
    %v5254 = vpop.f32.mrb[0].mxu0
    %5255 = vmatprep.mubr.bf16.mxu0 %v4112
    %5256 = vmatmul.mubr.bf16.gmra.mrb[0].mxu0 %v3760
    %v5257 = vpop.f32.mrb[0].mxu0
    %v5258 = vadd.f32 %v4605, %v5257
    %v5259 = vpop.f32.mrb[0].mxu0
    %v5260 = vpop.f32.mrb[0].mxu0
    %v5261 = vadd.f32 %v4605, %v5260
    %v5262 = vpop.f32.mrb[0].mxu0
    %5263 = vmatprep.mubr.bf16.mxu0 %v4113
    %5264 = vmatmul.mubr.bf16.gmra.mrb[0].mxu0 %v3761
    %v5265 = vpop.f32.mrb[0].mxu0
    %v5266 = vadd.f32 %v4605, %v5265
    %v5267 = vpop.f32.mrb[0].mxu0
    %v5268 = vpop.f32.mrb[0].mxu0
    %v5269 = vadd.f32 %v4605, %v5268
    %v5270 = vpop.f32.mrb[0].mxu0
    %5271 = vmatprep.mubr.bf16.mxu0 %v4114
    %5272 = vmatmul.mubr.bf16.gmra.mrb[0].mxu0 %v3762
    %v5273 = vpop.f32.mrb[0].mxu0
    %v5274 = vadd.f32 %v4605, %v5273
    %v5275 = vpop.f32.mrb[0].mxu0
    %v5276 = vpop.f32.mrb[0].mxu0
    %v5277 = vadd.f32 %v4605, %v5276
    %v5278 = vpop.f32.mrb[0].mxu0
    %5279 = vmatprep.mubr.bf16.mxu0 %v4115
    %5280 = vmatmul.mubr.bf16.gmra.mrb[0].mxu0 %v3763
    %v5281 = vpop.f32.mrb[0].mxu0
    %v5282 = vadd.f32 %v4605, %v5281
    %v5283 = vpop.f32.mrb[0].mxu0
    %v5284 = vpop.f32.mrb[0].mxu0
    %v5285 = vadd.f32 %v4605, %v5284
    %v5286 = vpop.f32.mrb[0].mxu0
    %5287 = vmatprep.mubr.bf16.mxu0 %v4116
    %5288 = vmatmul.mubr.bf16.gmra.mrb[0].mxu0 %v3764
    %v5289 = vpop.f32.mrb[0].mxu0
    %v5290 = vadd.f32 %v4605, %v5289
    %v5291 = vpop.f32.mrb[0].mxu0
    %v5292 = vpop.f32.mrb[0].mxu0
    %v5293 = vadd.f32 %v4605, %v5292
    %v5294 = vpop.f32.mrb[0].mxu0
    %5295 = vmatprep.mubr.bf16.mxu0 %v4117
    %5296 = vmatmul.mubr.bf16.gmra.mrb[0].mxu0 %v3765
    %v5297 = vpop.f32.mrb[0].mxu0
    %v5298 = vadd.f32 %v4605, %v5297
    %v5299 = vpop.f32.mrb[0].mxu0
    %v5300 = vpop.f32.mrb[0].mxu0
    %v5301 = vadd.f32 %v4605, %v5300
    %v5302 = vpop.f32.mrb[0].mxu0
    %5303 = vmatprep.mubr.bf16.mxu0 %v4118
    %5304 = vmatmul.mubr.bf16.gmra.mrb[0].mxu0 %v3766
    %v5305 = vpop.f32.mrb[0].mxu0
    %v5306 = vadd.f32 %v4605, %v5305
    %v5307 = vpop.f32.mrb[0].mxu0
    %v5308 = vpop.f32.mrb[0].mxu0
    %v5309 = vadd.f32 %v4605, %v5308
    %v5310 = vpop.f32.mrb[0].mxu0
    %5311 = vmatprep.mubr.bf16.mxu0 %v4119
    %5312 = vmatmul.mubr.bf16.gmra.mrb[0].mxu0 %v3767
    %v5313 = vpop.f32.mrb[0].mxu0
    %v5314 = vadd.f32 %v4605, %v5313
    %v5315 = vpop.f32.mrb[0].mxu0
    %v5316 = vpop.f32.mrb[0].mxu0
    %v5317 = vadd.f32 %v4605, %v5316
    %v5318 = vpop.f32.mrb[0].mxu0
    %5319 = vmatprep.mubr.bf16.mxu0 %v4120
    %5320 = vmatmul.mubr.bf16.gmra.mrb[0].mxu0 %v3768
    %v5321 = vpop.f32.mrb[0].mxu0
    %v5322 = vadd.f32 %v4605, %v5321
    %v5323 = vpop.f32.mrb[0].mxu0
    %v5324 = vpop.f32.mrb[0].mxu0
    %v5325 = vadd.f32 %v4605, %v5324
    %v5326 = vpop.f32.mrb[0].mxu0
    %5327 = vdwg.mxu0
    %5328 = vmatprep.subr.bf16.mxu0 0
    %5329 = vmatpush1.bf16.msra.mxu0 %v4911
    %5330 = vmatprep.subr.bf16.mxu0 0
    %5331 = vmatpush1.bf16.msra.mxu0 %v4912
    %5332 = vmatprep.subr.bf16.mxu0 0
    %5333 = vmatpush1.bf16.msra.mxu0 %v4913
    %5334 = vmatprep.subr.bf16.mxu0 0
    %5335 = vmatpush1.bf16.msra.mxu0 %v4914
    %5336 = vmatprep.subr.bf16.mxu0 0
    %5337 = vmatpush1.bf16.msra.mxu0 %v4915
    %5338 = vmatprep.subr.bf16.mxu0 0
    %5339 = vmatpush1.bf16.msra.mxu0 %v4916
    %5340 = vmatprep.subr.bf16.mxu0 0
    %5341 = vmatpush1.bf16.msra.mxu0 %v4917
    %5342 = vmatprep.subr.bf16.mxu0 0
    %5343 = vmatpush1.bf16.msra.mxu0 %v4918
    %5344 = vmatprep.subr.bf16.mxu0 0
    %5345 = vmatpush1.bf16.msra.mxu0 %v4919
    %5346 = vmatprep.subr.bf16.mxu0 0
    %5347 = vmatpush1.bf16.msra.mxu0 %v4920
    %5348 = vmatprep.subr.bf16.mxu0 0
    %5349 = vmatpush1.bf16.msra.mxu0 %v4921
    %5350 = vmatprep.subr.bf16.mxu0 0
    %5351 = vmatpush1.bf16.msra.mxu0 %v4922
    %5352 = vmatprep.subr.bf16.mxu0 0
    %5353 = vmatpush1.bf16.msra.mxu0 %v4923
    %5354 = vmatprep.subr.bf16.mxu0 0
    %5355 = vmatpush1.bf16.msra.mxu0 %v4924
    %5356 = vmatprep.subr.bf16.mxu0 0
    %5357 = vmatpush1.bf16.msra.mxu0 %v4925
    %5358 = vmatprep.subr.bf16.mxu0 0
    %5359 = vmatpush1.bf16.msra.mxu0 %v4926
    %5360 = vmatprep.mubr.bf16.mxu0 %v3738
    %5361 = vmatmul.mubr.bf16.gmra.mrb[0].mxu0 %v4345
    %v5362 = vpop.f32.mrb[0].mxu0
    %v5363 = vadd.f32 %v5074, %v5362
    %v5364 = vpop.f32.mrb[0].mxu0
    %v5365 = vpop.f32.mrb[0].mxu0
    %v5366 = vadd.f32 %v5077, %v5365
    %v5367 = vpop.f32.mrb[0].mxu0
    %5368 = vmatprep.mubr.bf16.mxu0 %v3739
    %5369 = vmatmul.mubr.bf16.gmra.mrb[0].mxu0 %v4346
    %v5370 = vpop.f32.mrb[0].mxu0
    %v5371 = vadd.f32 %v5082, %v5370
    %v5372 = vpop.f32.mrb[0].mxu0
    %v5373 = vpop.f32.mrb[0].mxu0
    %v5374 = vadd.f32 %v5085, %v5373
    %v5375 = vpop.f32.mrb[0].mxu0
    %5376 = vmatprep.mubr.bf16.mxu0 %v3740
    %5377 = vmatmul.mubr.bf16.gmra.mrb[0].mxu0 %v4347
    %v5378 = vpop.f32.mrb[0].mxu0
    %v5379 = vadd.f32 %v5090, %v5378
    %v5380 = vpop.f32.mrb[0].mxu0
    %v5381 = vpop.f32.mrb[0].mxu0
    %v5382 = vadd.f32 %v5093, %v5381
    %v5383 = vpop.f32.mrb[0].mxu0
    %5384 = vmatprep.mubr.bf16.mxu0 %v3741
    %5385 = vmatmul.mubr.bf16.gmra.mrb[0].mxu0 %v4348
    %v5386 = vpop.f32.mrb[0].mxu0
    %v5387 = vadd.f32 %v5098, %v5386
    %v5388 = vpop.f32.mrb[0].mxu0
    %v5389 = vpop.f32.mrb[0].mxu0
    %v5390 = vadd.f32 %v5101, %v5389
    %v5391 = vpop.f32.mrb[0].mxu0
    %5392 = vmatprep.mubr.bf16.mxu0 %v3742
    %5393 = vmatmul.mubr.bf16.gmra.mrb[0].mxu0 %v4349
    %v5394 = vpop.f32.mrb[0].mxu0
    %v5395 = vadd.f32 %v5106, %v5394
    %v5396 = vpop.f32.mrb[0].mxu0
    %v5397 = vpop.f32.mrb[0].mxu0
    %v5398 = vadd.f32 %v5109, %v5397
    %v5399 = vpop.f32.mrb[0].mxu0
    %5400 = vmatprep.mubr.bf16.mxu0 %v3743
    %5401 = vmatmul.mubr.bf16.gmra.mrb[0].mxu0 %v4350
    %v5402 = vpop.f32.mrb[0].mxu0
    %v5403 = vadd.f32 %v5114, %v5402
    %v5404 = vpop.f32.mrb[0].mxu0
    %v5405 = vpop.f32.mrb[0].mxu0
    %v5406 = vadd.f32 %v5117, %v5405
    %v5407 = vpop.f32.mrb[0].mxu0
    %5408 = vmatprep.mubr.bf16.mxu0 %v3744
    %5409 = vmatmul.mubr.bf16.gmra.mrb[0].mxu0 %v4351
    %v5410 = vpop.f32.mrb[0].mxu0
    %v5411 = vadd.f32 %v5122, %v5410
    %v5412 = vpop.f32.mrb[0].mxu0
    %v5413 = vpop.f32.mrb[0].mxu0
    %v5414 = vadd.f32 %v5125, %v5413
    %v5415 = vpop.f32.mrb[0].mxu0
    %5416 = vmatprep.mubr.bf16.mxu0 %v3745
    %5417 = vmatmul.mubr.bf16.gmra.mrb[0].mxu0 %v4352
    %v5418 = vpop.f32.mrb[0].mxu0
    %v5419 = vadd.f32 %v5130, %v5418
    %v5420 = vpop.f32.mrb[0].mxu0
    %v5421 = vpop.f32.mrb[0].mxu0
    %v5422 = vadd.f32 %v5133, %v5421
    %v5423 = vpop.f32.mrb[0].mxu0
    %5424 = vmatprep.mubr.bf16.mxu0 %v3746
    %5425 = vmatmul.mubr.bf16.gmra.mrb[0].mxu0 %v4353
    %v5426 = vpop.f32.mrb[0].mxu0
    %v5427 = vadd.f32 %v5138, %v5426
    %v5428 = vpop.f32.mrb[0].mxu0
    %v5429 = vpop.f32.mrb[0].mxu0
    %v5430 = vadd.f32 %v5141, %v5429
    %v5431 = vpop.f32.mrb[0].mxu0
    %5432 = vmatprep.mubr.bf16.mxu0 %v3747
    %5433 = vmatmul.mubr.bf16.gmra.mrb[0].mxu0 %v4354
    %v5434 = vpop.f32.mrb[0].mxu0
    %v5435 = vadd.f32 %v5146, %v5434
    %v5436 = vpop.f32.mrb[0].mxu0
    %v5437 = vpop.f32.mrb[0].mxu0
    %v5438 = vadd.f32 %v5149, %v5437
    %v5439 = vpop.f32.mrb[0].mxu0
    %5440 = vmatprep.mubr.bf16.mxu0 %v3748
    %5441 = vmatmul.mubr.bf16.gmra.mrb[0].mxu0 %v4355
    %v5442 = vpop.f32.mrb[0].mxu0
    %v5443 = vadd.f32 %v5154, %v5442
    %v5444 = vpop.f32.mrb[0].mxu0
    %v5445 = vpop.f32.mrb[0].mxu0
    %v5446 = vadd.f32 %v5157, %v5445
    %v5447 = vpop.f32.mrb[0].mxu0
    %5448 = vmatprep.mubr.bf16.mxu0 %v3749
    %5449 = vmatmul.mubr.bf16.gmra.mrb[0].mxu0 %v4356
    %v5450 = vpop.f32.mrb[0].mxu0
    %v5451 = vadd.f32 %v5162, %v5450
    %v5452 = vpop.f32.mrb[0].mxu0
    %v5453 = vpop.f32.mrb[0].mxu0
    %v5454 = vadd.f32 %v5165, %v5453
    %v5455 = vpop.f32.mrb[0].mxu0
    %5456 = vmatprep.mubr.bf16.mxu0 %v3750
    %5457 = vmatmul.mubr.bf16.gmra.mrb[0].mxu0 %v4357
    %v5458 = vpop.f32.mrb[0].mxu0
    %v5459 = vadd.f32 %v5170, %v5458
    %v5460 = vpop.f32.mrb[0].mxu0
    %v5461 = vpop.f32.mrb[0].mxu0
    %v5462 = vadd.f32 %v5173, %v5461
    %v5463 = vpop.f32.mrb[0].mxu0
    %5464 = vmatprep.mubr.bf16.mxu0 %v3751
    %5465 = vmatmul.mubr.bf16.gmra.mrb[0].mxu0 %v4358
    %v5466 = vpop.f32.mrb[0].mxu0
    %v5467 = vadd.f32 %v5178, %v5466
    %v5468 = vpop.f32.mrb[0].mxu0
    %v5469 = vpop.f32.mrb[0].mxu0
    %v5470 = vadd.f32 %v5181, %v5469
    %v5471 = vpop.f32.mrb[0].mxu0
    %5472 = vmatprep.mubr.bf16.mxu0 %v3752
    %5473 = vmatmul.mubr.bf16.gmra.mrb[0].mxu0 %v4359
    %v5474 = vpop.f32.mrb[0].mxu0
    %v5475 = vadd.f32 %v5186, %v5474
    %v5476 = vpop.f32.mrb[0].mxu0
    %v5477 = vpop.f32.mrb[0].mxu0
    %v5478 = vadd.f32 %v5189, %v5477
    %v5479 = vpop.f32.mrb[0].mxu0
    %5480 = vmatprep.mubr.bf16.mxu0 %v4377
    %5481 = vmatmul.mubr.bf16.gmra.mrb[0].mxu0 %v4360
    %v5482 = vpop.f32.mrb[0].mxu0
    %v5483 = vadd.f32 %v5194, %v5482
    %v5484 = vpop.f32.mrb[0].mxu0
    %v5485 = vpop.f32.mrb[0].mxu0
    %v5486 = vadd.f32 %v5197, %v5485
    %v5487 = vpop.f32.mrb[0].mxu0
    %5488 = vmatprep.mubr.bf16.mxu0 %v3754
    %5489 = vmatmul.mubr.bf16.gmra.mrb[0].mxu0 %v4361
    %v5490 = vpop.f32.mrb[0].mxu0
    %v5491 = vadd.f32 %v5202, %v5490
    %v5492 = vpop.f32.mrb[0].mxu0
    %v5493 = vpop.f32.mrb[0].mxu0
    %v5494 = vadd.f32 %v5205, %v5493
    %v5495 = vpop.f32.mrb[0].mxu0
    %5496 = vmatprep.mubr.bf16.mxu0 %v3755
    %5497 = vmatmul.mubr.bf16.gmra.mrb[0].mxu0 %v4362
    %v5498 = vpop.f32.mrb[0].mxu0
    %v5499 = vadd.f32 %v5210, %v5498
    %v5500 = vpop.f32.mrb[0].mxu0
    %v5501 = vpop.f32.mrb[0].mxu0
    %v5502 = vadd.f32 %v5213, %v5501
    %v5503 = vpop.f32.mrb[0].mxu0
    %5504 = vmatprep.mubr.bf16.mxu0 %v3756
    %5505 = vmatmul.mubr.bf16.gmra.mrb[0].mxu0 %v4363
    %v5506 = vpop.f32.mrb[0].mxu0
    %v5507 = vadd.f32 %v5218, %v5506
    %v5508 = vpop.f32.mrb[0].mxu0
    %v5509 = vpop.f32.mrb[0].mxu0
    %v5510 = vadd.f32 %v5221, %v5509
    %v5511 = vpop.f32.mrb[0].mxu0
    %5512 = vmatprep.mubr.bf16.mxu0 %v3757
    %5513 = vmatmul.mubr.bf16.gmra.mrb[0].mxu0 %v4364
    %v5514 = vpop.f32.mrb[0].mxu0
    %v5515 = vadd.f32 %v5226, %v5514
    %v5516 = vpop.f32.mrb[0].mxu0
    %v5517 = vpop.f32.mrb[0].mxu0
    %v5518 = vadd.f32 %v5229, %v5517
    %v5519 = vpop.f32.mrb[0].mxu0
    %5520 = vmatprep.mubr.bf16.mxu0 %v3758
    %5521 = vmatmul.mubr.bf16.gmra.mrb[0].mxu0 %v4365
    %v5522 = vpop.f32.mrb[0].mxu0
    %v5523 = vadd.f32 %v5234, %v5522
    %v5524 = vpop.f32.mrb[0].mxu0
    %v5525 = vpop.f32.mrb[0].mxu0
    %v5526 = vadd.f32 %v5237, %v5525
    %v5527 = vpop.f32.mrb[0].mxu0
    %5528 = vmatprep.mubr.bf16.mxu0 %v3759
    %5529 = vmatmul.mubr.bf16.gmra.mrb[0].mxu0 %v4366
    %v5530 = vpop.f32.mrb[0].mxu0
    %v5531 = vadd.f32 %v5242, %v5530
    %v5532 = vpop.f32.mrb[0].mxu0
    %v5533 = vpop.f32.mrb[0].mxu0
    %v5534 = vadd.f32 %v5245, %v5533
    %v5535 = vpop.f32.mrb[0].mxu0
    %5536 = vmatprep.mubr.bf16.mxu0 %v3760
    %5537 = vmatmul.mubr.bf16.gmra.mrb[0].mxu0 %v4367
    %v5538 = vpop.f32.mrb[0].mxu0
    %v5539 = vadd.f32 %v5250, %v5538
    %v5540 = vpop.f32.mrb[0].mxu0
    %v5541 = vpop.f32.mrb[0].mxu0
    %v5542 = vadd.f32 %v5253, %v5541
    %v5543 = vpop.f32.mrb[0].mxu0
    %5544 = vmatprep.mubr.bf16.mxu0 %v3761
    %5545 = vmatmul.mubr.bf16.gmra.mrb[0].mxu0 %v4368
    %v5546 = vpop.f32.mrb[0].mxu0
    %v5547 = vadd.f32 %v5258, %v5546
    %v5548 = vpop.f32.mrb[0].mxu0
    %v5549 = vpop.f32.mrb[0].mxu0
    %v5550 = vadd.f32 %v5261, %v5549
    %v5551 = vpop.f32.mrb[0].mxu0
    %5552 = vmatprep.mubr.bf16.mxu0 %v3762
    %5553 = vmatmul.mubr.bf16.gmra.mrb[0].mxu0 %v4369
    %v5554 = vpop.f32.mrb[0].mxu0
    %v5555 = vadd.f32 %v5266, %v5554
    %v5556 = vpop.f32.mrb[0].mxu0
    %v5557 = vpop.f32.mrb[0].mxu0
    %v5558 = vadd.f32 %v5269, %v5557
    %v5559 = vpop.f32.mrb[0].mxu0
    %5560 = vmatprep.mubr.bf16.mxu0 %v3763
    %5561 = vmatmul.mubr.bf16.gmra.mrb[0].mxu0 %v4370
    %v5562 = vpop.f32.mrb[0].mxu0
    %v5563 = vadd.f32 %v5274, %v5562
    %v5564 = vpop.f32.mrb[0].mxu0
    %v5565 = vpop.f32.mrb[0].mxu0
    %v5566 = vadd.f32 %v5277, %v5565
    %v5567 = vpop.f32.mrb[0].mxu0
    %5568 = vmatprep.mubr.bf16.mxu0 %v3764
    %5569 = vmatmul.mubr.bf16.gmra.mrb[0].mxu0 %v4371
    %v5570 = vpop.f32.mrb[0].mxu0
    %v5571 = vadd.f32 %v5282, %v5570
    %v5572 = vpop.f32.mrb[0].mxu0
    %v5573 = vpop.f32.mrb[0].mxu0
    %v5574 = vadd.f32 %v5285, %v5573
    %v5575 = vpop.f32.mrb[0].mxu0
    %5576 = vmatprep.mubr.bf16.mxu0 %v3765
    %5577 = vmatmul.mubr.bf16.gmra.mrb[0].mxu0 %v4372
    %v5578 = vpop.f32.mrb[0].mxu0
    %v5579 = vadd.f32 %v5290, %v5578
    %v5580 = vpop.f32.mrb[0].mxu0
    %v5581 = vpop.f32.mrb[0].mxu0
    %v5582 = vadd.f32 %v5293, %v5581
    %v5583 = vpop.f32.mrb[0].mxu0
    %5584 = vmatprep.mubr.bf16.mxu0 %v3766
    %5585 = vmatmul.mubr.bf16.gmra.mrb[0].mxu0 %v4373
    %v5586 = vpop.f32.mrb[0].mxu0
    %v5587 = vadd.f32 %v5298, %v5586
    %v5588 = vpop.f32.mrb[0].mxu0
    %v5589 = vpop.f32.mrb[0].mxu0
    %v5590 = vadd.f32 %v5301, %v5589
    %v5591 = vpop.f32.mrb[0].mxu0
    %5592 = vmatprep.mubr.bf16.mxu0 %v3767
    %5593 = vmatmul.mubr.bf16.gmra.mrb[0].mxu0 %v4374
    %v5594 = vpop.f32.mrb[0].mxu0
    %v5595 = vadd.f32 %v5306, %v5594
    %v5596 = vpop.f32.mrb[0].mxu0
    %v5597 = vpop.f32.mrb[0].mxu0
    %v5598 = vadd.f32 %v5309, %v5597
    %v5599 = vpop.f32.mrb[0].mxu0
    %5600 = vmatprep.mubr.bf16.mxu0 %v3768
    %5601 = vmatmul.mubr.bf16.gmra.mrb[0].mxu0 %v4375
    %v5602 = vpop.f32.mrb[0].mxu0
    %v5603 = vadd.f32 %v5314, %v5602
    %v5604 = vpop.f32.mrb[0].mxu0
    %v5605 = vpop.f32.mrb[0].mxu0
    %v5606 = vadd.f32 %v5317, %v5605
    %v5607 = vpop.f32.mrb[0].mxu0
    %5608 = vmatprep.mubr.bf16.mxu0 %v4378
    %5609 = vmatmul.mubr.bf16.gmra.mrb[0].mxu0 %v4376
    %v5610 = vpop.f32.mrb[0].mxu0
    %v5611 = vadd.f32 %v5322, %v5610
    %v5612 = vpop.f32.mrb[0].mxu0
    %v5613 = vpop.f32.mrb[0].mxu0
    %v5614 = vadd.f32 %v5325, %v5613
    %v5615 = vpop.f32.mrb[0].mxu0
    %5616 = vdwg.mxu0
    %5617 = vmatprep.subr.bf16.mxu0 0
    %5618 = vmatpush1.bf16.msra.mxu0 %v4927
    %5619 = vmatprep.subr.bf16.mxu0 0
    %5620 = vmatpush1.bf16.msra.mxu0 %v4928
    %5621 = vmatprep.subr.bf16.mxu0 0
    %5622 = vmatpush1.bf16.msra.mxu0 %v4929
    %5623 = vmatprep.subr.bf16.mxu0 0
    %5624 = vmatpush1.bf16.msra.mxu0 %v4930
    %5625 = vmatprep.subr.bf16.mxu0 0
    %5626 = vmatpush1.bf16.msra.mxu0 %v4931
    %5627 = vmatprep.subr.bf16.mxu0 0
    %5628 = vmatpush1.bf16.msra.mxu0 %v4932
    %5629 = vmatprep.subr.bf16.mxu0 0
    %5630 = vmatpush1.bf16.msra.mxu0 %v4933
    %5631 = vmatprep.subr.bf16.mxu0 0
    %5632 = vmatpush1.bf16.msra.mxu0 %v4934
    %5633 = vmatprep.subr.bf16.mxu0 0
    %5634 = vmatpush1.bf16.msra.mxu0 %v4935
    %5635 = vmatprep.subr.bf16.mxu0 0
    %5636 = vmatpush1.bf16.msra.mxu0 %v4936
    %5637 = vmatprep.subr.bf16.mxu0 0
    %5638 = vmatpush1.bf16.msra.mxu0 %v4937
    %5639 = vmatprep.subr.bf16.mxu0 0
    %5640 = vmatpush1.bf16.msra.mxu0 %v4938
    %5641 = vmatprep.subr.bf16.mxu0 0
    %5642 = vmatpush1.bf16.msra.mxu0 %v4939
    %5643 = vmatprep.subr.bf16.mxu0 0
    %5644 = vmatpush1.bf16.msra.mxu0 %v4940
    %5645 = vmatprep.subr.bf16.mxu0 0
    %5646 = vmatpush1.bf16.msra.mxu0 %v4941
    %5647 = vmatprep.subr.bf16.mxu0 0
    %5648 = vmatpush1.bf16.msra.mxu0 %v4942
    %5649 = vmatprep.mubr.bf16.mxu0 %v4346
    %5650 = vmatmul.mubr.bf16.gmra.mrb[0].mxu0 %v4090
    %v5651 = vpop.f32.mrb[0].mxu0
    %v5652 = vadd.f32 %v5363, %v5651
    %v5653 = vpop.f32.mrb[0].mxu0
    %v5654 = vpop.f32.mrb[0].mxu0
    %v5655 = vadd.f32 %v5366, %v5654
    %v5656 = vpop.f32.mrb[0].mxu0
    %5657 = vmatprep.mubr.bf16.mxu0 %v4347
    %5658 = vmatmul.mubr.bf16.gmra.mrb[0].mxu0 %v4091
    %v5659 = vpop.f32.mrb[0].mxu0
    %v5660 = vadd.f32 %v5371, %v5659
    %v5661 = vpop.f32.mrb[0].mxu0
    %v5662 = vpop.f32.mrb[0].mxu0
    %v5663 = vadd.f32 %v5374, %v5662
    %v5664 = vpop.f32.mrb[0].mxu0
    %5665 = vmatprep.mubr.bf16.mxu0 %v4348
    %5666 = vmatmul.mubr.bf16.gmra.mrb[0].mxu0 %v4092
    %v5667 = vpop.f32.mrb[0].mxu0
    %v5668 = vadd.f32 %v5379, %v5667
    %v5669 = vpop.f32.mrb[0].mxu0
    %v5670 = vpop.f32.mrb[0].mxu0
    %v5671 = vadd.f32 %v5382, %v5670
    %v5672 = vpop.f32.mrb[0].mxu0
    %5673 = vmatprep.mubr.bf16.mxu0 %v4349
    %5674 = vmatmul.mubr.bf16.gmra.mrb[0].mxu0 %v4093
    %v5675 = vpop.f32.mrb[0].mxu0
    %v5676 = vadd.f32 %v5387, %v5675
    %v5677 = vpop.f32.mrb[0].mxu0
    %v5678 = vpop.f32.mrb[0].mxu0
    %v5679 = vadd.f32 %v5390, %v5678
    %v5680 = vpop.f32.mrb[0].mxu0
    %5681 = vmatprep.mubr.bf16.mxu0 %v4350
    %5682 = vmatmul.mubr.bf16.gmra.mrb[0].mxu0 %v4094
    %v5683 = vpop.f32.mrb[0].mxu0
    %v5684 = vadd.f32 %v5395, %v5683
    %v5685 = vpop.f32.mrb[0].mxu0
    %v5686 = vpop.f32.mrb[0].mxu0
    %v5687 = vadd.f32 %v5398, %v5686
    %v5688 = vpop.f32.mrb[0].mxu0
    %5689 = vmatprep.mubr.bf16.mxu0 %v4351
    %5690 = vmatmul.mubr.bf16.gmra.mrb[0].mxu0 %v4095
    %v5691 = vpop.f32.mrb[0].mxu0
    %v5692 = vadd.f32 %v5403, %v5691
    %v5693 = vpop.f32.mrb[0].mxu0
    %v5694 = vpop.f32.mrb[0].mxu0
    %v5695 = vadd.f32 %v5406, %v5694
    %v5696 = vpop.f32.mrb[0].mxu0
    %5697 = vmatprep.mubr.bf16.mxu0 %v4352
    %5698 = vmatmul.mubr.bf16.gmra.mrb[0].mxu0 %v4096
    %v5699 = vpop.f32.mrb[0].mxu0
    %v5700 = vadd.f32 %v5411, %v5699
    %v5701 = vpop.f32.mrb[0].mxu0
    %v5702 = vpop.f32.mrb[0].mxu0
    %v5703 = vadd.f32 %v5414, %v5702
    %v5704 = vpop.f32.mrb[0].mxu0
    %5705 = vmatprep.mubr.bf16.mxu0 %v4353
    %5706 = vmatmul.mubr.bf16.gmra.mrb[0].mxu0 %v4097
    %v5707 = vpop.f32.mrb[0].mxu0
    %v5708 = vadd.f32 %v5419, %v5707
    %v5709 = vpop.f32.mrb[0].mxu0
    %v5710 = vpop.f32.mrb[0].mxu0
    %v5711 = vadd.f32 %v5422, %v5710
    %v5712 = vpop.f32.mrb[0].mxu0
    %5713 = vmatprep.mubr.bf16.mxu0 %v4354
    %5714 = vmatmul.mubr.bf16.gmra.mrb[0].mxu0 %v4098
    %v5715 = vpop.f32.mrb[0].mxu0
    %v5716 = vadd.f32 %v5427, %v5715
    %v5717 = vpop.f32.mrb[0].mxu0
    %v5718 = vpop.f32.mrb[0].mxu0
    %v5719 = vadd.f32 %v5430, %v5718
    %v5720 = vpop.f32.mrb[0].mxu0
    %5721 = vmatprep.mubr.bf16.mxu0 %v4355
    %5722 = vmatmul.mubr.bf16.gmra.mrb[0].mxu0 %v4099
    %v5723 = vpop.f32.mrb[0].mxu0
    %v5724 = vadd.f32 %v5435, %v5723
    %v5725 = vpop.f32.mrb[0].mxu0
    %v5726 = vpop.f32.mrb[0].mxu0
    %v5727 = vadd.f32 %v5438, %v5726
    %v5728 = vpop.f32.mrb[0].mxu0
    %5729 = vmatprep.mubr.bf16.mxu0 %v4356
    %5730 = vmatmul.mubr.bf16.gmra.mrb[0].mxu0 %v4100
    %v5731 = vpop.f32.mrb[0].mxu0
    %v5732 = vadd.f32 %v5443, %v5731
    %v5733 = vpop.f32.mrb[0].mxu0
    %v5734 = vpop.f32.mrb[0].mxu0
    %v5735 = vadd.f32 %v5446, %v5734
    %v5736 = vpop.f32.mrb[0].mxu0
    %5737 = vmatprep.mubr.bf16.mxu0 %v4357
    %5738 = vmatmul.mubr.bf16.gmra.mrb[0].mxu0 %v4101
    %v5739 = vpop.f32.mrb[0].mxu0
    %v5740 = vadd.f32 %v5451, %v5739
    %v5741 = vpop.f32.mrb[0].mxu0
    %v5742 = vpop.f32.mrb[0].mxu0
    %v5743 = vadd.f32 %v5454, %v5742
    %v5744 = vpop.f32.mrb[0].mxu0
    %5745 = vmatprep.mubr.bf16.mxu0 %v4358
    %5746 = vmatmul.mubr.bf16.gmra.mrb[0].mxu0 %v4102
    %v5747 = vpop.f32.mrb[0].mxu0
    %v5748 = vadd.f32 %v5459, %v5747
    %v5749 = vpop.f32.mrb[0].mxu0
    %v5750 = vpop.f32.mrb[0].mxu0
    %v5751 = vadd.f32 %v5462, %v5750
    %v5752 = vpop.f32.mrb[0].mxu0
    %5753 = vmatprep.mubr.bf16.mxu0 %v4359
    %5754 = vmatmul.mubr.bf16.gmra.mrb[0].mxu0 %v4103
    %v5755 = vpop.f32.mrb[0].mxu0
    %v5756 = vadd.f32 %v5467, %v5755
    %v5757 = vpop.f32.mrb[0].mxu0
    %v5758 = vpop.f32.mrb[0].mxu0
    %v5759 = vadd.f32 %v5470, %v5758
    %v5760 = vpop.f32.mrb[0].mxu0
    %5761 = vmatprep.mubr.bf16.mxu0 %v4360
    %5762 = vmatmul.mubr.bf16.gmra.mrb[0].mxu0 %v4104
    %v5763 = vpop.f32.mrb[0].mxu0
    %v5764 = vadd.f32 %v5475, %v5763
    %v5765 = vpop.f32.mrb[0].mxu0
    %v5766 = vpop.f32.mrb[0].mxu0
    %v5767 = vadd.f32 %v5478, %v5766
    %v5768 = vpop.f32.mrb[0].mxu0
    %5769 = vmatprep.mubr.bf16.mxu0 %v4415
    %5770 = vmatmul.mubr.bf16.gmra.mrb[0].mxu0 %v4399
    %v5771 = vpop.f32.mrb[0].mxu0
    %v5772 = vadd.f32 %v5483, %v5771
    %v5773 = vpop.f32.mrb[0].mxu0
    %v5774 = vpop.f32.mrb[0].mxu0
    %v5775 = vadd.f32 %v5486, %v5774
    %v5776 = vpop.f32.mrb[0].mxu0
    %5777 = vmatprep.mubr.bf16.mxu0 %v4362
    %5778 = vmatmul.mubr.bf16.gmra.mrb[0].mxu0 %v4106
    %v5779 = vpop.f32.mrb[0].mxu0
    %v5780 = vadd.f32 %v5491, %v5779
    %v5781 = vpop.f32.mrb[0].mxu0
    %v5782 = vpop.f32.mrb[0].mxu0
    %v5783 = vadd.f32 %v5494, %v5782
    %v5784 = vpop.f32.mrb[0].mxu0
    %5785 = vmatprep.mubr.bf16.mxu0 %v4363
    %5786 = vmatmul.mubr.bf16.gmra.mrb[0].mxu0 %v4107
    %v5787 = vpop.f32.mrb[0].mxu0
    %v5788 = vadd.f32 %v5499, %v5787
    %v5789 = vpop.f32.mrb[0].mxu0
    %v5790 = vpop.f32.mrb[0].mxu0
    %v5791 = vadd.f32 %v5502, %v5790
    %v5792 = vpop.f32.mrb[0].mxu0
    %5793 = vmatprep.mubr.bf16.mxu0 %v4364
    %5794 = vmatmul.mubr.bf16.gmra.mrb[0].mxu0 %v4108
    %v5795 = vpop.f32.mrb[0].mxu0
    %v5796 = vadd.f32 %v5507, %v5795
    %v5797 = vpop.f32.mrb[0].mxu0
    %v5798 = vpop.f32.mrb[0].mxu0
    %v5799 = vadd.f32 %v5510, %v5798
    %v5800 = vpop.f32.mrb[0].mxu0
    %5801 = vmatprep.mubr.bf16.mxu0 %v4365
    %5802 = vmatmul.mubr.bf16.gmra.mrb[0].mxu0 %v4109
    %v5803 = vpop.f32.mrb[0].mxu0
    %v5804 = vadd.f32 %v5515, %v5803
    %v5805 = vpop.f32.mrb[0].mxu0
    %v5806 = vpop.f32.mrb[0].mxu0
    %v5807 = vadd.f32 %v5518, %v5806
    %v5808 = vpop.f32.mrb[0].mxu0
    %5809 = vmatprep.mubr.bf16.mxu0 %v4366
    %5810 = vmatmul.mubr.bf16.gmra.mrb[0].mxu0 %v4110
    %v5811 = vpop.f32.mrb[0].mxu0
    %v5812 = vadd.f32 %v5523, %v5811
    %v5813 = vpop.f32.mrb[0].mxu0
    %v5814 = vpop.f32.mrb[0].mxu0
    %v5815 = vadd.f32 %v5526, %v5814
    %v5816 = vpop.f32.mrb[0].mxu0
    %5817 = vmatprep.mubr.bf16.mxu0 %v4367
    %5818 = vmatmul.mubr.bf16.gmra.mrb[0].mxu0 %v4111
    %v5819 = vpop.f32.mrb[0].mxu0
    %v5820 = vadd.f32 %v5531, %v5819
    %v5821 = vpop.f32.mrb[0].mxu0
    %v5822 = vpop.f32.mrb[0].mxu0
    %v5823 = vadd.f32 %v5534, %v5822
    %v5824 = vpop.f32.mrb[0].mxu0
    %5825 = vmatprep.mubr.bf16.mxu0 %v4368
    %5826 = vmatmul.mubr.bf16.gmra.mrb[0].mxu0 %v4112
    %v5827 = vpop.f32.mrb[0].mxu0
    %v5828 = vadd.f32 %v5539, %v5827
    %v5829 = vpop.f32.mrb[0].mxu0
    %v5830 = vpop.f32.mrb[0].mxu0
    %v5831 = vadd.f32 %v5542, %v5830
    %v5832 = vpop.f32.mrb[0].mxu0
    %5833 = vmatprep.mubr.bf16.mxu0 %v4369
    %5834 = vmatmul.mubr.bf16.gmra.mrb[0].mxu0 %v4113
    %v5835 = vpop.f32.mrb[0].mxu0
    %v5836 = vadd.f32 %v5547, %v5835
    %v5837 = vpop.f32.mrb[0].mxu0
    %v5838 = vpop.f32.mrb[0].mxu0
    %v5839 = vadd.f32 %v5550, %v5838
    %v5840 = vpop.f32.mrb[0].mxu0
    %5841 = vmatprep.mubr.bf16.mxu0 %v4370
    %5842 = vmatmul.mubr.bf16.gmra.mrb[0].mxu0 %v4114
    %v5843 = vpop.f32.mrb[0].mxu0
    %v5844 = vadd.f32 %v5555, %v5843
    %v5845 = vpop.f32.mrb[0].mxu0
    %v5846 = vpop.f32.mrb[0].mxu0
    %v5847 = vadd.f32 %v5558, %v5846
    %v5848 = vpop.f32.mrb[0].mxu0
    %5849 = vmatprep.mubr.bf16.mxu0 %v4371
    %5850 = vmatmul.mubr.bf16.gmra.mrb[0].mxu0 %v4115
    %v5851 = vpop.f32.mrb[0].mxu0
    %v5852 = vadd.f32 %v5563, %v5851
    %v5853 = vpop.f32.mrb[0].mxu0
    %v5854 = vpop.f32.mrb[0].mxu0
    %v5855 = vadd.f32 %v5566, %v5854
    %v5856 = vpop.f32.mrb[0].mxu0
    %5857 = vmatprep.mubr.bf16.mxu0 %v4372
    %5858 = vmatmul.mubr.bf16.gmra.mrb[0].mxu0 %v4116
    %v5859 = vpop.f32.mrb[0].mxu0
    %v5860 = vadd.f32 %v5571, %v5859
    %v5861 = vpop.f32.mrb[0].mxu0
    %v5862 = vpop.f32.mrb[0].mxu0
    %v5863 = vadd.f32 %v5574, %v5862
    %v5864 = vpop.f32.mrb[0].mxu0
    %5865 = vmatprep.mubr.bf16.mxu0 %v4373
    %5866 = vmatmul.mubr.bf16.gmra.mrb[0].mxu0 %v4117
    %v5867 = vpop.f32.mrb[0].mxu0
    %v5868 = vadd.f32 %v5579, %v5867
    %v5869 = vpop.f32.mrb[0].mxu0
    %v5870 = vpop.f32.mrb[0].mxu0
    %v5871 = vadd.f32 %v5582, %v5870
    %v5872 = vpop.f32.mrb[0].mxu0
    %5873 = vmatprep.mubr.bf16.mxu0 %v4374
    %5874 = vmatmul.mubr.bf16.gmra.mrb[0].mxu0 %v4118
    %v5875 = vpop.f32.mrb[0].mxu0
    %v5876 = vadd.f32 %v5587, %v5875
    %v5877 = vpop.f32.mrb[0].mxu0
    %v5878 = vpop.f32.mrb[0].mxu0
    %v5879 = vadd.f32 %v5590, %v5878
    %v5880 = vpop.f32.mrb[0].mxu0
    %5881 = vmatprep.mubr.bf16.mxu0 %v4375
    %5882 = vmatmul.mubr.bf16.gmra.mrb[0].mxu0 %v4119
    %v5883 = vpop.f32.mrb[0].mxu0
    %v5884 = vadd.f32 %v5595, %v5883
    %v5885 = vpop.f32.mrb[0].mxu0
    %v5886 = vpop.f32.mrb[0].mxu0
    %v5887 = vadd.f32 %v5598, %v5886
    %v5888 = vpop.f32.mrb[0].mxu0
    %5889 = vmatprep.mubr.bf16.mxu0 %v4376
    %5890 = vmatmul.mubr.bf16.gmra.mrb[0].mxu0 %v4120
    %v5891 = vpop.f32.mrb[0].mxu0
    %v5892 = vadd.f32 %v5603, %v5891
    %v5893 = vpop.f32.mrb[0].mxu0
    %v5894 = vpop.f32.mrb[0].mxu0
    %v5895 = vadd.f32 %v5606, %v5894
    %v5896 = vpop.f32.mrb[0].mxu0
    %5897 = vmatprep.mubr.bf16.mxu0 %v4416
    %5898 = vmatmul.mubr.bf16.gmra.mrb[0].mxu0 %v4400
    %v5899 = vpop.f32.mrb[0].mxu0
    %v5900 = vadd.f32 %v5611, %v5899
    %v5901 = vpop.f32.mrb[0].mxu0
    %v5902 = vpop.f32.mrb[0].mxu0
    %v5903 = vadd.f32 %v5614, %v5902
    %v5904 = vpop.f32.mrb[0].mxu0
    %5905 = vdwg.mxu0
    %5906 = vmatprep.subr.bf16.mxu0 0
    %5907 = vmatpush1.bf16.msra.mxu0 %v4943
    %5908 = vmatprep.subr.bf16.mxu0 0
    %5909 = vmatpush1.bf16.msra.mxu0 %v4944
    %5910 = vmatprep.subr.bf16.mxu0 0
    %5911 = vmatpush1.bf16.msra.mxu0 %v4945
    %5912 = vmatprep.subr.bf16.mxu0 0
    %5913 = vmatpush1.bf16.msra.mxu0 %v4946
    %5914 = vmatprep.subr.bf16.mxu0 0
    %5915 = vmatpush1.bf16.msra.mxu0 %v4947
    %5916 = vmatprep.subr.bf16.mxu0 0
    %5917 = vmatpush1.bf16.msra.mxu0 %v4948
    %5918 = vmatprep.subr.bf16.mxu0 0
    %5919 = vmatpush1.bf16.msra.mxu0 %v4949
    %5920 = vmatprep.subr.bf16.mxu0 0
    %5921 = vmatpush1.bf16.msra.mxu0 %v4950
    %5922 = vmatprep.subr.bf16.mxu0 0
    %5923 = vmatpush1.bf16.msra.mxu0 %v4951
    %5924 = vmatprep.subr.bf16.mxu0 0
    %5925 = vmatpush1.bf16.msra.mxu0 %v4952
    %5926 = vmatprep.subr.bf16.mxu0 0
    %5927 = vmatpush1.bf16.msra.mxu0 %v4953
    %5928 = vmatprep.subr.bf16.mxu0 0
    %5929 = vmatpush1.bf16.msra.mxu0 %v4954
    %5930 = vmatprep.subr.bf16.mxu0 0
    %5931 = vmatpush1.bf16.msra.mxu0 %v4955
    %5932 = vmatprep.subr.bf16.mxu0 0
    %5933 = vmatpush1.bf16.msra.mxu0 %v4956
    %5934 = vmatprep.subr.bf16.mxu0 0
    %5935 = vmatpush1.bf16.msra.mxu0 %v4957
    %5936 = vmatprep.subr.bf16.mxu0 0
    %5937 = vmatpush1.bf16.msra.mxu0 %v4958
    %5938 = vmatprep.mubr.bf16.mxu0 %v4091
    %5939 = vmatmul.mubr.bf16.gmra.mrb[0].mxu0 %v3739
    %v5940 = vpop.f32.mrb[0].mxu0
    %v5941 = vadd.f32 %v5652, %v5940
    %v5942 = vpop.f32.mrb[0].mxu0
    %v5943 = vpop.f32.mrb[0].mxu0
    %v5944 = vadd.f32 %v5655, %v5943
    %v5945 = vpop.f32.mrb[0].mxu0
    %5946 = vmatprep.mubr.bf16.mxu0 %v4092
    %5947 = vmatmul.mubr.bf16.gmra.mrb[0].mxu0 %v3740
    %v5948 = vpop.f32.mrb[0].mxu0
    %v5949 = vadd.f32 %v5660, %v5948
    %v5950 = vpop.f32.mrb[0].mxu0
    %v5951 = vpop.f32.mrb[0].mxu0
    %v5952 = vadd.f32 %v5663, %v5951
    %v5953 = vpop.f32.mrb[0].mxu0
    %5954 = vmatprep.mubr.bf16.mxu0 %v4093
    %5955 = vmatmul.mubr.bf16.gmra.mrb[0].mxu0 %v3741
    %v5956 = vpop.f32.mrb[0].mxu0
    %v5957 = vadd.f32 %v5668, %v5956
    %v5958 = vpop.f32.mrb[0].mxu0
    %v5959 = vpop.f32.mrb[0].mxu0
    %v5960 = vadd.f32 %v5671, %v5959
    %v5961 = vpop.f32.mrb[0].mxu0
    %5962 = vmatprep.mubr.bf16.mxu0 %v4094
    %5963 = vmatmul.mubr.bf16.gmra.mrb[0].mxu0 %v3742
    %v5964 = vpop.f32.mrb[0].mxu0
    %v5965 = vadd.f32 %v5676, %v5964
    %v5966 = vpop.f32.mrb[0].mxu0
    %v5967 = vpop.f32.mrb[0].mxu0
    %v5968 = vadd.f32 %v5679, %v5967
    %v5969 = vpop.f32.mrb[0].mxu0
    %5970 = vmatprep.mubr.bf16.mxu0 %v4095
    %5971 = vmatmul.mubr.bf16.gmra.mrb[0].mxu0 %v3743
    %v5972 = vpop.f32.mrb[0].mxu0
    %v5973 = vadd.f32 %v5684, %v5972
    %v5974 = vpop.f32.mrb[0].mxu0
    %v5975 = vpop.f32.mrb[0].mxu0
    %v5976 = vadd.f32 %v5687, %v5975
    %v5977 = vpop.f32.mrb[0].mxu0
    %5978 = vmatprep.mubr.bf16.mxu0 %v4096
    %5979 = vmatmul.mubr.bf16.gmra.mrb[0].mxu0 %v3744
    %v5980 = vpop.f32.mrb[0].mxu0
    %v5981 = vadd.f32 %v5692, %v5980
    %v5982 = vpop.f32.mrb[0].mxu0
    %v5983 = vpop.f32.mrb[0].mxu0
    %v5984 = vadd.f32 %v5695, %v5983
    %v5985 = vpop.f32.mrb[0].mxu0
    %5986 = vmatprep.mubr.bf16.mxu0 %v4097
    %5987 = vmatmul.mubr.bf16.gmra.mrb[0].mxu0 %v3745
    %v5988 = vpop.f32.mrb[0].mxu0
    %v5989 = vadd.f32 %v5700, %v5988
    %v5990 = vpop.f32.mrb[0].mxu0
    %v5991 = vpop.f32.mrb[0].mxu0
    %v5992 = vadd.f32 %v5703, %v5991
    %v5993 = vpop.f32.mrb[0].mxu0
    %5994 = vmatprep.mubr.bf16.mxu0 %v4098
    %5995 = vmatmul.mubr.bf16.gmra.mrb[0].mxu0 %v3746
    %v5996 = vpop.f32.mrb[0].mxu0
    %v5997 = vadd.f32 %v5708, %v5996
    %v5998 = vpop.f32.mrb[0].mxu0
    %v5999 = vpop.f32.mrb[0].mxu0
    %v6000 = vadd.f32 %v5711, %v5999
    %v6001 = vpop.f32.mrb[0].mxu0
    %6002 = vmatprep.mubr.bf16.mxu0 %v4099
    %6003 = vmatmul.mubr.bf16.gmra.mrb[0].mxu0 %v3747
    %v6004 = vpop.f32.mrb[0].mxu0
    %v6005 = vadd.f32 %v5716, %v6004
    %v6006 = vpop.f32.mrb[0].mxu0
    %v6007 = vpop.f32.mrb[0].mxu0
    %v6008 = vadd.f32 %v5719, %v6007
    %v6009 = vpop.f32.mrb[0].mxu0
    %6010 = vmatprep.mubr.bf16.mxu0 %v4100
    %6011 = vmatmul.mubr.bf16.gmra.mrb[0].mxu0 %v3748
    %v6012 = vpop.f32.mrb[0].mxu0
    %v6013 = vadd.f32 %v5724, %v6012
    %v6014 = vpop.f32.mrb[0].mxu0
    %v6015 = vpop.f32.mrb[0].mxu0
    %v6016 = vadd.f32 %v5727, %v6015
    %v6017 = vpop.f32.mrb[0].mxu0
    %6018 = vmatprep.mubr.bf16.mxu0 %v4101
    %6019 = vmatmul.mubr.bf16.gmra.mrb[0].mxu0 %v3749
    %v6020 = vpop.f32.mrb[0].mxu0
    %v6021 = vadd.f32 %v5732, %v6020
    %v6022 = vpop.f32.mrb[0].mxu0
    %v6023 = vpop.f32.mrb[0].mxu0
    %v6024 = vadd.f32 %v5735, %v6023
    %v6025 = vpop.f32.mrb[0].mxu0
    %6026 = vmatprep.mubr.bf16.mxu0 %v4102
    %6027 = vmatmul.mubr.bf16.gmra.mrb[0].mxu0 %v3750
    %v6028 = vpop.f32.mrb[0].mxu0
    %v6029 = vadd.f32 %v5740, %v6028
    %v6030 = vpop.f32.mrb[0].mxu0
    %v6031 = vpop.f32.mrb[0].mxu0
    %v6032 = vadd.f32 %v5743, %v6031
    %v6033 = vpop.f32.mrb[0].mxu0
    %6034 = vmatprep.mubr.bf16.mxu0 %v4103
    %6035 = vmatmul.mubr.bf16.gmra.mrb[0].mxu0 %v3751
    %v6036 = vpop.f32.mrb[0].mxu0
    %v6037 = vadd.f32 %v5748, %v6036
    %v6038 = vpop.f32.mrb[0].mxu0
    %v6039 = vpop.f32.mrb[0].mxu0
    %v6040 = vadd.f32 %v5751, %v6039
    %v6041 = vpop.f32.mrb[0].mxu0
    %6042 = vmatprep.mubr.bf16.mxu0 %v4104
    %6043 = vmatmul.mubr.bf16.gmra.mrb[0].mxu0 %v3752
    %v6044 = vpop.f32.mrb[0].mxu0
    %v6045 = vadd.f32 %v5756, %v6044
    %v6046 = vpop.f32.mrb[0].mxu0
    %v6047 = vpop.f32.mrb[0].mxu0
    %v6048 = vadd.f32 %v5759, %v6047
    %v6049 = vpop.f32.mrb[0].mxu0
    %6050 = vmatprep.mubr.bf16.mxu0 %v4399
    %6051 = vmatmul.mubr.bf16.gmra.mrb[0].mxu0 %v4377
    %v6052 = vpop.f32.mrb[0].mxu0
    %v6053 = vadd.f32 %v5764, %v6052
    %v6054 = vpop.f32.mrb[0].mxu0
    %v6055 = vpop.f32.mrb[0].mxu0
    %v6056 = vadd.f32 %v5767, %v6055
    %v6057 = vpop.f32.mrb[0].mxu0
    %6058 = vmatprep.mubr.bf16.mxu0 %v4439
    %6059 = vmatmul.mubr.bf16.gmra.mrb[0].mxu0 %v4417
    %v6060 = vpop.f32.mrb[0].mxu0
    %v6061 = vadd.f32 %v5772, %v6060
    %v6062 = vpop.f32.mrb[0].mxu0
    %v6063 = vpop.f32.mrb[0].mxu0
    %v6064 = vadd.f32 %v5775, %v6063
    %v6065 = vpop.f32.mrb[0].mxu0
    %6066 = vmatprep.mubr.bf16.mxu0 %v4107
    %6067 = vmatmul.mubr.bf16.gmra.mrb[0].mxu0 %v3755
    %v6068 = vpop.f32.mrb[0].mxu0
    %v6069 = vadd.f32 %v5780, %v6068
    %v6070 = vpop.f32.mrb[0].mxu0
    %v6071 = vpop.f32.mrb[0].mxu0
    %v6072 = vadd.f32 %v5783, %v6071
    %v6073 = vpop.f32.mrb[0].mxu0
    %6074 = vmatprep.mubr.bf16.mxu0 %v4108
    %6075 = vmatmul.mubr.bf16.gmra.mrb[0].mxu0 %v3756
    %v6076 = vpop.f32.mrb[0].mxu0
    %v6077 = vadd.f32 %v5788, %v6076
    %v6078 = vpop.f32.mrb[0].mxu0
    %v6079 = vpop.f32.mrb[0].mxu0
    %v6080 = vadd.f32 %v5791, %v6079
    %v6081 = vpop.f32.mrb[0].mxu0
    %6082 = vmatprep.mubr.bf16.mxu0 %v4109
    %6083 = vmatmul.mubr.bf16.gmra.mrb[0].mxu0 %v3757
    %v6084 = vpop.f32.mrb[0].mxu0
    %v6085 = vadd.f32 %v5796, %v6084
    %v6086 = vpop.f32.mrb[0].mxu0
    %v6087 = vpop.f32.mrb[0].mxu0
    %v6088 = vadd.f32 %v5799, %v6087
    %v6089 = vpop.f32.mrb[0].mxu0
    %6090 = vmatprep.mubr.bf16.mxu0 %v4110
    %6091 = vmatmul.mubr.bf16.gmra.mrb[0].mxu0 %v3758
    %v6092 = vpop.f32.mrb[0].mxu0
    %v6093 = vadd.f32 %v5804, %v6092
    %v6094 = vpop.f32.mrb[0].mxu0
    %v6095 = vpop.f32.mrb[0].mxu0
    %v6096 = vadd.f32 %v5807, %v6095
    %v6097 = vpop.f32.mrb[0].mxu0
    %6098 = vmatprep.mubr.bf16.mxu0 %v4111
    %6099 = vmatmul.mubr.bf16.gmra.mrb[0].mxu0 %v3759
    %v6100 = vpop.f32.mrb[0].mxu0
    %v6101 = vadd.f32 %v5812, %v6100
    %v6102 = vpop.f32.mrb[0].mxu0
    %v6103 = vpop.f32.mrb[0].mxu0
    %v6104 = vadd.f32 %v5815, %v6103
    %v6105 = vpop.f32.mrb[0].mxu0
    %6106 = vmatprep.mubr.bf16.mxu0 %v4112
    %6107 = vmatmul.mubr.bf16.gmra.mrb[0].mxu0 %v3760
    %v6108 = vpop.f32.mrb[0].mxu0
    %v6109 = vadd.f32 %v5820, %v6108
    %v6110 = vpop.f32.mrb[0].mxu0
    %v6111 = vpop.f32.mrb[0].mxu0
    %v6112 = vadd.f32 %v5823, %v6111
    %v6113 = vpop.f32.mrb[0].mxu0
    %6114 = vmatprep.mubr.bf16.mxu0 %v4113
    %6115 = vmatmul.mubr.bf16.gmra.mrb[0].mxu0 %v3761
    %v6116 = vpop.f32.mrb[0].mxu0
    %v6117 = vadd.f32 %v5828, %v6116
    %v6118 = vpop.f32.mrb[0].mxu0
    %v6119 = vpop.f32.mrb[0].mxu0
    %v6120 = vadd.f32 %v5831, %v6119
    %v6121 = vpop.f32.mrb[0].mxu0
    %6122 = vmatprep.mubr.bf16.mxu0 %v4114
    %6123 = vmatmul.mubr.bf16.gmra.mrb[0].mxu0 %v3762
    %v6124 = vpop.f32.mrb[0].mxu0
    %v6125 = vadd.f32 %v5836, %v6124
    %v6126 = vpop.f32.mrb[0].mxu0
    %v6127 = vpop.f32.mrb[0].mxu0
    %v6128 = vadd.f32 %v5839, %v6127
    %v6129 = vpop.f32.mrb[0].mxu0
    %6130 = vmatprep.mubr.bf16.mxu0 %v4115
    %6131 = vmatmul.mubr.bf16.gmra.mrb[0].mxu0 %v3763
    %v6132 = vpop.f32.mrb[0].mxu0
    %v6133 = vadd.f32 %v5844, %v6132
    %v6134 = vpop.f32.mrb[0].mxu0
    %v6135 = vpop.f32.mrb[0].mxu0
    %v6136 = vadd.f32 %v5847, %v6135
    %v6137 = vpop.f32.mrb[0].mxu0
    %6138 = vmatprep.mubr.bf16.mxu0 %v4116
    %6139 = vmatmul.mubr.bf16.gmra.mrb[0].mxu0 %v3764
    %v6140 = vpop.f32.mrb[0].mxu0
    %v6141 = vadd.f32 %v5852, %v6140
    %v6142 = vpop.f32.mrb[0].mxu0
    %v6143 = vpop.f32.mrb[0].mxu0
    %v6144 = vadd.f32 %v5855, %v6143
    %v6145 = vpop.f32.mrb[0].mxu0
    %6146 = vmatprep.mubr.bf16.mxu0 %v4117
    %6147 = vmatmul.mubr.bf16.gmra.mrb[0].mxu0 %v3765
    %v6148 = vpop.f32.mrb[0].mxu0
    %v6149 = vadd.f32 %v5860, %v6148
    %v6150 = vpop.f32.mrb[0].mxu0
    %v6151 = vpop.f32.mrb[0].mxu0
    %v6152 = vadd.f32 %v5863, %v6151
    %v6153 = vpop.f32.mrb[0].mxu0
    %6154 = vmatprep.mubr.bf16.mxu0 %v4118
    %6155 = vmatmul.mubr.bf16.gmra.mrb[0].mxu0 %v3766
    %v6156 = vpop.f32.mrb[0].mxu0
    %v6157 = vadd.f32 %v5868, %v6156
    %v6158 = vpop.f32.mrb[0].mxu0
    %v6159 = vpop.f32.mrb[0].mxu0
    %v6160 = vadd.f32 %v5871, %v6159
    %v6161 = vpop.f32.mrb[0].mxu0
    %6162 = vmatprep.mubr.bf16.mxu0 %v4119
    %6163 = vmatmul.mubr.bf16.gmra.mrb[0].mxu0 %v3767
    %v6164 = vpop.f32.mrb[0].mxu0
    %v6165 = vadd.f32 %v5876, %v6164
    %v6166 = vpop.f32.mrb[0].mxu0
    %v6167 = vpop.f32.mrb[0].mxu0
    %v6168 = vadd.f32 %v5879, %v6167
    %v6169 = vpop.f32.mrb[0].mxu0
    %6170 = vmatprep.mubr.bf16.mxu0 %v4120
    %6171 = vmatmul.mubr.bf16.gmra.mrb[0].mxu0 %v3768
    %v6172 = vpop.f32.mrb[0].mxu0
    %v6173 = vadd.f32 %v5884, %v6172
    %v6174 = vpop.f32.mrb[0].mxu0
    %v6175 = vpop.f32.mrb[0].mxu0
    %v6176 = vadd.f32 %v5887, %v6175
    %v6177 = vpop.f32.mrb[0].mxu0
    %6178 = vmatprep.mubr.bf16.mxu0 %v4400
    %6179 = vmatmul.mubr.bf16.gmra.mrb[0].mxu0 %v4378
    %v6180 = vpop.f32.mrb[0].mxu0
    %v6181 = vadd.f32 %v5892, %v6180
    %v6182 = vpop.f32.mrb[0].mxu0
    %v6183 = vpop.f32.mrb[0].mxu0
    %v6184 = vadd.f32 %v5895, %v6183
    %v6185 = vpop.f32.mrb[0].mxu0
    %6186 = vmatprep.mubr.bf16.mxu0 %v4440
    %6187 = vmatmul.mubr.bf16.gmra.mrb[0].mxu0 %v4418
    %v6188 = vpop.f32.mrb[0].mxu0
    %v6189 = vadd.f32 %v5900, %v6188
    %v6190 = vpop.f32.mrb[0].mxu0
    %v6191 = vpop.f32.mrb[0].mxu0
    %v6192 = vadd.f32 %v5903, %v6191
    %v6193 = vpop.f32.mrb[0].mxu0
    %6194 = vdwg.mxu0
    %6195 = vmatprep.subr.bf16.mxu0 0
    %6196 = vmatpush1.bf16.msra.mxu0 %v4959
    %6197 = vmatprep.subr.bf16.mxu0 0
    %6198 = vmatpush1.bf16.msra.mxu0 %v4960
    %6199 = vmatprep.subr.bf16.mxu0 0
    %6200 = vmatpush1.bf16.msra.mxu0 %v4961
    %6201 = vmatprep.subr.bf16.mxu0 0
    %6202 = vmatpush1.bf16.msra.mxu0 %v4962
    %6203 = vmatprep.subr.bf16.mxu0 0
    %6204 = vmatpush1.bf16.msra.mxu0 %v4963
    %6205 = vmatprep.subr.bf16.mxu0 0
    %6206 = vmatpush1.bf16.msra.mxu0 %v4964
    %6207 = vmatprep.subr.bf16.mxu0 0
    %6208 = vmatpush1.bf16.msra.mxu0 %v4965
    %6209 = vmatprep.subr.bf16.mxu0 0
    %6210 = vmatpush1.bf16.msra.mxu0 %v4966
    %6211 = vmatprep.subr.bf16.mxu0 0
    %6212 = vmatpush1.bf16.msra.mxu0 0
    %6213 = vmatprep.subr.bf16.mxu0 0
    %6214 = vmatpush1.bf16.msra.mxu0 0
    %6215 = vmatprep.subr.bf16.mxu0 0
    %6216 = vmatpush1.bf16.msra.mxu0 0
    %6217 = vmatprep.subr.bf16.mxu0 0
    %6218 = vmatpush1.bf16.msra.mxu0 0
    %6219 = vmatprep.subr.bf16.mxu0 0
    %6220 = vmatpush1.bf16.msra.mxu0 0
    %6221 = vmatprep.subr.bf16.mxu0 0
    %6222 = vmatpush1.bf16.msra.mxu0 0
    %6223 = vmatprep.subr.bf16.mxu0 0
    %6224 = vmatpush1.bf16.msra.mxu0 0
    %6225 = vmatprep.subr.bf16.mxu0 0
    %6226 = vmatpush1.bf16.msra.mxu0 0
    %6227 = vmatprep.mubr.bf16.mxu0 0
    %6228 = vmatmul.mubr.bf16.gmra.mrb[0].mxu0 %v4347
    %v6229 = vpop.f32.mrb[0].mxu0
    %v6230 = vadd.f32 %v5941, %v6229
    %v6231 = vpop.f32.mrb[0].mxu0
    %v6232 = vpop.f32.mrb[0].mxu0
    %v6233 = vadd.f32 %v5944, %v6232
    %v6234 = vpop.f32.mrb[0].mxu0
    %6235 = vmatprep.mubr.bf16.mxu0 0
    %6236 = vmatmul.mubr.bf16.gmra.mrb[0].mxu0 %v4348
    %v6237 = vpop.f32.mrb[0].mxu0
    %v6238 = vadd.f32 %v5949, %v6237
    %v6239 = vpop.f32.mrb[0].mxu0
    %v6240 = vpop.f32.mrb[0].mxu0
    %v6241 = vadd.f32 %v5952, %v6240
    %v6242 = vpop.f32.mrb[0].mxu0
    %6243 = vmatprep.mubr.bf16.mxu0 0
    %6244 = vmatmul.mubr.bf16.gmra.mrb[0].mxu0 %v4349
    %v6245 = vpop.f32.mrb[0].mxu0
    %v6246 = vadd.f32 %v5957, %v6245
    %v6247 = vpop.f32.mrb[0].mxu0
    %v6248 = vpop.f32.mrb[0].mxu0
    %v6249 = vadd.f32 %v5960, %v6248
    %v6250 = vpop.f32.mrb[0].mxu0
    %6251 = vmatprep.mubr.bf16.mxu0 0
    %6252 = vmatmul.mubr.bf16.gmra.mrb[0].mxu0 %v4350
    %v6253 = vpop.f32.mrb[0].mxu0
    %v6254 = vadd.f32 %v5965, %v6253
    %v6255 = vpop.f32.mrb[0].mxu0
    %v6256 = vpop.f32.mrb[0].mxu0
    %v6257 = vadd.f32 %v5968, %v6256
    %v6258 = vpop.f32.mrb[0].mxu0
    %6259 = vmatprep.mubr.bf16.mxu0 0
    %6260 = vmatmul.mubr.bf16.gmra.mrb[0].mxu0 %v4351
    %v6261 = vpop.f32.mrb[0].mxu0
    %v6262 = vadd.f32 %v5973, %v6261
    %v6263 = vpop.f32.mrb[0].mxu0
    %v6264 = vpop.f32.mrb[0].mxu0
    %v6265 = vadd.f32 %v5976, %v6264
    %v6266 = vpop.f32.mrb[0].mxu0
    %6267 = vmatprep.mubr.bf16.mxu0 0
    %6268 = vmatmul.mubr.bf16.gmra.mrb[0].mxu0 %v4352
    %v6269 = vpop.f32.mrb[0].mxu0
    %v6270 = vadd.f32 %v5981, %v6269
    %v6271 = vpop.f32.mrb[0].mxu0
    %v6272 = vpop.f32.mrb[0].mxu0
    %v6273 = vadd.f32 %v5984, %v6272
    %v6274 = vpop.f32.mrb[0].mxu0
    %6275 = vmatprep.mubr.bf16.mxu0 0
    %6276 = vmatmul.mubr.bf16.gmra.mrb[0].mxu0 %v4353
    %v6277 = vpop.f32.mrb[0].mxu0
    %v6278 = vadd.f32 %v5989, %v6277
    %v6279 = vpop.f32.mrb[0].mxu0
    %v6280 = vpop.f32.mrb[0].mxu0
    %v6281 = vadd.f32 %v5992, %v6280
    %v6282 = vpop.f32.mrb[0].mxu0
    %6283 = vmatprep.mubr.bf16.mxu0 0
    %6284 = vmatmul.mubr.bf16.gmra.mrb[0].mxu0 %v4354
    %v6285 = vpop.f32.mrb[0].mxu0
    %v6286 = vadd.f32 %v5997, %v6285
    %v6287 = vpop.f32.mrb[0].mxu0
    %v6288 = vpop.f32.mrb[0].mxu0
    %v6289 = vadd.f32 %v6000, %v6288
    %v6290 = vpop.f32.mrb[0].mxu0
    %6291 = vmatprep.mubr.bf16.mxu0 0
    %6292 = vmatmul.mubr.bf16.gmra.mrb[0].mxu0 %v4355
    %v6293 = vpop.f32.mrb[0].mxu0
    %v6294 = vadd.f32 %v6005, %v6293
    %v6295 = vpop.f32.mrb[0].mxu0
    %v6296 = vpop.f32.mrb[0].mxu0
    %v6297 = vadd.f32 %v6008, %v6296
    %v6298 = vpop.f32.mrb[0].mxu0
    %6299 = vmatprep.mubr.bf16.mxu0 0
    %6300 = vmatmul.mubr.bf16.gmra.mrb[0].mxu0 %v4356
    %v6301 = vpop.f32.mrb[0].mxu0
    %v6302 = vadd.f32 %v6013, %v6301
    %v6303 = vpop.f32.mrb[0].mxu0
    %v6304 = vpop.f32.mrb[0].mxu0
    %v6305 = vadd.f32 %v6016, %v6304
    %v6306 = vpop.f32.mrb[0].mxu0
    %6307 = vmatprep.mubr.bf16.mxu0 0
    %6308 = vmatmul.mubr.bf16.gmra.mrb[0].mxu0 %v4357
    %v6309 = vpop.f32.mrb[0].mxu0
    %v6310 = vadd.f32 %v6021, %v6309
    %v6311 = vpop.f32.mrb[0].mxu0
    %v6312 = vpop.f32.mrb[0].mxu0
    %v6313 = vadd.f32 %v6024, %v6312
    %v6314 = vpop.f32.mrb[0].mxu0
    %6315 = vmatprep.mubr.bf16.mxu0 0
    %6316 = vmatmul.mubr.bf16.gmra.mrb[0].mxu0 %v4358
    %v6317 = vpop.f32.mrb[0].mxu0
    %v6318 = vadd.f32 %v6029, %v6317
    %v6319 = vpop.f32.mrb[0].mxu0
    %v6320 = vpop.f32.mrb[0].mxu0
    %v6321 = vadd.f32 %v6032, %v6320
    %v6322 = vpop.f32.mrb[0].mxu0
    %6323 = vmatprep.mubr.bf16.mxu0 0
    %6324 = vmatmul.mubr.bf16.gmra.mrb[0].mxu0 %v4359
    %v6325 = vpop.f32.mrb[0].mxu0
    %v6326 = vadd.f32 %v6037, %v6325
    %v6327 = vpop.f32.mrb[0].mxu0
    %v6328 = vpop.f32.mrb[0].mxu0
    %v6329 = vadd.f32 %v6040, %v6328
    %v6330 = vpop.f32.mrb[0].mxu0
    %6331 = vmatprep.mubr.bf16.mxu0 0
    %6332 = vmatmul.mubr.bf16.gmra.mrb[0].mxu0 %v4360
    %v6333 = vpop.f32.mrb[0].mxu0
    %v6334 = vadd.f32 %v6045, %v6333
    %v6335 = vpop.f32.mrb[0].mxu0
    %v6336 = vpop.f32.mrb[0].mxu0
    %v6337 = vadd.f32 %v6048, %v6336
    %v6338 = vpop.f32.mrb[0].mxu0
    %6339 = vmatprep.mubr.bf16.mxu0 0
    %6340 = vmatmul.mubr.bf16.gmra.mrb[0].mxu0 %v4415
    %v6341 = vpop.f32.mrb[0].mxu0
    %v6342 = vadd.f32 %v6053, %v6341
    %v6343 = vpop.f32.mrb[0].mxu0
    %v6344 = vpop.f32.mrb[0].mxu0
    %v6345 = vadd.f32 %v6056, %v6344
    %v6346 = vpop.f32.mrb[0].mxu0
    %6347 = vmatprep.mubr.bf16.mxu0 0
    %6348 = vmatmul.mubr.bf16.gmra.mrb[0].mxu0 %v4455
    %v6349 = vpop.f32.mrb[0].mxu0
    %v6350 = vadd.f32 %v6061, %v6349
    %v6351 = vpop.f32.mrb[0].mxu0
    %v6352 = vpop.f32.mrb[0].mxu0
    %v6353 = vadd.f32 %v6064, %v6352
    %v6354 = vpop.f32.mrb[0].mxu0
    %6355 = vmatprep.mubr.bf16.mxu0 0
    %6356 = vmatmul.mubr.bf16.gmra.mrb[0].mxu0 %v4363
    %v6357 = vpop.f32.mrb[0].mxu0
    %v6358 = vadd.f32 %v6069, %v6357
    %v6359 = vpop.f32.mrb[0].mxu0
    %v6360 = vpop.f32.mrb[0].mxu0
    %v6361 = vadd.f32 %v6072, %v6360
    %v6362 = vpop.f32.mrb[0].mxu0
    %6363 = vmatprep.mubr.bf16.mxu0 0
    %6364 = vmatmul.mubr.bf16.gmra.mrb[0].mxu0 %v4364
    %v6365 = vpop.f32.mrb[0].mxu0
    %v6366 = vadd.f32 %v6077, %v6365
    %v6367 = vpop.f32.mrb[0].mxu0
    %v6368 = vpop.f32.mrb[0].mxu0
    %v6369 = vadd.f32 %v6080, %v6368
    %v6370 = vpop.f32.mrb[0].mxu0
    %6371 = vmatprep.mubr.bf16.mxu0 0
    %6372 = vmatmul.mubr.bf16.gmra.mrb[0].mxu0 %v4365
    %v6373 = vpop.f32.mrb[0].mxu0
    %v6374 = vadd.f32 %v6085, %v6373
    %v6375 = vpop.f32.mrb[0].mxu0
    %v6376 = vpop.f32.mrb[0].mxu0
    %v6377 = vadd.f32 %v6088, %v6376
    %v6378 = vpop.f32.mrb[0].mxu0
    %6379 = vmatprep.mubr.bf16.mxu0 0
    %6380 = vmatmul.mubr.bf16.gmra.mrb[0].mxu0 %v4366
    %v6381 = vpop.f32.mrb[0].mxu0
    %v6382 = vadd.f32 %v6093, %v6381
    %v6383 = vpop.f32.mrb[0].mxu0
    %v6384 = vpop.f32.mrb[0].mxu0
    %v6385 = vadd.f32 %v6096, %v6384
    %v6386 = vpop.f32.mrb[0].mxu0
    %6387 = vmatprep.mubr.bf16.mxu0 0
    %6388 = vmatmul.mubr.bf16.gmra.mrb[0].mxu0 %v4367
    %v6389 = vpop.f32.mrb[0].mxu0
    %v6390 = vadd.f32 %v6101, %v6389
    %v6391 = vpop.f32.mrb[0].mxu0
    %v6392 = vpop.f32.mrb[0].mxu0
    %v6393 = vadd.f32 %v6104, %v6392
    %v6394 = vpop.f32.mrb[0].mxu0
    %6395 = vmatprep.mubr.bf16.mxu0 0
    %6396 = vmatmul.mubr.bf16.gmra.mrb[0].mxu0 %v4368
    %v6397 = vpop.f32.mrb[0].mxu0
    %v6398 = vadd.f32 %v6109, %v6397
    %v6399 = vpop.f32.mrb[0].mxu0
    %v6400 = vpop.f32.mrb[0].mxu0
    %v6401 = vadd.f32 %v6112, %v6400
    %v6402 = vpop.f32.mrb[0].mxu0
    %6403 = vmatprep.mubr.bf16.mxu0 0
    %6404 = vmatmul.mubr.bf16.gmra.mrb[0].mxu0 %v4369
    %v6405 = vpop.f32.mrb[0].mxu0
    %v6406 = vadd.f32 %v6117, %v6405
    %v6407 = vpop.f32.mrb[0].mxu0
    %v6408 = vpop.f32.mrb[0].mxu0
    %v6409 = vadd.f32 %v6120, %v6408
    %v6410 = vpop.f32.mrb[0].mxu0
    %6411 = vmatprep.mubr.bf16.mxu0 0
    %6412 = vmatmul.mubr.bf16.gmra.mrb[0].mxu0 %v4370
    %v6413 = vpop.f32.mrb[0].mxu0
    %v6414 = vadd.f32 %v6125, %v6413
    %v6415 = vpop.f32.mrb[0].mxu0
    %v6416 = vpop.f32.mrb[0].mxu0
    %v6417 = vadd.f32 %v6128, %v6416
    %v6418 = vpop.f32.mrb[0].mxu0
    %6419 = vmatprep.mubr.bf16.mxu0 0
    %6420 = vmatmul.mubr.bf16.gmra.mrb[0].mxu0 %v4371
    %v6421 = vpop.f32.mrb[0].mxu0
    %v6422 = vadd.f32 %v6133, %v6421
    %v6423 = vpop.f32.mrb[0].mxu0
    %v6424 = vpop.f32.mrb[0].mxu0
    %v6425 = vadd.f32 %v6136, %v6424
    %v6426 = vpop.f32.mrb[0].mxu0
    %6427 = vmatprep.mubr.bf16.mxu0 0
    %6428 = vmatmul.mubr.bf16.gmra.mrb[0].mxu0 %v4372
    %v6429 = vpop.f32.mrb[0].mxu0
    %v6430 = vadd.f32 %v6141, %v6429
    %v6431 = vpop.f32.mrb[0].mxu0
    %v6432 = vpop.f32.mrb[0].mxu0
    %v6433 = vadd.f32 %v6144, %v6432
    %v6434 = vpop.f32.mrb[0].mxu0
    %6435 = vmatprep.mubr.bf16.mxu0 0
    %6436 = vmatmul.mubr.bf16.gmra.mrb[0].mxu0 %v4373
    %v6437 = vpop.f32.mrb[0].mxu0
    %v6438 = vadd.f32 %v6149, %v6437
    %v6439 = vpop.f32.mrb[0].mxu0
    %v6440 = vpop.f32.mrb[0].mxu0
    %v6441 = vadd.f32 %v6152, %v6440
    %v6442 = vpop.f32.mrb[0].mxu0
    %6443 = vmatprep.mubr.bf16.mxu0 0
    %6444 = vmatmul.mubr.bf16.gmra.mrb[0].mxu0 %v4374
    %v6445 = vpop.f32.mrb[0].mxu0
    %v6446 = vadd.f32 %v6157, %v6445
    %v6447 = vpop.f32.mrb[0].mxu0
    %v6448 = vpop.f32.mrb[0].mxu0
    %v6449 = vadd.f32 %v6160, %v6448
    %v6450 = vpop.f32.mrb[0].mxu0
    %6451 = vmatprep.mubr.bf16.mxu0 0
    %6452 = vmatmul.mubr.bf16.gmra.mrb[0].mxu0 %v4375
    %v6453 = vpop.f32.mrb[0].mxu0
    %v6454 = vadd.f32 %v6165, %v6453
    %v6455 = vpop.f32.mrb[0].mxu0
    %v6456 = vpop.f32.mrb[0].mxu0
    %v6457 = vadd.f32 %v6168, %v6456
    %v6458 = vpop.f32.mrb[0].mxu0
    %6459 = vmatprep.mubr.bf16.mxu0 0
    %6460 = vmatmul.mubr.bf16.gmra.mrb[0].mxu0 %v4376
    %v6461 = vpop.f32.mrb[0].mxu0
    %v6462 = vadd.f32 %v6173, %v6461
    %v6463 = vpop.f32.mrb[0].mxu0
    %v6464 = vpop.f32.mrb[0].mxu0
    %v6465 = vadd.f32 %v6176, %v6464
    %v6466 = vpop.f32.mrb[0].mxu0
    %6467 = vmatprep.mubr.bf16.mxu0 0
    %6468 = vmatmul.mubr.bf16.gmra.mrb[0].mxu0 %v4416
    %v6469 = vpop.f32.mrb[0].mxu0
    %v6470 = vadd.f32 %v6181, %v6469
    %v6471 = vpop.f32.mrb[0].mxu0
    %v6472 = vpop.f32.mrb[0].mxu0
    %v6473 = vadd.f32 %v6184, %v6472
    %v6474 = vpop.f32.mrb[0].mxu0
    %6475 = vmatprep.mubr.bf16.mxu0 0
    %6476 = vmatmul.mubr.bf16.gmra.mrb[0].mxu0 %v4456
    %v6477 = vpop.f32.mrb[0].mxu0
    %v6478 = vadd.f32 %v6189, %v6477
    %v6479 = vpop.f32.mrb[0].mxu0
    %v6480 = vpop.f32.mrb[0].mxu0
    %v6481 = vadd.f32 %v6192, %v6480
    %v6482 = vpop.f32.mrb[0].mxu0
    %6483 = vdwg.mxu0
    %v6484 = vmax.f32 %v6230, 0.0
    %v6485 = vmax.f32 %v6233, 0.0
    %v6486 = vmax.f32 %v6238, 0.0
    %v6487 = vmax.f32 %v6241, 0.0
    %v6488 = vmax.f32 %v6246, 0.0
    %v6489 = vmax.f32 %v6249, 0.0
    %v6490 = vmax.f32 %v6254, 0.0
    %v6491 = vmax.f32 %v6257, 0.0
    %v6492 = vmax.f32 %v6262, 0.0
    %v6493 = vmax.f32 %v6265, 0.0
    %v6494 = vmax.f32 %v6270, 0.0
    %v6495 = vmax.f32 %v6273, 0.0
    %v6496 = vmax.f32 %v6278, 0.0
    %v6497 = vmax.f32 %v6281, 0.0
    %v6498 = vmax.f32 %v6286, 0.0
    %v6499 = vmax.f32 %v6289, 0.0
    %v6500 = vmax.f32 %v6294, 0.0
    %v6501 = vmax.f32 %v6297, 0.0
    %v6502 = vmax.f32 %v6302, 0.0
    %v6503 = vmax.f32 %v6305, 0.0
    %v6504 = vmax.f32 %v6310, 0.0
    %v6505 = vmax.f32 %v6313, 0.0
    %v6506 = vmax.f32 %v6318, 0.0
    %v6507 = vmax.f32 %v6321, 0.0
    %v6508 = vmax.f32 %v6326, 0.0
    %v6509 = vmax.f32 %v6329, 0.0
    %v6510 = vmax.f32 %v6334, 0.0
    %v6511 = vmax.f32 %v6337, 0.0
    %v6512 = vmax.f32 %v6342, 0.0
    %v6513 = vmax.f32 %v6345, 0.0
    %v6514 = vmax.f32 %v6350, 0.0
    %v6515 = vmax.f32 %v6353, 0.0
    %v6516 = vmax.f32 %v6358, 0.0
    %v6517 = vmax.f32 %v6361, 0.0
    %v6518 = vmax.f32 %v6366, 0.0
    %v6519 = vmax.f32 %v6369, 0.0
    %v6520 = vmax.f32 %v6374, 0.0
    %v6521 = vmax.f32 %v6377, 0.0
    %v6522 = vmax.f32 %v6382, 0.0
    %v6523 = vmax.f32 %v6385, 0.0
    %v6524 = vmax.f32 %v6390, 0.0
    %v6525 = vmax.f32 %v6393, 0.0
    %v6526 = vmax.f32 %v6398, 0.0
    %v6527 = vmax.f32 %v6401, 0.0
    %v6528 = vmax.f32 %v6406, 0.0
    %v6529 = vmax.f32 %v6409, 0.0
    %v6530 = vmax.f32 %v6414, 0.0
    %v6531 = vmax.f32 %v6417, 0.0
    %v6532 = vmax.f32 %v6422, 0.0
    %v6533 = vmax.f32 %v6425, 0.0
    %v6534 = vmax.f32 %v6430, 0.0
    %v6535 = vmax.f32 %v6433, 0.0
    %v6536 = vmax.f32 %v6438, 0.0
    %v6537 = vmax.f32 %v6441, 0.0
    %v6538 = vmax.f32 %v6446, 0.0
    %v6539 = vmax.f32 %v6449, 0.0
    %v6540 = vmax.f32 %v6454, 0.0
    %v6541 = vmax.f32 %v6457, 0.0
    %v6542 = vmax.f32 %v6462, 0.0
    %v6543 = vmax.f32 %v6465, 0.0
    %v6544 = vmax.f32 %v6470, 0.0
    %v6545 = vmax.f32 %v6473, 0.0
    %v6546 = vmax.f32 %v6478, 0.0
    %v6547 = vmax.f32 %v6481, 0.0
    %v6548 = vadd.f32 %v6484, %v6485
    %v6549 = vadd.f32 %v6548, %v6486
    %v6550 = vadd.f32 %v6549, %v6487
    %v6551 = vadd.f32 %v6550, %v6488
    %v6552 = vadd.f32 %v6551, %v6489
    %v6553 = vadd.f32 %v6552, %v6490
    %v6554 = vadd.f32 %v6553, %v6491
    %v6555 = vadd.f32 %v6554, %v6492
    %v6556 = vadd.f32 %v6555, %v6493
    %v6557 = vadd.f32 %v6556, %v6494
    %v6558 = vadd.f32 %v6557, %v6495
    %v6559 = vadd.f32 %v6558, %v6496
    %v6560 = vadd.f32 %v6559, %v6497
    %v6561 = vadd.f32 %v6560, %v6498
    %v6562 = vadd.f32 %v6561, %v6499
    %v6563 = vadd.f32 %v6562, %v6500
    %v6564 = vadd.f32 %v6563, %v6501
    %v6565 = vadd.f32 %v6564, %v6502
    %v6566 = vadd.f32 %v6565, %v6503
    %v6567 = vadd.f32 %v6566, %v6504
    %v6568 = vadd.f32 %v6567, %v6505
    %v6569 = vadd.f32 %v6568, %v6506
    %v6570 = vadd.f32 %v6569, %v6507
    %v6571 = vadd.f32 %v6570, %v6508
    %v6572 = vadd.f32 %v6571, %v6509
    %v6573 = vadd.f32 %v6572, %v6510
    %v6574 = vadd.f32 %v6573, %v6511
    %v6575 = vadd.f32 %v6574, %v6512
    %v6576 = vadd.f32 %v6575, %v6513
    %v6577 = vadd.f32 %v6576, %v6514
    %v6578 = vadd.f32 %v6577, %v6515
    %v6579 = vadd.f32 %v6578, %v6516
    %v6580 = vadd.f32 %v6579, %v6517
    %v6581 = vadd.f32 %v6580, %v6518
    %v6582 = vadd.f32 %v6581, %v6519
    %v6583 = vadd.f32 %v6582, %v6520
    %v6584 = vadd.f32 %v6583, %v6521
    %v6585 = vadd.f32 %v6584, %v6522
    %v6586 = vadd.f32 %v6585, %v6523
    %v6587 = vadd.f32 %v6586, %v6524
    %v6588 = vadd.f32 %v6587, %v6525
    %v6589 = vadd.f32 %v6588, %v6526
    %v6590 = vadd.f32 %v6589, %v6527
    %v6591 = vadd.f32 %v6590, %v6528
    %v6592 = vadd.f32 %v6591, %v6529
    %v6593 = vadd.f32 %v6592, %v6530
    %v6594 = vadd.f32 %v6593, %v6531
    %v6595 = vadd.f32 %v6594, %v6532
    %v6596 = vadd.f32 %v6595, %v6533
    %v6597 = vadd.f32 %v6596, %v6534
    %v6598 = vadd.f32 %v6597, %v6535
    %v6599 = vadd.f32 %v6598, %v6536
    %v6600 = vadd.f32 %v6599, %v6537
    %v6601 = vadd.f32 %v6600, %v6538
    %v6602 = vadd.f32 %v6601, %v6539
    %v6603 = vadd.f32 %v6602, %v6540
    %v6604 = vadd.f32 %v6603, %v6541
    %v6605 = vadd.f32 %v6604, %v6542
    %v6606 = vadd.f32 %v6605, %v6543
    %v6607 = vadd.f32 %v6606, %v6544
    %v6608 = vadd.f32 %v6607, %v6545
    %v6609 = vadd.f32 %v6608, %v6546
    %v6610 = vadd.f32 %v6609, %v6547
    %v6611 = vrot.slane %v6610, 4
    %v6612 = vadd.f32 %v6610, %v6611
    %v6613 = vrot.slane %v6612, 2
    %v6614 = vadd.f32 %v6612, %v6613
    %v6615 = vrot.slane %v6614, 1
    %v6616 = vadd.f32 %v6614, %v6615
    %v6617 = vmul.f32 %v6484, %v6484
    %v6618 = vmul.f32 %v6485, %v6485
    %v6619 = vmul.f32 %v6486, %v6486
    %v6620 = vmul.f32 %v6487, %v6487
    %v6621 = vmul.f32 %v6488, %v6488
    %v6622 = vmul.f32 %v6489, %v6489
    %v6623 = vmul.f32 %v6490, %v6490
    %v6624 = vmul.f32 %v6491, %v6491
    %v6625 = vmul.f32 %v6492, %v6492
    %v6626 = vmul.f32 %v6493, %v6493
    %v6627 = vmul.f32 %v6494, %v6494
    %v6628 = vmul.f32 %v6495, %v6495
    %v6629 = vmul.f32 %v6496, %v6496
    %v6630 = vmul.f32 %v6497, %v6497
    %v6631 = vmul.f32 %v6498, %v6498
    %v6632 = vmul.f32 %v6499, %v6499
    %v6633 = vmul.f32 %v6500, %v6500
    %v6634 = vmul.f32 %v6501, %v6501
    %v6635 = vmul.f32 %v6502, %v6502
    %v6636 = vmul.f32 %v6503, %v6503
    %v6637 = vmul.f32 %v6504, %v6504
    %v6638 = vmul.f32 %v6505, %v6505
    %v6639 = vmul.f32 %v6506, %v6506
    %v6640 = vmul.f32 %v6507, %v6507
    %v6641 = vmul.f32 %v6508, %v6508
    %v6642 = vmul.f32 %v6509, %v6509
    %v6643 = vmul.f32 %v6510, %v6510
    %v6644 = vmul.f32 %v6511, %v6511
    %v6645 = vmul.f32 %v6512, %v6512
    %v6646 = vmul.f32 %v6513, %v6513
    %v6647 = vmul.f32 %v6514, %v6514
    %v6648 = vmul.f32 %v6515, %v6515
    %v6649 = vmul.f32 %v6516, %v6516
    %v6650 = vmul.f32 %v6517, %v6517
    %v6651 = vmul.f32 %v6518, %v6518
    %v6652 = vmul.f32 %v6519, %v6519
    %v6653 = vmul.f32 %v6520, %v6520
    %v6654 = vmul.f32 %v6521, %v6521
    %v6655 = vmul.f32 %v6522, %v6522
    %v6656 = vmul.f32 %v6523, %v6523
    %v6657 = vmul.f32 %v6524, %v6524
    %v6658 = vmul.f32 %v6525, %v6525
    %v6659 = vmul.f32 %v6526, %v6526
    %v6660 = vmul.f32 %v6527, %v6527
    %v6661 = vmul.f32 %v6528, %v6528
    %v6662 = vmul.f32 %v6529, %v6529
    %v6663 = vmul.f32 %v6530, %v6530
    %v6664 = vmul.f32 %v6531, %v6531
    %v6665 = vmul.f32 %v6532, %v6532
    %v6666 = vmul.f32 %v6533, %v6533
    %v6667 = vmul.f32 %v6534, %v6534
    %v6668 = vmul.f32 %v6535, %v6535
    %v6669 = vmul.f32 %v6536, %v6536
    %v6670 = vmul.f32 %v6537, %v6537
    %v6671 = vmul.f32 %v6538, %v6538
    %v6672 = vmul.f32 %v6539, %v6539
    %v6673 = vmul.f32 %v6540, %v6540
    %v6674 = vmul.f32 %v6541, %v6541
    %v6675 = vmul.f32 %v6542, %v6542
    %v6676 = vmul.f32 %v6543, %v6543
    %v6677 = vmul.f32 %v6544, %v6544
    %v6678 = vmul.f32 %v6545, %v6545
    %v6679 = vmul.f32 %v6546, %v6546
    %v6680 = vmul.f32 %v6547, %v6547
    %v6681 = vadd.f32 %v6617, %v6618
    %v6682 = vadd.f32 %v6681, %v6619
    %v6683 = vadd.f32 %v6682, %v6620
    %v6684 = vadd.f32 %v6683, %v6621
    %v6685 = vadd.f32 %v6684, %v6622
    %v6686 = vadd.f32 %v6685, %v6623
    %v6687 = vadd.f32 %v6686, %v6624
    %v6688 = vadd.f32 %v6687, %v6625
    %v6689 = vadd.f32 %v6688, %v6626
    %v6690 = vadd.f32 %v6689, %v6627
    %v6691 = vadd.f32 %v6690, %v6628
    %v6692 = vadd.f32 %v6691, %v6629
    %v6693 = vadd.f32 %v6692, %v6630
    %v6694 = vadd.f32 %v6693, %v6631
    %v6695 = vadd.f32 %v6694, %v6632
    %v6696 = vadd.f32 %v6695, %v6633
    %v6697 = vadd.f32 %v6696, %v6634
    %v6698 = vadd.f32 %v6697, %v6635
    %v6699 = vadd.f32 %v6698, %v6636
    %v6700 = vadd.f32 %v6699, %v6637
    %v6701 = vadd.f32 %v6700, %v6638
    %v6702 = vadd.f32 %v6701, %v6639
    %v6703 = vadd.f32 %v6702, %v6640
    %v6704 = vadd.f32 %v6703, %v6641
    %v6705 = vadd.f32 %v6704, %v6642
    %v6706 = vadd.f32 %v6705, %v6643
    %v6707 = vadd.f32 %v6706, %v6644
    %v6708 = vadd.f32 %v6707, %v6645
    %v6709 = vadd.f32 %v6708, %v6646
    %v6710 = vadd.f32 %v6709, %v6647
    %v6711 = vadd.f32 %v6710, %v6648
    %v6712 = vadd.f32 %v6711, %v6649
    %v6713 = vadd.f32 %v6712, %v6650
    %v6714 = vadd.f32 %v6713, %v6651
    %v6715 = vadd.f32 %v6714, %v6652
    %v6716 = vadd.f32 %v6715, %v6653
    %v6717 = vadd.f32 %v6716, %v6654
    %v6718 = vadd.f32 %v6717, %v6655
    %v6719 = vadd.f32 %v6718, %v6656
    %v6720 = vadd.f32 %v6719, %v6657
    %v6721 = vadd.f32 %v6720, %v6658
    %v6722 = vadd.f32 %v6721, %v6659
    %v6723 = vadd.f32 %v6722, %v6660
    %v6724 = vadd.f32 %v6723, %v6661
    %v6725 = vadd.f32 %v6724, %v6662
    %v6726 = vadd.f32 %v6725, %v6663
    %v6727 = vadd.f32 %v6726, %v6664
    %v6728 = vadd.f32 %v6727, %v6665
    %v6729 = vadd.f32 %v6728, %v6666
    %v6730 = vadd.f32 %v6729, %v6667
    %v6731 = vadd.f32 %v6730, %v6668
    %v6732 = vadd.f32 %v6731, %v6669
    %v6733 = vadd.f32 %v6732, %v6670
    %v6734 = vadd.f32 %v6733, %v6671
    %v6735 = vadd.f32 %v6734, %v6672
    %v6736 = vadd.f32 %v6735, %v6673
    %v6737 = vadd.f32 %v6736, %v6674
    %v6738 = vadd.f32 %v6737, %v6675
    %v6739 = vadd.f32 %v6738, %v6676
    %v6740 = vadd.f32 %v6739, %v6677
    %v6741 = vadd.f32 %v6740, %v6678
    %v6742 = vadd.f32 %v6741, %v6679
    %v6743 = vadd.f32 %v6742, %v6680
    %v6744 = vrot.slane %v6743, 4
    %v6745 = vadd.f32 %v6743, %v6744
    %v6746 = vrot.slane %v6745, 2
    %v6747 = vadd.f32 %v6745, %v6746
    %v6748 = vrot.slane %v6747, 1
    %v6749 = vadd.f32 %v6747, %v6748
    %v6750 = vmul.f32 %v6616, 0.001953125
    %v6751 = vmul.f32 %v6749, 0.001953125
    %v6752 = vmul.f32 %v6750, %v6750
    %v6753 = vsub.f32 %v6751, %v6752
    %v6754 = vadd.f32 %v6753, 1e-05
    %v6755 = vrsqrt.pop %v6754
    %v6756 = vmul.f32 %v6755, %v3627
    %v6757 = vmul.f32 %v6750, %v6756
    %v6758 = vsub.f32 %v3628, %v6757
    %v6759 = vlaneseq
    %v6760 = vshrl.u32 %v6759, 7
    %v6761 = vsub.s32 0, %v6760
    %v6762 = vrot.slane %v6756, %v6761
    %v6763 = vmul.f32 %v6484, %v6762
    %v6764 = vmul.f32 %v6485, %v6762
    %v6765 = vmul.f32 %v6486, %v6762
    %v6766 = vmul.f32 %v6487, %v6762
    %v6767 = vmul.f32 %v6488, %v6762
    %v6768 = vmul.f32 %v6489, %v6762
    %v6769 = vmul.f32 %v6490, %v6762
    %v6770 = vmul.f32 %v6491, %v6762
    %v6771 = vmul.f32 %v6492, %v6762
    %v6772 = vmul.f32 %v6493, %v6762
    %v6773 = vmul.f32 %v6494, %v6762
    %v6774 = vmul.f32 %v6495, %v6762
    %v6775 = vmul.f32 %v6496, %v6762
    %v6776 = vmul.f32 %v6497, %v6762
    %v6777 = vmul.f32 %v6498, %v6762
    %v6778 = vmul.f32 %v6499, %v6762
    %v6779 = vmul.f32 %v6500, %v6762
    %v6780 = vmul.f32 %v6501, %v6762
    %v6781 = vmul.f32 %v6502, %v6762
    %v6782 = vmul.f32 %v6503, %v6762
    %v6783 = vmul.f32 %v6504, %v6762
    %v6784 = vmul.f32 %v6505, %v6762
    %v6785 = vmul.f32 %v6506, %v6762
    %v6786 = vmul.f32 %v6507, %v6762
    %v6787 = vmul.f32 %v6508, %v6762
    %v6788 = vmul.f32 %v6509, %v6762
    %v6789 = vmul.f32 %v6510, %v6762
    %v6790 = vmul.f32 %v6511, %v6762
    %v6791 = vmul.f32 %v6512, %v6762
    %v6792 = vmul.f32 %v6513, %v6762
    %v6793 = vmul.f32 %v6514, %v6762
    %v6794 = vmul.f32 %v6515, %v6762
    %v6795 = vmul.f32 %v6516, %v6762
    %v6796 = vmul.f32 %v6517, %v6762
    %v6797 = vmul.f32 %v6518, %v6762
    %v6798 = vmul.f32 %v6519, %v6762
    %v6799 = vmul.f32 %v6520, %v6762
    %v6800 = vmul.f32 %v6521, %v6762
    %v6801 = vmul.f32 %v6522, %v6762
    %v6802 = vmul.f32 %v6523, %v6762
    %v6803 = vmul.f32 %v6524, %v6762
    %v6804 = vmul.f32 %v6525, %v6762
    %v6805 = vmul.f32 %v6526, %v6762
    %v6806 = vmul.f32 %v6527, %v6762
    %v6807 = vmul.f32 %v6528, %v6762
    %v6808 = vmul.f32 %v6529, %v6762
    %v6809 = vmul.f32 %v6530, %v6762
    %v6810 = vmul.f32 %v6531, %v6762
    %v6811 = vmul.f32 %v6532, %v6762
    %v6812 = vmul.f32 %v6533, %v6762
    %v6813 = vmul.f32 %v6534, %v6762
    %v6814 = vmul.f32 %v6535, %v6762
    %v6815 = vmul.f32 %v6536, %v6762
    %v6816 = vmul.f32 %v6537, %v6762
    %v6817 = vmul.f32 %v6538, %v6762
    %v6818 = vmul.f32 %v6539, %v6762
    %v6819 = vmul.f32 %v6540, %v6762
    %v6820 = vmul.f32 %v6541, %v6762
    %v6821 = vmul.f32 %v6542, %v6762
    %v6822 = vmul.f32 %v6543, %v6762
    %v6823 = vmul.f32 %v6544, %v6762
    %v6824 = vmul.f32 %v6545, %v6762
    %v6825 = vmul.f32 %v6546, %v6762
    %v6826 = vmul.f32 %v6547, %v6762
    %v6828 = vlaneseq
    %v6829 = vshrl.u32 %v6828, 7
    %v6830 = vsub.s32 0, %v6829
    %v6831 = vrot.slane %v6758, %v6830
    %v6833 = vadd.f32 %v6763, %v6831
    %v6834 = vadd.f32 %v6764, %v6831
    %v6835 = vadd.f32 %v6765, %v6831
    %v6836 = vadd.f32 %v6766, %v6831
    %v6837 = vadd.f32 %v6767, %v6831
    %v6838 = vadd.f32 %v6768, %v6831
    %v6839 = vadd.f32 %v6769, %v6831
    %v6840 = vadd.f32 %v6770, %v6831
    %v6841 = vadd.f32 %v6771, %v6831
    %v6842 = vadd.f32 %v6772, %v6831
    %v6843 = vadd.f32 %v6773, %v6831
    %v6844 = vadd.f32 %v6774, %v6831
    %v6845 = vadd.f32 %v6775, %v6831
    %v6846 = vadd.f32 %v6776, %v6831
    %v6847 = vadd.f32 %v6777, %v6831
    %v6848 = vadd.f32 %v6778, %v6831
    %v6849 = vadd.f32 %v6779, %v6831
    %v6850 = vadd.f32 %v6780, %v6831
    %v6851 = vadd.f32 %v6781, %v6831
    %v6852 = vadd.f32 %v6782, %v6831
    %v6853 = vadd.f32 %v6783, %v6831
    %v6854 = vadd.f32 %v6784, %v6831
    %v6855 = vadd.f32 %v6785, %v6831
    %v6856 = vadd.f32 %v6786, %v6831
    %v6857 = vadd.f32 %v6787, %v6831
    %v6858 = vadd.f32 %v6788, %v6831
    %v6859 = vadd.f32 %v6789, %v6831
    %v6860 = vadd.f32 %v6790, %v6831
    %v6861 = vadd.f32 %v6791, %v6831
    %v6862 = vadd.f32 %v6792, %v6831
    %v6863 = vadd.f32 %v6793, %v6831
    %v6864 = vadd.f32 %v6794, %v6831
    %v6865 = vadd.f32 %v6795, %v6831
    %v6866 = vadd.f32 %v6796, %v6831
    %v6867 = vadd.f32 %v6797, %v6831
    %v6868 = vadd.f32 %v6798, %v6831
    %v6869 = vadd.f32 %v6799, %v6831
    %v6870 = vadd.f32 %v6800, %v6831
    %v6871 = vadd.f32 %v6801, %v6831
    %v6872 = vadd.f32 %v6802, %v6831
    %v6873 = vadd.f32 %v6803, %v6831
    %v6874 = vadd.f32 %v6804, %v6831
    %v6875 = vadd.f32 %v6805, %v6831
    %v6876 = vadd.f32 %v6806, %v6831
    %v6877 = vadd.f32 %v6807, %v6831
    %v6878 = vadd.f32 %v6808, %v6831
    %v6879 = vadd.f32 %v6809, %v6831
    %v6880 = vadd.f32 %v6810, %v6831
    %v6881 = vadd.f32 %v6811, %v6831
    %v6882 = vadd.f32 %v6812, %v6831
    %v6883 = vadd.f32 %v6813, %v6831
    %v6884 = vadd.f32 %v6814, %v6831
    %v6885 = vadd.f32 %v6815, %v6831
    %v6886 = vadd.f32 %v6816, %v6831
    %v6887 = vadd.f32 %v6817, %v6831
    %v6888 = vadd.f32 %v6818, %v6831
    %v6889 = vadd.f32 %v6819, %v6831
    %v6890 = vadd.f32 %v6820, %v6831
    %v6891 = vadd.f32 %v6821, %v6831
    %v6892 = vadd.f32 %v6822, %v6831
    %v6893 = vadd.f32 %v6823, %v6831
    %v6894 = vadd.f32 %v6824, %v6831
    %v6895 = vadd.f32 %v6825, %v6831
    %v6896 = vadd.f32 %v6826, %v6831
    %v6897 = vadd.f32 %v6833, %v75
    %v6898 = vadd.f32 %v6834, %v76
    %v6899 = vadd.f32 %v6835, %v77
    %v6900 = vadd.f32 %v6836, %v78
    %v6901 = vadd.f32 %v6837, %v79
    %v6902 = vadd.f32 %v6838, %v80
    %v6903 = vadd.f32 %v6839, %v81
    %v6904 = vadd.f32 %v6840, %v82
    %v6905 = vadd.f32 %v6841, %v83
    %v6906 = vadd.f32 %v6842, %v84
    %v6907 = vadd.f32 %v6843, %v85
    %v6908 = vadd.f32 %v6844, %v86
    %v6909 = vadd.f32 %v6845, %v87
    %v6910 = vadd.f32 %v6846, %v88
    %v6911 = vadd.f32 %v6847, %v89
    %v6912 = vadd.f32 %v6848, %v90
    %v6913 = vadd.f32 %v6849, %v91
    %v6914 = vadd.f32 %v6850, %v92
    %v6915 = vadd.f32 %v6851, %v93
    %v6916 = vadd.f32 %v6852, %v94
    %v6917 = vadd.f32 %v6853, %v95
    %v6918 = vadd.f32 %v6854, %v96
    %v6919 = vadd.f32 %v6855, %v97
    %v6920 = vadd.f32 %v6856, %v98
    %v6921 = vadd.f32 %v6857, %v99
    %v6922 = vadd.f32 %v6858, %v100
    %v6923 = vadd.f32 %v6859, %v101
    %v6924 = vadd.f32 %v6860, %v102
    %v6925 = vadd.f32 %v6861, %v103
    %v6926 = vadd.f32 %v6862, %v104
    %v6927 = vadd.f32 %v6863, %v105
    %v6928 = vadd.f32 %v6864, %v106
    %v6929 = vadd.f32 %v6865, %v107
    %v6930 = vadd.f32 %v6866, %v108
    %v6931 = vadd.f32 %v6867, %v109
    %v6932 = vadd.f32 %v6868, %v110
    %v6933 = vadd.f32 %v6869, %v111
    %v6934 = vadd.f32 %v6870, %v112
    %v6935 = vadd.f32 %v6871, %v113
    %v6936 = vadd.f32 %v6872, %v114
    %v6937 = vadd.f32 %v6873, %v115
    %v6938 = vadd.f32 %v6874, %v116
    %v6939 = vadd.f32 %v6875, %v117
    %v6940 = vadd.f32 %v6876, %v118
    %v6941 = vadd.f32 %v6877, %v119
    %v6942 = vadd.f32 %v6878, %v120
    %v6943 = vadd.f32 %v6879, %v121
    %v6944 = vadd.f32 %v6880, %v122
    %v6945 = vadd.f32 %v6881, %v123
    %v6946 = vadd.f32 %v6882, %v124
    %v6947 = vadd.f32 %v6883, %v125
    %v6948 = vadd.f32 %v6884, %v126
    %v6949 = vadd.f32 %v6885, %v127
    %v6950 = vadd.f32 %v6886, %v128
    %v6951 = vadd.f32 %v6887, %v129
    %v6952 = vadd.f32 %v6888, %v130
    %v6953 = vadd.f32 %v6889, %v131
    %v6954 = vadd.f32 %v6890, %v132
    %v6955 = vadd.f32 %v6891, %v133
    %v6956 = vadd.f32 %v6892, %v134
    %v6957 = vadd.f32 %v6893, %v135
    %v6958 = vadd.f32 %v6894, %v136
    %v6959 = vadd.f32 %v6895, %v137
    %v6960 = vadd.f32 %v6896, %v138
    %6961 = vst [vmem:[#allocation9] sm:$0xff] %v6897
    %6962 = vst [vmem:[#allocation9 + $0x8] sm:$0xff] %v6898
    %6963 = vst [vmem:[#allocation9 + $0x10] sm:$0xff] %v6899
    %6964 = vst [vmem:[#allocation9 + $0x18] sm:$0xff] %v6900
    %6965 = vst [vmem:[#allocation9 + $0x20] sm:$0xff] %v6901
    %6966 = vst [vmem:[#allocation9 + $0x28] sm:$0xff] %v6902
    %6967 = vst [vmem:[#allocation9 + $0x30] sm:$0xff] %v6903
    %6968 = vst [vmem:[#allocation9 + $0x38] sm:$0xff] %v6904
    %6969 = vst [vmem:[#allocation9 + $0x40] sm:$0xff] %v6905
    %6970 = vst [vmem:[#allocation9 + $0x48] sm:$0xff] %v6906
    %6971 = vst [vmem:[#allocation9 + $0x50] sm:$0xff] %v6907
    %6972 = vst [vmem:[#allocation9 + $0x58] sm:$0xff] %v6908
    %6973 = vst [vmem:[#allocation9 + $0x60] sm:$0xff] %v6909
    %6974 = vst [vmem:[#allocation9 + $0x68] sm:$0xff] %v6910
    %6975 = vst [vmem:[#allocation9 + $0x70] sm:$0xff] %v6911
    %6976 = vst [vmem:[#allocation9 + $0x78] sm:$0xff] %v6912
    %6977 = vst [vmem:[#allocation9 + $0x80] sm:$0xff] %v6913
    %6978 = vst [vmem:[#allocation9 + $0x88] sm:$0xff] %v6914
    %6979 = vst [vmem:[#allocation9 + $0x90] sm:$0xff] %v6915
    %6980 = vst [vmem:[#allocation9 + $0x98] sm:$0xff] %v6916
    %6981 = vst [vmem:[#allocation9 + $0xa0] sm:$0xff] %v6917
    %6982 = vst [vmem:[#allocation9 + $0xa8] sm:$0xff] %v6918
    %6983 = vst [vmem:[#allocation9 + $0xb0] sm:$0xff] %v6919
    %6984 = vst [vmem:[#allocation9 + $0xb8] sm:$0xff] %v6920
    %6985 = vst [vmem:[#allocation9 + $0xc0] sm:$0xff] %v6921
    %6986 = vst [vmem:[#allocation9 + $0xc8] sm:$0xff] %v6922
    %6987 = vst [vmem:[#allocation9 + $0xd0] sm:$0xff] %v6923
    %6988 = vst [vmem:[#allocation9 + $0xd8] sm:$0xff] %v6924
    %6989 = vst [vmem:[#allocation9 + $0xe0] sm:$0xff] %v6925
    %6990 = vst [vmem:[#allocation9 + $0xe8] sm:$0xff] %v6926
    %6991 = vst [vmem:[#allocation9 + $0xf0] sm:$0xff] %v6927
    %6992 = vst [vmem:[#allocation9 + $0xf8] sm:$0xff] %v6928
    %6993 = vst [vmem:[#allocation9 + $0x100] sm:$0xff] %v6929
    %6994 = vst [vmem:[#allocation9 + $0x108] sm:$0xff] %v6930
    %6995 = vst [vmem:[#allocation9 + $0x110] sm:$0xff] %v6931
    %6996 = vst [vmem:[#allocation9 + $0x118] sm:$0xff] %v6932
    %6997 = vst [vmem:[#allocation9 + $0x120] sm:$0xff] %v6933
    %6998 = vst [vmem:[#allocation9 + $0x128] sm:$0xff] %v6934
    %6999 = vst [vmem:[#allocation9 + $0x130] sm:$0xff] %v6935
    %7000 = vst [vmem:[#allocation9 + $0x138] sm:$0xff] %v6936
    %7001 = vst [vmem:[#allocation9 + $0x140] sm:$0xff] %v6937
    %7002 = vst [vmem:[#allocation9 + $0x148] sm:$0xff] %v6938
    %7003 = vst [vmem:[#allocation9 + $0x150] sm:$0xff] %v6939
    %7004 = vst [vmem:[#allocation9 + $0x158] sm:$0xff] %v6940
    %7005 = vst [vmem:[#allocation9 + $0x160] sm:$0xff] %v6941
    %7006 = vst [vmem:[#allocation9 + $0x168] sm:$0xff] %v6942
    %7007 = vst [vmem:[#allocation9 + $0x170] sm:$0xff] %v6943
    %7008 = vst [vmem:[#allocation9 + $0x178] sm:$0xff] %v6944
    %7009 = vst [vmem:[#allocation9 + $0x180] sm:$0xff] %v6945
    %7010 = vst [vmem:[#allocation9 + $0x188] sm:$0xff] %v6946
    %7011 = vst [vmem:[#allocation9 + $0x190] sm:$0xff] %v6947
    %7012 = vst [vmem:[#allocation9 + $0x198] sm:$0xff] %v6948
    %7013 = vst [vmem:[#allocation9 + $0x1a0] sm:$0xff] %v6949
    %7014 = vst [vmem:[#allocation9 + $0x1a8] sm:$0xff] %v6950
    %7015 = vst [vmem:[#allocation9 + $0x1b0] sm:$0xff] %v6951
    %7016 = vst [vmem:[#allocation9 + $0x1b8] sm:$0xff] %v6952
    %7017 = vst [vmem:[#allocation9 + $0x1c0] sm:$0xff] %v6953
    %7018 = vst [vmem:[#allocation9 + $0x1c8] sm:$0xff] %v6954
    %7019 = vst [vmem:[#allocation9 + $0x1d0] sm:$0xff] %v6955
    %7020 = vst [vmem:[#allocation9 + $0x1d8] sm:$0xff] %v6956
    %7021 = vst [vmem:[#allocation9 + $0x1e0] sm:$0xff] %v6957
    %7022 = vst [vmem:[#allocation9 + $0x1e8] sm:$0xff] %v6958
    %7023 = vst [vmem:[#allocation9 + $0x1f0] sm:$0xff] %v6959
    %7024 = vst [vmem:[#allocation9 + $0x1f8] sm:$0xff] %v6960
    // Predicated region
    $region50: #{tpu_custom_call.1} parent=1 // pred_check
      _
    $region51: #{tpu_custom_call.1} parent=1 // pred_check_branch
      %7026 = sbr.rel (0) target = $region53
    $region52: #{tpu_custom_call.1} parent=1 // pred_region
      %s7028 = ssub.s32 8192, 8192
      %7029 = vsyncadd [#allocation5], %s7028
      %s7030 = sshll.u32 [#allocation9], 4
      %s7031 = int_to_ptr.vmem [resolvable:$true] %s7030
      %7036 = dma.vmem_to_hbm [thread:$0]  %s7031, 8192, %s9, [#allocation5], 128, 128, 8
    $region53: #{tpu_custom_call.1} parent=1 // pred_fallthru
      _
    // Predicated region
    $region54: #{tpu_custom_call.1} parent=1 // pred_check
      _
    $region55: #{tpu_custom_call.1} parent=1 // pred_check_branch
      %7038 = sbr.rel (0) target = $region57
    $region56: #{tpu_custom_call.1} parent=1 // pred_region
      %7039 = dma.done [#allocation5], 8192
    $region57: #{tpu_custom_call.1} parent=1 // pred_fallthru
      _
    %7040 = vsyncpa [#allocation4], 1
    %7041 = vsyncpa [#allocation7], 1
    %7042 = vsyncpa [#allocation5], 1

</llo_original>
